<compile_context>
chip_gen: v6e
topology: v6e:2x2x1
jax: 0.10.0
libtpu: 0.0.40
codegen_flags: <defaults>
</compile_context>

<pallas_src>
import jax
import jax.numpy as jnp
from jax.experimental import pallas as pl
from jax.experimental.pallas import tpu as pltpu

D = 8
W = 256
W_HALF = W // 2        # 128
INPUT_CH = 3
INPUT_CH_VIEWS = 3
SKIP = 4               # skips=[4]
PAD = 128              # lane padding for the 4-channel (rgb+alpha) output
IN_LANES = 8           # pts (3) + views (3), padded to 8 lanes
TILE_MAX = 1024        # max rows per grid step


def nerf_kernel(xin_ref, w0_ref, b0_ref, wmid_ref, bmid_ref, w5p_ref,
                wf_ref, bf_ref, wa_ref, wvf_ref, wvv_ref, bv_ref,
                wrgb_ref, brgba_ref, out_ref):
    f32 = jnp.float32
    bf16 = jnp.bfloat16
    xin = xin_ref[...]                 # (TILE, 8) f32: lanes 0-2 pts, 3-5 views

    def rank1(w_ref, lane0):
        # 3-input "matmul" as VPU FMAs; avoids a K-padded (3 -> 128) MXU pass.
        acc = xin[:, lane0:lane0 + 1] * w_ref[0:1, :]
        for k in range(1, INPUT_CH):
            acc = acc + xin[:, lane0 + k:lane0 + k + 1] * w_ref[k:k + 1, :]
        return acc

    # pts_linears[0]: input_pts(3) -> W
    h = jnp.maximum(rank1(w0_ref, 0) + b0_ref[...], 0.0)

    # pts_linears[1 .. D-1]; skip concat feeds layer SKIP+1
    for li in range(1, D):
        z = jnp.dot(h.astype(bf16), wmid_ref[li - 1],
                    preferred_element_type=f32) + bmid_ref[li - 1]
        if li == SKIP + 1:
            # cat([input_pts, h]) @ W  ==  h @ W[3:, :] + input_pts @ W[:3, :]
            z = z + rank1(w5p_ref, 0)
        h = jnp.maximum(z, 0.0)

    hb = h.astype(bf16)
    # use_viewdirs heads: alpha weights live in output column 3 of wa
    alpha_full = jnp.dot(hb, wa_ref[...], preferred_element_type=f32)             # (TILE,128)
    feature = jnp.dot(hb, wf_ref[...], preferred_element_type=f32) + bf_ref[...]  # (TILE,256)
    # views_linears[0]: cat([feature, input_views]) @ W
    hv = jnp.maximum(
        jnp.dot(feature.astype(bf16), wvf_ref[...], preferred_element_type=f32)
        + rank1(wvv_ref, INPUT_CH) + bv_ref[...], 0.0)                            # (TILE,128)
    rgb_full = jnp.dot(hv.astype(bf16), wrgb_ref[...], preferred_element_type=f32)
    # rgb in cols 0-2, alpha in col 3, merged bias — no iota/select needed
    out_ref[...] = rgb_full + alpha_full + brgba_ref[...]


def init_params(key):
    """Deterministic synthetic weights, PyTorch-Linear-like uniform init, stored [in, out]."""
    def lin(k, fan_in, fan_out):
        k1, k2 = jax.random.split(k)
        bound = 1.0 / jnp.sqrt(fan_in)
        w = jax.random.uniform(k1, (fan_in, fan_out), jnp.float32, -bound, bound)
        b = jax.random.uniform(k2, (fan_out,), jnp.float32, -bound, bound)
        return w, b

    keys = jax.random.split(key, D + 4)
    pts_w, pts_b = [], []
    w, b = lin(keys[0], INPUT_CH, W)
    pts_w.append(w); pts_b.append(b)
    for i in range(D - 1):
        fan_in = W + INPUT_CH if i == SKIP else W   # ModuleList index i+1
        w, b = lin(keys[i + 1], fan_in, W)
        pts_w.append(w); pts_b.append(b)
    wf, bf = lin(keys[D], W, W)                         # feature_linear
    wa, ba = lin(keys[D + 1], W, 1)                     # alpha_linear
    wv, bv = lin(keys[D + 2], W + INPUT_CH_VIEWS, W_HALF)   # views_linears[0]
    wrgb, brgb = lin(keys[D + 3], W_HALF, 3)            # rgb_linear
    return dict(pts_w=pts_w, pts_b=pts_b, wf=wf, bf=bf, wa=wa, ba=ba,
                wv=wv, bv=bv, wrgb=wrgb, brgb=brgb)


def pack_params(p):
    """Pad/split raw weights into the kernel layout. Call ONCE (hoisted off the hot path)."""
    f32, bf16 = jnp.float32, jnp.bfloat16

    # layer 0 (rank-1 in-kernel): rows 0-2 = pts weights
    w0 = jnp.zeros((IN_LANES, W), f32).at[:INPUT_CH].set(p["pts_w"][0])
    b0 = p["pts_b"][0].reshape(1, W).astype(f32)

    wmid, bmid = [], []
    w5p = None
    for li in range(1, D):
        w = p["pts_w"][li]
        if li == SKIP + 1:
            # concat order is [input_pts, h]: rows 0-2 are the pts part
            w5p = jnp.zeros((IN_LANES, W), f32).at[:INPUT_CH].set(w[:INPUT_CH])
            wmid.append(w[INPUT_CH:])
        else:
            wmid.append(w)
        bmid.append(p["pts_b"][li])
    if w5p is None:                          # guard: config without a skip layer
        w5p = jnp.zeros((IN_LANES, W), f32)
    wmid = jnp.stack(wmid).astype(bf16)                  # (D-1, W, W) bf16
    bmid = jnp.stack(bmid).reshape(D - 1, 1, W).astype(f32)

    wf = p["wf"].astype(bf16)
    bf = p["bf"].reshape(1, W).astype(f32)
    wa = jnp.zeros((W, PAD), f32).at[:, 3:4].set(p["wa"]).astype(bf16)   # alpha -> col 3
    wvf = p["wv"][:W].astype(bf16)                       # (W, 128) feature part
    wvv = jnp.zeros((IN_LANES, W_HALF), f32).at[:INPUT_CH_VIEWS].set(p["wv"][W:])
    bv = p["bv"].reshape(1, W_HALF).astype(f32)
    wrgb = jnp.zeros((W_HALF, PAD), f32).at[:, :3].set(p["wrgb"]).astype(bf16)
    brgba = (jnp.zeros((1, PAD), f32).at[0, :3].set(p["brgb"])
             .at[0, 3].set(p["ba"][0]))                  # rgb bias cols 0-2, alpha bias col 3

    return (w0, b0, wmid, bmid, w5p, wf, bf, wa, wvf, wvv, bv, wrgb, brgba)


def _pick_tile(n):
    return int(min(TILE_MAX, max(128, pl.next_power_of_2(int(n)))))


def nerf_forward_pallas(x, packed):
    """x: (N, 6) = [pts(3), views(3)]. packed: pack_params(...) output. Returns (N, 4)."""
    N = x.shape[0]
    tile = _pick_tile(N)
    n_pad = pl.cdiv(N, tile) * tile

    # single small input stream: lanes 0-2 pts, 3-5 views, 6-7 zero
    xin = jnp.zeros((n_pad, IN_LANES), jnp.float32)
    xin = xin.at[:N, :INPUT_CH + INPUT_CH_VIEWS].set(
        x[:, :INPUT_CH + INPUT_CH_VIEWS].astype(jnp.float32))

    def full(shape):
        return pl.BlockSpec(shape, lambda n, _nd=len(shape): (0,) * _nd)

    out_pad = pl.pallas_call(
        nerf_kernel,
        out_shape=jax.ShapeDtypeStruct((n_pad, PAD), jnp.float32),
        grid_spec=pltpu.PrefetchScalarGridSpec(
            num_scalar_prefetch=0,
            grid=(n_pad // tile,),
            in_specs=[
                pl.BlockSpec((tile, IN_LANES), lambda n: (n, 0)),   # pts+views
                full((IN_LANES, W)), full((1, W)),                  # layer 0 (rank-1) + bias
                full((D - 1, W, W)), full((D - 1, 1, W)),           # layers 1..7 (h part)
                full((IN_LANES, W)),                                # layer 5 pts part (rank-1)
                full((W, W)), full((1, W)),                         # feature_linear
                full((W, PAD)),                                     # alpha_linear -> col 3
                full((W, W_HALF)), full((IN_LANES, W_HALF)), full((1, W_HALF)),  # views_linears[0]
                full((W_HALF, PAD)), full((1, PAD)),                # rgb_linear + merged bias
            ],
            out_specs=pl.BlockSpec((tile, PAD), lambda n: (n, 0)),
        ),
        compiler_params=pltpu.CompilerParams(
            dimension_semantics=("parallel",),        # row tiles are independent -> v7x megacore
            vmem_limit_bytes=32 * 1024 * 1024),       # covers v5e's 16 MiB scoped default
    )(xin, *packed)

    return out_pad[:N, :4]    # [rgb (3), alpha (1)]


def nerf_reference(x, p):
    """Pure-JAX f32 reference matching the PyTorch forward exactly (use_viewdirs=True)."""
    input_pts = x[:, :INPUT_CH]
    input_views = x[:, INPUT_CH:INPUT_CH + INPUT_CH_VIEWS]
    h = input_pts
    for i in range(D):
        h = jnp.maximum(h @ p["pts_w"][i] + p["pts_b"][i], 0.0)
        if i == SKIP:
            h = jnp.concatenate([input_pts, h], axis=-1)
    alpha = h @ p["wa"] + p["ba"]
    feature = h @ p["wf"] + p["bf"]
    hv = jnp.concatenate([feature, input_views], axis=-1)
    hv = jnp.maximum(hv @ p["wv"] + p["bv"], 0.0)
    rgb = hv @ p["wrgb"] + p["brgb"]
    return jnp.concatenate([rgb, alpha], axis=-1)


if __name__ == "__main__":
    key = jax.random.PRNGKey(0)
    k_param, k_x = jax.random.split(key)
    params = init_params(k_param)
    packed = pack_params(params)          # hoisted: packed exactly once

    N = 256                               # small test; production N would be >= 64K rays
    x = jax.random.normal(k_x, (N, INPUT_CH + INPUT_CH_VIEWS), jnp.float32)

    fwd = jax.jit(nerf_forward_pallas)
    out = jax.block_until_ready(fwd(x, packed))

    ref = nerf_reference(x, params)
    assert out.shape == (N, 4), f"bad output shape {out.shape}"
    max_err = jnp.max(jnp.abs(out - ref))
    # bf16 MXU operands with f32 accumulation: a couple of per-mille of drift
    # over the 10-matmul chain is expected; keep a meaningful tolerance.
    assert jnp.allclose(out, ref, rtol=2e-2, atol=2e-2), f"max abs err {max_err}"

    print("KERNEL_OK")
</pallas_src>

<mosaic_0001>
module attributes {stable_mosaic.version = 11 : i64} {
  func.func @nerf_kernel(%arg0: i32, %arg1: memref<256x8xf32, #tpu.memory_space<vmem>>, %arg2: memref<8x256xf32, #tpu.memory_space<vmem>>, %arg3: memref<1x256xf32, #tpu.memory_space<vmem>>, %arg4: memref<7x256x256xbf16, #tpu.memory_space<vmem>>, %arg5: memref<7x1x256xf32, #tpu.memory_space<vmem>>, %arg6: memref<8x256xf32, #tpu.memory_space<vmem>>, %arg7: memref<256x256xbf16, #tpu.memory_space<vmem>>, %arg8: memref<1x256xf32, #tpu.memory_space<vmem>>, %arg9: memref<256x128xbf16, #tpu.memory_space<vmem>>, %arg10: memref<256x128xbf16, #tpu.memory_space<vmem>>, %arg11: memref<8x128xf32, #tpu.memory_space<vmem>>, %arg12: memref<1x128xf32, #tpu.memory_space<vmem>>, %arg13: memref<128x128xbf16, #tpu.memory_space<vmem>>, %arg14: memref<1x128xf32, #tpu.memory_space<vmem>>, %arg15: memref<256x128xf32, #tpu.memory_space<vmem>>) attributes {dimension_semantics = [#tpu.dimension_semantics<parallel>], iteration_bounds = array<i64: 1>, scalar_prefetch = 0 : i64, scratch_operands = 0 : i64, tpu.core_type = #tpu.core_type<tc>, window_params = [{transform_indices = @transform_0, window_bounds = array<i64: 256, 8>}, {pipeline_mode = #tpu.pipeline_mode<synchronous>, transform_indices = @transform_1, window_bounds = array<i64: 8, 256>}, {pipeline_mode = #tpu.pipeline_mode<synchronous>, transform_indices = @transform_2, window_bounds = array<i64: 1, 256>}, {pipeline_mode = #tpu.pipeline_mode<synchronous>, transform_indices = @transform_3, window_bounds = array<i64: 7, 256, 256>}, {pipeline_mode = #tpu.pipeline_mode<synchronous>, transform_indices = @transform_4, window_bounds = array<i64: 7, 1, 256>}, {pipeline_mode = #tpu.pipeline_mode<synchronous>, transform_indices = @transform_5, window_bounds = array<i64: 8, 256>}, {pipeline_mode = #tpu.pipeline_mode<synchronous>, transform_indices = @transform_6, window_bounds = array<i64: 256, 256>}, {pipeline_mode = #tpu.pipeline_mode<synchronous>, transform_indices = @transform_7, window_bounds = array<i64: 1, 256>}, {pipeline_mode = #tpu.pipeline_mode<synchronous>, transform_indices = @transform_8, window_bounds = array<i64: 256, 128>}, {pipeline_mode = #tpu.pipeline_mode<synchronous>, transform_indices = @transform_9, window_bounds = array<i64: 256, 128>}, {pipeline_mode = #tpu.pipeline_mode<synchronous>, transform_indices = @transform_10, window_bounds = array<i64: 8, 128>}, {pipeline_mode = #tpu.pipeline_mode<synchronous>, transform_indices = @transform_11, window_bounds = array<i64: 1, 128>}, {pipeline_mode = #tpu.pipeline_mode<synchronous>, transform_indices = @transform_12, window_bounds = array<i64: 128, 128>}, {pipeline_mode = #tpu.pipeline_mode<synchronous>, transform_indices = @transform_13, window_bounds = array<i64: 1, 128>}, {transform_indices = @transform_14, window_bounds = array<i64: 256, 128>}]} {
    %c0 = arith.constant 0 : index
    %c0_0 = arith.constant 0 : index
    %0 = vector.load %arg1[%c0, %c0_0] : memref<256x8xf32, #tpu.memory_space<vmem>>, vector<256x8xf32>
    %1 = vector.extract_strided_slice %0 {offsets = [0, 0], sizes = [256, 1], strides = [1, 1]} : vector<256x8xf32> to vector<256x1xf32>
    %c0_1 = arith.constant 0 : index
    %c0_2 = arith.constant 0 : index
    %2 = vector.load %arg2[%c0_1, %c0_2] : memref<8x256xf32, #tpu.memory_space<vmem>>, vector<1x256xf32>
    %3 = vector.broadcast %1 : vector<256x1xf32> to vector<256x256xf32>
    %4 = vector.broadcast %2 : vector<1x256xf32> to vector<256x256xf32>
    %5 = arith.mulf %3, %4 : vector<256x256xf32>
    %6 = vector.extract_strided_slice %0 {offsets = [0, 1], sizes = [256, 1], strides = [1, 1]} : vector<256x8xf32> to vector<256x1xf32>
    %c1 = arith.constant 1 : index
    %c0_3 = arith.constant 0 : index
    %7 = vector.load %arg2[%c1, %c0_3] : memref<8x256xf32, #tpu.memory_space<vmem>>, vector<1x256xf32>
    %8 = vector.broadcast %6 : vector<256x1xf32> to vector<256x256xf32>
    %9 = vector.broadcast %7 : vector<1x256xf32> to vector<256x256xf32>
    %10 = arith.mulf %8, %9 : vector<256x256xf32>
    %11 = arith.addf %5, %10 : vector<256x256xf32>
    %12 = vector.extract_strided_slice %0 {offsets = [0, 2], sizes = [256, 1], strides = [1, 1]} : vector<256x8xf32> to vector<256x1xf32>
    %c2 = arith.constant 2 : index
    %c0_4 = arith.constant 0 : index
    %13 = vector.load %arg2[%c2, %c0_4] : memref<8x256xf32, #tpu.memory_space<vmem>>, vector<1x256xf32>
    %14 = vector.broadcast %12 : vector<256x1xf32> to vector<256x256xf32>
    %15 = vector.broadcast %13 : vector<1x256xf32> to vector<256x256xf32>
    %16 = arith.mulf %14, %15 : vector<256x256xf32>
    %17 = arith.addf %11, %16 : vector<256x256xf32>
    %c0_5 = arith.constant 0 : index
    %c0_6 = arith.constant 0 : index
    %18 = vector.load %arg3[%c0_5, %c0_6] : memref<1x256xf32, #tpu.memory_space<vmem>>, vector<1x256xf32>
    %19 = vector.broadcast %18 : vector<1x256xf32> to vector<256x256xf32>
    %20 = arith.addf %17, %19 : vector<256x256xf32>
    %cst = arith.constant 0.000000e+00 : f32
    %21 = vector.broadcast %cst : f32 to vector<256x256xf32>
    %22 = arith.maximumf %20, %21 : vector<256x256xf32>
    %23 = arith.truncf %22 : vector<256x256xf32> to vector<256x256xbf16>
    %c0_7 = arith.constant 0 : index
    %c0_8 = arith.constant 0 : index
    %c0_9 = arith.constant 0 : index
    %24 = vector.load %arg4[%c0_7, %c0_8, %c0_9] : memref<7x256x256xbf16, #tpu.memory_space<vmem>>, vector<1x256x256xbf16>
    %25 = vector.shape_cast %24 : vector<1x256x256xbf16> to vector<256x256xbf16>
    %cst_10 = arith.constant dense<0.000000e+00> : vector<256x256xf32>
    %26 = tpu.matmul %23, %25, %cst_10 {dimension_numbers = #tpu.dot_dimension_numbers<[1], [0], [0], [1], [0, 0, 1, 1], [], []>} : vector<256x256xbf16>, vector<256x256xbf16>, vector<256x256xf32> -> vector<256x256xf32>
    %c0_11 = arith.constant 0 : index
    %c0_12 = arith.constant 0 : index
    %c0_13 = arith.constant 0 : index
    %27 = vector.load %arg5[%c0_11, %c0_12, %c0_13] : memref<7x1x256xf32, #tpu.memory_space<vmem>>, vector<1x1x256xf32>
    %28 = vector.shape_cast %27 : vector<1x1x256xf32> to vector<1x256xf32>
    %29 = vector.broadcast %28 : vector<1x256xf32> to vector<256x256xf32>
    %30 = arith.addf %26, %29 : vector<256x256xf32>
    %cst_14 = arith.constant 0.000000e+00 : f32
    %31 = vector.broadcast %cst_14 : f32 to vector<256x256xf32>
    %32 = arith.maximumf %30, %31 : vector<256x256xf32>
    %33 = arith.truncf %32 : vector<256x256xf32> to vector<256x256xbf16>
    %c1_15 = arith.constant 1 : index
    %c0_16 = arith.constant 0 : index
    %c0_17 = arith.constant 0 : index
    %34 = vector.load %arg4[%c1_15, %c0_16, %c0_17] : memref<7x256x256xbf16, #tpu.memory_space<vmem>>, vector<1x256x256xbf16>
    %35 = vector.shape_cast %34 : vector<1x256x256xbf16> to vector<256x256xbf16>
    %cst_18 = arith.constant dense<0.000000e+00> : vector<256x256xf32>
    %36 = tpu.matmul %33, %35, %cst_18 {dimension_numbers = #tpu.dot_dimension_numbers<[1], [0], [0], [1], [0, 0, 1, 1], [], []>} : vector<256x256xbf16>, vector<256x256xbf16>, vector<256x256xf32> -> vector<256x256xf32>
    %c1_19 = arith.constant 1 : index
    %c0_20 = arith.constant 0 : index
    %c0_21 = arith.constant 0 : index
    %37 = vector.load %arg5[%c1_19, %c0_20, %c0_21] : memref<7x1x256xf32, #tpu.memory_space<vmem>>, vector<1x1x256xf32>
    %38 = vector.shape_cast %37 : vector<1x1x256xf32> to vector<1x256xf32>
    %39 = vector.broadcast %38 : vector<1x256xf32> to vector<256x256xf32>
    %40 = arith.addf %36, %39 : vector<256x256xf32>
    %cst_22 = arith.constant 0.000000e+00 : f32
    %41 = vector.broadcast %cst_22 : f32 to vector<256x256xf32>
    %42 = arith.maximumf %40, %41 : vector<256x256xf32>
    %43 = arith.truncf %42 : vector<256x256xf32> to vector<256x256xbf16>
    %c2_23 = arith.constant 2 : index
    %c0_24 = arith.constant 0 : index
    %c0_25 = arith.constant 0 : index
    %44 = vector.load %arg4[%c2_23, %c0_24, %c0_25] : memref<7x256x256xbf16, #tpu.memory_space<vmem>>, vector<1x256x256xbf16>
    %45 = vector.shape_cast %44 : vector<1x256x256xbf16> to vector<256x256xbf16>
    %cst_26 = arith.constant dense<0.000000e+00> : vector<256x256xf32>
    %46 = tpu.matmul %43, %45, %cst_26 {dimension_numbers = #tpu.dot_dimension_numbers<[1], [0], [0], [1], [0, 0, 1, 1], [], []>} : vector<256x256xbf16>, vector<256x256xbf16>, vector<256x256xf32> -> vector<256x256xf32>
    %c2_27 = arith.constant 2 : index
    %c0_28 = arith.constant 0 : index
    %c0_29 = arith.constant 0 : index
    %47 = vector.load %arg5[%c2_27, %c0_28, %c0_29] : memref<7x1x256xf32, #tpu.memory_space<vmem>>, vector<1x1x256xf32>
    %48 = vector.shape_cast %47 : vector<1x1x256xf32> to vector<1x256xf32>
    %49 = vector.broadcast %48 : vector<1x256xf32> to vector<256x256xf32>
    %50 = arith.addf %46, %49 : vector<256x256xf32>
    %cst_30 = arith.constant 0.000000e+00 : f32
    %51 = vector.broadcast %cst_30 : f32 to vector<256x256xf32>
    %52 = arith.maximumf %50, %51 : vector<256x256xf32>
    %53 = arith.truncf %52 : vector<256x256xf32> to vector<256x256xbf16>
    %c3 = arith.constant 3 : index
    %c0_31 = arith.constant 0 : index
    %c0_32 = arith.constant 0 : index
    %54 = vector.load %arg4[%c3, %c0_31, %c0_32] : memref<7x256x256xbf16, #tpu.memory_space<vmem>>, vector<1x256x256xbf16>
    %55 = vector.shape_cast %54 : vector<1x256x256xbf16> to vector<256x256xbf16>
    %cst_33 = arith.constant dense<0.000000e+00> : vector<256x256xf32>
    %56 = tpu.matmul %53, %55, %cst_33 {dimension_numbers = #tpu.dot_dimension_numbers<[1], [0], [0], [1], [0, 0, 1, 1], [], []>} : vector<256x256xbf16>, vector<256x256xbf16>, vector<256x256xf32> -> vector<256x256xf32>
    %c3_34 = arith.constant 3 : index
    %c0_35 = arith.constant 0 : index
    %c0_36 = arith.constant 0 : index
    %57 = vector.load %arg5[%c3_34, %c0_35, %c0_36] : memref<7x1x256xf32, #tpu.memory_space<vmem>>, vector<1x1x256xf32>
    %58 = vector.shape_cast %57 : vector<1x1x256xf32> to vector<1x256xf32>
    %59 = vector.broadcast %58 : vector<1x256xf32> to vector<256x256xf32>
    %60 = arith.addf %56, %59 : vector<256x256xf32>
    %cst_37 = arith.constant 0.000000e+00 : f32
    %61 = vector.broadcast %cst_37 : f32 to vector<256x256xf32>
    %62 = arith.maximumf %60, %61 : vector<256x256xf32>
    %63 = arith.truncf %62 : vector<256x256xf32> to vector<256x256xbf16>
    %c4 = arith.constant 4 : index
    %c0_38 = arith.constant 0 : index
    %c0_39 = arith.constant 0 : index
    %64 = vector.load %arg4[%c4, %c0_38, %c0_39] : memref<7x256x256xbf16, #tpu.memory_space<vmem>>, vector<1x256x256xbf16>
    %65 = vector.shape_cast %64 : vector<1x256x256xbf16> to vector<256x256xbf16>
    %cst_40 = arith.constant dense<0.000000e+00> : vector<256x256xf32>
    %66 = tpu.matmul %63, %65, %cst_40 {dimension_numbers = #tpu.dot_dimension_numbers<[1], [0], [0], [1], [0, 0, 1, 1], [], []>} : vector<256x256xbf16>, vector<256x256xbf16>, vector<256x256xf32> -> vector<256x256xf32>
    %c4_41 = arith.constant 4 : index
    %c0_42 = arith.constant 0 : index
    %c0_43 = arith.constant 0 : index
    %67 = vector.load %arg5[%c4_41, %c0_42, %c0_43] : memref<7x1x256xf32, #tpu.memory_space<vmem>>, vector<1x1x256xf32>
    %68 = vector.shape_cast %67 : vector<1x1x256xf32> to vector<1x256xf32>
    %69 = vector.broadcast %68 : vector<1x256xf32> to vector<256x256xf32>
    %70 = arith.addf %66, %69 : vector<256x256xf32>
    %71 = vector.extract_strided_slice %0 {offsets = [0, 0], sizes = [256, 1], strides = [1, 1]} : vector<256x8xf32> to vector<256x1xf32>
    %c0_44 = arith.constant 0 : index
    %c0_45 = arith.constant 0 : index
    %72 = vector.load %arg6[%c0_44, %c0_45] : memref<8x256xf32, #tpu.memory_space<vmem>>, vector<1x256xf32>
    %73 = vector.broadcast %71 : vector<256x1xf32> to vector<256x256xf32>
    %74 = vector.broadcast %72 : vector<1x256xf32> to vector<256x256xf32>
    %75 = arith.mulf %73, %74 : vector<256x256xf32>
    %76 = vector.extract_strided_slice %0 {offsets = [0, 1], sizes = [256, 1], strides = [1, 1]} : vector<256x8xf32> to vector<256x1xf32>
    %c1_46 = arith.constant 1 : index
    %c0_47 = arith.constant 0 : index
    %77 = vector.load %arg6[%c1_46, %c0_47] : memref<8x256xf32, #tpu.memory_space<vmem>>, vector<1x256xf32>
    %78 = vector.broadcast %76 : vector<256x1xf32> to vector<256x256xf32>
    %79 = vector.broadcast %77 : vector<1x256xf32> to vector<256x256xf32>
    %80 = arith.mulf %78, %79 : vector<256x256xf32>
    %81 = arith.addf %75, %80 : vector<256x256xf32>
    %82 = vector.extract_strided_slice %0 {offsets = [0, 2], sizes = [256, 1], strides = [1, 1]} : vector<256x8xf32> to vector<256x1xf32>
    %c2_48 = arith.constant 2 : index
    %c0_49 = arith.constant 0 : index
    %83 = vector.load %arg6[%c2_48, %c0_49] : memref<8x256xf32, #tpu.memory_space<vmem>>, vector<1x256xf32>
    %84 = vector.broadcast %82 : vector<256x1xf32> to vector<256x256xf32>
    %85 = vector.broadcast %83 : vector<1x256xf32> to vector<256x256xf32>
    %86 = arith.mulf %84, %85 : vector<256x256xf32>
    %87 = arith.addf %81, %86 : vector<256x256xf32>
    %88 = arith.addf %70, %87 : vector<256x256xf32>
    %cst_50 = arith.constant 0.000000e+00 : f32
    %89 = vector.broadcast %cst_50 : f32 to vector<256x256xf32>
    %90 = arith.maximumf %88, %89 : vector<256x256xf32>
    %91 = arith.truncf %90 : vector<256x256xf32> to vector<256x256xbf16>
    %c5 = arith.constant 5 : index
    %c0_51 = arith.constant 0 : index
    %c0_52 = arith.constant 0 : index
    %92 = vector.load %arg4[%c5, %c0_51, %c0_52] : memref<7x256x256xbf16, #tpu.memory_space<vmem>>, vector<1x256x256xbf16>
    %93 = vector.shape_cast %92 : vector<1x256x256xbf16> to vector<256x256xbf16>
    %cst_53 = arith.constant dense<0.000000e+00> : vector<256x256xf32>
    %94 = tpu.matmul %91, %93, %cst_53 {dimension_numbers = #tpu.dot_dimension_numbers<[1], [0], [0], [1], [0, 0, 1, 1], [], []>} : vector<256x256xbf16>, vector<256x256xbf16>, vector<256x256xf32> -> vector<256x256xf32>
    %c5_54 = arith.constant 5 : index
    %c0_55 = arith.constant 0 : index
    %c0_56 = arith.constant 0 : index
    %95 = vector.load %arg5[%c5_54, %c0_55, %c0_56] : memref<7x1x256xf32, #tpu.memory_space<vmem>>, vector<1x1x256xf32>
    %96 = vector.shape_cast %95 : vector<1x1x256xf32> to vector<1x256xf32>
    %97 = vector.broadcast %96 : vector<1x256xf32> to vector<256x256xf32>
    %98 = arith.addf %94, %97 : vector<256x256xf32>
    %cst_57 = arith.constant 0.000000e+00 : f32
    %99 = vector.broadcast %cst_57 : f32 to vector<256x256xf32>
    %100 = arith.maximumf %98, %99 : vector<256x256xf32>
    %101 = arith.truncf %100 : vector<256x256xf32> to vector<256x256xbf16>
    %c6 = arith.constant 6 : index
    %c0_58 = arith.constant 0 : index
    %c0_59 = arith.constant 0 : index
    %102 = vector.load %arg4[%c6, %c0_58, %c0_59] : memref<7x256x256xbf16, #tpu.memory_space<vmem>>, vector<1x256x256xbf16>
    %103 = vector.shape_cast %102 : vector<1x256x256xbf16> to vector<256x256xbf16>
    %cst_60 = arith.constant dense<0.000000e+00> : vector<256x256xf32>
    %104 = tpu.matmul %101, %103, %cst_60 {dimension_numbers = #tpu.dot_dimension_numbers<[1], [0], [0], [1], [0, 0, 1, 1], [], []>} : vector<256x256xbf16>, vector<256x256xbf16>, vector<256x256xf32> -> vector<256x256xf32>
    %c6_61 = arith.constant 6 : index
    %c0_62 = arith.constant 0 : index
    %c0_63 = arith.constant 0 : index
    %105 = vector.load %arg5[%c6_61, %c0_62, %c0_63] : memref<7x1x256xf32, #tpu.memory_space<vmem>>, vector<1x1x256xf32>
    %106 = vector.shape_cast %105 : vector<1x1x256xf32> to vector<1x256xf32>
    %107 = vector.broadcast %106 : vector<1x256xf32> to vector<256x256xf32>
    %108 = arith.addf %104, %107 : vector<256x256xf32>
    %cst_64 = arith.constant 0.000000e+00 : f32
    %109 = vector.broadcast %cst_64 : f32 to vector<256x256xf32>
    %110 = arith.maximumf %108, %109 : vector<256x256xf32>
    %111 = arith.truncf %110 : vector<256x256xf32> to vector<256x256xbf16>
    %c0_65 = arith.constant 0 : index
    %c0_66 = arith.constant 0 : index
    %112 = vector.load %arg9[%c0_65, %c0_66] : memref<256x128xbf16, #tpu.memory_space<vmem>>, vector<256x128xbf16>
    %cst_67 = arith.constant dense<0.000000e+00> : vector<256x128xf32>
    %113 = tpu.matmul %111, %112, %cst_67 {dimension_numbers = #tpu.dot_dimension_numbers<[1], [0], [0], [1], [0, 0, 1, 1], [], []>} : vector<256x256xbf16>, vector<256x128xbf16>, vector<256x128xf32> -> vector<256x128xf32>
    %c0_68 = arith.constant 0 : index
    %c0_69 = arith.constant 0 : index
    %114 = vector.load %arg7[%c0_68, %c0_69] : memref<256x256xbf16, #tpu.memory_space<vmem>>, vector<256x256xbf16>
    %cst_70 = arith.constant dense<0.000000e+00> : vector<256x256xf32>
    %115 = tpu.matmul %111, %114, %cst_70 {dimension_numbers = #tpu.dot_dimension_numbers<[1], [0], [0], [1], [0, 0, 1, 1], [], []>} : vector<256x256xbf16>, vector<256x256xbf16>, vector<256x256xf32> -> vector<256x256xf32>
    %c0_71 = arith.constant 0 : index
    %c0_72 = arith.constant 0 : index
    %116 = vector.load %arg8[%c0_71, %c0_72] : memref<1x256xf32, #tpu.memory_space<vmem>>, vector<1x256xf32>
    %117 = vector.broadcast %116 : vector<1x256xf32> to vector<256x256xf32>
    %118 = arith.addf %115, %117 : vector<256x256xf32>
    %119 = arith.truncf %118 : vector<256x256xf32> to vector<256x256xbf16>
    %c0_73 = arith.constant 0 : index
    %c0_74 = arith.constant 0 : index
    %120 = vector.load %arg10[%c0_73, %c0_74] : memref<256x128xbf16, #tpu.memory_space<vmem>>, vector<256x128xbf16>
    %cst_75 = arith.constant dense<0.000000e+00> : vector<256x128xf32>
    %121 = tpu.matmul %119, %120, %cst_75 {dimension_numbers = #tpu.dot_dimension_numbers<[1], [0], [0], [1], [0, 0, 1, 1], [], []>} : vector<256x256xbf16>, vector<256x128xbf16>, vector<256x128xf32> -> vector<256x128xf32>
    %122 = vector.extract_strided_slice %0 {offsets = [0, 3], sizes = [256, 1], strides = [1, 1]} : vector<256x8xf32> to vector<256x1xf32>
    %c0_76 = arith.constant 0 : index
    %c0_77 = arith.constant 0 : index
    %123 = vector.load %arg11[%c0_76, %c0_77] : memref<8x128xf32, #tpu.memory_space<vmem>>, vector<1x128xf32>
    %124 = vector.broadcast %122 : vector<256x1xf32> to vector<256x128xf32>
    %125 = vector.broadcast %123 : vector<1x128xf32> to vector<256x128xf32>
    %126 = arith.mulf %124, %125 : vector<256x128xf32>
    %127 = vector.extract_strided_slice %0 {offsets = [0, 4], sizes = [256, 1], strides = [1, 1]} : vector<256x8xf32> to vector<256x1xf32>
    %c1_78 = arith.constant 1 : index
    %c0_79 = arith.constant 0 : index
    %128 = vector.load %arg11[%c1_78, %c0_79] : memref<8x128xf32, #tpu.memory_space<vmem>>, vector<1x128xf32>
    %129 = vector.broadcast %127 : vector<256x1xf32> to vector<256x128xf32>
    %130 = vector.broadcast %128 : vector<1x128xf32> to vector<256x128xf32>
    %131 = arith.mulf %129, %130 : vector<256x128xf32>
    %132 = arith.addf %126, %131 : vector<256x128xf32>
    %133 = vector.extract_strided_slice %0 {offsets = [0, 5], sizes = [256, 1], strides = [1, 1]} : vector<256x8xf32> to vector<256x1xf32>
    %c2_80 = arith.constant 2 : index
    %c0_81 = arith.constant 0 : index
    %134 = vector.load %arg11[%c2_80, %c0_81] : memref<8x128xf32, #tpu.memory_space<vmem>>, vector<1x128xf32>
    %135 = vector.broadcast %133 : vector<256x1xf32> to vector<256x128xf32>
    %136 = vector.broadcast %134 : vector<1x128xf32> to vector<256x128xf32>
    %137 = arith.mulf %135, %136 : vector<256x128xf32>
    %138 = arith.addf %132, %137 : vector<256x128xf32>
    %139 = arith.addf %121, %138 : vector<256x128xf32>
    %c0_82 = arith.constant 0 : index
    %c0_83 = arith.constant 0 : index
    %140 = vector.load %arg12[%c0_82, %c0_83] : memref<1x128xf32, #tpu.memory_space<vmem>>, vector<1x128xf32>
    %141 = vector.broadcast %140 : vector<1x128xf32> to vector<256x128xf32>
    %142 = arith.addf %139, %141 : vector<256x128xf32>
    %cst_84 = arith.constant 0.000000e+00 : f32
    %143 = vector.broadcast %cst_84 : f32 to vector<256x128xf32>
    %144 = arith.maximumf %142, %143 : vector<256x128xf32>
    %145 = arith.truncf %144 : vector<256x128xf32> to vector<256x128xbf16>
    %c0_85 = arith.constant 0 : index
    %c0_86 = arith.constant 0 : index
    %146 = vector.load %arg13[%c0_85, %c0_86] : memref<128x128xbf16, #tpu.memory_space<vmem>>, vector<128x128xbf16>
    %cst_87 = arith.constant dense<0.000000e+00> : vector<256x128xf32>
    %147 = tpu.matmul %145, %146, %cst_87 {dimension_numbers = #tpu.dot_dimension_numbers<[1], [0], [0], [1], [0, 0, 1, 1], [], []>} : vector<256x128xbf16>, vector<128x128xbf16>, vector<256x128xf32> -> vector<256x128xf32>
    %148 = arith.addf %147, %113 : vector<256x128xf32>
    %c0_88 = arith.constant 0 : index
    %c0_89 = arith.constant 0 : index
    %149 = vector.load %arg14[%c0_88, %c0_89] : memref<1x128xf32, #tpu.memory_space<vmem>>, vector<1x128xf32>
    %150 = vector.broadcast %149 : vector<1x128xf32> to vector<256x128xf32>
    %151 = arith.addf %148, %150 : vector<256x128xf32>
    %c0_90 = arith.constant 0 : index
    %c0_91 = arith.constant 0 : index
    %152 = vector.load %arg15[%c0_90, %c0_91] : memref<256x128xf32, #tpu.memory_space<vmem>>, vector<256x128xf32>
    tpu.vector_store %arg15[%c0_90, %c0_91], %151 {strides = array<i32>} : memref<256x128xf32, #tpu.memory_space<vmem>>, vector<256x128xf32>,
    return
  }
  func.func @transform_0(%arg0: i32) -> (i32, i32) {
    %c0_i32 = arith.constant 0 : i32
    %c0_i32_0 = arith.constant 0 : i32
    return %arg0, %c0_i32 : i32, i32
  }
  func.func @transform_1(%arg0: i32) -> (i32, i32) {
    %c0_i32 = arith.constant 0 : i32
    %c0_i32_0 = arith.constant 0 : i32
    %c0_i32_1 = arith.constant 0 : i32
    return %c0_i32, %c0_i32_0 : i32, i32
  }
  func.func @transform_2(%arg0: i32) -> (i32, i32) {
    %c0_i32 = arith.constant 0 : i32
    %c0_i32_0 = arith.constant 0 : i32
    %c0_i32_1 = arith.constant 0 : i32
    return %c0_i32, %c0_i32_0 : i32, i32
  }
  func.func @transform_3(%arg0: i32) -> (i32, i32, i32) {
    %c0_i32 = arith.constant 0 : i32
    %c0_i32_0 = arith.constant 0 : i32
    %c0_i32_1 = arith.constant 0 : i32
    %c0_i32_2 = arith.constant 0 : i32
    return %c0_i32, %c0_i32_0, %c0_i32_1 : i32, i32, i32
  }
  func.func @transform_4(%arg0: i32) -> (i32, i32, i32) {
    %c0_i32 = arith.constant 0 : i32
    %c0_i32_0 = arith.constant 0 : i32
    %c0_i32_1 = arith.constant 0 : i32
    %c0_i32_2 = arith.constant 0 : i32
    return %c0_i32, %c0_i32_0, %c0_i32_1 : i32, i32, i32
  }
  func.func @transform_5(%arg0: i32) -> (i32, i32) {
    %c0_i32 = arith.constant 0 : i32
    %c0_i32_0 = arith.constant 0 : i32
    %c0_i32_1 = arith.constant 0 : i32
    return %c0_i32, %c0_i32_0 : i32, i32
  }
  func.func @transform_6(%arg0: i32) -> (i32, i32) {
    %c0_i32 = arith.constant 0 : i32
    %c0_i32_0 = arith.constant 0 : i32
    %c0_i32_1 = arith.constant 0 : i32
    return %c0_i32, %c0_i32_0 : i32, i32
  }
  func.func @transform_7(%arg0: i32) -> (i32, i32) {
    %c0_i32 = arith.constant 0 : i32
    %c0_i32_0 = arith.constant 0 : i32
    %c0_i32_1 = arith.constant 0 : i32
    return %c0_i32, %c0_i32_0 : i32, i32
  }
  func.func @transform_8(%arg0: i32) -> (i32, i32) {
    %c0_i32 = arith.constant 0 : i32
    %c0_i32_0 = arith.constant 0 : i32
    %c0_i32_1 = arith.constant 0 : i32
    return %c0_i32, %c0_i32_0 : i32, i32
  }
  func.func @transform_9(%arg0: i32) -> (i32, i32) {
    %c0_i32 = arith.constant 0 : i32
    %c0_i32_0 = arith.constant 0 : i32
    %c0_i32_1 = arith.constant 0 : i32
    return %c0_i32, %c0_i32_0 : i32, i32
  }
  func.func @transform_10(%arg0: i32) -> (i32, i32) {
    %c0_i32 = arith.constant 0 : i32
    %c0_i32_0 = arith.constant 0 : i32
    %c0_i32_1 = arith.constant 0 : i32
    return %c0_i32, %c0_i32_0 : i32, i32
  }
  func.func @transform_11(%arg0: i32) -> (i32, i32) {
    %c0_i32 = arith.constant 0 : i32
    %c0_i32_0 = arith.constant 0 : i32
    %c0_i32_1 = arith.constant 0 : i32
    return %c0_i32, %c0_i32_0 : i32, i32
  }
  func.func @transform_12(%arg0: i32) -> (i32, i32) {
    %c0_i32 = arith.constant 0 : i32
    %c0_i32_0 = arith.constant 0 : i32
    %c0_i32_1 = arith.constant 0 : i32
    return %c0_i32, %c0_i32_0 : i32, i32
  }
  func.func @transform_13(%arg0: i32) -> (i32, i32) {
    %c0_i32 = arith.constant 0 : i32
    %c0_i32_0 = arith.constant 0 : i32
    %c0_i32_1 = arith.constant 0 : i32
    return %c0_i32, %c0_i32_0 : i32, i32
  }
  func.func @transform_14(%arg0: i32) -> (i32, i32) {
    %c0_i32 = arith.constant 0 : i32
    %c0_i32_0 = arith.constant 0 : i32
    return %arg0, %c0_i32 : i32, i32
  }
}

</mosaic_0001>

<llo_original>
// kernel: nerf_forward_pallas.1
$region0: #{nerf_forward_pallas.1}
  #allocation0 [shape = 'u32[]', space=smem, size = 0x4, offset = 0x4, fixed_abs, tag = 'smem constant byte address 0x4 - core index']
  #allocation1 [shape = 'u32[144,128]{1,0:T(1,128)}', space=vmem, size = 0x12000, scoped, tag = 'internal scratch']
  %s0 = inlined_call_operand.vmem [shape: f32[256,8], index: 0, kind: input, shape index: {}]
  %s1 = inlined_call_operand.vmem [shape: f32[8,256], index: 1, kind: input, shape index: {}]
  %s2 = inlined_call_operand.vmem [shape: f32[1,256], index: 2, kind: input, shape index: {}]
  %s3 = inlined_call_operand.hbm [shape: bf16[7,256,256], index: 3, kind: input, shape index: {}]
  %s4 = inlined_call_operand.vmem [shape: f32[7,1,256], index: 4, kind: input, shape index: {}]
  %s5 = inlined_call_operand.vmem [shape: f32[8,256], index: 5, kind: input, shape index: {}]
  %s6 = inlined_call_operand.vmem [shape: bf16[256,256], index: 6, kind: input, shape index: {}]
  %s7 = inlined_call_operand.vmem [shape: f32[1,256], index: 7, kind: input, shape index: {}]
  %s8 = inlined_call_operand.vmem [shape: bf16[256,128], index: 8, kind: input, shape index: {}]
  %s9 = inlined_call_operand.vmem [shape: bf16[256,128], index: 9, kind: input, shape index: {}]
  %s10 = inlined_call_operand.vmem [shape: f32[8,128], index: 10, kind: input, shape index: {}]
  %s11 = inlined_call_operand.vmem [shape: f32[1,128], index: 11, kind: input, shape index: {}]
  %s12 = inlined_call_operand.vmem [shape: bf16[128,128], index: 12, kind: input, shape index: {}]
  %s13 = inlined_call_operand.vmem [shape: f32[1,128], index: 13, kind: input, shape index: {}]
  %s14 = inlined_call_operand.vmem [shape: f32[256,128], index: 14, kind: output, shape index: {}]
  %s15 = sld [smem:[#allocation0]]
  $region70: #{nerf_forward_pallas.1} parent=0
    _
  %s17 = ssub.s32 1, %s15
  %s18 = scalar_select 0, %s17, %s15
  $region1: #{nerf_forward_pallas.1} parent=0
    #allocation2 [shape = 'u8[917504]{0}', space=vmem, size = 0xe0000, scoped, tag = 'input window, operand 3, single buffered']
    #allocation3 [shape = 's32[1]{0}', space=sflag, size = 0x4, scoped, tag = 'scoped memory for nerf_forward_pallas.1']
    %19 = vsyncpa [#allocation3], 0
    // Predicated region
    $region2: #{nerf_forward_pallas.1} parent=1 // pred_check
      _
    $region3: #{nerf_forward_pallas.1} parent=1 // pred_check_branch
      %21 = sbr.rel (0) target = $region5
    $region4: #{nerf_forward_pallas.1} parent=1 // pred_region
      _
    $region5: #{nerf_forward_pallas.1} parent=1 // pred_fallthru
      _
    // Predicated region
    $region6: #{nerf_forward_pallas.1} parent=1 // pred_check
      _
    $region7: #{nerf_forward_pallas.1} parent=1 // pred_check_branch
      %23 = sbr.rel (0) target = $region9
    $region8: #{nerf_forward_pallas.1} parent=1 // pred_region
      _
    $region9: #{nerf_forward_pallas.1} parent=1 // pred_fallthru
      _
    // Predicated region
    $region10: #{nerf_forward_pallas.1} parent=1 // pred_check
      _
    $region11: #{nerf_forward_pallas.1} parent=1 // pred_check_branch
      %25 = sbr.rel (0) target = $region13
    $region12: #{nerf_forward_pallas.1} parent=1 // pred_region
      _
    $region13: #{nerf_forward_pallas.1} parent=1 // pred_fallthru
      _
    // Predicated region
    $region14: #{nerf_forward_pallas.1} parent=1 // pred_check
      _
    $region15: #{nerf_forward_pallas.1} parent=1 // pred_check_branch
      %27 = sbr.rel (0) target = $region17
    $region16: #{nerf_forward_pallas.1} parent=1 // pred_region
      %s29 = ssub.s32 28672, 28672
      %30 = vsyncadd [#allocation3], %s29
      %s31 = sshll.u32 [#allocation2], 4
      %s32 = int_to_ptr.vmem [resolvable:$true] %s31
      %37 = dma.hbm_to_vmem [thread:$0]  %s3, 28672, %s32, [#allocation3], 128, 128, 8
    $region17: #{nerf_forward_pallas.1} parent=1 // pred_fallthru
      _
    // Predicated region
    $region18: #{nerf_forward_pallas.1} parent=1 // pred_check
      _
    $region19: #{nerf_forward_pallas.1} parent=1 // pred_check_branch
      %39 = sbr.rel (0) target = $region21
    $region20: #{nerf_forward_pallas.1} parent=1 // pred_region
      _
    $region21: #{nerf_forward_pallas.1} parent=1 // pred_fallthru
      _
    // Predicated region
    $region22: #{nerf_forward_pallas.1} parent=1 // pred_check
      _
    $region23: #{nerf_forward_pallas.1} parent=1 // pred_check_branch
      %41 = sbr.rel (0) target = $region25
    $region24: #{nerf_forward_pallas.1} parent=1 // pred_region
      _
    $region25: #{nerf_forward_pallas.1} parent=1 // pred_fallthru
      _
    // Predicated region
    $region26: #{nerf_forward_pallas.1} parent=1 // pred_check
      _
    $region27: #{nerf_forward_pallas.1} parent=1 // pred_check_branch
      %43 = sbr.rel (0) target = $region29
    $region28: #{nerf_forward_pallas.1} parent=1 // pred_region
      _
    $region29: #{nerf_forward_pallas.1} parent=1 // pred_fallthru
      _
    // Predicated region
    $region30: #{nerf_forward_pallas.1} parent=1 // pred_check
      _
    $region31: #{nerf_forward_pallas.1} parent=1 // pred_check_branch
      %45 = sbr.rel (0) target = $region33
    $region32: #{nerf_forward_pallas.1} parent=1 // pred_region
      _
    $region33: #{nerf_forward_pallas.1} parent=1 // pred_fallthru
      _
    // Predicated region
    $region34: #{nerf_forward_pallas.1} parent=1 // pred_check
      _
    $region35: #{nerf_forward_pallas.1} parent=1 // pred_check_branch
      %47 = sbr.rel (0) target = $region37
    $region36: #{nerf_forward_pallas.1} parent=1 // pred_region
      _
    $region37: #{nerf_forward_pallas.1} parent=1 // pred_fallthru
      _
    // Predicated region
    $region38: #{nerf_forward_pallas.1} parent=1 // pred_check
      _
    $region39: #{nerf_forward_pallas.1} parent=1 // pred_check_branch
      %49 = sbr.rel (0) target = $region41
    $region40: #{nerf_forward_pallas.1} parent=1 // pred_region
      _
    $region41: #{nerf_forward_pallas.1} parent=1 // pred_fallthru
      _
    // Predicated region
    $region42: #{nerf_forward_pallas.1} parent=1 // pred_check
      _
    $region43: #{nerf_forward_pallas.1} parent=1 // pred_check_branch
      %51 = sbr.rel (0) target = $region45
    $region44: #{nerf_forward_pallas.1} parent=1 // pred_region
      _
    $region45: #{nerf_forward_pallas.1} parent=1 // pred_fallthru
      _
    // Predicated region
    $region46: #{nerf_forward_pallas.1} parent=1 // pred_check
      _
    $region47: #{nerf_forward_pallas.1} parent=1 // pred_check_branch
      %53 = sbr.rel (0) target = $region49
    $region48: #{nerf_forward_pallas.1} parent=1 // pred_region
      _
    $region49: #{nerf_forward_pallas.1} parent=1 // pred_fallthru
      _
    // Predicated region
    $region50: #{nerf_forward_pallas.1} parent=1 // pred_check
      _
    $region51: #{nerf_forward_pallas.1} parent=1 // pred_check_branch
      %55 = sbr.rel (0) target = $region53
    $region52: #{nerf_forward_pallas.1} parent=1 // pred_region
      _
    $region53: #{nerf_forward_pallas.1} parent=1 // pred_fallthru
      _
    // Predicated region
    $region54: #{nerf_forward_pallas.1} parent=1 // pred_check
      _
    $region55: #{nerf_forward_pallas.1} parent=1 // pred_check_branch
      %57 = sbr.rel (0) target = $region57
    $region56: #{nerf_forward_pallas.1} parent=1 // pred_region
      _
    $region57: #{nerf_forward_pallas.1} parent=1 // pred_fallthru
      _
    // Predicated region
    $region58: #{nerf_forward_pallas.1} parent=1 // pred_check
      _
    $region59: #{nerf_forward_pallas.1} parent=1 // pred_check_branch
      %59 = sbr.rel (0) target = $region61
    $region60: #{nerf_forward_pallas.1} parent=1 // pred_region
      %60 = dma.done [#allocation3], 28672
    $region61: #{nerf_forward_pallas.1} parent=1 // pred_fallthru
      _
    %v62 = vld [vmem:[%s0] sm:$0xff]
    %v63 = vld [vmem:[%s0 + $0x8] sm:$0xff]
    %v64 = vld [vmem:[%s0 + $0x10] sm:$0xff]
    %v65 = vld [vmem:[%s0 + $0x18] sm:$0xff]
    %v66 = vld [vmem:[%s0 + $0x20] sm:$0xff]
    %v67 = vld [vmem:[%s0 + $0x28] sm:$0xff]
    %v68 = vld [vmem:[%s0 + $0x30] sm:$0xff]
    %v69 = vld [vmem:[%s0 + $0x38] sm:$0xff]
    %v70 = vld [vmem:[%s0 + $0x40] sm:$0xff]
    %v71 = vld [vmem:[%s0 + $0x48] sm:$0xff]
    %v72 = vld [vmem:[%s0 + $0x50] sm:$0xff]
    %v73 = vld [vmem:[%s0 + $0x58] sm:$0xff]
    %v74 = vld [vmem:[%s0 + $0x60] sm:$0xff]
    %v75 = vld [vmem:[%s0 + $0x68] sm:$0xff]
    %v76 = vld [vmem:[%s0 + $0x70] sm:$0xff]
    %v77 = vld [vmem:[%s0 + $0x78] sm:$0xff]
    %v78 = vld [vmem:[%s0 + $0x80] sm:$0xff]
    %v79 = vld [vmem:[%s0 + $0x88] sm:$0xff]
    %v80 = vld [vmem:[%s0 + $0x90] sm:$0xff]
    %v81 = vld [vmem:[%s0 + $0x98] sm:$0xff]
    %v82 = vld [vmem:[%s0 + $0xa0] sm:$0xff]
    %v83 = vld [vmem:[%s0 + $0xa8] sm:$0xff]
    %v84 = vld [vmem:[%s0 + $0xb0] sm:$0xff]
    %v85 = vld [vmem:[%s0 + $0xb8] sm:$0xff]
    %v86 = vld [vmem:[%s0 + $0xc0] sm:$0xff]
    %v87 = vld [vmem:[%s0 + $0xc8] sm:$0xff]
    %v88 = vld [vmem:[%s0 + $0xd0] sm:$0xff]
    %v89 = vld [vmem:[%s0 + $0xd8] sm:$0xff]
    %v90 = vld [vmem:[%s0 + $0xe0] sm:$0xff]
    %v91 = vld [vmem:[%s0 + $0xe8] sm:$0xff]
    %v92 = vld [vmem:[%s0 + $0xf0] sm:$0xff]
    %v93 = vld [vmem:[%s0 + $0xf8] sm:$0xff]
    %v94 = vld [vmem:[%s1] ss:$8 sm:$0x3]
    %96 = vset.pattern.permute.xlu0 0
    %97 = vperm.xlu0 %96, %v62
    %v98 = vpop.permute.xlu0 %97
    %101 = vset.pattern.permute.xlu0 0
    %102 = vperm.xlu0 %101, %v63
    %v103 = vpop.permute.xlu0 %102
    %106 = vset.pattern.permute.xlu0 0
    %107 = vperm.xlu0 %106, %v64
    %v108 = vpop.permute.xlu0 %107
    %111 = vset.pattern.permute.xlu0 0
    %112 = vperm.xlu0 %111, %v65
    %v113 = vpop.permute.xlu0 %112
    %116 = vset.pattern.permute.xlu0 0
    %117 = vperm.xlu0 %116, %v66
    %v118 = vpop.permute.xlu0 %117
    %121 = vset.pattern.permute.xlu0 0
    %122 = vperm.xlu0 %121, %v67
    %v123 = vpop.permute.xlu0 %122
    %126 = vset.pattern.permute.xlu0 0
    %127 = vperm.xlu0 %126, %v68
    %v128 = vpop.permute.xlu0 %127
    %131 = vset.pattern.permute.xlu0 0
    %132 = vperm.xlu0 %131, %v69
    %v133 = vpop.permute.xlu0 %132
    %136 = vset.pattern.permute.xlu0 0
    %137 = vperm.xlu0 %136, %v70
    %v138 = vpop.permute.xlu0 %137
    %141 = vset.pattern.permute.xlu0 0
    %142 = vperm.xlu0 %141, %v71
    %v143 = vpop.permute.xlu0 %142
    %146 = vset.pattern.permute.xlu0 0
    %147 = vperm.xlu0 %146, %v72
    %v148 = vpop.permute.xlu0 %147
    %151 = vset.pattern.permute.xlu0 0
    %152 = vperm.xlu0 %151, %v73
    %v153 = vpop.permute.xlu0 %152
    %156 = vset.pattern.permute.xlu0 0
    %157 = vperm.xlu0 %156, %v74
    %v158 = vpop.permute.xlu0 %157
    %161 = vset.pattern.permute.xlu0 0
    %162 = vperm.xlu0 %161, %v75
    %v163 = vpop.permute.xlu0 %162
    %166 = vset.pattern.permute.xlu0 0
    %167 = vperm.xlu0 %166, %v76
    %v168 = vpop.permute.xlu0 %167
    %171 = vset.pattern.permute.xlu0 0
    %172 = vperm.xlu0 %171, %v77
    %v173 = vpop.permute.xlu0 %172
    %176 = vset.pattern.permute.xlu0 0
    %177 = vperm.xlu0 %176, %v78
    %v178 = vpop.permute.xlu0 %177
    %181 = vset.pattern.permute.xlu0 0
    %182 = vperm.xlu0 %181, %v79
    %v183 = vpop.permute.xlu0 %182
    %186 = vset.pattern.permute.xlu0 0
    %187 = vperm.xlu0 %186, %v80
    %v188 = vpop.permute.xlu0 %187
    %191 = vset.pattern.permute.xlu0 0
    %192 = vperm.xlu0 %191, %v81
    %v193 = vpop.permute.xlu0 %192
    %196 = vset.pattern.permute.xlu0 0
    %197 = vperm.xlu0 %196, %v82
    %v198 = vpop.permute.xlu0 %197
    %201 = vset.pattern.permute.xlu0 0
    %202 = vperm.xlu0 %201, %v83
    %v203 = vpop.permute.xlu0 %202
    %206 = vset.pattern.permute.xlu0 0
    %207 = vperm.xlu0 %206, %v84
    %v208 = vpop.permute.xlu0 %207
    %211 = vset.pattern.permute.xlu0 0
    %212 = vperm.xlu0 %211, %v85
    %v213 = vpop.permute.xlu0 %212
    %216 = vset.pattern.permute.xlu0 0
    %217 = vperm.xlu0 %216, %v86
    %v218 = vpop.permute.xlu0 %217
    %221 = vset.pattern.permute.xlu0 0
    %222 = vperm.xlu0 %221, %v87
    %v223 = vpop.permute.xlu0 %222
    %226 = vset.pattern.permute.xlu0 0
    %227 = vperm.xlu0 %226, %v88
    %v228 = vpop.permute.xlu0 %227
    %231 = vset.pattern.permute.xlu0 0
    %232 = vperm.xlu0 %231, %v89
    %v233 = vpop.permute.xlu0 %232
    %236 = vset.pattern.permute.xlu0 0
    %237 = vperm.xlu0 %236, %v90
    %v238 = vpop.permute.xlu0 %237
    %241 = vset.pattern.permute.xlu0 0
    %242 = vperm.xlu0 %241, %v91
    %v243 = vpop.permute.xlu0 %242
    %246 = vset.pattern.permute.xlu0 0
    %247 = vperm.xlu0 %246, %v92
    %v248 = vpop.permute.xlu0 %247
    %251 = vset.pattern.permute.xlu0 0
    %252 = vperm.xlu0 %251, %v93
    %v253 = vpop.permute.xlu0 %252
    %v256 = vlaneseq
    %v257 = vshrl.u32 %v256, 7
    %v258 = vsub.s32 0, %v257
    %v259 = vrot.slane %v94, %v258
    %v260 = vlaneseq
    %v261 = vshrl.u32 %v260, 7
    %v262 = vsub.s32 1, %v261
    %v263 = vrot.slane %v94, %v262
    %v266 = vmul.f32 %v98, %v259
    %v267 = vmul.f32 %v98, %v263
    %v268 = vmul.f32 %v103, %v259
    %v269 = vmul.f32 %v103, %v263
    %v270 = vmul.f32 %v108, %v259
    %v271 = vmul.f32 %v108, %v263
    %v272 = vmul.f32 %v113, %v259
    %v273 = vmul.f32 %v113, %v263
    %v274 = vmul.f32 %v118, %v259
    %v275 = vmul.f32 %v118, %v263
    %v276 = vmul.f32 %v123, %v259
    %v277 = vmul.f32 %v123, %v263
    %v278 = vmul.f32 %v128, %v259
    %v279 = vmul.f32 %v128, %v263
    %v280 = vmul.f32 %v133, %v259
    %v281 = vmul.f32 %v133, %v263
    %v282 = vmul.f32 %v138, %v259
    %v283 = vmul.f32 %v138, %v263
    %v284 = vmul.f32 %v143, %v259
    %v285 = vmul.f32 %v143, %v263
    %v286 = vmul.f32 %v148, %v259
    %v287 = vmul.f32 %v148, %v263
    %v288 = vmul.f32 %v153, %v259
    %v289 = vmul.f32 %v153, %v263
    %v290 = vmul.f32 %v158, %v259
    %v291 = vmul.f32 %v158, %v263
    %v292 = vmul.f32 %v163, %v259
    %v293 = vmul.f32 %v163, %v263
    %v294 = vmul.f32 %v168, %v259
    %v295 = vmul.f32 %v168, %v263
    %v296 = vmul.f32 %v173, %v259
    %v297 = vmul.f32 %v173, %v263
    %v298 = vmul.f32 %v178, %v259
    %v299 = vmul.f32 %v178, %v263
    %v300 = vmul.f32 %v183, %v259
    %v301 = vmul.f32 %v183, %v263
    %v302 = vmul.f32 %v188, %v259
    %v303 = vmul.f32 %v188, %v263
    %v304 = vmul.f32 %v193, %v259
    %v305 = vmul.f32 %v193, %v263
    %v306 = vmul.f32 %v198, %v259
    %v307 = vmul.f32 %v198, %v263
    %v308 = vmul.f32 %v203, %v259
    %v309 = vmul.f32 %v203, %v263
    %v310 = vmul.f32 %v208, %v259
    %v311 = vmul.f32 %v208, %v263
    %v312 = vmul.f32 %v213, %v259
    %v313 = vmul.f32 %v213, %v263
    %v314 = vmul.f32 %v218, %v259
    %v315 = vmul.f32 %v218, %v263
    %v316 = vmul.f32 %v223, %v259
    %v317 = vmul.f32 %v223, %v263
    %v318 = vmul.f32 %v228, %v259
    %v319 = vmul.f32 %v228, %v263
    %v320 = vmul.f32 %v233, %v259
    %v321 = vmul.f32 %v233, %v263
    %v322 = vmul.f32 %v238, %v259
    %v323 = vmul.f32 %v238, %v263
    %v324 = vmul.f32 %v243, %v259
    %v325 = vmul.f32 %v243, %v263
    %v326 = vmul.f32 %v248, %v259
    %v327 = vmul.f32 %v248, %v263
    %v328 = vmul.f32 %v253, %v259
    %v329 = vmul.f32 %v253, %v263
    %s330 = scalar_lea.vmem %s1, 1
    %v331 = vld [vmem:[%s330] ss:$8 sm:$0x3]
    %332 = vset.pattern.permute.xlu0 1
    %333 = vperm.xlu0 %332, %v62
    %v334 = vpop.permute.xlu0 %333
    %336 = vset.pattern.permute.xlu0 1
    %337 = vperm.xlu0 %336, %v63
    %v338 = vpop.permute.xlu0 %337
    %340 = vset.pattern.permute.xlu0 1
    %341 = vperm.xlu0 %340, %v64
    %v342 = vpop.permute.xlu0 %341
    %344 = vset.pattern.permute.xlu0 1
    %345 = vperm.xlu0 %344, %v65
    %v346 = vpop.permute.xlu0 %345
    %348 = vset.pattern.permute.xlu0 1
    %349 = vperm.xlu0 %348, %v66
    %v350 = vpop.permute.xlu0 %349
    %352 = vset.pattern.permute.xlu0 1
    %353 = vperm.xlu0 %352, %v67
    %v354 = vpop.permute.xlu0 %353
    %356 = vset.pattern.permute.xlu0 1
    %357 = vperm.xlu0 %356, %v68
    %v358 = vpop.permute.xlu0 %357
    %360 = vset.pattern.permute.xlu0 1
    %361 = vperm.xlu0 %360, %v69
    %v362 = vpop.permute.xlu0 %361
    %364 = vset.pattern.permute.xlu0 1
    %365 = vperm.xlu0 %364, %v70
    %v366 = vpop.permute.xlu0 %365
    %368 = vset.pattern.permute.xlu0 1
    %369 = vperm.xlu0 %368, %v71
    %v370 = vpop.permute.xlu0 %369
    %372 = vset.pattern.permute.xlu0 1
    %373 = vperm.xlu0 %372, %v72
    %v374 = vpop.permute.xlu0 %373
    %376 = vset.pattern.permute.xlu0 1
    %377 = vperm.xlu0 %376, %v73
    %v378 = vpop.permute.xlu0 %377
    %380 = vset.pattern.permute.xlu0 1
    %381 = vperm.xlu0 %380, %v74
    %v382 = vpop.permute.xlu0 %381
    %384 = vset.pattern.permute.xlu0 1
    %385 = vperm.xlu0 %384, %v75
    %v386 = vpop.permute.xlu0 %385
    %388 = vset.pattern.permute.xlu0 1
    %389 = vperm.xlu0 %388, %v76
    %v390 = vpop.permute.xlu0 %389
    %392 = vset.pattern.permute.xlu0 1
    %393 = vperm.xlu0 %392, %v77
    %v394 = vpop.permute.xlu0 %393
    %396 = vset.pattern.permute.xlu0 1
    %397 = vperm.xlu0 %396, %v78
    %v398 = vpop.permute.xlu0 %397
    %400 = vset.pattern.permute.xlu0 1
    %401 = vperm.xlu0 %400, %v79
    %v402 = vpop.permute.xlu0 %401
    %404 = vset.pattern.permute.xlu0 1
    %405 = vperm.xlu0 %404, %v80
    %v406 = vpop.permute.xlu0 %405
    %408 = vset.pattern.permute.xlu0 1
    %409 = vperm.xlu0 %408, %v81
    %v410 = vpop.permute.xlu0 %409
    %412 = vset.pattern.permute.xlu0 1
    %413 = vperm.xlu0 %412, %v82
    %v414 = vpop.permute.xlu0 %413
    %416 = vset.pattern.permute.xlu0 1
    %417 = vperm.xlu0 %416, %v83
    %v418 = vpop.permute.xlu0 %417
    %420 = vset.pattern.permute.xlu0 1
    %421 = vperm.xlu0 %420, %v84
    %v422 = vpop.permute.xlu0 %421
    %424 = vset.pattern.permute.xlu0 1
    %425 = vperm.xlu0 %424, %v85
    %v426 = vpop.permute.xlu0 %425
    %428 = vset.pattern.permute.xlu0 1
    %429 = vperm.xlu0 %428, %v86
    %v430 = vpop.permute.xlu0 %429
    %432 = vset.pattern.permute.xlu0 1
    %433 = vperm.xlu0 %432, %v87
    %v434 = vpop.permute.xlu0 %433
    %436 = vset.pattern.permute.xlu0 1
    %437 = vperm.xlu0 %436, %v88
    %v438 = vpop.permute.xlu0 %437
    %440 = vset.pattern.permute.xlu0 1
    %441 = vperm.xlu0 %440, %v89
    %v442 = vpop.permute.xlu0 %441
    %444 = vset.pattern.permute.xlu0 1
    %445 = vperm.xlu0 %444, %v90
    %v446 = vpop.permute.xlu0 %445
    %448 = vset.pattern.permute.xlu0 1
    %449 = vperm.xlu0 %448, %v91
    %v450 = vpop.permute.xlu0 %449
    %452 = vset.pattern.permute.xlu0 1
    %453 = vperm.xlu0 %452, %v92
    %v454 = vpop.permute.xlu0 %453
    %456 = vset.pattern.permute.xlu0 1
    %457 = vperm.xlu0 %456, %v93
    %v458 = vpop.permute.xlu0 %457
    %v461 = vlaneseq
    %v462 = vshrl.u32 %v461, 7
    %v463 = vsub.s32 0, %v462
    %v464 = vrot.slane %v331, %v463
    %v465 = vlaneseq
    %v466 = vshrl.u32 %v465, 7
    %v467 = vsub.s32 1, %v466
    %v468 = vrot.slane %v331, %v467
    %v471 = vmul.f32 %v334, %v464
    %v472 = vmul.f32 %v334, %v468
    %v473 = vmul.f32 %v338, %v464
    %v474 = vmul.f32 %v338, %v468
    %v475 = vmul.f32 %v342, %v464
    %v476 = vmul.f32 %v342, %v468
    %v477 = vmul.f32 %v346, %v464
    %v478 = vmul.f32 %v346, %v468
    %v479 = vmul.f32 %v350, %v464
    %v480 = vmul.f32 %v350, %v468
    %v481 = vmul.f32 %v354, %v464
    %v482 = vmul.f32 %v354, %v468
    %v483 = vmul.f32 %v358, %v464
    %v484 = vmul.f32 %v358, %v468
    %v485 = vmul.f32 %v362, %v464
    %v486 = vmul.f32 %v362, %v468
    %v487 = vmul.f32 %v366, %v464
    %v488 = vmul.f32 %v366, %v468
    %v489 = vmul.f32 %v370, %v464
    %v490 = vmul.f32 %v370, %v468
    %v491 = vmul.f32 %v374, %v464
    %v492 = vmul.f32 %v374, %v468
    %v493 = vmul.f32 %v378, %v464
    %v494 = vmul.f32 %v378, %v468
    %v495 = vmul.f32 %v382, %v464
    %v496 = vmul.f32 %v382, %v468
    %v497 = vmul.f32 %v386, %v464
    %v498 = vmul.f32 %v386, %v468
    %v499 = vmul.f32 %v390, %v464
    %v500 = vmul.f32 %v390, %v468
    %v501 = vmul.f32 %v394, %v464
    %v502 = vmul.f32 %v394, %v468
    %v503 = vmul.f32 %v398, %v464
    %v504 = vmul.f32 %v398, %v468
    %v505 = vmul.f32 %v402, %v464
    %v506 = vmul.f32 %v402, %v468
    %v507 = vmul.f32 %v406, %v464
    %v508 = vmul.f32 %v406, %v468
    %v509 = vmul.f32 %v410, %v464
    %v510 = vmul.f32 %v410, %v468
    %v511 = vmul.f32 %v414, %v464
    %v512 = vmul.f32 %v414, %v468
    %v513 = vmul.f32 %v418, %v464
    %v514 = vmul.f32 %v418, %v468
    %v515 = vmul.f32 %v422, %v464
    %v516 = vmul.f32 %v422, %v468
    %v517 = vmul.f32 %v426, %v464
    %v518 = vmul.f32 %v426, %v468
    %v519 = vmul.f32 %v430, %v464
    %v520 = vmul.f32 %v430, %v468
    %v521 = vmul.f32 %v434, %v464
    %v522 = vmul.f32 %v434, %v468
    %v523 = vmul.f32 %v438, %v464
    %v524 = vmul.f32 %v438, %v468
    %v525 = vmul.f32 %v442, %v464
    %v526 = vmul.f32 %v442, %v468
    %v527 = vmul.f32 %v446, %v464
    %v528 = vmul.f32 %v446, %v468
    %v529 = vmul.f32 %v450, %v464
    %v530 = vmul.f32 %v450, %v468
    %v531 = vmul.f32 %v454, %v464
    %v532 = vmul.f32 %v454, %v468
    %v533 = vmul.f32 %v458, %v464
    %v534 = vmul.f32 %v458, %v468
    %v535 = vadd.f32 %v266, %v471
    %v536 = vadd.f32 %v267, %v472
    %v537 = vadd.f32 %v268, %v473
    %v538 = vadd.f32 %v269, %v474
    %v539 = vadd.f32 %v270, %v475
    %v540 = vadd.f32 %v271, %v476
    %v541 = vadd.f32 %v272, %v477
    %v542 = vadd.f32 %v273, %v478
    %v543 = vadd.f32 %v274, %v479
    %v544 = vadd.f32 %v275, %v480
    %v545 = vadd.f32 %v276, %v481
    %v546 = vadd.f32 %v277, %v482
    %v547 = vadd.f32 %v278, %v483
    %v548 = vadd.f32 %v279, %v484
    %v549 = vadd.f32 %v280, %v485
    %v550 = vadd.f32 %v281, %v486
    %v551 = vadd.f32 %v282, %v487
    %v552 = vadd.f32 %v283, %v488
    %v553 = vadd.f32 %v284, %v489
    %v554 = vadd.f32 %v285, %v490
    %v555 = vadd.f32 %v286, %v491
    %v556 = vadd.f32 %v287, %v492
    %v557 = vadd.f32 %v288, %v493
    %v558 = vadd.f32 %v289, %v494
    %v559 = vadd.f32 %v290, %v495
    %v560 = vadd.f32 %v291, %v496
    %v561 = vadd.f32 %v292, %v497
    %v562 = vadd.f32 %v293, %v498
    %v563 = vadd.f32 %v294, %v499
    %v564 = vadd.f32 %v295, %v500
    %v565 = vadd.f32 %v296, %v501
    %v566 = vadd.f32 %v297, %v502
    %v567 = vadd.f32 %v298, %v503
    %v568 = vadd.f32 %v299, %v504
    %v569 = vadd.f32 %v300, %v505
    %v570 = vadd.f32 %v301, %v506
    %v571 = vadd.f32 %v302, %v507
    %v572 = vadd.f32 %v303, %v508
    %v573 = vadd.f32 %v304, %v509
    %v574 = vadd.f32 %v305, %v510
    %v575 = vadd.f32 %v306, %v511
    %v576 = vadd.f32 %v307, %v512
    %v577 = vadd.f32 %v308, %v513
    %v578 = vadd.f32 %v309, %v514
    %v579 = vadd.f32 %v310, %v515
    %v580 = vadd.f32 %v311, %v516
    %v581 = vadd.f32 %v312, %v517
    %v582 = vadd.f32 %v313, %v518
    %v583 = vadd.f32 %v314, %v519
    %v584 = vadd.f32 %v315, %v520
    %v585 = vadd.f32 %v316, %v521
    %v586 = vadd.f32 %v317, %v522
    %v587 = vadd.f32 %v318, %v523
    %v588 = vadd.f32 %v319, %v524
    %v589 = vadd.f32 %v320, %v525
    %v590 = vadd.f32 %v321, %v526
    %v591 = vadd.f32 %v322, %v527
    %v592 = vadd.f32 %v323, %v528
    %v593 = vadd.f32 %v324, %v529
    %v594 = vadd.f32 %v325, %v530
    %v595 = vadd.f32 %v326, %v531
    %v596 = vadd.f32 %v327, %v532
    %v597 = vadd.f32 %v328, %v533
    %v598 = vadd.f32 %v329, %v534
    %s599 = scalar_lea.vmem %s1, 2
    %v600 = vld [vmem:[%s599] ss:$8 sm:$0x3]
    %601 = vset.pattern.permute.xlu0 2
    %602 = vperm.xlu0 %601, %v62
    %v603 = vpop.permute.xlu0 %602
    %605 = vset.pattern.permute.xlu0 2
    %606 = vperm.xlu0 %605, %v63
    %v607 = vpop.permute.xlu0 %606
    %609 = vset.pattern.permute.xlu0 2
    %610 = vperm.xlu0 %609, %v64
    %v611 = vpop.permute.xlu0 %610
    %613 = vset.pattern.permute.xlu0 2
    %614 = vperm.xlu0 %613, %v65
    %v615 = vpop.permute.xlu0 %614
    %617 = vset.pattern.permute.xlu0 2
    %618 = vperm.xlu0 %617, %v66
    %v619 = vpop.permute.xlu0 %618
    %621 = vset.pattern.permute.xlu0 2
    %622 = vperm.xlu0 %621, %v67
    %v623 = vpop.permute.xlu0 %622
    %625 = vset.pattern.permute.xlu0 2
    %626 = vperm.xlu0 %625, %v68
    %v627 = vpop.permute.xlu0 %626
    %629 = vset.pattern.permute.xlu0 2
    %630 = vperm.xlu0 %629, %v69
    %v631 = vpop.permute.xlu0 %630
    %633 = vset.pattern.permute.xlu0 2
    %634 = vperm.xlu0 %633, %v70
    %v635 = vpop.permute.xlu0 %634
    %637 = vset.pattern.permute.xlu0 2
    %638 = vperm.xlu0 %637, %v71
    %v639 = vpop.permute.xlu0 %638
    %641 = vset.pattern.permute.xlu0 2
    %642 = vperm.xlu0 %641, %v72
    %v643 = vpop.permute.xlu0 %642
    %645 = vset.pattern.permute.xlu0 2
    %646 = vperm.xlu0 %645, %v73
    %v647 = vpop.permute.xlu0 %646
    %649 = vset.pattern.permute.xlu0 2
    %650 = vperm.xlu0 %649, %v74
    %v651 = vpop.permute.xlu0 %650
    %653 = vset.pattern.permute.xlu0 2
    %654 = vperm.xlu0 %653, %v75
    %v655 = vpop.permute.xlu0 %654
    %657 = vset.pattern.permute.xlu0 2
    %658 = vperm.xlu0 %657, %v76
    %v659 = vpop.permute.xlu0 %658
    %661 = vset.pattern.permute.xlu0 2
    %662 = vperm.xlu0 %661, %v77
    %v663 = vpop.permute.xlu0 %662
    %665 = vset.pattern.permute.xlu0 2
    %666 = vperm.xlu0 %665, %v78
    %v667 = vpop.permute.xlu0 %666
    %669 = vset.pattern.permute.xlu0 2
    %670 = vperm.xlu0 %669, %v79
    %v671 = vpop.permute.xlu0 %670
    %673 = vset.pattern.permute.xlu0 2
    %674 = vperm.xlu0 %673, %v80
    %v675 = vpop.permute.xlu0 %674
    %677 = vset.pattern.permute.xlu0 2
    %678 = vperm.xlu0 %677, %v81
    %v679 = vpop.permute.xlu0 %678
    %681 = vset.pattern.permute.xlu0 2
    %682 = vperm.xlu0 %681, %v82
    %v683 = vpop.permute.xlu0 %682
    %685 = vset.pattern.permute.xlu0 2
    %686 = vperm.xlu0 %685, %v83
    %v687 = vpop.permute.xlu0 %686
    %689 = vset.pattern.permute.xlu0 2
    %690 = vperm.xlu0 %689, %v84
    %v691 = vpop.permute.xlu0 %690
    %693 = vset.pattern.permute.xlu0 2
    %694 = vperm.xlu0 %693, %v85
    %v695 = vpop.permute.xlu0 %694
    %697 = vset.pattern.permute.xlu0 2
    %698 = vperm.xlu0 %697, %v86
    %v699 = vpop.permute.xlu0 %698
    %701 = vset.pattern.permute.xlu0 2
    %702 = vperm.xlu0 %701, %v87
    %v703 = vpop.permute.xlu0 %702
    %705 = vset.pattern.permute.xlu0 2
    %706 = vperm.xlu0 %705, %v88
    %v707 = vpop.permute.xlu0 %706
    %709 = vset.pattern.permute.xlu0 2
    %710 = vperm.xlu0 %709, %v89
    %v711 = vpop.permute.xlu0 %710
    %713 = vset.pattern.permute.xlu0 2
    %714 = vperm.xlu0 %713, %v90
    %v715 = vpop.permute.xlu0 %714
    %717 = vset.pattern.permute.xlu0 2
    %718 = vperm.xlu0 %717, %v91
    %v719 = vpop.permute.xlu0 %718
    %721 = vset.pattern.permute.xlu0 2
    %722 = vperm.xlu0 %721, %v92
    %v723 = vpop.permute.xlu0 %722
    %725 = vset.pattern.permute.xlu0 2
    %726 = vperm.xlu0 %725, %v93
    %v727 = vpop.permute.xlu0 %726
    %v730 = vlaneseq
    %v731 = vshrl.u32 %v730, 7
    %v732 = vsub.s32 0, %v731
    %v733 = vrot.slane %v600, %v732
    %v734 = vlaneseq
    %v735 = vshrl.u32 %v734, 7
    %v736 = vsub.s32 1, %v735
    %v737 = vrot.slane %v600, %v736
    %v740 = vmul.f32 %v603, %v733
    %v741 = vmul.f32 %v603, %v737
    %v742 = vmul.f32 %v607, %v733
    %v743 = vmul.f32 %v607, %v737
    %v744 = vmul.f32 %v611, %v733
    %v745 = vmul.f32 %v611, %v737
    %v746 = vmul.f32 %v615, %v733
    %v747 = vmul.f32 %v615, %v737
    %v748 = vmul.f32 %v619, %v733
    %v749 = vmul.f32 %v619, %v737
    %v750 = vmul.f32 %v623, %v733
    %v751 = vmul.f32 %v623, %v737
    %v752 = vmul.f32 %v627, %v733
    %v753 = vmul.f32 %v627, %v737
    %v754 = vmul.f32 %v631, %v733
    %v755 = vmul.f32 %v631, %v737
    %v756 = vmul.f32 %v635, %v733
    %v757 = vmul.f32 %v635, %v737
    %v758 = vmul.f32 %v639, %v733
    %v759 = vmul.f32 %v639, %v737
    %v760 = vmul.f32 %v643, %v733
    %v761 = vmul.f32 %v643, %v737
    %v762 = vmul.f32 %v647, %v733
    %v763 = vmul.f32 %v647, %v737
    %v764 = vmul.f32 %v651, %v733
    %v765 = vmul.f32 %v651, %v737
    %v766 = vmul.f32 %v655, %v733
    %v767 = vmul.f32 %v655, %v737
    %v768 = vmul.f32 %v659, %v733
    %v769 = vmul.f32 %v659, %v737
    %v770 = vmul.f32 %v663, %v733
    %v771 = vmul.f32 %v663, %v737
    %v772 = vmul.f32 %v667, %v733
    %v773 = vmul.f32 %v667, %v737
    %v774 = vmul.f32 %v671, %v733
    %v775 = vmul.f32 %v671, %v737
    %v776 = vmul.f32 %v675, %v733
    %v777 = vmul.f32 %v675, %v737
    %v778 = vmul.f32 %v679, %v733
    %v779 = vmul.f32 %v679, %v737
    %v780 = vmul.f32 %v683, %v733
    %v781 = vmul.f32 %v683, %v737
    %v782 = vmul.f32 %v687, %v733
    %v783 = vmul.f32 %v687, %v737
    %v784 = vmul.f32 %v691, %v733
    %v785 = vmul.f32 %v691, %v737
    %v786 = vmul.f32 %v695, %v733
    %v787 = vmul.f32 %v695, %v737
    %v788 = vmul.f32 %v699, %v733
    %v789 = vmul.f32 %v699, %v737
    %v790 = vmul.f32 %v703, %v733
    %v791 = vmul.f32 %v703, %v737
    %v792 = vmul.f32 %v707, %v733
    %v793 = vmul.f32 %v707, %v737
    %v794 = vmul.f32 %v711, %v733
    %v795 = vmul.f32 %v711, %v737
    %v796 = vmul.f32 %v715, %v733
    %v797 = vmul.f32 %v715, %v737
    %v798 = vmul.f32 %v719, %v733
    %v799 = vmul.f32 %v719, %v737
    %v800 = vmul.f32 %v723, %v733
    %v801 = vmul.f32 %v723, %v737
    %v802 = vmul.f32 %v727, %v733
    %v803 = vmul.f32 %v727, %v737
    %v804 = vadd.f32 %v535, %v740
    %v805 = vadd.f32 %v536, %v741
    %v806 = vadd.f32 %v537, %v742
    %v807 = vadd.f32 %v538, %v743
    %v808 = vadd.f32 %v539, %v744
    %v809 = vadd.f32 %v540, %v745
    %v810 = vadd.f32 %v541, %v746
    %v811 = vadd.f32 %v542, %v747
    %v812 = vadd.f32 %v543, %v748
    %v813 = vadd.f32 %v544, %v749
    %v814 = vadd.f32 %v545, %v750
    %v815 = vadd.f32 %v546, %v751
    %v816 = vadd.f32 %v547, %v752
    %v817 = vadd.f32 %v548, %v753
    %v818 = vadd.f32 %v549, %v754
    %v819 = vadd.f32 %v550, %v755
    %v820 = vadd.f32 %v551, %v756
    %v821 = vadd.f32 %v552, %v757
    %v822 = vadd.f32 %v553, %v758
    %v823 = vadd.f32 %v554, %v759
    %v824 = vadd.f32 %v555, %v760
    %v825 = vadd.f32 %v556, %v761
    %v826 = vadd.f32 %v557, %v762
    %v827 = vadd.f32 %v558, %v763
    %v828 = vadd.f32 %v559, %v764
    %v829 = vadd.f32 %v560, %v765
    %v830 = vadd.f32 %v561, %v766
    %v831 = vadd.f32 %v562, %v767
    %v832 = vadd.f32 %v563, %v768
    %v833 = vadd.f32 %v564, %v769
    %v834 = vadd.f32 %v565, %v770
    %v835 = vadd.f32 %v566, %v771
    %v836 = vadd.f32 %v567, %v772
    %v837 = vadd.f32 %v568, %v773
    %v838 = vadd.f32 %v569, %v774
    %v839 = vadd.f32 %v570, %v775
    %v840 = vadd.f32 %v571, %v776
    %v841 = vadd.f32 %v572, %v777
    %v842 = vadd.f32 %v573, %v778
    %v843 = vadd.f32 %v574, %v779
    %v844 = vadd.f32 %v575, %v780
    %v845 = vadd.f32 %v576, %v781
    %v846 = vadd.f32 %v577, %v782
    %v847 = vadd.f32 %v578, %v783
    %v848 = vadd.f32 %v579, %v784
    %v849 = vadd.f32 %v580, %v785
    %v850 = vadd.f32 %v581, %v786
    %v851 = vadd.f32 %v582, %v787
    %v852 = vadd.f32 %v583, %v788
    %v853 = vadd.f32 %v584, %v789
    %v854 = vadd.f32 %v585, %v790
    %v855 = vadd.f32 %v586, %v791
    %v856 = vadd.f32 %v587, %v792
    %v857 = vadd.f32 %v588, %v793
    %v858 = vadd.f32 %v589, %v794
    %v859 = vadd.f32 %v590, %v795
    %v860 = vadd.f32 %v591, %v796
    %v861 = vadd.f32 %v592, %v797
    %v862 = vadd.f32 %v593, %v798
    %v863 = vadd.f32 %v594, %v799
    %v864 = vadd.f32 %v595, %v800
    %v865 = vadd.f32 %v596, %v801
    %v866 = vadd.f32 %v597, %v802
    %v867 = vadd.f32 %v598, %v803
    %v868 = vld [vmem:[%s2] sm:$0x3]
    %v870 = vlaneseq
    %v871 = vshrl.u32 %v870, 7
    %v872 = vsub.s32 0, %v871
    %v873 = vrot.slane %v868, %v872
    %v874 = vlaneseq
    %v875 = vshrl.u32 %v874, 7
    %v876 = vsub.s32 1, %v875
    %v877 = vrot.slane %v868, %v876
    %v880 = vadd.f32 %v804, %v873
    %v881 = vadd.f32 %v805, %v877
    %v882 = vadd.f32 %v806, %v873
    %v883 = vadd.f32 %v807, %v877
    %v884 = vadd.f32 %v808, %v873
    %v885 = vadd.f32 %v809, %v877
    %v886 = vadd.f32 %v810, %v873
    %v887 = vadd.f32 %v811, %v877
    %v888 = vadd.f32 %v812, %v873
    %v889 = vadd.f32 %v813, %v877
    %v890 = vadd.f32 %v814, %v873
    %v891 = vadd.f32 %v815, %v877
    %v892 = vadd.f32 %v816, %v873
    %v893 = vadd.f32 %v817, %v877
    %v894 = vadd.f32 %v818, %v873
    %v895 = vadd.f32 %v819, %v877
    %v896 = vadd.f32 %v820, %v873
    %v897 = vadd.f32 %v821, %v877
    %v898 = vadd.f32 %v822, %v873
    %v899 = vadd.f32 %v823, %v877
    %v900 = vadd.f32 %v824, %v873
    %v901 = vadd.f32 %v825, %v877
    %v902 = vadd.f32 %v826, %v873
    %v903 = vadd.f32 %v827, %v877
    %v904 = vadd.f32 %v828, %v873
    %v905 = vadd.f32 %v829, %v877
    %v906 = vadd.f32 %v830, %v873
    %v907 = vadd.f32 %v831, %v877
    %v908 = vadd.f32 %v832, %v873
    %v909 = vadd.f32 %v833, %v877
    %v910 = vadd.f32 %v834, %v873
    %v911 = vadd.f32 %v835, %v877
    %v912 = vadd.f32 %v836, %v873
    %v913 = vadd.f32 %v837, %v877
    %v914 = vadd.f32 %v838, %v873
    %v915 = vadd.f32 %v839, %v877
    %v916 = vadd.f32 %v840, %v873
    %v917 = vadd.f32 %v841, %v877
    %v918 = vadd.f32 %v842, %v873
    %v919 = vadd.f32 %v843, %v877
    %v920 = vadd.f32 %v844, %v873
    %v921 = vadd.f32 %v845, %v877
    %v922 = vadd.f32 %v846, %v873
    %v923 = vadd.f32 %v847, %v877
    %v924 = vadd.f32 %v848, %v873
    %v925 = vadd.f32 %v849, %v877
    %v926 = vadd.f32 %v850, %v873
    %v927 = vadd.f32 %v851, %v877
    %v928 = vadd.f32 %v852, %v873
    %v929 = vadd.f32 %v853, %v877
    %v930 = vadd.f32 %v854, %v873
    %v931 = vadd.f32 %v855, %v877
    %v932 = vadd.f32 %v856, %v873
    %v933 = vadd.f32 %v857, %v877
    %v934 = vadd.f32 %v858, %v873
    %v935 = vadd.f32 %v859, %v877
    %v936 = vadd.f32 %v860, %v873
    %v937 = vadd.f32 %v861, %v877
    %v938 = vadd.f32 %v862, %v873
    %v939 = vadd.f32 %v863, %v877
    %v940 = vadd.f32 %v864, %v873
    %v941 = vadd.f32 %v865, %v877
    %v942 = vadd.f32 %v866, %v873
    %v943 = vadd.f32 %v867, %v877
    %v944 = vmax.f32 %v880, 0.0
    %v945 = vmax.f32 %v881, 0.0
    %v946 = vmax.f32 %v882, 0.0
    %v947 = vmax.f32 %v883, 0.0
    %v948 = vmax.f32 %v884, 0.0
    %v949 = vmax.f32 %v885, 0.0
    %v950 = vmax.f32 %v886, 0.0
    %v951 = vmax.f32 %v887, 0.0
    %v952 = vmax.f32 %v888, 0.0
    %v953 = vmax.f32 %v889, 0.0
    %v954 = vmax.f32 %v890, 0.0
    %v955 = vmax.f32 %v891, 0.0
    %v956 = vmax.f32 %v892, 0.0
    %v957 = vmax.f32 %v893, 0.0
    %v958 = vmax.f32 %v894, 0.0
    %v959 = vmax.f32 %v895, 0.0
    %v960 = vmax.f32 %v896, 0.0
    %v961 = vmax.f32 %v897, 0.0
    %v962 = vmax.f32 %v898, 0.0
    %v963 = vmax.f32 %v899, 0.0
    %v964 = vmax.f32 %v900, 0.0
    %v965 = vmax.f32 %v901, 0.0
    %v966 = vmax.f32 %v902, 0.0
    %v967 = vmax.f32 %v903, 0.0
    %v968 = vmax.f32 %v904, 0.0
    %v969 = vmax.f32 %v905, 0.0
    %v970 = vmax.f32 %v906, 0.0
    %v971 = vmax.f32 %v907, 0.0
    %v972 = vmax.f32 %v908, 0.0
    %v973 = vmax.f32 %v909, 0.0
    %v974 = vmax.f32 %v910, 0.0
    %v975 = vmax.f32 %v911, 0.0
    %v976 = vmax.f32 %v912, 0.0
    %v977 = vmax.f32 %v913, 0.0
    %v978 = vmax.f32 %v914, 0.0
    %v979 = vmax.f32 %v915, 0.0
    %v980 = vmax.f32 %v916, 0.0
    %v981 = vmax.f32 %v917, 0.0
    %v982 = vmax.f32 %v918, 0.0
    %v983 = vmax.f32 %v919, 0.0
    %v984 = vmax.f32 %v920, 0.0
    %v985 = vmax.f32 %v921, 0.0
    %v986 = vmax.f32 %v922, 0.0
    %v987 = vmax.f32 %v923, 0.0
    %v988 = vmax.f32 %v924, 0.0
    %v989 = vmax.f32 %v925, 0.0
    %v990 = vmax.f32 %v926, 0.0
    %v991 = vmax.f32 %v927, 0.0
    %v992 = vmax.f32 %v928, 0.0
    %v993 = vmax.f32 %v929, 0.0
    %v994 = vmax.f32 %v930, 0.0
    %v995 = vmax.f32 %v931, 0.0
    %v996 = vmax.f32 %v932, 0.0
    %v997 = vmax.f32 %v933, 0.0
    %v998 = vmax.f32 %v934, 0.0
    %v999 = vmax.f32 %v935, 0.0
    %v1000 = vmax.f32 %v936, 0.0
    %v1001 = vmax.f32 %v937, 0.0
    %v1002 = vmax.f32 %v938, 0.0
    %v1003 = vmax.f32 %v939, 0.0
    %v1004 = vmax.f32 %v940, 0.0
    %v1005 = vmax.f32 %v941, 0.0
    %v1006 = vmax.f32 %v942, 0.0
    %v1007 = vmax.f32 %v943, 0.0
    %v1008 = vpack.c.bf16 %v946, %v944
    %v1009 = vpack.c.bf16 %v947, %v945
    %v1010 = vpack.c.bf16 %v950, %v948
    %v1011 = vpack.c.bf16 %v951, %v949
    %v1012 = vpack.c.bf16 %v954, %v952
    %v1013 = vpack.c.bf16 %v955, %v953
    %v1014 = vpack.c.bf16 %v958, %v956
    %v1015 = vpack.c.bf16 %v959, %v957
    %v1016 = vpack.c.bf16 %v962, %v960
    %v1017 = vpack.c.bf16 %v963, %v961
    %v1018 = vpack.c.bf16 %v966, %v964
    %v1019 = vpack.c.bf16 %v967, %v965
    %v1020 = vpack.c.bf16 %v970, %v968
    %v1021 = vpack.c.bf16 %v971, %v969
    %v1022 = vpack.c.bf16 %v974, %v972
    %v1023 = vpack.c.bf16 %v975, %v973
    %v1024 = vpack.c.bf16 %v978, %v976
    %v1025 = vpack.c.bf16 %v979, %v977
    %v1026 = vpack.c.bf16 %v982, %v980
    %v1027 = vpack.c.bf16 %v983, %v981
    %v1028 = vpack.c.bf16 %v986, %v984
    %v1029 = vpack.c.bf16 %v987, %v985
    %v1030 = vpack.c.bf16 %v990, %v988
    %v1031 = vpack.c.bf16 %v991, %v989
    %v1032 = vpack.c.bf16 %v994, %v992
    %v1033 = vpack.c.bf16 %v995, %v993
    %v1034 = vpack.c.bf16 %v998, %v996
    %v1035 = vpack.c.bf16 %v999, %v997
    %v1036 = vpack.c.bf16 %v1002, %v1000
    %v1037 = vpack.c.bf16 %v1003, %v1001
    %v1038 = vpack.c.bf16 %v1006, %v1004
    %v1039 = vpack.c.bf16 %v1007, %v1005
    %v1040 = vld [vmem:[#allocation2] sm:$0xff]
    %v1041 = vld [vmem:[#allocation2 + $0x8] sm:$0xff]
    %v1042 = vld [vmem:[#allocation2 + $0x10] sm:$0xff]
    %v1043 = vld [vmem:[#allocation2 + $0x18] sm:$0xff]
    %v1044 = vld [vmem:[#allocation2 + $0x20] sm:$0xff]
    %v1045 = vld [vmem:[#allocation2 + $0x28] sm:$0xff]
    %v1046 = vld [vmem:[#allocation2 + $0x30] sm:$0xff]
    %v1047 = vld [vmem:[#allocation2 + $0x38] sm:$0xff]
    %v1048 = vld [vmem:[#allocation2 + $0x40] sm:$0xff]
    %v1049 = vld [vmem:[#allocation2 + $0x48] sm:$0xff]
    %v1050 = vld [vmem:[#allocation2 + $0x50] sm:$0xff]
    %v1051 = vld [vmem:[#allocation2 + $0x58] sm:$0xff]
    %v1052 = vld [vmem:[#allocation2 + $0x60] sm:$0xff]
    %v1053 = vld [vmem:[#allocation2 + $0x68] sm:$0xff]
    %v1054 = vld [vmem:[#allocation2 + $0x70] sm:$0xff]
    %v1055 = vld [vmem:[#allocation2 + $0x78] sm:$0xff]
    %v1056 = vld [vmem:[#allocation2 + $0x80] sm:$0xff]
    %v1057 = vld [vmem:[#allocation2 + $0x88] sm:$0xff]
    %v1058 = vld [vmem:[#allocation2 + $0x90] sm:$0xff]
    %v1059 = vld [vmem:[#allocation2 + $0x98] sm:$0xff]
    %v1060 = vld [vmem:[#allocation2 + $0xa0] sm:$0xff]
    %v1061 = vld [vmem:[#allocation2 + $0xa8] sm:$0xff]
    %v1062 = vld [vmem:[#allocation2 + $0xb0] sm:$0xff]
    %v1063 = vld [vmem:[#allocation2 + $0xb8] sm:$0xff]
    %v1064 = vld [vmem:[#allocation2 + $0xc0] sm:$0xff]
    %v1065 = vld [vmem:[#allocation2 + $0xc8] sm:$0xff]
    %v1066 = vld [vmem:[#allocation2 + $0xd0] sm:$0xff]
    %v1067 = vld [vmem:[#allocation2 + $0xd8] sm:$0xff]
    %v1068 = vld [vmem:[#allocation2 + $0xe0] sm:$0xff]
    %v1069 = vld [vmem:[#allocation2 + $0xe8] sm:$0xff]
    %v1070 = vld [vmem:[#allocation2 + $0xf0] sm:$0xff]
    %v1071 = vld [vmem:[#allocation2 + $0xf8] sm:$0xff]
    %v1072 = vld [vmem:[%s4] sm:$0x3]
    %v1074 = vlaneseq
    %v1075 = vshrl.u32 %v1074, 7
    %v1076 = vsub.s32 0, %v1075
    %v1077 = vrot.slane %v1072, %v1076
    %v1078 = vlaneseq
    %v1079 = vshrl.u32 %v1078, 7
    %v1080 = vsub.s32 1, %v1079
    %v1081 = vrot.slane %v1072, %v1080
    %v1116 = vunpack.c.l.b16 %v1040
    %v1117 = vunpack.c.h.b16 %v1040
    %v1118 = vunpack.c.l.b16 %v1041
    %v1119 = vunpack.c.h.b16 %v1041
    %v1120 = vunpack.c.l.b16 %v1042
    %v1121 = vunpack.c.h.b16 %v1042
    %v1122 = vunpack.c.l.b16 %v1043
    %v1123 = vunpack.c.h.b16 %v1043
    %v1124 = vunpack.c.l.b16 %v1044
    %v1125 = vunpack.c.h.b16 %v1044
    %v1126 = vunpack.c.l.b16 %v1045
    %v1127 = vunpack.c.h.b16 %v1045
    %v1128 = vunpack.c.l.b16 %v1046
    %v1129 = vunpack.c.h.b16 %v1046
    %v1130 = vunpack.c.l.b16 %v1047
    %v1131 = vunpack.c.h.b16 %v1047
    %v1132 = vunpack.c.l.b16 %v1048
    %v1133 = vunpack.c.h.b16 %v1048
    %v1134 = vunpack.c.l.b16 %v1049
    %v1135 = vunpack.c.h.b16 %v1049
    %v1136 = vunpack.c.l.b16 %v1050
    %v1137 = vunpack.c.h.b16 %v1050
    %v1138 = vunpack.c.l.b16 %v1051
    %v1139 = vunpack.c.h.b16 %v1051
    %v1140 = vunpack.c.l.b16 %v1052
    %v1141 = vunpack.c.h.b16 %v1052
    %v1142 = vunpack.c.l.b16 %v1053
    %v1143 = vunpack.c.h.b16 %v1053
    %v1144 = vunpack.c.l.b16 %v1054
    %v1145 = vunpack.c.h.b16 %v1054
    %v1146 = vunpack.c.l.b16 %v1055
    %v1147 = vunpack.c.h.b16 %v1055
    %v1148 = vunpack.c.l.b16 %v1056
    %v1149 = vunpack.c.h.b16 %v1056
    %v1150 = vunpack.c.l.b16 %v1057
    %v1151 = vunpack.c.h.b16 %v1057
    %v1152 = vunpack.c.l.b16 %v1058
    %v1153 = vunpack.c.h.b16 %v1058
    %v1154 = vunpack.c.l.b16 %v1059
    %v1155 = vunpack.c.h.b16 %v1059
    %v1156 = vunpack.c.l.b16 %v1060
    %v1157 = vunpack.c.h.b16 %v1060
    %v1158 = vunpack.c.l.b16 %v1061
    %v1159 = vunpack.c.h.b16 %v1061
    %v1160 = vunpack.c.l.b16 %v1062
    %v1161 = vunpack.c.h.b16 %v1062
    %v1162 = vunpack.c.l.b16 %v1063
    %v1163 = vunpack.c.h.b16 %v1063
    %v1164 = vunpack.c.l.b16 %v1064
    %v1165 = vunpack.c.h.b16 %v1064
    %v1166 = vunpack.c.l.b16 %v1065
    %v1167 = vunpack.c.h.b16 %v1065
    %v1168 = vunpack.c.l.b16 %v1066
    %v1169 = vunpack.c.h.b16 %v1066
    %v1170 = vunpack.c.l.b16 %v1067
    %v1171 = vunpack.c.h.b16 %v1067
    %v1172 = vunpack.c.l.b16 %v1068
    %v1173 = vunpack.c.h.b16 %v1068
    %v1174 = vunpack.c.l.b16 %v1069
    %v1175 = vunpack.c.h.b16 %v1069
    %v1176 = vunpack.c.l.b16 %v1070
    %v1177 = vunpack.c.h.b16 %v1070
    %v1178 = vunpack.c.l.b16 %v1071
    %v1179 = vunpack.c.h.b16 %v1071
    %v1180 = vpack.c.b16 %v1118, %v1116
    %v1181 = vpack.c.b16 %v1119, %v1117
    %v1182 = vpack.c.b16 %v1122, %v1120
    %v1183 = vpack.c.b16 %v1123, %v1121
    %v1184 = vpack.c.b16 %v1126, %v1124
    %v1185 = vpack.c.b16 %v1127, %v1125
    %v1186 = vpack.c.b16 %v1130, %v1128
    %v1187 = vpack.c.b16 %v1131, %v1129
    %v1188 = vpack.c.b16 %v1134, %v1132
    %v1189 = vpack.c.b16 %v1135, %v1133
    %v1190 = vpack.c.b16 %v1138, %v1136
    %v1191 = vpack.c.b16 %v1139, %v1137
    %v1192 = vpack.c.b16 %v1142, %v1140
    %v1193 = vpack.c.b16 %v1143, %v1141
    %v1194 = vpack.c.b16 %v1146, %v1144
    %v1195 = vpack.c.b16 %v1147, %v1145
    %v1196 = vpack.c.b16 %v1150, %v1148
    %v1197 = vpack.c.b16 %v1151, %v1149
    %v1198 = vpack.c.b16 %v1154, %v1152
    %v1199 = vpack.c.b16 %v1155, %v1153
    %v1200 = vpack.c.b16 %v1158, %v1156
    %v1201 = vpack.c.b16 %v1159, %v1157
    %v1202 = vpack.c.b16 %v1162, %v1160
    %v1203 = vpack.c.b16 %v1163, %v1161
    %v1204 = vpack.c.b16 %v1166, %v1164
    %v1205 = vpack.c.b16 %v1167, %v1165
    %v1206 = vpack.c.b16 %v1170, %v1168
    %v1207 = vpack.c.b16 %v1171, %v1169
    %v1208 = vpack.c.b16 %v1174, %v1172
    %v1209 = vpack.c.b16 %v1175, %v1173
    %v1210 = vpack.c.b16 %v1178, %v1176
    %v1211 = vpack.c.b16 %v1179, %v1177
    %1244 = vmatprep.subr.bf16.mxu0 %v1195
    %1245 = vmatpush1.bf16.msra.mxu0 %v1194
    %1246 = vmatprep.subr.bf16.mxu0 %v1193
    %1247 = vmatpush1.bf16.msra.mxu0 %v1192
    %1248 = vmatprep.subr.bf16.mxu0 %v1191
    %1249 = vmatpush1.bf16.msra.mxu0 %v1190
    %1250 = vmatprep.subr.bf16.mxu0 %v1189
    %1251 = vmatpush1.bf16.msra.mxu0 %v1188
    %1252 = vmatprep.subr.bf16.mxu0 %v1187
    %1253 = vmatpush1.bf16.msra.mxu0 %v1186
    %1254 = vmatprep.subr.bf16.mxu0 %v1185
    %1255 = vmatpush1.bf16.msra.mxu0 %v1184
    %1256 = vmatprep.subr.bf16.mxu0 %v1183
    %1257 = vmatpush1.bf16.msra.mxu0 %v1182
    %1258 = vmatprep.subr.bf16.mxu0 %v1181
    %1259 = vmatpush1.bf16.msra.mxu0 %v1180
    %1260 = vmatprep.subr.bf16.mxu0 %v1211
    %1261 = vmatpush2.bf16.msra.mxu0 %v1210
    %1262 = vmatprep.subr.bf16.mxu0 %v1209
    %1263 = vmatpush2.bf16.msra.mxu0 %v1208
    %1264 = vmatprep.subr.bf16.mxu0 %v1207
    %1265 = vmatpush2.bf16.msra.mxu0 %v1206
    %1266 = vmatprep.subr.bf16.mxu0 %v1205
    %1267 = vmatpush2.bf16.msra.mxu0 %v1204
    %1268 = vmatprep.subr.bf16.mxu0 %v1203
    %1269 = vmatpush2.bf16.msra.mxu0 %v1202
    %1270 = vmatprep.subr.bf16.mxu0 %v1201
    %1271 = vmatpush2.bf16.msra.mxu0 %v1200
    %1272 = vmatprep.subr.bf16.mxu0 %v1199
    %1273 = vmatpush2.bf16.msra.mxu0 %v1198
    %1274 = vmatprep.subr.bf16.mxu0 %v1197
    %1275 = vmatpush2.bf16.msra.mxu0 %v1196
    %1276 = vmatprep.mubr.bf16.mxu0 %v1009
    %1277 = vmatmul.mubr.bf16.gmra.mxu0 %v1008
    %v1278 = vpop.f32.mrf.mxu0
    %v1279 = vadd.f32 %v1077, %v1278
    %v1280 = vpop.f32.mrf.mxu0
    %v1281 = vadd.f32 %v1081, %v1280
    %v1282 = vpop.f32.mrf.mxu0
    %v1283 = vadd.f32 %v1077, %v1282
    %v1284 = vpop.f32.mrf.mxu0
    %v1285 = vadd.f32 %v1081, %v1284
    %1286 = vmatprep.mubr.bf16.mxu0 %v1011
    %1287 = vmatmul.mubr.bf16.gmra.mxu0 %v1010
    %v1288 = vpop.f32.mrf.mxu0
    %v1289 = vadd.f32 %v1077, %v1288
    %v1290 = vpop.f32.mrf.mxu0
    %v1291 = vadd.f32 %v1081, %v1290
    %v1292 = vpop.f32.mrf.mxu0
    %v1293 = vadd.f32 %v1077, %v1292
    %v1294 = vpop.f32.mrf.mxu0
    %v1295 = vadd.f32 %v1081, %v1294
    %1296 = vmatprep.mubr.bf16.mxu0 %v1013
    %1297 = vmatmul.mubr.bf16.gmra.mxu0 %v1012
    %v1298 = vpop.f32.mrf.mxu0
    %v1299 = vadd.f32 %v1077, %v1298
    %v1300 = vpop.f32.mrf.mxu0
    %v1301 = vadd.f32 %v1081, %v1300
    %v1302 = vpop.f32.mrf.mxu0
    %v1303 = vadd.f32 %v1077, %v1302
    %v1304 = vpop.f32.mrf.mxu0
    %v1305 = vadd.f32 %v1081, %v1304
    %1306 = vmatprep.mubr.bf16.mxu0 %v1015
    %1307 = vmatmul.mubr.bf16.gmra.mxu0 %v1014
    %v1308 = vpop.f32.mrf.mxu0
    %v1309 = vadd.f32 %v1077, %v1308
    %v1310 = vpop.f32.mrf.mxu0
    %v1311 = vadd.f32 %v1081, %v1310
    %v1312 = vpop.f32.mrf.mxu0
    %v1313 = vadd.f32 %v1077, %v1312
    %v1314 = vpop.f32.mrf.mxu0
    %v1315 = vadd.f32 %v1081, %v1314
    %1316 = vmatprep.mubr.bf16.mxu0 %v1017
    %1317 = vmatmul.mubr.bf16.gmra.mxu0 %v1016
    %v1318 = vpop.f32.mrf.mxu0
    %v1319 = vadd.f32 %v1077, %v1318
    %v1320 = vpop.f32.mrf.mxu0
    %v1321 = vadd.f32 %v1081, %v1320
    %v1322 = vpop.f32.mrf.mxu0
    %v1323 = vadd.f32 %v1077, %v1322
    %v1324 = vpop.f32.mrf.mxu0
    %v1325 = vadd.f32 %v1081, %v1324
    %1326 = vmatprep.mubr.bf16.mxu0 %v1019
    %1327 = vmatmul.mubr.bf16.gmra.mxu0 %v1018
    %v1328 = vpop.f32.mrf.mxu0
    %v1329 = vadd.f32 %v1077, %v1328
    %v1330 = vpop.f32.mrf.mxu0
    %v1331 = vadd.f32 %v1081, %v1330
    %v1332 = vpop.f32.mrf.mxu0
    %v1333 = vadd.f32 %v1077, %v1332
    %v1334 = vpop.f32.mrf.mxu0
    %v1335 = vadd.f32 %v1081, %v1334
    %1336 = vmatprep.mubr.bf16.mxu0 %v1021
    %1337 = vmatmul.mubr.bf16.gmra.mxu0 %v1020
    %v1338 = vpop.f32.mrf.mxu0
    %v1339 = vadd.f32 %v1077, %v1338
    %v1340 = vpop.f32.mrf.mxu0
    %v1341 = vadd.f32 %v1081, %v1340
    %v1342 = vpop.f32.mrf.mxu0
    %v1343 = vadd.f32 %v1077, %v1342
    %v1344 = vpop.f32.mrf.mxu0
    %v1345 = vadd.f32 %v1081, %v1344
    %1346 = vmatprep.mubr.bf16.mxu0 %v1023
    %1347 = vmatmul.mubr.bf16.gmra.mxu0 %v1022
    %v1348 = vpop.f32.mrf.mxu0
    %v1349 = vadd.f32 %v1077, %v1348
    %v1350 = vpop.f32.mrf.mxu0
    %v1351 = vadd.f32 %v1081, %v1350
    %v1352 = vpop.f32.mrf.mxu0
    %v1353 = vadd.f32 %v1077, %v1352
    %v1354 = vpop.f32.mrf.mxu0
    %v1355 = vadd.f32 %v1081, %v1354
    %1356 = vmatprep.mubr.bf16.mxu0 %v1025
    %1357 = vmatmul.mubr.bf16.gmra.mxu0 %v1024
    %v1358 = vpop.f32.mrf.mxu0
    %v1359 = vadd.f32 %v1077, %v1358
    %v1360 = vpop.f32.mrf.mxu0
    %v1361 = vadd.f32 %v1081, %v1360
    %v1362 = vpop.f32.mrf.mxu0
    %v1363 = vadd.f32 %v1077, %v1362
    %v1364 = vpop.f32.mrf.mxu0
    %v1365 = vadd.f32 %v1081, %v1364
    %1366 = vmatprep.mubr.bf16.mxu0 %v1027
    %1367 = vmatmul.mubr.bf16.gmra.mxu0 %v1026
    %v1368 = vpop.f32.mrf.mxu0
    %v1369 = vadd.f32 %v1077, %v1368
    %v1370 = vpop.f32.mrf.mxu0
    %v1371 = vadd.f32 %v1081, %v1370
    %v1372 = vpop.f32.mrf.mxu0
    %v1373 = vadd.f32 %v1077, %v1372
    %v1374 = vpop.f32.mrf.mxu0
    %v1375 = vadd.f32 %v1081, %v1374
    %1376 = vmatprep.mubr.bf16.mxu0 %v1029
    %1377 = vmatmul.mubr.bf16.gmra.mxu0 %v1028
    %v1378 = vpop.f32.mrf.mxu0
    %v1379 = vadd.f32 %v1077, %v1378
    %v1380 = vpop.f32.mrf.mxu0
    %v1381 = vadd.f32 %v1081, %v1380
    %v1382 = vpop.f32.mrf.mxu0
    %v1383 = vadd.f32 %v1077, %v1382
    %v1384 = vpop.f32.mrf.mxu0
    %v1385 = vadd.f32 %v1081, %v1384
    %1386 = vmatprep.mubr.bf16.mxu0 %v1031
    %1387 = vmatmul.mubr.bf16.gmra.mxu0 %v1030
    %v1388 = vpop.f32.mrf.mxu0
    %v1389 = vadd.f32 %v1077, %v1388
    %v1390 = vpop.f32.mrf.mxu0
    %v1391 = vadd.f32 %v1081, %v1390
    %v1392 = vpop.f32.mrf.mxu0
    %v1393 = vadd.f32 %v1077, %v1392
    %v1394 = vpop.f32.mrf.mxu0
    %v1395 = vadd.f32 %v1081, %v1394
    %1396 = vmatprep.mubr.bf16.mxu0 %v1033
    %1397 = vmatmul.mubr.bf16.gmra.mxu0 %v1032
    %v1398 = vpop.f32.mrf.mxu0
    %v1399 = vadd.f32 %v1077, %v1398
    %v1400 = vpop.f32.mrf.mxu0
    %v1401 = vadd.f32 %v1081, %v1400
    %v1402 = vpop.f32.mrf.mxu0
    %v1403 = vadd.f32 %v1077, %v1402
    %v1404 = vpop.f32.mrf.mxu0
    %v1405 = vadd.f32 %v1081, %v1404
    %1406 = vmatprep.mubr.bf16.mxu0 %v1035
    %1407 = vmatmul.mubr.bf16.gmra.mxu0 %v1034
    %v1408 = vpop.f32.mrf.mxu0
    %v1409 = vadd.f32 %v1077, %v1408
    %v1410 = vpop.f32.mrf.mxu0
    %v1411 = vadd.f32 %v1081, %v1410
    %v1412 = vpop.f32.mrf.mxu0
    %v1413 = vadd.f32 %v1077, %v1412
    %v1414 = vpop.f32.mrf.mxu0
    %v1415 = vadd.f32 %v1081, %v1414
    %1416 = vmatprep.mubr.bf16.mxu0 %v1037
    %1417 = vmatmul.mubr.bf16.gmra.mxu0 %v1036
    %v1418 = vpop.f32.mrf.mxu0
    %v1419 = vadd.f32 %v1077, %v1418
    %v1420 = vpop.f32.mrf.mxu0
    %v1421 = vadd.f32 %v1081, %v1420
    %v1422 = vpop.f32.mrf.mxu0
    %v1423 = vadd.f32 %v1077, %v1422
    %v1424 = vpop.f32.mrf.mxu0
    %v1425 = vadd.f32 %v1081, %v1424
    %1426 = vmatprep.mubr.bf16.mxu0 %v1039
    %1427 = vmatmul.mubr.bf16.gmra.mxu0 %v1038
    %v1428 = vpop.f32.mrf.mxu0
    %v1429 = vadd.f32 %v1077, %v1428
    %v1430 = vpop.f32.mrf.mxu0
    %v1431 = vadd.f32 %v1081, %v1430
    %v1432 = vpop.f32.mrf.mxu0
    %v1433 = vadd.f32 %v1077, %v1432
    %v1434 = vpop.f32.mrf.mxu0
    %v1435 = vadd.f32 %v1081, %v1434
    %1436 = vdwg.mxu0
    %v1437 = vmax.f32 %v1279, 0.0
    %v1438 = vmax.f32 %v1281, 0.0
    %v1439 = vmax.f32 %v1283, 0.0
    %v1440 = vmax.f32 %v1285, 0.0
    %v1441 = vmax.f32 %v1289, 0.0
    %v1442 = vmax.f32 %v1291, 0.0
    %v1443 = vmax.f32 %v1293, 0.0
    %v1444 = vmax.f32 %v1295, 0.0
    %v1445 = vmax.f32 %v1299, 0.0
    %v1446 = vmax.f32 %v1301, 0.0
    %v1447 = vmax.f32 %v1303, 0.0
    %v1448 = vmax.f32 %v1305, 0.0
    %v1449 = vmax.f32 %v1309, 0.0
    %v1450 = vmax.f32 %v1311, 0.0
    %v1451 = vmax.f32 %v1313, 0.0
    %v1452 = vmax.f32 %v1315, 0.0
    %v1453 = vmax.f32 %v1319, 0.0
    %v1454 = vmax.f32 %v1321, 0.0
    %v1455 = vmax.f32 %v1323, 0.0
    %v1456 = vmax.f32 %v1325, 0.0
    %v1457 = vmax.f32 %v1329, 0.0
    %v1458 = vmax.f32 %v1331, 0.0
    %v1459 = vmax.f32 %v1333, 0.0
    %v1460 = vmax.f32 %v1335, 0.0
    %v1461 = vmax.f32 %v1339, 0.0
    %v1462 = vmax.f32 %v1341, 0.0
    %v1463 = vmax.f32 %v1343, 0.0
    %v1464 = vmax.f32 %v1345, 0.0
    %v1465 = vmax.f32 %v1349, 0.0
    %v1466 = vmax.f32 %v1351, 0.0
    %v1467 = vmax.f32 %v1353, 0.0
    %v1468 = vmax.f32 %v1355, 0.0
    %v1469 = vmax.f32 %v1359, 0.0
    %v1470 = vmax.f32 %v1361, 0.0
    %v1471 = vmax.f32 %v1363, 0.0
    %v1472 = vmax.f32 %v1365, 0.0
    %v1473 = vmax.f32 %v1369, 0.0
    %v1474 = vmax.f32 %v1371, 0.0
    %v1475 = vmax.f32 %v1373, 0.0
    %v1476 = vmax.f32 %v1375, 0.0
    %v1477 = vmax.f32 %v1379, 0.0
    %v1478 = vmax.f32 %v1381, 0.0
    %v1479 = vmax.f32 %v1383, 0.0
    %v1480 = vmax.f32 %v1385, 0.0
    %v1481 = vmax.f32 %v1389, 0.0
    %v1482 = vmax.f32 %v1391, 0.0
    %v1483 = vmax.f32 %v1393, 0.0
    %v1484 = vmax.f32 %v1395, 0.0
    %v1485 = vmax.f32 %v1399, 0.0
    %v1486 = vmax.f32 %v1401, 0.0
    %v1487 = vmax.f32 %v1403, 0.0
    %v1488 = vmax.f32 %v1405, 0.0
    %v1489 = vmax.f32 %v1409, 0.0
    %v1490 = vmax.f32 %v1411, 0.0
    %v1491 = vmax.f32 %v1413, 0.0
    %v1492 = vmax.f32 %v1415, 0.0
    %v1493 = vmax.f32 %v1419, 0.0
    %v1494 = vmax.f32 %v1421, 0.0
    %v1495 = vmax.f32 %v1423, 0.0
    %v1496 = vmax.f32 %v1425, 0.0
    %v1497 = vmax.f32 %v1429, 0.0
    %v1498 = vmax.f32 %v1431, 0.0
    %v1499 = vmax.f32 %v1433, 0.0
    %v1500 = vmax.f32 %v1435, 0.0
    %v1501 = vpack.c.bf16 %v1439, %v1437
    %v1502 = vpack.c.bf16 %v1440, %v1438
    %v1503 = vpack.c.bf16 %v1443, %v1441
    %v1504 = vpack.c.bf16 %v1444, %v1442
    %v1505 = vpack.c.bf16 %v1447, %v1445
    %v1506 = vpack.c.bf16 %v1448, %v1446
    %v1507 = vpack.c.bf16 %v1451, %v1449
    %v1508 = vpack.c.bf16 %v1452, %v1450
    %v1509 = vpack.c.bf16 %v1455, %v1453
    %v1510 = vpack.c.bf16 %v1456, %v1454
    %v1511 = vpack.c.bf16 %v1459, %v1457
    %v1512 = vpack.c.bf16 %v1460, %v1458
    %v1513 = vpack.c.bf16 %v1463, %v1461
    %v1514 = vpack.c.bf16 %v1464, %v1462
    %v1515 = vpack.c.bf16 %v1467, %v1465
    %v1516 = vpack.c.bf16 %v1468, %v1466
    %v1517 = vpack.c.bf16 %v1471, %v1469
    %v1518 = vpack.c.bf16 %v1472, %v1470
    %v1519 = vpack.c.bf16 %v1475, %v1473
    %v1520 = vpack.c.bf16 %v1476, %v1474
    %v1521 = vpack.c.bf16 %v1479, %v1477
    %v1522 = vpack.c.bf16 %v1480, %v1478
    %v1523 = vpack.c.bf16 %v1483, %v1481
    %v1524 = vpack.c.bf16 %v1484, %v1482
    %v1525 = vpack.c.bf16 %v1487, %v1485
    %v1526 = vpack.c.bf16 %v1488, %v1486
    %v1527 = vpack.c.bf16 %v1491, %v1489
    %v1528 = vpack.c.bf16 %v1492, %v1490
    %v1529 = vpack.c.bf16 %v1495, %v1493
    %v1530 = vpack.c.bf16 %v1496, %v1494
    %v1531 = vpack.c.bf16 %v1499, %v1497
    %v1532 = vpack.c.bf16 %v1500, %v1498
    %s1533 = scalar_lea.vmem [#allocation2], 256
    %v1534 = vld [vmem:[%s1533] sm:$0xff]
    %v1535 = vld [vmem:[%s1533 + $0x8] sm:$0xff]
    %v1536 = vld [vmem:[%s1533 + $0x10] sm:$0xff]
    %v1537 = vld [vmem:[%s1533 + $0x18] sm:$0xff]
    %v1538 = vld [vmem:[%s1533 + $0x20] sm:$0xff]
    %v1539 = vld [vmem:[%s1533 + $0x28] sm:$0xff]
    %v1540 = vld [vmem:[%s1533 + $0x30] sm:$0xff]
    %v1541 = vld [vmem:[%s1533 + $0x38] sm:$0xff]
    %v1542 = vld [vmem:[%s1533 + $0x40] sm:$0xff]
    %v1543 = vld [vmem:[%s1533 + $0x48] sm:$0xff]
    %v1544 = vld [vmem:[%s1533 + $0x50] sm:$0xff]
    %v1545 = vld [vmem:[%s1533 + $0x58] sm:$0xff]
    %v1546 = vld [vmem:[%s1533 + $0x60] sm:$0xff]
    %v1547 = vld [vmem:[%s1533 + $0x68] sm:$0xff]
    %v1548 = vld [vmem:[%s1533 + $0x70] sm:$0xff]
    %v1549 = vld [vmem:[%s1533 + $0x78] sm:$0xff]
    %v1550 = vld [vmem:[%s1533 + $0x80] sm:$0xff]
    %v1551 = vld [vmem:[%s1533 + $0x88] sm:$0xff]
    %v1552 = vld [vmem:[%s1533 + $0x90] sm:$0xff]
    %v1553 = vld [vmem:[%s1533 + $0x98] sm:$0xff]
    %v1554 = vld [vmem:[%s1533 + $0xa0] sm:$0xff]
    %v1555 = vld [vmem:[%s1533 + $0xa8] sm:$0xff]
    %v1556 = vld [vmem:[%s1533 + $0xb0] sm:$0xff]
    %v1557 = vld [vmem:[%s1533 + $0xb8] sm:$0xff]
    %v1558 = vld [vmem:[%s1533 + $0xc0] sm:$0xff]
    %v1559 = vld [vmem:[%s1533 + $0xc8] sm:$0xff]
    %v1560 = vld [vmem:[%s1533 + $0xd0] sm:$0xff]
    %v1561 = vld [vmem:[%s1533 + $0xd8] sm:$0xff]
    %v1562 = vld [vmem:[%s1533 + $0xe0] sm:$0xff]
    %v1563 = vld [vmem:[%s1533 + $0xe8] sm:$0xff]
    %v1564 = vld [vmem:[%s1533 + $0xf0] sm:$0xff]
    %v1565 = vld [vmem:[%s1533 + $0xf8] sm:$0xff]
    %s1566 = scalar_lea.vmem %s4, 2
    %v1567 = vld [vmem:[%s1566] sm:$0x3]
    %v1569 = vlaneseq
    %v1570 = vshrl.u32 %v1569, 7
    %v1571 = vsub.s32 0, %v1570
    %v1572 = vrot.slane %v1567, %v1571
    %v1573 = vlaneseq
    %v1574 = vshrl.u32 %v1573, 7
    %v1575 = vsub.s32 1, %v1574
    %v1576 = vrot.slane %v1567, %v1575
    %v1611 = vunpack.c.l.b16 %v1534
    %v1612 = vunpack.c.h.b16 %v1534
    %v1613 = vunpack.c.l.b16 %v1535
    %v1614 = vunpack.c.h.b16 %v1535
    %v1615 = vunpack.c.l.b16 %v1536
    %v1616 = vunpack.c.h.b16 %v1536
    %v1617 = vunpack.c.l.b16 %v1537
    %v1618 = vunpack.c.h.b16 %v1537
    %v1619 = vunpack.c.l.b16 %v1538
    %v1620 = vunpack.c.h.b16 %v1538
    %v1621 = vunpack.c.l.b16 %v1539
    %v1622 = vunpack.c.h.b16 %v1539
    %v1623 = vunpack.c.l.b16 %v1540
    %v1624 = vunpack.c.h.b16 %v1540
    %v1625 = vunpack.c.l.b16 %v1541
    %v1626 = vunpack.c.h.b16 %v1541
    %v1627 = vunpack.c.l.b16 %v1542
    %v1628 = vunpack.c.h.b16 %v1542
    %v1629 = vunpack.c.l.b16 %v1543
    %v1630 = vunpack.c.h.b16 %v1543
    %v1631 = vunpack.c.l.b16 %v1544
    %v1632 = vunpack.c.h.b16 %v1544
    %v1633 = vunpack.c.l.b16 %v1545
    %v1634 = vunpack.c.h.b16 %v1545
    %v1635 = vunpack.c.l.b16 %v1546
    %v1636 = vunpack.c.h.b16 %v1546
    %v1637 = vunpack.c.l.b16 %v1547
    %v1638 = vunpack.c.h.b16 %v1547
    %v1639 = vunpack.c.l.b16 %v1548
    %v1640 = vunpack.c.h.b16 %v1548
    %v1641 = vunpack.c.l.b16 %v1549
    %v1642 = vunpack.c.h.b16 %v1549
    %v1643 = vunpack.c.l.b16 %v1550
    %v1644 = vunpack.c.h.b16 %v1550
    %v1645 = vunpack.c.l.b16 %v1551
    %v1646 = vunpack.c.h.b16 %v1551
    %v1647 = vunpack.c.l.b16 %v1552
    %v1648 = vunpack.c.h.b16 %v1552
    %v1649 = vunpack.c.l.b16 %v1553
    %v1650 = vunpack.c.h.b16 %v1553
    %v1651 = vunpack.c.l.b16 %v1554
    %v1652 = vunpack.c.h.b16 %v1554
    %v1653 = vunpack.c.l.b16 %v1555
    %v1654 = vunpack.c.h.b16 %v1555
    %v1655 = vunpack.c.l.b16 %v1556
    %v1656 = vunpack.c.h.b16 %v1556
    %v1657 = vunpack.c.l.b16 %v1557
    %v1658 = vunpack.c.h.b16 %v1557
    %v1659 = vunpack.c.l.b16 %v1558
    %v1660 = vunpack.c.h.b16 %v1558
    %v1661 = vunpack.c.l.b16 %v1559
    %v1662 = vunpack.c.h.b16 %v1559
    %v1663 = vunpack.c.l.b16 %v1560
    %v1664 = vunpack.c.h.b16 %v1560
    %v1665 = vunpack.c.l.b16 %v1561
    %v1666 = vunpack.c.h.b16 %v1561
    %v1667 = vunpack.c.l.b16 %v1562
    %v1668 = vunpack.c.h.b16 %v1562
    %v1669 = vunpack.c.l.b16 %v1563
    %v1670 = vunpack.c.h.b16 %v1563
    %v1671 = vunpack.c.l.b16 %v1564
    %v1672 = vunpack.c.h.b16 %v1564
    %v1673 = vunpack.c.l.b16 %v1565
    %v1674 = vunpack.c.h.b16 %v1565
    %v1675 = vpack.c.b16 %v1613, %v1611
    %v1676 = vpack.c.b16 %v1614, %v1612
    %v1677 = vpack.c.b16 %v1617, %v1615
    %v1678 = vpack.c.b16 %v1618, %v1616
    %v1679 = vpack.c.b16 %v1621, %v1619
    %v1680 = vpack.c.b16 %v1622, %v1620
    %v1681 = vpack.c.b16 %v1625, %v1623
    %v1682 = vpack.c.b16 %v1626, %v1624
    %v1683 = vpack.c.b16 %v1629, %v1627
    %v1684 = vpack.c.b16 %v1630, %v1628
    %v1685 = vpack.c.b16 %v1633, %v1631
    %v1686 = vpack.c.b16 %v1634, %v1632
    %v1687 = vpack.c.b16 %v1637, %v1635
    %v1688 = vpack.c.b16 %v1638, %v1636
    %v1689 = vpack.c.b16 %v1641, %v1639
    %v1690 = vpack.c.b16 %v1642, %v1640
    %v1691 = vpack.c.b16 %v1645, %v1643
    %v1692 = vpack.c.b16 %v1646, %v1644
    %v1693 = vpack.c.b16 %v1649, %v1647
    %v1694 = vpack.c.b16 %v1650, %v1648
    %v1695 = vpack.c.b16 %v1653, %v1651
    %v1696 = vpack.c.b16 %v1654, %v1652
    %v1697 = vpack.c.b16 %v1657, %v1655
    %v1698 = vpack.c.b16 %v1658, %v1656
    %v1699 = vpack.c.b16 %v1661, %v1659
    %v1700 = vpack.c.b16 %v1662, %v1660
    %v1701 = vpack.c.b16 %v1665, %v1663
    %v1702 = vpack.c.b16 %v1666, %v1664
    %v1703 = vpack.c.b16 %v1669, %v1667
    %v1704 = vpack.c.b16 %v1670, %v1668
    %v1705 = vpack.c.b16 %v1673, %v1671
    %v1706 = vpack.c.b16 %v1674, %v1672
    %1739 = vmatprep.subr.bf16.mxu0 %v1690
    %1740 = vmatpush1.bf16.msra.mxu0 %v1689
    %1741 = vmatprep.subr.bf16.mxu0 %v1688
    %1742 = vmatpush1.bf16.msra.mxu0 %v1687
    %1743 = vmatprep.subr.bf16.mxu0 %v1686
    %1744 = vmatpush1.bf16.msra.mxu0 %v1685
    %1745 = vmatprep.subr.bf16.mxu0 %v1684
    %1746 = vmatpush1.bf16.msra.mxu0 %v1683
    %1747 = vmatprep.subr.bf16.mxu0 %v1682
    %1748 = vmatpush1.bf16.msra.mxu0 %v1681
    %1749 = vmatprep.subr.bf16.mxu0 %v1680
    %1750 = vmatpush1.bf16.msra.mxu0 %v1679
    %1751 = vmatprep.subr.bf16.mxu0 %v1678
    %1752 = vmatpush1.bf16.msra.mxu0 %v1677
    %1753 = vmatprep.subr.bf16.mxu0 %v1676
    %1754 = vmatpush1.bf16.msra.mxu0 %v1675
    %1755 = vmatprep.subr.bf16.mxu0 %v1706
    %1756 = vmatpush2.bf16.msra.mxu0 %v1705
    %1757 = vmatprep.subr.bf16.mxu0 %v1704
    %1758 = vmatpush2.bf16.msra.mxu0 %v1703
    %1759 = vmatprep.subr.bf16.mxu0 %v1702
    %1760 = vmatpush2.bf16.msra.mxu0 %v1701
    %1761 = vmatprep.subr.bf16.mxu0 %v1700
    %1762 = vmatpush2.bf16.msra.mxu0 %v1699
    %1763 = vmatprep.subr.bf16.mxu0 %v1698
    %1764 = vmatpush2.bf16.msra.mxu0 %v1697
    %1765 = vmatprep.subr.bf16.mxu0 %v1696
    %1766 = vmatpush2.bf16.msra.mxu0 %v1695
    %1767 = vmatprep.subr.bf16.mxu0 %v1694
    %1768 = vmatpush2.bf16.msra.mxu0 %v1693
    %1769 = vmatprep.subr.bf16.mxu0 %v1692
    %1770 = vmatpush2.bf16.msra.mxu0 %v1691
    %1771 = vmatprep.mubr.bf16.mxu0 %v1502
    %1772 = vmatmul.mubr.bf16.gmra.mxu0 %v1501
    %v1773 = vpop.f32.mrf.mxu0
    %v1774 = vadd.f32 %v1572, %v1773
    %v1775 = vpop.f32.mrf.mxu0
    %v1776 = vadd.f32 %v1576, %v1775
    %v1777 = vpop.f32.mrf.mxu0
    %v1778 = vadd.f32 %v1572, %v1777
    %v1779 = vpop.f32.mrf.mxu0
    %v1780 = vadd.f32 %v1576, %v1779
    %1781 = vmatprep.mubr.bf16.mxu0 %v1504
    %1782 = vmatmul.mubr.bf16.gmra.mxu0 %v1503
    %v1783 = vpop.f32.mrf.mxu0
    %v1784 = vadd.f32 %v1572, %v1783
    %v1785 = vpop.f32.mrf.mxu0
    %v1786 = vadd.f32 %v1576, %v1785
    %v1787 = vpop.f32.mrf.mxu0
    %v1788 = vadd.f32 %v1572, %v1787
    %v1789 = vpop.f32.mrf.mxu0
    %v1790 = vadd.f32 %v1576, %v1789
    %1791 = vmatprep.mubr.bf16.mxu0 %v1506
    %1792 = vmatmul.mubr.bf16.gmra.mxu0 %v1505
    %v1793 = vpop.f32.mrf.mxu0
    %v1794 = vadd.f32 %v1572, %v1793
    %v1795 = vpop.f32.mrf.mxu0
    %v1796 = vadd.f32 %v1576, %v1795
    %v1797 = vpop.f32.mrf.mxu0
    %v1798 = vadd.f32 %v1572, %v1797
    %v1799 = vpop.f32.mrf.mxu0
    %v1800 = vadd.f32 %v1576, %v1799
    %1801 = vmatprep.mubr.bf16.mxu0 %v1508
    %1802 = vmatmul.mubr.bf16.gmra.mxu0 %v1507
    %v1803 = vpop.f32.mrf.mxu0
    %v1804 = vadd.f32 %v1572, %v1803
    %v1805 = vpop.f32.mrf.mxu0
    %v1806 = vadd.f32 %v1576, %v1805
    %v1807 = vpop.f32.mrf.mxu0
    %v1808 = vadd.f32 %v1572, %v1807
    %v1809 = vpop.f32.mrf.mxu0
    %v1810 = vadd.f32 %v1576, %v1809
    %1811 = vmatprep.mubr.bf16.mxu0 %v1510
    %1812 = vmatmul.mubr.bf16.gmra.mxu0 %v1509
    %v1813 = vpop.f32.mrf.mxu0
    %v1814 = vadd.f32 %v1572, %v1813
    %v1815 = vpop.f32.mrf.mxu0
    %v1816 = vadd.f32 %v1576, %v1815
    %v1817 = vpop.f32.mrf.mxu0
    %v1818 = vadd.f32 %v1572, %v1817
    %v1819 = vpop.f32.mrf.mxu0
    %v1820 = vadd.f32 %v1576, %v1819
    %1821 = vmatprep.mubr.bf16.mxu0 %v1512
    %1822 = vmatmul.mubr.bf16.gmra.mxu0 %v1511
    %v1823 = vpop.f32.mrf.mxu0
    %v1824 = vadd.f32 %v1572, %v1823
    %v1825 = vpop.f32.mrf.mxu0
    %v1826 = vadd.f32 %v1576, %v1825
    %v1827 = vpop.f32.mrf.mxu0
    %v1828 = vadd.f32 %v1572, %v1827
    %v1829 = vpop.f32.mrf.mxu0
    %v1830 = vadd.f32 %v1576, %v1829
    %1831 = vmatprep.mubr.bf16.mxu0 %v1514
    %1832 = vmatmul.mubr.bf16.gmra.mxu0 %v1513
    %v1833 = vpop.f32.mrf.mxu0
    %v1834 = vadd.f32 %v1572, %v1833
    %v1835 = vpop.f32.mrf.mxu0
    %v1836 = vadd.f32 %v1576, %v1835
    %v1837 = vpop.f32.mrf.mxu0
    %v1838 = vadd.f32 %v1572, %v1837
    %v1839 = vpop.f32.mrf.mxu0
    %v1840 = vadd.f32 %v1576, %v1839
    %1841 = vmatprep.mubr.bf16.mxu0 %v1516
    %1842 = vmatmul.mubr.bf16.gmra.mxu0 %v1515
    %v1843 = vpop.f32.mrf.mxu0
    %v1844 = vadd.f32 %v1572, %v1843
    %v1845 = vpop.f32.mrf.mxu0
    %v1846 = vadd.f32 %v1576, %v1845
    %v1847 = vpop.f32.mrf.mxu0
    %v1848 = vadd.f32 %v1572, %v1847
    %v1849 = vpop.f32.mrf.mxu0
    %v1850 = vadd.f32 %v1576, %v1849
    %1851 = vmatprep.mubr.bf16.mxu0 %v1518
    %1852 = vmatmul.mubr.bf16.gmra.mxu0 %v1517
    %v1853 = vpop.f32.mrf.mxu0
    %v1854 = vadd.f32 %v1572, %v1853
    %v1855 = vpop.f32.mrf.mxu0
    %v1856 = vadd.f32 %v1576, %v1855
    %v1857 = vpop.f32.mrf.mxu0
    %v1858 = vadd.f32 %v1572, %v1857
    %v1859 = vpop.f32.mrf.mxu0
    %v1860 = vadd.f32 %v1576, %v1859
    %1861 = vmatprep.mubr.bf16.mxu0 %v1520
    %1862 = vmatmul.mubr.bf16.gmra.mxu0 %v1519
    %v1863 = vpop.f32.mrf.mxu0
    %v1864 = vadd.f32 %v1572, %v1863
    %v1865 = vpop.f32.mrf.mxu0
    %v1866 = vadd.f32 %v1576, %v1865
    %v1867 = vpop.f32.mrf.mxu0
    %v1868 = vadd.f32 %v1572, %v1867
    %v1869 = vpop.f32.mrf.mxu0
    %v1870 = vadd.f32 %v1576, %v1869
    %1871 = vmatprep.mubr.bf16.mxu0 %v1522
    %1872 = vmatmul.mubr.bf16.gmra.mxu0 %v1521
    %v1873 = vpop.f32.mrf.mxu0
    %v1874 = vadd.f32 %v1572, %v1873
    %v1875 = vpop.f32.mrf.mxu0
    %v1876 = vadd.f32 %v1576, %v1875
    %v1877 = vpop.f32.mrf.mxu0
    %v1878 = vadd.f32 %v1572, %v1877
    %v1879 = vpop.f32.mrf.mxu0
    %v1880 = vadd.f32 %v1576, %v1879
    %1881 = vmatprep.mubr.bf16.mxu0 %v1524
    %1882 = vmatmul.mubr.bf16.gmra.mxu0 %v1523
    %v1883 = vpop.f32.mrf.mxu0
    %v1884 = vadd.f32 %v1572, %v1883
    %v1885 = vpop.f32.mrf.mxu0
    %v1886 = vadd.f32 %v1576, %v1885
    %v1887 = vpop.f32.mrf.mxu0
    %v1888 = vadd.f32 %v1572, %v1887
    %v1889 = vpop.f32.mrf.mxu0
    %v1890 = vadd.f32 %v1576, %v1889
    %1891 = vmatprep.mubr.bf16.mxu0 %v1526
    %1892 = vmatmul.mubr.bf16.gmra.mxu0 %v1525
    %v1893 = vpop.f32.mrf.mxu0
    %v1894 = vadd.f32 %v1572, %v1893
    %v1895 = vpop.f32.mrf.mxu0
    %v1896 = vadd.f32 %v1576, %v1895
    %v1897 = vpop.f32.mrf.mxu0
    %v1898 = vadd.f32 %v1572, %v1897
    %v1899 = vpop.f32.mrf.mxu0
    %v1900 = vadd.f32 %v1576, %v1899
    %1901 = vmatprep.mubr.bf16.mxu0 %v1528
    %1902 = vmatmul.mubr.bf16.gmra.mxu0 %v1527
    %v1903 = vpop.f32.mrf.mxu0
    %v1904 = vadd.f32 %v1572, %v1903
    %v1905 = vpop.f32.mrf.mxu0
    %v1906 = vadd.f32 %v1576, %v1905
    %v1907 = vpop.f32.mrf.mxu0
    %v1908 = vadd.f32 %v1572, %v1907
    %v1909 = vpop.f32.mrf.mxu0
    %v1910 = vadd.f32 %v1576, %v1909
    %1911 = vmatprep.mubr.bf16.mxu0 %v1530
    %1912 = vmatmul.mubr.bf16.gmra.mxu0 %v1529
    %v1913 = vpop.f32.mrf.mxu0
    %v1914 = vadd.f32 %v1572, %v1913
    %v1915 = vpop.f32.mrf.mxu0
    %v1916 = vadd.f32 %v1576, %v1915
    %v1917 = vpop.f32.mrf.mxu0
    %v1918 = vadd.f32 %v1572, %v1917
    %v1919 = vpop.f32.mrf.mxu0
    %v1920 = vadd.f32 %v1576, %v1919
    %1921 = vmatprep.mubr.bf16.mxu0 %v1532
    %1922 = vmatmul.mubr.bf16.gmra.mxu0 %v1531
    %v1923 = vpop.f32.mrf.mxu0
    %v1924 = vadd.f32 %v1572, %v1923
    %v1925 = vpop.f32.mrf.mxu0
    %v1926 = vadd.f32 %v1576, %v1925
    %v1927 = vpop.f32.mrf.mxu0
    %v1928 = vadd.f32 %v1572, %v1927
    %v1929 = vpop.f32.mrf.mxu0
    %v1930 = vadd.f32 %v1576, %v1929
    %1931 = vdwg.mxu0
    %v1932 = vmax.f32 %v1774, 0.0
    %v1933 = vmax.f32 %v1776, 0.0
    %v1934 = vmax.f32 %v1778, 0.0
    %v1935 = vmax.f32 %v1780, 0.0
    %v1936 = vmax.f32 %v1784, 0.0
    %v1937 = vmax.f32 %v1786, 0.0
    %v1938 = vmax.f32 %v1788, 0.0
    %v1939 = vmax.f32 %v1790, 0.0
    %v1940 = vmax.f32 %v1794, 0.0
    %v1941 = vmax.f32 %v1796, 0.0
    %v1942 = vmax.f32 %v1798, 0.0
    %v1943 = vmax.f32 %v1800, 0.0
    %v1944 = vmax.f32 %v1804, 0.0
    %v1945 = vmax.f32 %v1806, 0.0
    %v1946 = vmax.f32 %v1808, 0.0
    %v1947 = vmax.f32 %v1810, 0.0
    %v1948 = vmax.f32 %v1814, 0.0
    %v1949 = vmax.f32 %v1816, 0.0
    %v1950 = vmax.f32 %v1818, 0.0
    %v1951 = vmax.f32 %v1820, 0.0
    %v1952 = vmax.f32 %v1824, 0.0
    %v1953 = vmax.f32 %v1826, 0.0
    %v1954 = vmax.f32 %v1828, 0.0
    %v1955 = vmax.f32 %v1830, 0.0
    %v1956 = vmax.f32 %v1834, 0.0
    %v1957 = vmax.f32 %v1836, 0.0
    %v1958 = vmax.f32 %v1838, 0.0
    %v1959 = vmax.f32 %v1840, 0.0
    %v1960 = vmax.f32 %v1844, 0.0
    %v1961 = vmax.f32 %v1846, 0.0
    %v1962 = vmax.f32 %v1848, 0.0
    %v1963 = vmax.f32 %v1850, 0.0
    %v1964 = vmax.f32 %v1854, 0.0
    %v1965 = vmax.f32 %v1856, 0.0
    %v1966 = vmax.f32 %v1858, 0.0
    %v1967 = vmax.f32 %v1860, 0.0
    %v1968 = vmax.f32 %v1864, 0.0
    %v1969 = vmax.f32 %v1866, 0.0
    %v1970 = vmax.f32 %v1868, 0.0
    %v1971 = vmax.f32 %v1870, 0.0
    %v1972 = vmax.f32 %v1874, 0.0
    %v1973 = vmax.f32 %v1876, 0.0
    %v1974 = vmax.f32 %v1878, 0.0
    %v1975 = vmax.f32 %v1880, 0.0
    %v1976 = vmax.f32 %v1884, 0.0
    %v1977 = vmax.f32 %v1886, 0.0
    %v1978 = vmax.f32 %v1888, 0.0
    %v1979 = vmax.f32 %v1890, 0.0
    %v1980 = vmax.f32 %v1894, 0.0
    %v1981 = vmax.f32 %v1896, 0.0
    %v1982 = vmax.f32 %v1898, 0.0
    %v1983 = vmax.f32 %v1900, 0.0
    %v1984 = vmax.f32 %v1904, 0.0
    %v1985 = vmax.f32 %v1906, 0.0
    %v1986 = vmax.f32 %v1908, 0.0
    %v1987 = vmax.f32 %v1910, 0.0
    %v1988 = vmax.f32 %v1914, 0.0
    %v1989 = vmax.f32 %v1916, 0.0
    %v1990 = vmax.f32 %v1918, 0.0
    %v1991 = vmax.f32 %v1920, 0.0
    %v1992 = vmax.f32 %v1924, 0.0
    %v1993 = vmax.f32 %v1926, 0.0
    %v1994 = vmax.f32 %v1928, 0.0
    %v1995 = vmax.f32 %v1930, 0.0
    %v1996 = vpack.c.bf16 %v1934, %v1932
    %v1997 = vpack.c.bf16 %v1935, %v1933
    %v1998 = vpack.c.bf16 %v1938, %v1936
    %v1999 = vpack.c.bf16 %v1939, %v1937
    %v2000 = vpack.c.bf16 %v1942, %v1940
    %v2001 = vpack.c.bf16 %v1943, %v1941
    %v2002 = vpack.c.bf16 %v1946, %v1944
    %v2003 = vpack.c.bf16 %v1947, %v1945
    %v2004 = vpack.c.bf16 %v1950, %v1948
    %v2005 = vpack.c.bf16 %v1951, %v1949
    %v2006 = vpack.c.bf16 %v1954, %v1952
    %v2007 = vpack.c.bf16 %v1955, %v1953
    %v2008 = vpack.c.bf16 %v1958, %v1956
    %v2009 = vpack.c.bf16 %v1959, %v1957
    %v2010 = vpack.c.bf16 %v1962, %v1960
    %v2011 = vpack.c.bf16 %v1963, %v1961
    %v2012 = vpack.c.bf16 %v1966, %v1964
    %v2013 = vpack.c.bf16 %v1967, %v1965
    %v2014 = vpack.c.bf16 %v1970, %v1968
    %v2015 = vpack.c.bf16 %v1971, %v1969
    %v2016 = vpack.c.bf16 %v1974, %v1972
    %v2017 = vpack.c.bf16 %v1975, %v1973
    %v2018 = vpack.c.bf16 %v1978, %v1976
    %v2019 = vpack.c.bf16 %v1979, %v1977
    %v2020 = vpack.c.bf16 %v1982, %v1980
    %v2021 = vpack.c.bf16 %v1983, %v1981
    %v2022 = vpack.c.bf16 %v1986, %v1984
    %v2023 = vpack.c.bf16 %v1987, %v1985
    %v2024 = vpack.c.bf16 %v1990, %v1988
    %v2025 = vpack.c.bf16 %v1991, %v1989
    %v2026 = vpack.c.bf16 %v1994, %v1992
    %v2027 = vpack.c.bf16 %v1995, %v1993
    %s2028 = scalar_lea.vmem [#allocation2], 512
    %v2029 = vld [vmem:[%s2028] sm:$0xff]
    %v2030 = vld [vmem:[%s2028 + $0x8] sm:$0xff]
    %v2031 = vld [vmem:[%s2028 + $0x10] sm:$0xff]
    %v2032 = vld [vmem:[%s2028 + $0x18] sm:$0xff]
    %v2033 = vld [vmem:[%s2028 + $0x20] sm:$0xff]
    %v2034 = vld [vmem:[%s2028 + $0x28] sm:$0xff]
    %v2035 = vld [vmem:[%s2028 + $0x30] sm:$0xff]
    %v2036 = vld [vmem:[%s2028 + $0x38] sm:$0xff]
    %v2037 = vld [vmem:[%s2028 + $0x40] sm:$0xff]
    %v2038 = vld [vmem:[%s2028 + $0x48] sm:$0xff]
    %v2039 = vld [vmem:[%s2028 + $0x50] sm:$0xff]
    %v2040 = vld [vmem:[%s2028 + $0x58] sm:$0xff]
    %v2041 = vld [vmem:[%s2028 + $0x60] sm:$0xff]
    %v2042 = vld [vmem:[%s2028 + $0x68] sm:$0xff]
    %v2043 = vld [vmem:[%s2028 + $0x70] sm:$0xff]
    %v2044 = vld [vmem:[%s2028 + $0x78] sm:$0xff]
    %v2045 = vld [vmem:[%s2028 + $0x80] sm:$0xff]
    %v2046 = vld [vmem:[%s2028 + $0x88] sm:$0xff]
    %v2047 = vld [vmem:[%s2028 + $0x90] sm:$0xff]
    %v2048 = vld [vmem:[%s2028 + $0x98] sm:$0xff]
    %v2049 = vld [vmem:[%s2028 + $0xa0] sm:$0xff]
    %v2050 = vld [vmem:[%s2028 + $0xa8] sm:$0xff]
    %v2051 = vld [vmem:[%s2028 + $0xb0] sm:$0xff]
    %v2052 = vld [vmem:[%s2028 + $0xb8] sm:$0xff]
    %v2053 = vld [vmem:[%s2028 + $0xc0] sm:$0xff]
    %v2054 = vld [vmem:[%s2028 + $0xc8] sm:$0xff]
    %v2055 = vld [vmem:[%s2028 + $0xd0] sm:$0xff]
    %v2056 = vld [vmem:[%s2028 + $0xd8] sm:$0xff]
    %v2057 = vld [vmem:[%s2028 + $0xe0] sm:$0xff]
    %v2058 = vld [vmem:[%s2028 + $0xe8] sm:$0xff]
    %v2059 = vld [vmem:[%s2028 + $0xf0] sm:$0xff]
    %v2060 = vld [vmem:[%s2028 + $0xf8] sm:$0xff]
    %s2061 = scalar_lea.vmem %s4, 4
    %v2062 = vld [vmem:[%s2061] sm:$0x3]
    %v2064 = vlaneseq
    %v2065 = vshrl.u32 %v2064, 7
    %v2066 = vsub.s32 0, %v2065
    %v2067 = vrot.slane %v2062, %v2066
    %v2068 = vlaneseq
    %v2069 = vshrl.u32 %v2068, 7
    %v2070 = vsub.s32 1, %v2069
    %v2071 = vrot.slane %v2062, %v2070
    %v2106 = vunpack.c.l.b16 %v2029
    %v2107 = vunpack.c.h.b16 %v2029
    %v2108 = vunpack.c.l.b16 %v2030
    %v2109 = vunpack.c.h.b16 %v2030
    %v2110 = vunpack.c.l.b16 %v2031
    %v2111 = vunpack.c.h.b16 %v2031
    %v2112 = vunpack.c.l.b16 %v2032
    %v2113 = vunpack.c.h.b16 %v2032
    %v2114 = vunpack.c.l.b16 %v2033
    %v2115 = vunpack.c.h.b16 %v2033
    %v2116 = vunpack.c.l.b16 %v2034
    %v2117 = vunpack.c.h.b16 %v2034
    %v2118 = vunpack.c.l.b16 %v2035
    %v2119 = vunpack.c.h.b16 %v2035
    %v2120 = vunpack.c.l.b16 %v2036
    %v2121 = vunpack.c.h.b16 %v2036
    %v2122 = vunpack.c.l.b16 %v2037
    %v2123 = vunpack.c.h.b16 %v2037
    %v2124 = vunpack.c.l.b16 %v2038
    %v2125 = vunpack.c.h.b16 %v2038
    %v2126 = vunpack.c.l.b16 %v2039
    %v2127 = vunpack.c.h.b16 %v2039
    %v2128 = vunpack.c.l.b16 %v2040
    %v2129 = vunpack.c.h.b16 %v2040
    %v2130 = vunpack.c.l.b16 %v2041
    %v2131 = vunpack.c.h.b16 %v2041
    %v2132 = vunpack.c.l.b16 %v2042
    %v2133 = vunpack.c.h.b16 %v2042
    %v2134 = vunpack.c.l.b16 %v2043
    %v2135 = vunpack.c.h.b16 %v2043
    %v2136 = vunpack.c.l.b16 %v2044
    %v2137 = vunpack.c.h.b16 %v2044
    %v2138 = vunpack.c.l.b16 %v2045
    %v2139 = vunpack.c.h.b16 %v2045
    %v2140 = vunpack.c.l.b16 %v2046
    %v2141 = vunpack.c.h.b16 %v2046
    %v2142 = vunpack.c.l.b16 %v2047
    %v2143 = vunpack.c.h.b16 %v2047
    %v2144 = vunpack.c.l.b16 %v2048
    %v2145 = vunpack.c.h.b16 %v2048
    %v2146 = vunpack.c.l.b16 %v2049
    %v2147 = vunpack.c.h.b16 %v2049
    %v2148 = vunpack.c.l.b16 %v2050
    %v2149 = vunpack.c.h.b16 %v2050
    %v2150 = vunpack.c.l.b16 %v2051
    %v2151 = vunpack.c.h.b16 %v2051
    %v2152 = vunpack.c.l.b16 %v2052
    %v2153 = vunpack.c.h.b16 %v2052
    %v2154 = vunpack.c.l.b16 %v2053
    %v2155 = vunpack.c.h.b16 %v2053
    %v2156 = vunpack.c.l.b16 %v2054
    %v2157 = vunpack.c.h.b16 %v2054
    %v2158 = vunpack.c.l.b16 %v2055
    %v2159 = vunpack.c.h.b16 %v2055
    %v2160 = vunpack.c.l.b16 %v2056
    %v2161 = vunpack.c.h.b16 %v2056
    %v2162 = vunpack.c.l.b16 %v2057
    %v2163 = vunpack.c.h.b16 %v2057
    %v2164 = vunpack.c.l.b16 %v2058
    %v2165 = vunpack.c.h.b16 %v2058
    %v2166 = vunpack.c.l.b16 %v2059
    %v2167 = vunpack.c.h.b16 %v2059
    %v2168 = vunpack.c.l.b16 %v2060
    %v2169 = vunpack.c.h.b16 %v2060
    %v2170 = vpack.c.b16 %v2108, %v2106
    %v2171 = vpack.c.b16 %v2109, %v2107
    %v2172 = vpack.c.b16 %v2112, %v2110
    %v2173 = vpack.c.b16 %v2113, %v2111
    %v2174 = vpack.c.b16 %v2116, %v2114
    %v2175 = vpack.c.b16 %v2117, %v2115
    %v2176 = vpack.c.b16 %v2120, %v2118
    %v2177 = vpack.c.b16 %v2121, %v2119
    %v2178 = vpack.c.b16 %v2124, %v2122
    %v2179 = vpack.c.b16 %v2125, %v2123
    %v2180 = vpack.c.b16 %v2128, %v2126
    %v2181 = vpack.c.b16 %v2129, %v2127
    %v2182 = vpack.c.b16 %v2132, %v2130
    %v2183 = vpack.c.b16 %v2133, %v2131
    %v2184 = vpack.c.b16 %v2136, %v2134
    %v2185 = vpack.c.b16 %v2137, %v2135
    %v2186 = vpack.c.b16 %v2140, %v2138
    %v2187 = vpack.c.b16 %v2141, %v2139
    %v2188 = vpack.c.b16 %v2144, %v2142
    %v2189 = vpack.c.b16 %v2145, %v2143
    %v2190 = vpack.c.b16 %v2148, %v2146
    %v2191 = vpack.c.b16 %v2149, %v2147
    %v2192 = vpack.c.b16 %v2152, %v2150
    %v2193 = vpack.c.b16 %v2153, %v2151
    %v2194 = vpack.c.b16 %v2156, %v2154
    %v2195 = vpack.c.b16 %v2157, %v2155
    %v2196 = vpack.c.b16 %v2160, %v2158
    %v2197 = vpack.c.b16 %v2161, %v2159
    %v2198 = vpack.c.b16 %v2164, %v2162
    %v2199 = vpack.c.b16 %v2165, %v2163
    %v2200 = vpack.c.b16 %v2168, %v2166
    %v2201 = vpack.c.b16 %v2169, %v2167
    %2234 = vmatprep.subr.bf16.mxu0 %v2185
    %2235 = vmatpush1.bf16.msra.mxu0 %v2184
    %2236 = vmatprep.subr.bf16.mxu0 %v2183
    %2237 = vmatpush1.bf16.msra.mxu0 %v2182
    %2238 = vmatprep.subr.bf16.mxu0 %v2181
    %2239 = vmatpush1.bf16.msra.mxu0 %v2180
    %2240 = vmatprep.subr.bf16.mxu0 %v2179
    %2241 = vmatpush1.bf16.msra.mxu0 %v2178
    %2242 = vmatprep.subr.bf16.mxu0 %v2177
    %2243 = vmatpush1.bf16.msra.mxu0 %v2176
    %2244 = vmatprep.subr.bf16.mxu0 %v2175
    %2245 = vmatpush1.bf16.msra.mxu0 %v2174
    %2246 = vmatprep.subr.bf16.mxu0 %v2173
    %2247 = vmatpush1.bf16.msra.mxu0 %v2172
    %2248 = vmatprep.subr.bf16.mxu0 %v2171
    %2249 = vmatpush1.bf16.msra.mxu0 %v2170
    %2250 = vmatprep.subr.bf16.mxu0 %v2201
    %2251 = vmatpush2.bf16.msra.mxu0 %v2200
    %2252 = vmatprep.subr.bf16.mxu0 %v2199
    %2253 = vmatpush2.bf16.msra.mxu0 %v2198
    %2254 = vmatprep.subr.bf16.mxu0 %v2197
    %2255 = vmatpush2.bf16.msra.mxu0 %v2196
    %2256 = vmatprep.subr.bf16.mxu0 %v2195
    %2257 = vmatpush2.bf16.msra.mxu0 %v2194
    %2258 = vmatprep.subr.bf16.mxu0 %v2193
    %2259 = vmatpush2.bf16.msra.mxu0 %v2192
    %2260 = vmatprep.subr.bf16.mxu0 %v2191
    %2261 = vmatpush2.bf16.msra.mxu0 %v2190
    %2262 = vmatprep.subr.bf16.mxu0 %v2189
    %2263 = vmatpush2.bf16.msra.mxu0 %v2188
    %2264 = vmatprep.subr.bf16.mxu0 %v2187
    %2265 = vmatpush2.bf16.msra.mxu0 %v2186
    %2266 = vmatprep.mubr.bf16.mxu0 %v1997
    %2267 = vmatmul.mubr.bf16.gmra.mxu0 %v1996
    %v2268 = vpop.f32.mrf.mxu0
    %v2269 = vadd.f32 %v2067, %v2268
    %v2270 = vpop.f32.mrf.mxu0
    %v2271 = vadd.f32 %v2071, %v2270
    %v2272 = vpop.f32.mrf.mxu0
    %v2273 = vadd.f32 %v2067, %v2272
    %v2274 = vpop.f32.mrf.mxu0
    %v2275 = vadd.f32 %v2071, %v2274
    %2276 = vmatprep.mubr.bf16.mxu0 %v1999
    %2277 = vmatmul.mubr.bf16.gmra.mxu0 %v1998
    %v2278 = vpop.f32.mrf.mxu0
    %v2279 = vadd.f32 %v2067, %v2278
    %v2280 = vpop.f32.mrf.mxu0
    %v2281 = vadd.f32 %v2071, %v2280
    %v2282 = vpop.f32.mrf.mxu0
    %v2283 = vadd.f32 %v2067, %v2282
    %v2284 = vpop.f32.mrf.mxu0
    %v2285 = vadd.f32 %v2071, %v2284
    %2286 = vmatprep.mubr.bf16.mxu0 %v2001
    %2287 = vmatmul.mubr.bf16.gmra.mxu0 %v2000
    %v2288 = vpop.f32.mrf.mxu0
    %v2289 = vadd.f32 %v2067, %v2288
    %v2290 = vpop.f32.mrf.mxu0
    %v2291 = vadd.f32 %v2071, %v2290
    %v2292 = vpop.f32.mrf.mxu0
    %v2293 = vadd.f32 %v2067, %v2292
    %v2294 = vpop.f32.mrf.mxu0
    %v2295 = vadd.f32 %v2071, %v2294
    %2296 = vmatprep.mubr.bf16.mxu0 %v2003
    %2297 = vmatmul.mubr.bf16.gmra.mxu0 %v2002
    %v2298 = vpop.f32.mrf.mxu0
    %v2299 = vadd.f32 %v2067, %v2298
    %v2300 = vpop.f32.mrf.mxu0
    %v2301 = vadd.f32 %v2071, %v2300
    %v2302 = vpop.f32.mrf.mxu0
    %v2303 = vadd.f32 %v2067, %v2302
    %v2304 = vpop.f32.mrf.mxu0
    %v2305 = vadd.f32 %v2071, %v2304
    %2306 = vmatprep.mubr.bf16.mxu0 %v2005
    %2307 = vmatmul.mubr.bf16.gmra.mxu0 %v2004
    %v2308 = vpop.f32.mrf.mxu0
    %v2309 = vadd.f32 %v2067, %v2308
    %v2310 = vpop.f32.mrf.mxu0
    %v2311 = vadd.f32 %v2071, %v2310
    %v2312 = vpop.f32.mrf.mxu0
    %v2313 = vadd.f32 %v2067, %v2312
    %v2314 = vpop.f32.mrf.mxu0
    %v2315 = vadd.f32 %v2071, %v2314
    %2316 = vmatprep.mubr.bf16.mxu0 %v2007
    %2317 = vmatmul.mubr.bf16.gmra.mxu0 %v2006
    %v2318 = vpop.f32.mrf.mxu0
    %v2319 = vadd.f32 %v2067, %v2318
    %v2320 = vpop.f32.mrf.mxu0
    %v2321 = vadd.f32 %v2071, %v2320
    %v2322 = vpop.f32.mrf.mxu0
    %v2323 = vadd.f32 %v2067, %v2322
    %v2324 = vpop.f32.mrf.mxu0
    %v2325 = vadd.f32 %v2071, %v2324
    %2326 = vmatprep.mubr.bf16.mxu0 %v2009
    %2327 = vmatmul.mubr.bf16.gmra.mxu0 %v2008
    %v2328 = vpop.f32.mrf.mxu0
    %v2329 = vadd.f32 %v2067, %v2328
    %v2330 = vpop.f32.mrf.mxu0
    %v2331 = vadd.f32 %v2071, %v2330
    %v2332 = vpop.f32.mrf.mxu0
    %v2333 = vadd.f32 %v2067, %v2332
    %v2334 = vpop.f32.mrf.mxu0
    %v2335 = vadd.f32 %v2071, %v2334
    %2336 = vmatprep.mubr.bf16.mxu0 %v2011
    %2337 = vmatmul.mubr.bf16.gmra.mxu0 %v2010
    %v2338 = vpop.f32.mrf.mxu0
    %v2339 = vadd.f32 %v2067, %v2338
    %v2340 = vpop.f32.mrf.mxu0
    %v2341 = vadd.f32 %v2071, %v2340
    %v2342 = vpop.f32.mrf.mxu0
    %v2343 = vadd.f32 %v2067, %v2342
    %v2344 = vpop.f32.mrf.mxu0
    %v2345 = vadd.f32 %v2071, %v2344
    %2346 = vmatprep.mubr.bf16.mxu0 %v2013
    %2347 = vmatmul.mubr.bf16.gmra.mxu0 %v2012
    %v2348 = vpop.f32.mrf.mxu0
    %v2349 = vadd.f32 %v2067, %v2348
    %v2350 = vpop.f32.mrf.mxu0
    %v2351 = vadd.f32 %v2071, %v2350
    %v2352 = vpop.f32.mrf.mxu0
    %v2353 = vadd.f32 %v2067, %v2352
    %v2354 = vpop.f32.mrf.mxu0
    %v2355 = vadd.f32 %v2071, %v2354
    %2356 = vmatprep.mubr.bf16.mxu0 %v2015
    %2357 = vmatmul.mubr.bf16.gmra.mxu0 %v2014
    %v2358 = vpop.f32.mrf.mxu0
    %v2359 = vadd.f32 %v2067, %v2358
    %v2360 = vpop.f32.mrf.mxu0
    %v2361 = vadd.f32 %v2071, %v2360
    %v2362 = vpop.f32.mrf.mxu0
    %v2363 = vadd.f32 %v2067, %v2362
    %v2364 = vpop.f32.mrf.mxu0
    %v2365 = vadd.f32 %v2071, %v2364
    %2366 = vmatprep.mubr.bf16.mxu0 %v2017
    %2367 = vmatmul.mubr.bf16.gmra.mxu0 %v2016
    %v2368 = vpop.f32.mrf.mxu0
    %v2369 = vadd.f32 %v2067, %v2368
    %v2370 = vpop.f32.mrf.mxu0
    %v2371 = vadd.f32 %v2071, %v2370
    %v2372 = vpop.f32.mrf.mxu0
    %v2373 = vadd.f32 %v2067, %v2372
    %v2374 = vpop.f32.mrf.mxu0
    %v2375 = vadd.f32 %v2071, %v2374
    %2376 = vmatprep.mubr.bf16.mxu0 %v2019
    %2377 = vmatmul.mubr.bf16.gmra.mxu0 %v2018
    %v2378 = vpop.f32.mrf.mxu0
    %v2379 = vadd.f32 %v2067, %v2378
    %v2380 = vpop.f32.mrf.mxu0
    %v2381 = vadd.f32 %v2071, %v2380
    %v2382 = vpop.f32.mrf.mxu0
    %v2383 = vadd.f32 %v2067, %v2382
    %v2384 = vpop.f32.mrf.mxu0
    %v2385 = vadd.f32 %v2071, %v2384
    %2386 = vmatprep.mubr.bf16.mxu0 %v2021
    %2387 = vmatmul.mubr.bf16.gmra.mxu0 %v2020
    %v2388 = vpop.f32.mrf.mxu0
    %v2389 = vadd.f32 %v2067, %v2388
    %v2390 = vpop.f32.mrf.mxu0
    %v2391 = vadd.f32 %v2071, %v2390
    %v2392 = vpop.f32.mrf.mxu0
    %v2393 = vadd.f32 %v2067, %v2392
    %v2394 = vpop.f32.mrf.mxu0
    %v2395 = vadd.f32 %v2071, %v2394
    %2396 = vmatprep.mubr.bf16.mxu0 %v2023
    %2397 = vmatmul.mubr.bf16.gmra.mxu0 %v2022
    %v2398 = vpop.f32.mrf.mxu0
    %v2399 = vadd.f32 %v2067, %v2398
    %v2400 = vpop.f32.mrf.mxu0
    %v2401 = vadd.f32 %v2071, %v2400
    %v2402 = vpop.f32.mrf.mxu0
    %v2403 = vadd.f32 %v2067, %v2402
    %v2404 = vpop.f32.mrf.mxu0
    %v2405 = vadd.f32 %v2071, %v2404
    %2406 = vmatprep.mubr.bf16.mxu0 %v2025
    %2407 = vmatmul.mubr.bf16.gmra.mxu0 %v2024
    %v2408 = vpop.f32.mrf.mxu0
    %v2409 = vadd.f32 %v2067, %v2408
    %v2410 = vpop.f32.mrf.mxu0
    %v2411 = vadd.f32 %v2071, %v2410
    %v2412 = vpop.f32.mrf.mxu0
    %v2413 = vadd.f32 %v2067, %v2412
    %v2414 = vpop.f32.mrf.mxu0
    %v2415 = vadd.f32 %v2071, %v2414
    %2416 = vmatprep.mubr.bf16.mxu0 %v2027
    %2417 = vmatmul.mubr.bf16.gmra.mxu0 %v2026
    %v2418 = vpop.f32.mrf.mxu0
    %v2419 = vadd.f32 %v2067, %v2418
    %v2420 = vpop.f32.mrf.mxu0
    %v2421 = vadd.f32 %v2071, %v2420
    %v2422 = vpop.f32.mrf.mxu0
    %v2423 = vadd.f32 %v2067, %v2422
    %v2424 = vpop.f32.mrf.mxu0
    %v2425 = vadd.f32 %v2071, %v2424
    %2426 = vdwg.mxu0
    %v2427 = vmax.f32 %v2269, 0.0
    %v2428 = vmax.f32 %v2271, 0.0
    %v2429 = vmax.f32 %v2273, 0.0
    %v2430 = vmax.f32 %v2275, 0.0
    %v2431 = vmax.f32 %v2279, 0.0
    %v2432 = vmax.f32 %v2281, 0.0
    %v2433 = vmax.f32 %v2283, 0.0
    %v2434 = vmax.f32 %v2285, 0.0
    %v2435 = vmax.f32 %v2289, 0.0
    %v2436 = vmax.f32 %v2291, 0.0
    %v2437 = vmax.f32 %v2293, 0.0
    %v2438 = vmax.f32 %v2295, 0.0
    %v2439 = vmax.f32 %v2299, 0.0
    %v2440 = vmax.f32 %v2301, 0.0
    %v2441 = vmax.f32 %v2303, 0.0
    %v2442 = vmax.f32 %v2305, 0.0
    %v2443 = vmax.f32 %v2309, 0.0
    %v2444 = vmax.f32 %v2311, 0.0
    %v2445 = vmax.f32 %v2313, 0.0
    %v2446 = vmax.f32 %v2315, 0.0
    %v2447 = vmax.f32 %v2319, 0.0
    %v2448 = vmax.f32 %v2321, 0.0
    %v2449 = vmax.f32 %v2323, 0.0
    %v2450 = vmax.f32 %v2325, 0.0
    %v2451 = vmax.f32 %v2329, 0.0
    %v2452 = vmax.f32 %v2331, 0.0
    %v2453 = vmax.f32 %v2333, 0.0
    %v2454 = vmax.f32 %v2335, 0.0
    %v2455 = vmax.f32 %v2339, 0.0
    %v2456 = vmax.f32 %v2341, 0.0
    %v2457 = vmax.f32 %v2343, 0.0
    %v2458 = vmax.f32 %v2345, 0.0
    %v2459 = vmax.f32 %v2349, 0.0
    %v2460 = vmax.f32 %v2351, 0.0
    %v2461 = vmax.f32 %v2353, 0.0
    %v2462 = vmax.f32 %v2355, 0.0
    %v2463 = vmax.f32 %v2359, 0.0
    %v2464 = vmax.f32 %v2361, 0.0
    %v2465 = vmax.f32 %v2363, 0.0
    %v2466 = vmax.f32 %v2365, 0.0
    %v2467 = vmax.f32 %v2369, 0.0
    %v2468 = vmax.f32 %v2371, 0.0
    %v2469 = vmax.f32 %v2373, 0.0
    %v2470 = vmax.f32 %v2375, 0.0
    %v2471 = vmax.f32 %v2379, 0.0
    %v2472 = vmax.f32 %v2381, 0.0
    %v2473 = vmax.f32 %v2383, 0.0
    %v2474 = vmax.f32 %v2385, 0.0
    %v2475 = vmax.f32 %v2389, 0.0
    %v2476 = vmax.f32 %v2391, 0.0
    %v2477 = vmax.f32 %v2393, 0.0
    %v2478 = vmax.f32 %v2395, 0.0
    %v2479 = vmax.f32 %v2399, 0.0
    %v2480 = vmax.f32 %v2401, 0.0
    %v2481 = vmax.f32 %v2403, 0.0
    %v2482 = vmax.f32 %v2405, 0.0
    %v2483 = vmax.f32 %v2409, 0.0
    %v2484 = vmax.f32 %v2411, 0.0
    %v2485 = vmax.f32 %v2413, 0.0
    %v2486 = vmax.f32 %v2415, 0.0
    %v2487 = vmax.f32 %v2419, 0.0
    %v2488 = vmax.f32 %v2421, 0.0
    %v2489 = vmax.f32 %v2423, 0.0
    %v2490 = vmax.f32 %v2425, 0.0
    %v2491 = vpack.c.bf16 %v2429, %v2427
    %v2492 = vpack.c.bf16 %v2430, %v2428
    %v2493 = vpack.c.bf16 %v2433, %v2431
    %v2494 = vpack.c.bf16 %v2434, %v2432
    %v2495 = vpack.c.bf16 %v2437, %v2435
    %v2496 = vpack.c.bf16 %v2438, %v2436
    %v2497 = vpack.c.bf16 %v2441, %v2439
    %v2498 = vpack.c.bf16 %v2442, %v2440
    %v2499 = vpack.c.bf16 %v2445, %v2443
    %v2500 = vpack.c.bf16 %v2446, %v2444
    %v2501 = vpack.c.bf16 %v2449, %v2447
    %v2502 = vpack.c.bf16 %v2450, %v2448
    %v2503 = vpack.c.bf16 %v2453, %v2451
    %v2504 = vpack.c.bf16 %v2454, %v2452
    %v2505 = vpack.c.bf16 %v2457, %v2455
    %v2506 = vpack.c.bf16 %v2458, %v2456
    %v2507 = vpack.c.bf16 %v2461, %v2459
    %v2508 = vpack.c.bf16 %v2462, %v2460
    %v2509 = vpack.c.bf16 %v2465, %v2463
    %v2510 = vpack.c.bf16 %v2466, %v2464
    %v2511 = vpack.c.bf16 %v2469, %v2467
    %v2512 = vpack.c.bf16 %v2470, %v2468
    %v2513 = vpack.c.bf16 %v2473, %v2471
    %v2514 = vpack.c.bf16 %v2474, %v2472
    %v2515 = vpack.c.bf16 %v2477, %v2475
    %v2516 = vpack.c.bf16 %v2478, %v2476
    %v2517 = vpack.c.bf16 %v2481, %v2479
    %v2518 = vpack.c.bf16 %v2482, %v2480
    %v2519 = vpack.c.bf16 %v2485, %v2483
    %v2520 = vpack.c.bf16 %v2486, %v2484
    %v2521 = vpack.c.bf16 %v2489, %v2487
    %v2522 = vpack.c.bf16 %v2490, %v2488
    %s2523 = scalar_lea.vmem [#allocation2], 768
    %v2524 = vld [vmem:[%s2523] sm:$0xff]
    %v2525 = vld [vmem:[%s2523 + $0x8] sm:$0xff]
    %v2526 = vld [vmem:[%s2523 + $0x10] sm:$0xff]
    %v2527 = vld [vmem:[%s2523 + $0x18] sm:$0xff]
    %v2528 = vld [vmem:[%s2523 + $0x20] sm:$0xff]
    %v2529 = vld [vmem:[%s2523 + $0x28] sm:$0xff]
    %v2530 = vld [vmem:[%s2523 + $0x30] sm:$0xff]
    %v2531 = vld [vmem:[%s2523 + $0x38] sm:$0xff]
    %v2532 = vld [vmem:[%s2523 + $0x40] sm:$0xff]
    %v2533 = vld [vmem:[%s2523 + $0x48] sm:$0xff]
    %v2534 = vld [vmem:[%s2523 + $0x50] sm:$0xff]
    %v2535 = vld [vmem:[%s2523 + $0x58] sm:$0xff]
    %v2536 = vld [vmem:[%s2523 + $0x60] sm:$0xff]
    %v2537 = vld [vmem:[%s2523 + $0x68] sm:$0xff]
    %v2538 = vld [vmem:[%s2523 + $0x70] sm:$0xff]
    %v2539 = vld [vmem:[%s2523 + $0x78] sm:$0xff]
    %v2540 = vld [vmem:[%s2523 + $0x80] sm:$0xff]
    %v2541 = vld [vmem:[%s2523 + $0x88] sm:$0xff]
    %v2542 = vld [vmem:[%s2523 + $0x90] sm:$0xff]
    %v2543 = vld [vmem:[%s2523 + $0x98] sm:$0xff]
    %v2544 = vld [vmem:[%s2523 + $0xa0] sm:$0xff]
    %v2545 = vld [vmem:[%s2523 + $0xa8] sm:$0xff]
    %v2546 = vld [vmem:[%s2523 + $0xb0] sm:$0xff]
    %v2547 = vld [vmem:[%s2523 + $0xb8] sm:$0xff]
    %v2548 = vld [vmem:[%s2523 + $0xc0] sm:$0xff]
    %v2549 = vld [vmem:[%s2523 + $0xc8] sm:$0xff]
    %v2550 = vld [vmem:[%s2523 + $0xd0] sm:$0xff]
    %v2551 = vld [vmem:[%s2523 + $0xd8] sm:$0xff]
    %v2552 = vld [vmem:[%s2523 + $0xe0] sm:$0xff]
    %v2553 = vld [vmem:[%s2523 + $0xe8] sm:$0xff]
    %v2554 = vld [vmem:[%s2523 + $0xf0] sm:$0xff]
    %v2555 = vld [vmem:[%s2523 + $0xf8] sm:$0xff]
    %s2556 = scalar_lea.vmem %s4, 6
    %v2557 = vld [vmem:[%s2556] sm:$0x3]
    %v2559 = vlaneseq
    %v2560 = vshrl.u32 %v2559, 7
    %v2561 = vsub.s32 0, %v2560
    %v2562 = vrot.slane %v2557, %v2561
    %v2563 = vlaneseq
    %v2564 = vshrl.u32 %v2563, 7
    %v2565 = vsub.s32 1, %v2564
    %v2566 = vrot.slane %v2557, %v2565
    %v2601 = vunpack.c.l.b16 %v2524
    %v2602 = vunpack.c.h.b16 %v2524
    %v2603 = vunpack.c.l.b16 %v2525
    %v2604 = vunpack.c.h.b16 %v2525
    %v2605 = vunpack.c.l.b16 %v2526
    %v2606 = vunpack.c.h.b16 %v2526
    %v2607 = vunpack.c.l.b16 %v2527
    %v2608 = vunpack.c.h.b16 %v2527
    %v2609 = vunpack.c.l.b16 %v2528
    %v2610 = vunpack.c.h.b16 %v2528
    %v2611 = vunpack.c.l.b16 %v2529
    %v2612 = vunpack.c.h.b16 %v2529
    %v2613 = vunpack.c.l.b16 %v2530
    %v2614 = vunpack.c.h.b16 %v2530
    %v2615 = vunpack.c.l.b16 %v2531
    %v2616 = vunpack.c.h.b16 %v2531
    %v2617 = vunpack.c.l.b16 %v2532
    %v2618 = vunpack.c.h.b16 %v2532
    %v2619 = vunpack.c.l.b16 %v2533
    %v2620 = vunpack.c.h.b16 %v2533
    %v2621 = vunpack.c.l.b16 %v2534
    %v2622 = vunpack.c.h.b16 %v2534
    %v2623 = vunpack.c.l.b16 %v2535
    %v2624 = vunpack.c.h.b16 %v2535
    %v2625 = vunpack.c.l.b16 %v2536
    %v2626 = vunpack.c.h.b16 %v2536
    %v2627 = vunpack.c.l.b16 %v2537
    %v2628 = vunpack.c.h.b16 %v2537
    %v2629 = vunpack.c.l.b16 %v2538
    %v2630 = vunpack.c.h.b16 %v2538
    %v2631 = vunpack.c.l.b16 %v2539
    %v2632 = vunpack.c.h.b16 %v2539
    %v2633 = vunpack.c.l.b16 %v2540
    %v2634 = vunpack.c.h.b16 %v2540
    %v2635 = vunpack.c.l.b16 %v2541
    %v2636 = vunpack.c.h.b16 %v2541
    %v2637 = vunpack.c.l.b16 %v2542
    %v2638 = vunpack.c.h.b16 %v2542
    %v2639 = vunpack.c.l.b16 %v2543
    %v2640 = vunpack.c.h.b16 %v2543
    %v2641 = vunpack.c.l.b16 %v2544
    %v2642 = vunpack.c.h.b16 %v2544
    %v2643 = vunpack.c.l.b16 %v2545
    %v2644 = vunpack.c.h.b16 %v2545
    %v2645 = vunpack.c.l.b16 %v2546
    %v2646 = vunpack.c.h.b16 %v2546
    %v2647 = vunpack.c.l.b16 %v2547
    %v2648 = vunpack.c.h.b16 %v2547
    %v2649 = vunpack.c.l.b16 %v2548
    %v2650 = vunpack.c.h.b16 %v2548
    %v2651 = vunpack.c.l.b16 %v2549
    %v2652 = vunpack.c.h.b16 %v2549
    %v2653 = vunpack.c.l.b16 %v2550
    %v2654 = vunpack.c.h.b16 %v2550
    %v2655 = vunpack.c.l.b16 %v2551
    %v2656 = vunpack.c.h.b16 %v2551
    %v2657 = vunpack.c.l.b16 %v2552
    %v2658 = vunpack.c.h.b16 %v2552
    %v2659 = vunpack.c.l.b16 %v2553
    %v2660 = vunpack.c.h.b16 %v2553
    %v2661 = vunpack.c.l.b16 %v2554
    %v2662 = vunpack.c.h.b16 %v2554
    %v2663 = vunpack.c.l.b16 %v2555
    %v2664 = vunpack.c.h.b16 %v2555
    %v2665 = vpack.c.b16 %v2603, %v2601
    %v2666 = vpack.c.b16 %v2604, %v2602
    %v2667 = vpack.c.b16 %v2607, %v2605
    %v2668 = vpack.c.b16 %v2608, %v2606
    %v2669 = vpack.c.b16 %v2611, %v2609
    %v2670 = vpack.c.b16 %v2612, %v2610
    %v2671 = vpack.c.b16 %v2615, %v2613
    %v2672 = vpack.c.b16 %v2616, %v2614
    %v2673 = vpack.c.b16 %v2619, %v2617
    %v2674 = vpack.c.b16 %v2620, %v2618
    %v2675 = vpack.c.b16 %v2623, %v2621
    %v2676 = vpack.c.b16 %v2624, %v2622
    %v2677 = vpack.c.b16 %v2627, %v2625
    %v2678 = vpack.c.b16 %v2628, %v2626
    %v2679 = vpack.c.b16 %v2631, %v2629
    %v2680 = vpack.c.b16 %v2632, %v2630
    %v2681 = vpack.c.b16 %v2635, %v2633
    %v2682 = vpack.c.b16 %v2636, %v2634
    %v2683 = vpack.c.b16 %v2639, %v2637
    %v2684 = vpack.c.b16 %v2640, %v2638
    %v2685 = vpack.c.b16 %v2643, %v2641
    %v2686 = vpack.c.b16 %v2644, %v2642
    %v2687 = vpack.c.b16 %v2647, %v2645
    %v2688 = vpack.c.b16 %v2648, %v2646
    %v2689 = vpack.c.b16 %v2651, %v2649
    %v2690 = vpack.c.b16 %v2652, %v2650
    %v2691 = vpack.c.b16 %v2655, %v2653
    %v2692 = vpack.c.b16 %v2656, %v2654
    %v2693 = vpack.c.b16 %v2659, %v2657
    %v2694 = vpack.c.b16 %v2660, %v2658
    %v2695 = vpack.c.b16 %v2663, %v2661
    %v2696 = vpack.c.b16 %v2664, %v2662
    %2729 = vmatprep.subr.bf16.mxu0 %v2680
    %2730 = vmatpush1.bf16.msra.mxu0 %v2679
    %2731 = vmatprep.subr.bf16.mxu0 %v2678
    %2732 = vmatpush1.bf16.msra.mxu0 %v2677
    %2733 = vmatprep.subr.bf16.mxu0 %v2676
    %2734 = vmatpush1.bf16.msra.mxu0 %v2675
    %2735 = vmatprep.subr.bf16.mxu0 %v2674
    %2736 = vmatpush1.bf16.msra.mxu0 %v2673
    %2737 = vmatprep.subr.bf16.mxu0 %v2672
    %2738 = vmatpush1.bf16.msra.mxu0 %v2671
    %2739 = vmatprep.subr.bf16.mxu0 %v2670
    %2740 = vmatpush1.bf16.msra.mxu0 %v2669
    %2741 = vmatprep.subr.bf16.mxu0 %v2668
    %2742 = vmatpush1.bf16.msra.mxu0 %v2667
    %2743 = vmatprep.subr.bf16.mxu0 %v2666
    %2744 = vmatpush1.bf16.msra.mxu0 %v2665
    %2745 = vmatprep.subr.bf16.mxu0 %v2696
    %2746 = vmatpush2.bf16.msra.mxu0 %v2695
    %2747 = vmatprep.subr.bf16.mxu0 %v2694
    %2748 = vmatpush2.bf16.msra.mxu0 %v2693
    %2749 = vmatprep.subr.bf16.mxu0 %v2692
    %2750 = vmatpush2.bf16.msra.mxu0 %v2691
    %2751 = vmatprep.subr.bf16.mxu0 %v2690
    %2752 = vmatpush2.bf16.msra.mxu0 %v2689
    %2753 = vmatprep.subr.bf16.mxu0 %v2688
    %2754 = vmatpush2.bf16.msra.mxu0 %v2687
    %2755 = vmatprep.subr.bf16.mxu0 %v2686
    %2756 = vmatpush2.bf16.msra.mxu0 %v2685
    %2757 = vmatprep.subr.bf16.mxu0 %v2684
    %2758 = vmatpush2.bf16.msra.mxu0 %v2683
    %2759 = vmatprep.subr.bf16.mxu0 %v2682
    %2760 = vmatpush2.bf16.msra.mxu0 %v2681
    %2761 = vmatprep.mubr.bf16.mxu0 %v2492
    %2762 = vmatmul.mubr.bf16.gmra.mxu0 %v2491
    %v2763 = vpop.f32.mrf.mxu0
    %v2764 = vadd.f32 %v2562, %v2763
    %v2765 = vpop.f32.mrf.mxu0
    %v2766 = vadd.f32 %v2566, %v2765
    %v2767 = vpop.f32.mrf.mxu0
    %v2768 = vadd.f32 %v2562, %v2767
    %v2769 = vpop.f32.mrf.mxu0
    %v2770 = vadd.f32 %v2566, %v2769
    %2771 = vmatprep.mubr.bf16.mxu0 %v2494
    %2772 = vmatmul.mubr.bf16.gmra.mxu0 %v2493
    %v2773 = vpop.f32.mrf.mxu0
    %v2774 = vadd.f32 %v2562, %v2773
    %v2775 = vpop.f32.mrf.mxu0
    %v2776 = vadd.f32 %v2566, %v2775
    %v2777 = vpop.f32.mrf.mxu0
    %v2778 = vadd.f32 %v2562, %v2777
    %v2779 = vpop.f32.mrf.mxu0
    %v2780 = vadd.f32 %v2566, %v2779
    %2781 = vmatprep.mubr.bf16.mxu0 %v2496
    %2782 = vmatmul.mubr.bf16.gmra.mxu0 %v2495
    %v2783 = vpop.f32.mrf.mxu0
    %v2784 = vadd.f32 %v2562, %v2783
    %v2785 = vpop.f32.mrf.mxu0
    %v2786 = vadd.f32 %v2566, %v2785
    %v2787 = vpop.f32.mrf.mxu0
    %v2788 = vadd.f32 %v2562, %v2787
    %v2789 = vpop.f32.mrf.mxu0
    %v2790 = vadd.f32 %v2566, %v2789
    %2791 = vmatprep.mubr.bf16.mxu0 %v2498
    %2792 = vmatmul.mubr.bf16.gmra.mxu0 %v2497
    %v2793 = vpop.f32.mrf.mxu0
    %v2794 = vadd.f32 %v2562, %v2793
    %v2795 = vpop.f32.mrf.mxu0
    %v2796 = vadd.f32 %v2566, %v2795
    %v2797 = vpop.f32.mrf.mxu0
    %v2798 = vadd.f32 %v2562, %v2797
    %v2799 = vpop.f32.mrf.mxu0
    %v2800 = vadd.f32 %v2566, %v2799
    %2801 = vmatprep.mubr.bf16.mxu0 %v2500
    %2802 = vmatmul.mubr.bf16.gmra.mxu0 %v2499
    %v2803 = vpop.f32.mrf.mxu0
    %v2804 = vadd.f32 %v2562, %v2803
    %v2805 = vpop.f32.mrf.mxu0
    %v2806 = vadd.f32 %v2566, %v2805
    %v2807 = vpop.f32.mrf.mxu0
    %v2808 = vadd.f32 %v2562, %v2807
    %v2809 = vpop.f32.mrf.mxu0
    %v2810 = vadd.f32 %v2566, %v2809
    %2811 = vmatprep.mubr.bf16.mxu0 %v2502
    %2812 = vmatmul.mubr.bf16.gmra.mxu0 %v2501
    %v2813 = vpop.f32.mrf.mxu0
    %v2814 = vadd.f32 %v2562, %v2813
    %v2815 = vpop.f32.mrf.mxu0
    %v2816 = vadd.f32 %v2566, %v2815
    %v2817 = vpop.f32.mrf.mxu0
    %v2818 = vadd.f32 %v2562, %v2817
    %v2819 = vpop.f32.mrf.mxu0
    %v2820 = vadd.f32 %v2566, %v2819
    %2821 = vmatprep.mubr.bf16.mxu0 %v2504
    %2822 = vmatmul.mubr.bf16.gmra.mxu0 %v2503
    %v2823 = vpop.f32.mrf.mxu0
    %v2824 = vadd.f32 %v2562, %v2823
    %v2825 = vpop.f32.mrf.mxu0
    %v2826 = vadd.f32 %v2566, %v2825
    %v2827 = vpop.f32.mrf.mxu0
    %v2828 = vadd.f32 %v2562, %v2827
    %v2829 = vpop.f32.mrf.mxu0
    %v2830 = vadd.f32 %v2566, %v2829
    %2831 = vmatprep.mubr.bf16.mxu0 %v2506
    %2832 = vmatmul.mubr.bf16.gmra.mxu0 %v2505
    %v2833 = vpop.f32.mrf.mxu0
    %v2834 = vadd.f32 %v2562, %v2833
    %v2835 = vpop.f32.mrf.mxu0
    %v2836 = vadd.f32 %v2566, %v2835
    %v2837 = vpop.f32.mrf.mxu0
    %v2838 = vadd.f32 %v2562, %v2837
    %v2839 = vpop.f32.mrf.mxu0
    %v2840 = vadd.f32 %v2566, %v2839
    %2841 = vmatprep.mubr.bf16.mxu0 %v2508
    %2842 = vmatmul.mubr.bf16.gmra.mxu0 %v2507
    %v2843 = vpop.f32.mrf.mxu0
    %v2844 = vadd.f32 %v2562, %v2843
    %v2845 = vpop.f32.mrf.mxu0
    %v2846 = vadd.f32 %v2566, %v2845
    %v2847 = vpop.f32.mrf.mxu0
    %v2848 = vadd.f32 %v2562, %v2847
    %v2849 = vpop.f32.mrf.mxu0
    %v2850 = vadd.f32 %v2566, %v2849
    %2851 = vmatprep.mubr.bf16.mxu0 %v2510
    %2852 = vmatmul.mubr.bf16.gmra.mxu0 %v2509
    %v2853 = vpop.f32.mrf.mxu0
    %v2854 = vadd.f32 %v2562, %v2853
    %v2855 = vpop.f32.mrf.mxu0
    %v2856 = vadd.f32 %v2566, %v2855
    %v2857 = vpop.f32.mrf.mxu0
    %v2858 = vadd.f32 %v2562, %v2857
    %v2859 = vpop.f32.mrf.mxu0
    %v2860 = vadd.f32 %v2566, %v2859
    %2861 = vmatprep.mubr.bf16.mxu0 %v2512
    %2862 = vmatmul.mubr.bf16.gmra.mxu0 %v2511
    %v2863 = vpop.f32.mrf.mxu0
    %v2864 = vadd.f32 %v2562, %v2863
    %v2865 = vpop.f32.mrf.mxu0
    %v2866 = vadd.f32 %v2566, %v2865
    %v2867 = vpop.f32.mrf.mxu0
    %v2868 = vadd.f32 %v2562, %v2867
    %v2869 = vpop.f32.mrf.mxu0
    %v2870 = vadd.f32 %v2566, %v2869
    %2871 = vmatprep.mubr.bf16.mxu0 %v2514
    %2872 = vmatmul.mubr.bf16.gmra.mxu0 %v2513
    %v2873 = vpop.f32.mrf.mxu0
    %v2874 = vadd.f32 %v2562, %v2873
    %v2875 = vpop.f32.mrf.mxu0
    %v2876 = vadd.f32 %v2566, %v2875
    %v2877 = vpop.f32.mrf.mxu0
    %v2878 = vadd.f32 %v2562, %v2877
    %v2879 = vpop.f32.mrf.mxu0
    %v2880 = vadd.f32 %v2566, %v2879
    %2881 = vmatprep.mubr.bf16.mxu0 %v2516
    %2882 = vmatmul.mubr.bf16.gmra.mxu0 %v2515
    %v2883 = vpop.f32.mrf.mxu0
    %v2884 = vadd.f32 %v2562, %v2883
    %v2885 = vpop.f32.mrf.mxu0
    %v2886 = vadd.f32 %v2566, %v2885
    %v2887 = vpop.f32.mrf.mxu0
    %v2888 = vadd.f32 %v2562, %v2887
    %v2889 = vpop.f32.mrf.mxu0
    %v2890 = vadd.f32 %v2566, %v2889
    %2891 = vmatprep.mubr.bf16.mxu0 %v2518
    %2892 = vmatmul.mubr.bf16.gmra.mxu0 %v2517
    %v2893 = vpop.f32.mrf.mxu0
    %v2894 = vadd.f32 %v2562, %v2893
    %v2895 = vpop.f32.mrf.mxu0
    %v2896 = vadd.f32 %v2566, %v2895
    %v2897 = vpop.f32.mrf.mxu0
    %v2898 = vadd.f32 %v2562, %v2897
    %v2899 = vpop.f32.mrf.mxu0
    %v2900 = vadd.f32 %v2566, %v2899
    %2901 = vmatprep.mubr.bf16.mxu0 %v2520
    %2902 = vmatmul.mubr.bf16.gmra.mxu0 %v2519
    %v2903 = vpop.f32.mrf.mxu0
    %v2904 = vadd.f32 %v2562, %v2903
    %v2905 = vpop.f32.mrf.mxu0
    %v2906 = vadd.f32 %v2566, %v2905
    %v2907 = vpop.f32.mrf.mxu0
    %v2908 = vadd.f32 %v2562, %v2907
    %v2909 = vpop.f32.mrf.mxu0
    %v2910 = vadd.f32 %v2566, %v2909
    %2911 = vmatprep.mubr.bf16.mxu0 %v2522
    %2912 = vmatmul.mubr.bf16.gmra.mxu0 %v2521
    %v2913 = vpop.f32.mrf.mxu0
    %v2914 = vadd.f32 %v2562, %v2913
    %v2915 = vpop.f32.mrf.mxu0
    %v2916 = vadd.f32 %v2566, %v2915
    %v2917 = vpop.f32.mrf.mxu0
    %v2918 = vadd.f32 %v2562, %v2917
    %v2919 = vpop.f32.mrf.mxu0
    %v2920 = vadd.f32 %v2566, %v2919
    %2921 = vdwg.mxu0
    %v2922 = vmax.f32 %v2764, 0.0
    %v2923 = vmax.f32 %v2766, 0.0
    %v2924 = vmax.f32 %v2768, 0.0
    %v2925 = vmax.f32 %v2770, 0.0
    %v2926 = vmax.f32 %v2774, 0.0
    %v2927 = vmax.f32 %v2776, 0.0
    %v2928 = vmax.f32 %v2778, 0.0
    %v2929 = vmax.f32 %v2780, 0.0
    %v2930 = vmax.f32 %v2784, 0.0
    %v2931 = vmax.f32 %v2786, 0.0
    %v2932 = vmax.f32 %v2788, 0.0
    %v2933 = vmax.f32 %v2790, 0.0
    %v2934 = vmax.f32 %v2794, 0.0
    %v2935 = vmax.f32 %v2796, 0.0
    %v2936 = vmax.f32 %v2798, 0.0
    %v2937 = vmax.f32 %v2800, 0.0
    %v2938 = vmax.f32 %v2804, 0.0
    %v2939 = vmax.f32 %v2806, 0.0
    %v2940 = vmax.f32 %v2808, 0.0
    %v2941 = vmax.f32 %v2810, 0.0
    %v2942 = vmax.f32 %v2814, 0.0
    %v2943 = vmax.f32 %v2816, 0.0
    %v2944 = vmax.f32 %v2818, 0.0
    %v2945 = vmax.f32 %v2820, 0.0
    %v2946 = vmax.f32 %v2824, 0.0
    %v2947 = vmax.f32 %v2826, 0.0
    %v2948 = vmax.f32 %v2828, 0.0
    %v2949 = vmax.f32 %v2830, 0.0
    %v2950 = vmax.f32 %v2834, 0.0
    %v2951 = vmax.f32 %v2836, 0.0
    %v2952 = vmax.f32 %v2838, 0.0
    %v2953 = vmax.f32 %v2840, 0.0
    %v2954 = vmax.f32 %v2844, 0.0
    %v2955 = vmax.f32 %v2846, 0.0
    %v2956 = vmax.f32 %v2848, 0.0
    %v2957 = vmax.f32 %v2850, 0.0
    %v2958 = vmax.f32 %v2854, 0.0
    %v2959 = vmax.f32 %v2856, 0.0
    %v2960 = vmax.f32 %v2858, 0.0
    %v2961 = vmax.f32 %v2860, 0.0
    %v2962 = vmax.f32 %v2864, 0.0
    %v2963 = vmax.f32 %v2866, 0.0
    %v2964 = vmax.f32 %v2868, 0.0
    %v2965 = vmax.f32 %v2870, 0.0
    %v2966 = vmax.f32 %v2874, 0.0
    %v2967 = vmax.f32 %v2876, 0.0
    %v2968 = vmax.f32 %v2878, 0.0
    %v2969 = vmax.f32 %v2880, 0.0
    %v2970 = vmax.f32 %v2884, 0.0
    %v2971 = vmax.f32 %v2886, 0.0
    %v2972 = vmax.f32 %v2888, 0.0
    %v2973 = vmax.f32 %v2890, 0.0
    %v2974 = vmax.f32 %v2894, 0.0
    %v2975 = vmax.f32 %v2896, 0.0
    %v2976 = vmax.f32 %v2898, 0.0
    %v2977 = vmax.f32 %v2900, 0.0
    %v2978 = vmax.f32 %v2904, 0.0
    %v2979 = vmax.f32 %v2906, 0.0
    %v2980 = vmax.f32 %v2908, 0.0
    %v2981 = vmax.f32 %v2910, 0.0
    %v2982 = vmax.f32 %v2914, 0.0
    %v2983 = vmax.f32 %v2916, 0.0
    %v2984 = vmax.f32 %v2918, 0.0
    %v2985 = vmax.f32 %v2920, 0.0
    %v2986 = vpack.c.bf16 %v2924, %v2922
    %v2987 = vpack.c.bf16 %v2925, %v2923
    %v2988 = vpack.c.bf16 %v2928, %v2926
    %v2989 = vpack.c.bf16 %v2929, %v2927
    %v2990 = vpack.c.bf16 %v2932, %v2930
    %v2991 = vpack.c.bf16 %v2933, %v2931
    %v2992 = vpack.c.bf16 %v2936, %v2934
    %v2993 = vpack.c.bf16 %v2937, %v2935
    %v2994 = vpack.c.bf16 %v2940, %v2938
    %v2995 = vpack.c.bf16 %v2941, %v2939
    %v2996 = vpack.c.bf16 %v2944, %v2942
    %v2997 = vpack.c.bf16 %v2945, %v2943
    %v2998 = vpack.c.bf16 %v2948, %v2946
    %v2999 = vpack.c.bf16 %v2949, %v2947
    %v3000 = vpack.c.bf16 %v2952, %v2950
    %v3001 = vpack.c.bf16 %v2953, %v2951
    %v3002 = vpack.c.bf16 %v2956, %v2954
    %v3003 = vpack.c.bf16 %v2957, %v2955
    %v3004 = vpack.c.bf16 %v2960, %v2958
    %v3005 = vpack.c.bf16 %v2961, %v2959
    %v3006 = vpack.c.bf16 %v2964, %v2962
    %v3007 = vpack.c.bf16 %v2965, %v2963
    %v3008 = vpack.c.bf16 %v2968, %v2966
    %v3009 = vpack.c.bf16 %v2969, %v2967
    %v3010 = vpack.c.bf16 %v2972, %v2970
    %v3011 = vpack.c.bf16 %v2973, %v2971
    %v3012 = vpack.c.bf16 %v2976, %v2974
    %v3013 = vpack.c.bf16 %v2977, %v2975
    %v3014 = vpack.c.bf16 %v2980, %v2978
    %v3015 = vpack.c.bf16 %v2981, %v2979
    %v3016 = vpack.c.bf16 %v2984, %v2982
    %v3017 = vpack.c.bf16 %v2985, %v2983
    %s3018 = scalar_lea.vmem [#allocation2], 1024
    %v3019 = vld [vmem:[%s3018] sm:$0xff]
    %v3020 = vld [vmem:[%s3018 + $0x8] sm:$0xff]
    %v3021 = vld [vmem:[%s3018 + $0x10] sm:$0xff]
    %v3022 = vld [vmem:[%s3018 + $0x18] sm:$0xff]
    %v3023 = vld [vmem:[%s3018 + $0x20] sm:$0xff]
    %v3024 = vld [vmem:[%s3018 + $0x28] sm:$0xff]
    %v3025 = vld [vmem:[%s3018 + $0x30] sm:$0xff]
    %v3026 = vld [vmem:[%s3018 + $0x38] sm:$0xff]
    %v3027 = vld [vmem:[%s3018 + $0x40] sm:$0xff]
    %v3028 = vld [vmem:[%s3018 + $0x48] sm:$0xff]
    %v3029 = vld [vmem:[%s3018 + $0x50] sm:$0xff]
    %v3030 = vld [vmem:[%s3018 + $0x58] sm:$0xff]
    %v3031 = vld [vmem:[%s3018 + $0x60] sm:$0xff]
    %v3032 = vld [vmem:[%s3018 + $0x68] sm:$0xff]
    %v3033 = vld [vmem:[%s3018 + $0x70] sm:$0xff]
    %v3034 = vld [vmem:[%s3018 + $0x78] sm:$0xff]
    %v3035 = vld [vmem:[%s3018 + $0x80] sm:$0xff]
    %v3036 = vld [vmem:[%s3018 + $0x88] sm:$0xff]
    %v3037 = vld [vmem:[%s3018 + $0x90] sm:$0xff]
    %v3038 = vld [vmem:[%s3018 + $0x98] sm:$0xff]
    %v3039 = vld [vmem:[%s3018 + $0xa0] sm:$0xff]
    %v3040 = vld [vmem:[%s3018 + $0xa8] sm:$0xff]
    %v3041 = vld [vmem:[%s3018 + $0xb0] sm:$0xff]
    %v3042 = vld [vmem:[%s3018 + $0xb8] sm:$0xff]
    %v3043 = vld [vmem:[%s3018 + $0xc0] sm:$0xff]
    %v3044 = vld [vmem:[%s3018 + $0xc8] sm:$0xff]
    %v3045 = vld [vmem:[%s3018 + $0xd0] sm:$0xff]
    %v3046 = vld [vmem:[%s3018 + $0xd8] sm:$0xff]
    %v3047 = vld [vmem:[%s3018 + $0xe0] sm:$0xff]
    %v3048 = vld [vmem:[%s3018 + $0xe8] sm:$0xff]
    %v3049 = vld [vmem:[%s3018 + $0xf0] sm:$0xff]
    %v3050 = vld [vmem:[%s3018 + $0xf8] sm:$0xff]
    %s3051 = scalar_lea.vmem %s4, 8
    %v3052 = vld [vmem:[%s3051] sm:$0x3]
    %v3054 = vlaneseq
    %v3055 = vshrl.u32 %v3054, 7
    %v3056 = vsub.s32 0, %v3055
    %v3057 = vrot.slane %v3052, %v3056
    %v3058 = vlaneseq
    %v3059 = vshrl.u32 %v3058, 7
    %v3060 = vsub.s32 1, %v3059
    %v3061 = vrot.slane %v3052, %v3060
    %v3096 = vunpack.c.l.b16 %v3019
    %v3097 = vunpack.c.h.b16 %v3019
    %v3098 = vunpack.c.l.b16 %v3020
    %v3099 = vunpack.c.h.b16 %v3020
    %v3100 = vunpack.c.l.b16 %v3021
    %v3101 = vunpack.c.h.b16 %v3021
    %v3102 = vunpack.c.l.b16 %v3022
    %v3103 = vunpack.c.h.b16 %v3022
    %v3104 = vunpack.c.l.b16 %v3023
    %v3105 = vunpack.c.h.b16 %v3023
    %v3106 = vunpack.c.l.b16 %v3024
    %v3107 = vunpack.c.h.b16 %v3024
    %v3108 = vunpack.c.l.b16 %v3025
    %v3109 = vunpack.c.h.b16 %v3025
    %v3110 = vunpack.c.l.b16 %v3026
    %v3111 = vunpack.c.h.b16 %v3026
    %v3112 = vunpack.c.l.b16 %v3027
    %v3113 = vunpack.c.h.b16 %v3027
    %v3114 = vunpack.c.l.b16 %v3028
    %v3115 = vunpack.c.h.b16 %v3028
    %v3116 = vunpack.c.l.b16 %v3029
    %v3117 = vunpack.c.h.b16 %v3029
    %v3118 = vunpack.c.l.b16 %v3030
    %v3119 = vunpack.c.h.b16 %v3030
    %v3120 = vunpack.c.l.b16 %v3031
    %v3121 = vunpack.c.h.b16 %v3031
    %v3122 = vunpack.c.l.b16 %v3032
    %v3123 = vunpack.c.h.b16 %v3032
    %v3124 = vunpack.c.l.b16 %v3033
    %v3125 = vunpack.c.h.b16 %v3033
    %v3126 = vunpack.c.l.b16 %v3034
    %v3127 = vunpack.c.h.b16 %v3034
    %v3128 = vunpack.c.l.b16 %v3035
    %v3129 = vunpack.c.h.b16 %v3035
    %v3130 = vunpack.c.l.b16 %v3036
    %v3131 = vunpack.c.h.b16 %v3036
    %v3132 = vunpack.c.l.b16 %v3037
    %v3133 = vunpack.c.h.b16 %v3037
    %v3134 = vunpack.c.l.b16 %v3038
    %v3135 = vunpack.c.h.b16 %v3038
    %v3136 = vunpack.c.l.b16 %v3039
    %v3137 = vunpack.c.h.b16 %v3039
    %v3138 = vunpack.c.l.b16 %v3040
    %v3139 = vunpack.c.h.b16 %v3040
    %v3140 = vunpack.c.l.b16 %v3041
    %v3141 = vunpack.c.h.b16 %v3041
    %v3142 = vunpack.c.l.b16 %v3042
    %v3143 = vunpack.c.h.b16 %v3042
    %v3144 = vunpack.c.l.b16 %v3043
    %v3145 = vunpack.c.h.b16 %v3043
    %v3146 = vunpack.c.l.b16 %v3044
    %v3147 = vunpack.c.h.b16 %v3044
    %v3148 = vunpack.c.l.b16 %v3045
    %v3149 = vunpack.c.h.b16 %v3045
    %v3150 = vunpack.c.l.b16 %v3046
    %v3151 = vunpack.c.h.b16 %v3046
    %v3152 = vunpack.c.l.b16 %v3047
    %v3153 = vunpack.c.h.b16 %v3047
    %v3154 = vunpack.c.l.b16 %v3048
    %v3155 = vunpack.c.h.b16 %v3048
    %v3156 = vunpack.c.l.b16 %v3049
    %v3157 = vunpack.c.h.b16 %v3049
    %v3158 = vunpack.c.l.b16 %v3050
    %v3159 = vunpack.c.h.b16 %v3050
    %v3160 = vpack.c.b16 %v3098, %v3096
    %v3161 = vpack.c.b16 %v3099, %v3097
    %v3162 = vpack.c.b16 %v3102, %v3100
    %v3163 = vpack.c.b16 %v3103, %v3101
    %v3164 = vpack.c.b16 %v3106, %v3104
    %v3165 = vpack.c.b16 %v3107, %v3105
    %v3166 = vpack.c.b16 %v3110, %v3108
    %v3167 = vpack.c.b16 %v3111, %v3109
    %v3168 = vpack.c.b16 %v3114, %v3112
    %v3169 = vpack.c.b16 %v3115, %v3113
    %v3170 = vpack.c.b16 %v3118, %v3116
    %v3171 = vpack.c.b16 %v3119, %v3117
    %v3172 = vpack.c.b16 %v3122, %v3120
    %v3173 = vpack.c.b16 %v3123, %v3121
    %v3174 = vpack.c.b16 %v3126, %v3124
    %v3175 = vpack.c.b16 %v3127, %v3125
    %v3176 = vpack.c.b16 %v3130, %v3128
    %v3177 = vpack.c.b16 %v3131, %v3129
    %v3178 = vpack.c.b16 %v3134, %v3132
    %v3179 = vpack.c.b16 %v3135, %v3133
    %v3180 = vpack.c.b16 %v3138, %v3136
    %v3181 = vpack.c.b16 %v3139, %v3137
    %v3182 = vpack.c.b16 %v3142, %v3140
    %v3183 = vpack.c.b16 %v3143, %v3141
    %v3184 = vpack.c.b16 %v3146, %v3144
    %v3185 = vpack.c.b16 %v3147, %v3145
    %v3186 = vpack.c.b16 %v3150, %v3148
    %v3187 = vpack.c.b16 %v3151, %v3149
    %v3188 = vpack.c.b16 %v3154, %v3152
    %v3189 = vpack.c.b16 %v3155, %v3153
    %v3190 = vpack.c.b16 %v3158, %v3156
    %v3191 = vpack.c.b16 %v3159, %v3157
    %3224 = vmatprep.subr.bf16.mxu0 %v3175
    %3225 = vmatpush1.bf16.msra.mxu0 %v3174
    %3226 = vmatprep.subr.bf16.mxu0 %v3173
    %3227 = vmatpush1.bf16.msra.mxu0 %v3172
    %3228 = vmatprep.subr.bf16.mxu0 %v3171
    %3229 = vmatpush1.bf16.msra.mxu0 %v3170
    %3230 = vmatprep.subr.bf16.mxu0 %v3169
    %3231 = vmatpush1.bf16.msra.mxu0 %v3168
    %3232 = vmatprep.subr.bf16.mxu0 %v3167
    %3233 = vmatpush1.bf16.msra.mxu0 %v3166
    %3234 = vmatprep.subr.bf16.mxu0 %v3165
    %3235 = vmatpush1.bf16.msra.mxu0 %v3164
    %3236 = vmatprep.subr.bf16.mxu0 %v3163
    %3237 = vmatpush1.bf16.msra.mxu0 %v3162
    %3238 = vmatprep.subr.bf16.mxu0 %v3161
    %3239 = vmatpush1.bf16.msra.mxu0 %v3160
    %3240 = vmatprep.subr.bf16.mxu0 %v3191
    %3241 = vmatpush2.bf16.msra.mxu0 %v3190
    %3242 = vmatprep.subr.bf16.mxu0 %v3189
    %3243 = vmatpush2.bf16.msra.mxu0 %v3188
    %3244 = vmatprep.subr.bf16.mxu0 %v3187
    %3245 = vmatpush2.bf16.msra.mxu0 %v3186
    %3246 = vmatprep.subr.bf16.mxu0 %v3185
    %3247 = vmatpush2.bf16.msra.mxu0 %v3184
    %3248 = vmatprep.subr.bf16.mxu0 %v3183
    %3249 = vmatpush2.bf16.msra.mxu0 %v3182
    %3250 = vmatprep.subr.bf16.mxu0 %v3181
    %3251 = vmatpush2.bf16.msra.mxu0 %v3180
    %3252 = vmatprep.subr.bf16.mxu0 %v3179
    %3253 = vmatpush2.bf16.msra.mxu0 %v3178
    %3254 = vmatprep.subr.bf16.mxu0 %v3177
    %3255 = vmatpush2.bf16.msra.mxu0 %v3176
    %3256 = vmatprep.mubr.bf16.mxu0 %v2987
    %3257 = vmatmul.mubr.bf16.gmra.mxu0 %v2986
    %v3258 = vpop.f32.mrf.mxu0
    %v3259 = vadd.f32 %v3057, %v3258
    %v3260 = vpop.f32.mrf.mxu0
    %v3261 = vadd.f32 %v3061, %v3260
    %v3262 = vpop.f32.mrf.mxu0
    %v3263 = vadd.f32 %v3057, %v3262
    %v3264 = vpop.f32.mrf.mxu0
    %v3265 = vadd.f32 %v3061, %v3264
    %3266 = vmatprep.mubr.bf16.mxu0 %v2989
    %3267 = vmatmul.mubr.bf16.gmra.mxu0 %v2988
    %v3268 = vpop.f32.mrf.mxu0
    %v3269 = vadd.f32 %v3057, %v3268
    %v3270 = vpop.f32.mrf.mxu0
    %v3271 = vadd.f32 %v3061, %v3270
    %v3272 = vpop.f32.mrf.mxu0
    %v3273 = vadd.f32 %v3057, %v3272
    %v3274 = vpop.f32.mrf.mxu0
    %v3275 = vadd.f32 %v3061, %v3274
    %3276 = vmatprep.mubr.bf16.mxu0 %v2991
    %3277 = vmatmul.mubr.bf16.gmra.mxu0 %v2990
    %v3278 = vpop.f32.mrf.mxu0
    %v3279 = vadd.f32 %v3057, %v3278
    %v3280 = vpop.f32.mrf.mxu0
    %v3281 = vadd.f32 %v3061, %v3280
    %v3282 = vpop.f32.mrf.mxu0
    %v3283 = vadd.f32 %v3057, %v3282
    %v3284 = vpop.f32.mrf.mxu0
    %v3285 = vadd.f32 %v3061, %v3284
    %3286 = vmatprep.mubr.bf16.mxu0 %v2993
    %3287 = vmatmul.mubr.bf16.gmra.mxu0 %v2992
    %v3288 = vpop.f32.mrf.mxu0
    %v3289 = vadd.f32 %v3057, %v3288
    %v3290 = vpop.f32.mrf.mxu0
    %v3291 = vadd.f32 %v3061, %v3290
    %v3292 = vpop.f32.mrf.mxu0
    %v3293 = vadd.f32 %v3057, %v3292
    %v3294 = vpop.f32.mrf.mxu0
    %v3295 = vadd.f32 %v3061, %v3294
    %3296 = vmatprep.mubr.bf16.mxu0 %v2995
    %3297 = vmatmul.mubr.bf16.gmra.mxu0 %v2994
    %v3298 = vpop.f32.mrf.mxu0
    %v3299 = vadd.f32 %v3057, %v3298
    %v3300 = vpop.f32.mrf.mxu0
    %v3301 = vadd.f32 %v3061, %v3300
    %v3302 = vpop.f32.mrf.mxu0
    %v3303 = vadd.f32 %v3057, %v3302
    %v3304 = vpop.f32.mrf.mxu0
    %v3305 = vadd.f32 %v3061, %v3304
    %3306 = vmatprep.mubr.bf16.mxu0 %v2997
    %3307 = vmatmul.mubr.bf16.gmra.mxu0 %v2996
    %v3308 = vpop.f32.mrf.mxu0
    %v3309 = vadd.f32 %v3057, %v3308
    %v3310 = vpop.f32.mrf.mxu0
    %v3311 = vadd.f32 %v3061, %v3310
    %v3312 = vpop.f32.mrf.mxu0
    %v3313 = vadd.f32 %v3057, %v3312
    %v3314 = vpop.f32.mrf.mxu0
    %v3315 = vadd.f32 %v3061, %v3314
    %3316 = vmatprep.mubr.bf16.mxu0 %v2999
    %3317 = vmatmul.mubr.bf16.gmra.mxu0 %v2998
    %v3318 = vpop.f32.mrf.mxu0
    %v3319 = vadd.f32 %v3057, %v3318
    %v3320 = vpop.f32.mrf.mxu0
    %v3321 = vadd.f32 %v3061, %v3320
    %v3322 = vpop.f32.mrf.mxu0
    %v3323 = vadd.f32 %v3057, %v3322
    %v3324 = vpop.f32.mrf.mxu0
    %v3325 = vadd.f32 %v3061, %v3324
    %3326 = vmatprep.mubr.bf16.mxu0 %v3001
    %3327 = vmatmul.mubr.bf16.gmra.mxu0 %v3000
    %v3328 = vpop.f32.mrf.mxu0
    %v3329 = vadd.f32 %v3057, %v3328
    %v3330 = vpop.f32.mrf.mxu0
    %v3331 = vadd.f32 %v3061, %v3330
    %v3332 = vpop.f32.mrf.mxu0
    %v3333 = vadd.f32 %v3057, %v3332
    %v3334 = vpop.f32.mrf.mxu0
    %v3335 = vadd.f32 %v3061, %v3334
    %3336 = vmatprep.mubr.bf16.mxu0 %v3003
    %3337 = vmatmul.mubr.bf16.gmra.mxu0 %v3002
    %v3338 = vpop.f32.mrf.mxu0
    %v3339 = vadd.f32 %v3057, %v3338
    %v3340 = vpop.f32.mrf.mxu0
    %v3341 = vadd.f32 %v3061, %v3340
    %v3342 = vpop.f32.mrf.mxu0
    %v3343 = vadd.f32 %v3057, %v3342
    %v3344 = vpop.f32.mrf.mxu0
    %v3345 = vadd.f32 %v3061, %v3344
    %3346 = vmatprep.mubr.bf16.mxu0 %v3005
    %3347 = vmatmul.mubr.bf16.gmra.mxu0 %v3004
    %v3348 = vpop.f32.mrf.mxu0
    %v3349 = vadd.f32 %v3057, %v3348
    %v3350 = vpop.f32.mrf.mxu0
    %v3351 = vadd.f32 %v3061, %v3350
    %v3352 = vpop.f32.mrf.mxu0
    %v3353 = vadd.f32 %v3057, %v3352
    %v3354 = vpop.f32.mrf.mxu0
    %v3355 = vadd.f32 %v3061, %v3354
    %3356 = vmatprep.mubr.bf16.mxu0 %v3007
    %3357 = vmatmul.mubr.bf16.gmra.mxu0 %v3006
    %v3358 = vpop.f32.mrf.mxu0
    %v3359 = vadd.f32 %v3057, %v3358
    %v3360 = vpop.f32.mrf.mxu0
    %v3361 = vadd.f32 %v3061, %v3360
    %v3362 = vpop.f32.mrf.mxu0
    %v3363 = vadd.f32 %v3057, %v3362
    %v3364 = vpop.f32.mrf.mxu0
    %v3365 = vadd.f32 %v3061, %v3364
    %3366 = vmatprep.mubr.bf16.mxu0 %v3009
    %3367 = vmatmul.mubr.bf16.gmra.mxu0 %v3008
    %v3368 = vpop.f32.mrf.mxu0
    %v3369 = vadd.f32 %v3057, %v3368
    %v3370 = vpop.f32.mrf.mxu0
    %v3371 = vadd.f32 %v3061, %v3370
    %v3372 = vpop.f32.mrf.mxu0
    %v3373 = vadd.f32 %v3057, %v3372
    %v3374 = vpop.f32.mrf.mxu0
    %v3375 = vadd.f32 %v3061, %v3374
    %3376 = vmatprep.mubr.bf16.mxu0 %v3011
    %3377 = vmatmul.mubr.bf16.gmra.mxu0 %v3010
    %v3378 = vpop.f32.mrf.mxu0
    %v3379 = vadd.f32 %v3057, %v3378
    %v3380 = vpop.f32.mrf.mxu0
    %v3381 = vadd.f32 %v3061, %v3380
    %v3382 = vpop.f32.mrf.mxu0
    %v3383 = vadd.f32 %v3057, %v3382
    %v3384 = vpop.f32.mrf.mxu0
    %v3385 = vadd.f32 %v3061, %v3384
    %3386 = vmatprep.mubr.bf16.mxu0 %v3013
    %3387 = vmatmul.mubr.bf16.gmra.mxu0 %v3012
    %v3388 = vpop.f32.mrf.mxu0
    %v3389 = vadd.f32 %v3057, %v3388
    %v3390 = vpop.f32.mrf.mxu0
    %v3391 = vadd.f32 %v3061, %v3390
    %v3392 = vpop.f32.mrf.mxu0
    %v3393 = vadd.f32 %v3057, %v3392
    %v3394 = vpop.f32.mrf.mxu0
    %v3395 = vadd.f32 %v3061, %v3394
    %3396 = vmatprep.mubr.bf16.mxu0 %v3015
    %3397 = vmatmul.mubr.bf16.gmra.mxu0 %v3014
    %v3398 = vpop.f32.mrf.mxu0
    %v3399 = vadd.f32 %v3057, %v3398
    %v3400 = vpop.f32.mrf.mxu0
    %v3401 = vadd.f32 %v3061, %v3400
    %v3402 = vpop.f32.mrf.mxu0
    %v3403 = vadd.f32 %v3057, %v3402
    %v3404 = vpop.f32.mrf.mxu0
    %v3405 = vadd.f32 %v3061, %v3404
    %3406 = vmatprep.mubr.bf16.mxu0 %v3017
    %3407 = vmatmul.mubr.bf16.gmra.mxu0 %v3016
    %v3408 = vpop.f32.mrf.mxu0
    %v3409 = vadd.f32 %v3057, %v3408
    %v3410 = vpop.f32.mrf.mxu0
    %v3411 = vadd.f32 %v3061, %v3410
    %v3412 = vpop.f32.mrf.mxu0
    %v3413 = vadd.f32 %v3057, %v3412
    %v3414 = vpop.f32.mrf.mxu0
    %v3415 = vadd.f32 %v3061, %v3414
    %3416 = vdwg.mxu0
    %v3417 = vld [vmem:[%s5] ss:$8 sm:$0x3]
    %v3419 = vlaneseq
    %v3420 = vshrl.u32 %v3419, 7
    %v3421 = vsub.s32 0, %v3420
    %v3422 = vrot.slane %v3417, %v3421
    %v3423 = vlaneseq
    %v3424 = vshrl.u32 %v3423, 7
    %v3425 = vsub.s32 1, %v3424
    %v3426 = vrot.slane %v3417, %v3425
    %v3429 = vmul.f32 %v98, %v3422
    %v3430 = vmul.f32 %v98, %v3426
    %v3431 = vmul.f32 %v103, %v3422
    %v3432 = vmul.f32 %v103, %v3426
    %v3433 = vmul.f32 %v108, %v3422
    %v3434 = vmul.f32 %v108, %v3426
    %v3435 = vmul.f32 %v113, %v3422
    %v3436 = vmul.f32 %v113, %v3426
    %v3437 = vmul.f32 %v118, %v3422
    %v3438 = vmul.f32 %v118, %v3426
    %v3439 = vmul.f32 %v123, %v3422
    %v3440 = vmul.f32 %v123, %v3426
    %v3441 = vmul.f32 %v128, %v3422
    %v3442 = vmul.f32 %v128, %v3426
    %v3443 = vmul.f32 %v133, %v3422
    %v3444 = vmul.f32 %v133, %v3426
    %v3445 = vmul.f32 %v138, %v3422
    %v3446 = vmul.f32 %v138, %v3426
    %v3447 = vmul.f32 %v143, %v3422
    %v3448 = vmul.f32 %v143, %v3426
    %v3449 = vmul.f32 %v148, %v3422
    %v3450 = vmul.f32 %v148, %v3426
    %v3451 = vmul.f32 %v153, %v3422
    %v3452 = vmul.f32 %v153, %v3426
    %v3453 = vmul.f32 %v158, %v3422
    %v3454 = vmul.f32 %v158, %v3426
    %v3455 = vmul.f32 %v163, %v3422
    %v3456 = vmul.f32 %v163, %v3426
    %v3457 = vmul.f32 %v168, %v3422
    %v3458 = vmul.f32 %v168, %v3426
    %v3459 = vmul.f32 %v173, %v3422
    %v3460 = vmul.f32 %v173, %v3426
    %v3461 = vmul.f32 %v178, %v3422
    %v3462 = vmul.f32 %v178, %v3426
    %v3463 = vmul.f32 %v183, %v3422
    %v3464 = vmul.f32 %v183, %v3426
    %v3465 = vmul.f32 %v188, %v3422
    %v3466 = vmul.f32 %v188, %v3426
    %v3467 = vmul.f32 %v193, %v3422
    %v3468 = vmul.f32 %v193, %v3426
    %v3469 = vmul.f32 %v198, %v3422
    %v3470 = vmul.f32 %v198, %v3426
    %v3471 = vmul.f32 %v203, %v3422
    %v3472 = vmul.f32 %v203, %v3426
    %v3473 = vmul.f32 %v208, %v3422
    %v3474 = vmul.f32 %v208, %v3426
    %v3475 = vmul.f32 %v213, %v3422
    %v3476 = vmul.f32 %v213, %v3426
    %v3477 = vmul.f32 %v218, %v3422
    %v3478 = vmul.f32 %v218, %v3426
    %v3479 = vmul.f32 %v223, %v3422
    %v3480 = vmul.f32 %v223, %v3426
    %v3481 = vmul.f32 %v228, %v3422
    %v3482 = vmul.f32 %v228, %v3426
    %v3483 = vmul.f32 %v233, %v3422
    %v3484 = vmul.f32 %v233, %v3426
    %v3485 = vmul.f32 %v238, %v3422
    %v3486 = vmul.f32 %v238, %v3426
    %v3487 = vmul.f32 %v243, %v3422
    %v3488 = vmul.f32 %v243, %v3426
    %v3489 = vmul.f32 %v248, %v3422
    %v3490 = vmul.f32 %v248, %v3426
    %v3491 = vmul.f32 %v253, %v3422
    %v3492 = vmul.f32 %v253, %v3426
    %s3493 = scalar_lea.vmem %s5, 1
    %v3494 = vld [vmem:[%s3493] ss:$8 sm:$0x3]
    %v3496 = vlaneseq
    %v3497 = vshrl.u32 %v3496, 7
    %v3498 = vsub.s32 0, %v3497
    %v3499 = vrot.slane %v3494, %v3498
    %v3500 = vlaneseq
    %v3501 = vshrl.u32 %v3500, 7
    %v3502 = vsub.s32 1, %v3501
    %v3503 = vrot.slane %v3494, %v3502
    %v3506 = vmul.f32 %v334, %v3499
    %v3507 = vmul.f32 %v334, %v3503
    %v3508 = vmul.f32 %v338, %v3499
    %v3509 = vmul.f32 %v338, %v3503
    %v3510 = vmul.f32 %v342, %v3499
    %v3511 = vmul.f32 %v342, %v3503
    %v3512 = vmul.f32 %v346, %v3499
    %v3513 = vmul.f32 %v346, %v3503
    %v3514 = vmul.f32 %v350, %v3499
    %v3515 = vmul.f32 %v350, %v3503
    %v3516 = vmul.f32 %v354, %v3499
    %v3517 = vmul.f32 %v354, %v3503
    %v3518 = vmul.f32 %v358, %v3499
    %v3519 = vmul.f32 %v358, %v3503
    %v3520 = vmul.f32 %v362, %v3499
    %v3521 = vmul.f32 %v362, %v3503
    %v3522 = vmul.f32 %v366, %v3499
    %v3523 = vmul.f32 %v366, %v3503
    %v3524 = vmul.f32 %v370, %v3499
    %v3525 = vmul.f32 %v370, %v3503
    %v3526 = vmul.f32 %v374, %v3499
    %v3527 = vmul.f32 %v374, %v3503
    %v3528 = vmul.f32 %v378, %v3499
    %v3529 = vmul.f32 %v378, %v3503
    %v3530 = vmul.f32 %v382, %v3499
    %v3531 = vmul.f32 %v382, %v3503
    %v3532 = vmul.f32 %v386, %v3499
    %v3533 = vmul.f32 %v386, %v3503
    %v3534 = vmul.f32 %v390, %v3499
    %v3535 = vmul.f32 %v390, %v3503
    %v3536 = vmul.f32 %v394, %v3499
    %v3537 = vmul.f32 %v394, %v3503
    %v3538 = vmul.f32 %v398, %v3499
    %v3539 = vmul.f32 %v398, %v3503
    %v3540 = vmul.f32 %v402, %v3499
    %v3541 = vmul.f32 %v402, %v3503
    %v3542 = vmul.f32 %v406, %v3499
    %v3543 = vmul.f32 %v406, %v3503
    %v3544 = vmul.f32 %v410, %v3499
    %v3545 = vmul.f32 %v410, %v3503
    %v3546 = vmul.f32 %v414, %v3499
    %v3547 = vmul.f32 %v414, %v3503
    %v3548 = vmul.f32 %v418, %v3499
    %v3549 = vmul.f32 %v418, %v3503
    %v3550 = vmul.f32 %v422, %v3499
    %v3551 = vmul.f32 %v422, %v3503
    %v3552 = vmul.f32 %v426, %v3499
    %v3553 = vmul.f32 %v426, %v3503
    %v3554 = vmul.f32 %v430, %v3499
    %v3555 = vmul.f32 %v430, %v3503
    %v3556 = vmul.f32 %v434, %v3499
    %v3557 = vmul.f32 %v434, %v3503
    %v3558 = vmul.f32 %v438, %v3499
    %v3559 = vmul.f32 %v438, %v3503
    %v3560 = vmul.f32 %v442, %v3499
    %v3561 = vmul.f32 %v442, %v3503
    %v3562 = vmul.f32 %v446, %v3499
    %v3563 = vmul.f32 %v446, %v3503
    %v3564 = vmul.f32 %v450, %v3499
    %v3565 = vmul.f32 %v450, %v3503
    %v3566 = vmul.f32 %v454, %v3499
    %v3567 = vmul.f32 %v454, %v3503
    %v3568 = vmul.f32 %v458, %v3499
    %v3569 = vmul.f32 %v458, %v3503
    %v3570 = vadd.f32 %v3429, %v3506
    %v3571 = vadd.f32 %v3430, %v3507
    %v3572 = vadd.f32 %v3431, %v3508
    %v3573 = vadd.f32 %v3432, %v3509
    %v3574 = vadd.f32 %v3433, %v3510
    %v3575 = vadd.f32 %v3434, %v3511
    %v3576 = vadd.f32 %v3435, %v3512
    %v3577 = vadd.f32 %v3436, %v3513
    %v3578 = vadd.f32 %v3437, %v3514
    %v3579 = vadd.f32 %v3438, %v3515
    %v3580 = vadd.f32 %v3439, %v3516
    %v3581 = vadd.f32 %v3440, %v3517
    %v3582 = vadd.f32 %v3441, %v3518
    %v3583 = vadd.f32 %v3442, %v3519
    %v3584 = vadd.f32 %v3443, %v3520
    %v3585 = vadd.f32 %v3444, %v3521
    %v3586 = vadd.f32 %v3445, %v3522
    %v3587 = vadd.f32 %v3446, %v3523
    %v3588 = vadd.f32 %v3447, %v3524
    %v3589 = vadd.f32 %v3448, %v3525
    %v3590 = vadd.f32 %v3449, %v3526
    %v3591 = vadd.f32 %v3450, %v3527
    %v3592 = vadd.f32 %v3451, %v3528
    %v3593 = vadd.f32 %v3452, %v3529
    %v3594 = vadd.f32 %v3453, %v3530
    %v3595 = vadd.f32 %v3454, %v3531
    %v3596 = vadd.f32 %v3455, %v3532
    %v3597 = vadd.f32 %v3456, %v3533
    %v3598 = vadd.f32 %v3457, %v3534
    %v3599 = vadd.f32 %v3458, %v3535
    %v3600 = vadd.f32 %v3459, %v3536
    %v3601 = vadd.f32 %v3460, %v3537
    %v3602 = vadd.f32 %v3461, %v3538
    %v3603 = vadd.f32 %v3462, %v3539
    %v3604 = vadd.f32 %v3463, %v3540
    %v3605 = vadd.f32 %v3464, %v3541
    %v3606 = vadd.f32 %v3465, %v3542
    %v3607 = vadd.f32 %v3466, %v3543
    %v3608 = vadd.f32 %v3467, %v3544
    %v3609 = vadd.f32 %v3468, %v3545
    %v3610 = vadd.f32 %v3469, %v3546
    %v3611 = vadd.f32 %v3470, %v3547
    %v3612 = vadd.f32 %v3471, %v3548
    %v3613 = vadd.f32 %v3472, %v3549
    %v3614 = vadd.f32 %v3473, %v3550
    %v3615 = vadd.f32 %v3474, %v3551
    %v3616 = vadd.f32 %v3475, %v3552
    %v3617 = vadd.f32 %v3476, %v3553
    %v3618 = vadd.f32 %v3477, %v3554
    %v3619 = vadd.f32 %v3478, %v3555
    %v3620 = vadd.f32 %v3479, %v3556
    %v3621 = vadd.f32 %v3480, %v3557
    %v3622 = vadd.f32 %v3481, %v3558
    %v3623 = vadd.f32 %v3482, %v3559
    %v3624 = vadd.f32 %v3483, %v3560
    %v3625 = vadd.f32 %v3484, %v3561
    %v3626 = vadd.f32 %v3485, %v3562
    %v3627 = vadd.f32 %v3486, %v3563
    %v3628 = vadd.f32 %v3487, %v3564
    %v3629 = vadd.f32 %v3488, %v3565
    %v3630 = vadd.f32 %v3489, %v3566
    %v3631 = vadd.f32 %v3490, %v3567
    %v3632 = vadd.f32 %v3491, %v3568
    %v3633 = vadd.f32 %v3492, %v3569
    %s3634 = scalar_lea.vmem %s5, 2
    %v3635 = vld [vmem:[%s3634] ss:$8 sm:$0x3]
    %v3637 = vlaneseq
    %v3638 = vshrl.u32 %v3637, 7
    %v3639 = vsub.s32 0, %v3638
    %v3640 = vrot.slane %v3635, %v3639
    %v3641 = vlaneseq
    %v3642 = vshrl.u32 %v3641, 7
    %v3643 = vsub.s32 1, %v3642
    %v3644 = vrot.slane %v3635, %v3643
    %v3647 = vmul.f32 %v603, %v3640
    %v3648 = vmul.f32 %v603, %v3644
    %v3649 = vmul.f32 %v607, %v3640
    %v3650 = vmul.f32 %v607, %v3644
    %v3651 = vmul.f32 %v611, %v3640
    %v3652 = vmul.f32 %v611, %v3644
    %v3653 = vmul.f32 %v615, %v3640
    %v3654 = vmul.f32 %v615, %v3644
    %v3655 = vmul.f32 %v619, %v3640
    %v3656 = vmul.f32 %v619, %v3644
    %v3657 = vmul.f32 %v623, %v3640
    %v3658 = vmul.f32 %v623, %v3644
    %v3659 = vmul.f32 %v627, %v3640
    %v3660 = vmul.f32 %v627, %v3644
    %v3661 = vmul.f32 %v631, %v3640
    %v3662 = vmul.f32 %v631, %v3644
    %v3663 = vmul.f32 %v635, %v3640
    %v3664 = vmul.f32 %v635, %v3644
    %v3665 = vmul.f32 %v639, %v3640
    %v3666 = vmul.f32 %v639, %v3644
    %v3667 = vmul.f32 %v643, %v3640
    %v3668 = vmul.f32 %v643, %v3644
    %v3669 = vmul.f32 %v647, %v3640
    %v3670 = vmul.f32 %v647, %v3644
    %v3671 = vmul.f32 %v651, %v3640
    %v3672 = vmul.f32 %v651, %v3644
    %v3673 = vmul.f32 %v655, %v3640
    %v3674 = vmul.f32 %v655, %v3644
    %v3675 = vmul.f32 %v659, %v3640
    %v3676 = vmul.f32 %v659, %v3644
    %v3677 = vmul.f32 %v663, %v3640
    %v3678 = vmul.f32 %v663, %v3644
    %v3679 = vmul.f32 %v667, %v3640
    %v3680 = vmul.f32 %v667, %v3644
    %v3681 = vmul.f32 %v671, %v3640
    %v3682 = vmul.f32 %v671, %v3644
    %v3683 = vmul.f32 %v675, %v3640
    %v3684 = vmul.f32 %v675, %v3644
    %v3685 = vmul.f32 %v679, %v3640
    %v3686 = vmul.f32 %v679, %v3644
    %v3687 = vmul.f32 %v683, %v3640
    %v3688 = vmul.f32 %v683, %v3644
    %v3689 = vmul.f32 %v687, %v3640
    %v3690 = vmul.f32 %v687, %v3644
    %v3691 = vmul.f32 %v691, %v3640
    %v3692 = vmul.f32 %v691, %v3644
    %v3693 = vmul.f32 %v695, %v3640
    %v3694 = vmul.f32 %v695, %v3644
    %v3695 = vmul.f32 %v699, %v3640
    %v3696 = vmul.f32 %v699, %v3644
    %v3697 = vmul.f32 %v703, %v3640
    %v3698 = vmul.f32 %v703, %v3644
    %v3699 = vmul.f32 %v707, %v3640
    %v3700 = vmul.f32 %v707, %v3644
    %v3701 = vmul.f32 %v711, %v3640
    %v3702 = vmul.f32 %v711, %v3644
    %v3703 = vmul.f32 %v715, %v3640
    %v3704 = vmul.f32 %v715, %v3644
    %v3705 = vmul.f32 %v719, %v3640
    %v3706 = vmul.f32 %v719, %v3644
    %v3707 = vmul.f32 %v723, %v3640
    %v3708 = vmul.f32 %v723, %v3644
    %v3709 = vmul.f32 %v727, %v3640
    %v3710 = vmul.f32 %v727, %v3644
    %v3711 = vadd.f32 %v3570, %v3647
    %v3712 = vadd.f32 %v3571, %v3648
    %v3713 = vadd.f32 %v3572, %v3649
    %v3714 = vadd.f32 %v3573, %v3650
    %v3715 = vadd.f32 %v3574, %v3651
    %v3716 = vadd.f32 %v3575, %v3652
    %v3717 = vadd.f32 %v3576, %v3653
    %v3718 = vadd.f32 %v3577, %v3654
    %v3719 = vadd.f32 %v3578, %v3655
    %v3720 = vadd.f32 %v3579, %v3656
    %v3721 = vadd.f32 %v3580, %v3657
    %v3722 = vadd.f32 %v3581, %v3658
    %v3723 = vadd.f32 %v3582, %v3659
    %v3724 = vadd.f32 %v3583, %v3660
    %v3725 = vadd.f32 %v3584, %v3661
    %v3726 = vadd.f32 %v3585, %v3662
    %v3727 = vadd.f32 %v3586, %v3663
    %v3728 = vadd.f32 %v3587, %v3664
    %v3729 = vadd.f32 %v3588, %v3665
    %v3730 = vadd.f32 %v3589, %v3666
    %v3731 = vadd.f32 %v3590, %v3667
    %v3732 = vadd.f32 %v3591, %v3668
    %v3733 = vadd.f32 %v3592, %v3669
    %v3734 = vadd.f32 %v3593, %v3670
    %v3735 = vadd.f32 %v3594, %v3671
    %v3736 = vadd.f32 %v3595, %v3672
    %v3737 = vadd.f32 %v3596, %v3673
    %v3738 = vadd.f32 %v3597, %v3674
    %v3739 = vadd.f32 %v3598, %v3675
    %v3740 = vadd.f32 %v3599, %v3676
    %v3741 = vadd.f32 %v3600, %v3677
    %v3742 = vadd.f32 %v3601, %v3678
    %v3743 = vadd.f32 %v3602, %v3679
    %v3744 = vadd.f32 %v3603, %v3680
    %v3745 = vadd.f32 %v3604, %v3681
    %v3746 = vadd.f32 %v3605, %v3682
    %v3747 = vadd.f32 %v3606, %v3683
    %v3748 = vadd.f32 %v3607, %v3684
    %v3749 = vadd.f32 %v3608, %v3685
    %v3750 = vadd.f32 %v3609, %v3686
    %v3751 = vadd.f32 %v3610, %v3687
    %v3752 = vadd.f32 %v3611, %v3688
    %v3753 = vadd.f32 %v3612, %v3689
    %v3754 = vadd.f32 %v3613, %v3690
    %v3755 = vadd.f32 %v3614, %v3691
    %v3756 = vadd.f32 %v3615, %v3692
    %v3757 = vadd.f32 %v3616, %v3693
    %v3758 = vadd.f32 %v3617, %v3694
    %v3759 = vadd.f32 %v3618, %v3695
    %v3760 = vadd.f32 %v3619, %v3696
    %v3761 = vadd.f32 %v3620, %v3697
    %v3762 = vadd.f32 %v3621, %v3698
    %v3763 = vadd.f32 %v3622, %v3699
    %v3764 = vadd.f32 %v3623, %v3700
    %v3765 = vadd.f32 %v3624, %v3701
    %v3766 = vadd.f32 %v3625, %v3702
    %v3767 = vadd.f32 %v3626, %v3703
    %v3768 = vadd.f32 %v3627, %v3704
    %v3769 = vadd.f32 %v3628, %v3705
    %v3770 = vadd.f32 %v3629, %v3706
    %v3771 = vadd.f32 %v3630, %v3707
    %v3772 = vadd.f32 %v3631, %v3708
    %v3773 = vadd.f32 %v3632, %v3709
    %v3774 = vadd.f32 %v3633, %v3710
    %v3775 = vadd.f32 %v3259, %v3711
    %v3776 = vadd.f32 %v3261, %v3712
    %v3777 = vadd.f32 %v3263, %v3713
    %v3778 = vadd.f32 %v3265, %v3714
    %v3779 = vadd.f32 %v3269, %v3715
    %v3780 = vadd.f32 %v3271, %v3716
    %v3781 = vadd.f32 %v3273, %v3717
    %v3782 = vadd.f32 %v3275, %v3718
    %v3783 = vadd.f32 %v3279, %v3719
    %v3784 = vadd.f32 %v3281, %v3720
    %v3785 = vadd.f32 %v3283, %v3721
    %v3786 = vadd.f32 %v3285, %v3722
    %v3787 = vadd.f32 %v3289, %v3723
    %v3788 = vadd.f32 %v3291, %v3724
    %v3789 = vadd.f32 %v3293, %v3725
    %v3790 = vadd.f32 %v3295, %v3726
    %v3791 = vadd.f32 %v3299, %v3727
    %v3792 = vadd.f32 %v3301, %v3728
    %v3793 = vadd.f32 %v3303, %v3729
    %v3794 = vadd.f32 %v3305, %v3730
    %v3795 = vadd.f32 %v3309, %v3731
    %v3796 = vadd.f32 %v3311, %v3732
    %v3797 = vadd.f32 %v3313, %v3733
    %v3798 = vadd.f32 %v3315, %v3734
    %v3799 = vadd.f32 %v3319, %v3735
    %v3800 = vadd.f32 %v3321, %v3736
    %v3801 = vadd.f32 %v3323, %v3737
    %v3802 = vadd.f32 %v3325, %v3738
    %v3803 = vadd.f32 %v3329, %v3739
    %v3804 = vadd.f32 %v3331, %v3740
    %v3805 = vadd.f32 %v3333, %v3741
    %v3806 = vadd.f32 %v3335, %v3742
    %v3807 = vadd.f32 %v3339, %v3743
    %v3808 = vadd.f32 %v3341, %v3744
    %v3809 = vadd.f32 %v3343, %v3745
    %v3810 = vadd.f32 %v3345, %v3746
    %v3811 = vadd.f32 %v3349, %v3747
    %v3812 = vadd.f32 %v3351, %v3748
    %v3813 = vadd.f32 %v3353, %v3749
    %v3814 = vadd.f32 %v3355, %v3750
    %v3815 = vadd.f32 %v3359, %v3751
    %v3816 = vadd.f32 %v3361, %v3752
    %v3817 = vadd.f32 %v3363, %v3753
    %v3818 = vadd.f32 %v3365, %v3754
    %v3819 = vadd.f32 %v3369, %v3755
    %v3820 = vadd.f32 %v3371, %v3756
    %v3821 = vadd.f32 %v3373, %v3757
    %v3822 = vadd.f32 %v3375, %v3758
    %v3823 = vadd.f32 %v3379, %v3759
    %v3824 = vadd.f32 %v3381, %v3760
    %v3825 = vadd.f32 %v3383, %v3761
    %v3826 = vadd.f32 %v3385, %v3762
    %v3827 = vadd.f32 %v3389, %v3763
    %v3828 = vadd.f32 %v3391, %v3764
    %v3829 = vadd.f32 %v3393, %v3765
    %v3830 = vadd.f32 %v3395, %v3766
    %v3831 = vadd.f32 %v3399, %v3767
    %v3832 = vadd.f32 %v3401, %v3768
    %v3833 = vadd.f32 %v3403, %v3769
    %v3834 = vadd.f32 %v3405, %v3770
    %v3835 = vadd.f32 %v3409, %v3771
    %v3836 = vadd.f32 %v3411, %v3772
    %v3837 = vadd.f32 %v3413, %v3773
    %v3838 = vadd.f32 %v3415, %v3774
    %v3839 = vmax.f32 %v3775, 0.0
    %v3840 = vmax.f32 %v3776, 0.0
    %v3841 = vmax.f32 %v3777, 0.0
    %v3842 = vmax.f32 %v3778, 0.0
    %v3843 = vmax.f32 %v3779, 0.0
    %v3844 = vmax.f32 %v3780, 0.0
    %v3845 = vmax.f32 %v3781, 0.0
    %v3846 = vmax.f32 %v3782, 0.0
    %v3847 = vmax.f32 %v3783, 0.0
    %v3848 = vmax.f32 %v3784, 0.0
    %v3849 = vmax.f32 %v3785, 0.0
    %v3850 = vmax.f32 %v3786, 0.0
    %v3851 = vmax.f32 %v3787, 0.0
    %v3852 = vmax.f32 %v3788, 0.0
    %v3853 = vmax.f32 %v3789, 0.0
    %v3854 = vmax.f32 %v3790, 0.0
    %v3855 = vmax.f32 %v3791, 0.0
    %v3856 = vmax.f32 %v3792, 0.0
    %v3857 = vmax.f32 %v3793, 0.0
    %v3858 = vmax.f32 %v3794, 0.0
    %v3859 = vmax.f32 %v3795, 0.0
    %v3860 = vmax.f32 %v3796, 0.0
    %v3861 = vmax.f32 %v3797, 0.0
    %v3862 = vmax.f32 %v3798, 0.0
    %v3863 = vmax.f32 %v3799, 0.0
    %v3864 = vmax.f32 %v3800, 0.0
    %v3865 = vmax.f32 %v3801, 0.0
    %v3866 = vmax.f32 %v3802, 0.0
    %v3867 = vmax.f32 %v3803, 0.0
    %v3868 = vmax.f32 %v3804, 0.0
    %v3869 = vmax.f32 %v3805, 0.0
    %v3870 = vmax.f32 %v3806, 0.0
    %v3871 = vmax.f32 %v3807, 0.0
    %v3872 = vmax.f32 %v3808, 0.0
    %v3873 = vmax.f32 %v3809, 0.0
    %v3874 = vmax.f32 %v3810, 0.0
    %v3875 = vmax.f32 %v3811, 0.0
    %v3876 = vmax.f32 %v3812, 0.0
    %v3877 = vmax.f32 %v3813, 0.0
    %v3878 = vmax.f32 %v3814, 0.0
    %v3879 = vmax.f32 %v3815, 0.0
    %v3880 = vmax.f32 %v3816, 0.0
    %v3881 = vmax.f32 %v3817, 0.0
    %v3882 = vmax.f32 %v3818, 0.0
    %v3883 = vmax.f32 %v3819, 0.0
    %v3884 = vmax.f32 %v3820, 0.0
    %v3885 = vmax.f32 %v3821, 0.0
    %v3886 = vmax.f32 %v3822, 0.0
    %v3887 = vmax.f32 %v3823, 0.0
    %v3888 = vmax.f32 %v3824, 0.0
    %v3889 = vmax.f32 %v3825, 0.0
    %v3890 = vmax.f32 %v3826, 0.0
    %v3891 = vmax.f32 %v3827, 0.0
    %v3892 = vmax.f32 %v3828, 0.0
    %v3893 = vmax.f32 %v3829, 0.0
    %v3894 = vmax.f32 %v3830, 0.0
    %v3895 = vmax.f32 %v3831, 0.0
    %v3896 = vmax.f32 %v3832, 0.0
    %v3897 = vmax.f32 %v3833, 0.0
    %v3898 = vmax.f32 %v3834, 0.0
    %v3899 = vmax.f32 %v3835, 0.0
    %v3900 = vmax.f32 %v3836, 0.0
    %v3901 = vmax.f32 %v3837, 0.0
    %v3902 = vmax.f32 %v3838, 0.0
    %v3903 = vpack.c.bf16 %v3841, %v3839
    %v3904 = vpack.c.bf16 %v3842, %v3840
    %v3905 = vpack.c.bf16 %v3845, %v3843
    %v3906 = vpack.c.bf16 %v3846, %v3844
    %v3907 = vpack.c.bf16 %v3849, %v3847
    %v3908 = vpack.c.bf16 %v3850, %v3848
    %v3909 = vpack.c.bf16 %v3853, %v3851
    %v3910 = vpack.c.bf16 %v3854, %v3852
    %v3911 = vpack.c.bf16 %v3857, %v3855
    %v3912 = vpack.c.bf16 %v3858, %v3856
    %v3913 = vpack.c.bf16 %v3861, %v3859
    %v3914 = vpack.c.bf16 %v3862, %v3860
    %v3915 = vpack.c.bf16 %v3865, %v3863
    %v3916 = vpack.c.bf16 %v3866, %v3864
    %v3917 = vpack.c.bf16 %v3869, %v3867
    %v3918 = vpack.c.bf16 %v3870, %v3868
    %v3919 = vpack.c.bf16 %v3873, %v3871
    %v3920 = vpack.c.bf16 %v3874, %v3872
    %v3921 = vpack.c.bf16 %v3877, %v3875
    %v3922 = vpack.c.bf16 %v3878, %v3876
    %v3923 = vpack.c.bf16 %v3881, %v3879
    %v3924 = vpack.c.bf16 %v3882, %v3880
    %v3925 = vpack.c.bf16 %v3885, %v3883
    %v3926 = vpack.c.bf16 %v3886, %v3884
    %v3927 = vpack.c.bf16 %v3889, %v3887
    %v3928 = vpack.c.bf16 %v3890, %v3888
    %v3929 = vpack.c.bf16 %v3893, %v3891
    %v3930 = vpack.c.bf16 %v3894, %v3892
    %v3931 = vpack.c.bf16 %v3897, %v3895
    %v3932 = vpack.c.bf16 %v3898, %v3896
    %v3933 = vpack.c.bf16 %v3901, %v3899
    %v3934 = vpack.c.bf16 %v3902, %v3900
    %s3935 = scalar_lea.vmem [#allocation2], 1280
    %v3936 = vld [vmem:[%s3935] sm:$0xff]
    %v3937 = vld [vmem:[%s3935 + $0x8] sm:$0xff]
    %v3938 = vld [vmem:[%s3935 + $0x10] sm:$0xff]
    %v3939 = vld [vmem:[%s3935 + $0x18] sm:$0xff]
    %v3940 = vld [vmem:[%s3935 + $0x20] sm:$0xff]
    %v3941 = vld [vmem:[%s3935 + $0x28] sm:$0xff]
    %v3942 = vld [vmem:[%s3935 + $0x30] sm:$0xff]
    %v3943 = vld [vmem:[%s3935 + $0x38] sm:$0xff]
    %v3944 = vld [vmem:[%s3935 + $0x40] sm:$0xff]
    %v3945 = vld [vmem:[%s3935 + $0x48] sm:$0xff]
    %v3946 = vld [vmem:[%s3935 + $0x50] sm:$0xff]
    %v3947 = vld [vmem:[%s3935 + $0x58] sm:$0xff]
    %v3948 = vld [vmem:[%s3935 + $0x60] sm:$0xff]
    %v3949 = vld [vmem:[%s3935 + $0x68] sm:$0xff]
    %v3950 = vld [vmem:[%s3935 + $0x70] sm:$0xff]
    %v3951 = vld [vmem:[%s3935 + $0x78] sm:$0xff]
    %v3952 = vld [vmem:[%s3935 + $0x80] sm:$0xff]
    %v3953 = vld [vmem:[%s3935 + $0x88] sm:$0xff]
    %v3954 = vld [vmem:[%s3935 + $0x90] sm:$0xff]
    %v3955 = vld [vmem:[%s3935 + $0x98] sm:$0xff]
    %v3956 = vld [vmem:[%s3935 + $0xa0] sm:$0xff]
    %v3957 = vld [vmem:[%s3935 + $0xa8] sm:$0xff]
    %v3958 = vld [vmem:[%s3935 + $0xb0] sm:$0xff]
    %v3959 = vld [vmem:[%s3935 + $0xb8] sm:$0xff]
    %v3960 = vld [vmem:[%s3935 + $0xc0] sm:$0xff]
    %v3961 = vld [vmem:[%s3935 + $0xc8] sm:$0xff]
    %v3962 = vld [vmem:[%s3935 + $0xd0] sm:$0xff]
    %v3963 = vld [vmem:[%s3935 + $0xd8] sm:$0xff]
    %v3964 = vld [vmem:[%s3935 + $0xe0] sm:$0xff]
    %v3965 = vld [vmem:[%s3935 + $0xe8] sm:$0xff]
    %v3966 = vld [vmem:[%s3935 + $0xf0] sm:$0xff]
    %v3967 = vld [vmem:[%s3935 + $0xf8] sm:$0xff]
    %s3968 = scalar_lea.vmem %s4, 10
    %v3969 = vld [vmem:[%s3968] sm:$0x3]
    %v3971 = vlaneseq
    %v3972 = vshrl.u32 %v3971, 7
    %v3973 = vsub.s32 0, %v3972
    %v3974 = vrot.slane %v3969, %v3973
    %v3975 = vlaneseq
    %v3976 = vshrl.u32 %v3975, 7
    %v3977 = vsub.s32 1, %v3976
    %v3978 = vrot.slane %v3969, %v3977
    %v4013 = vunpack.c.l.b16 %v3936
    %v4014 = vunpack.c.h.b16 %v3936
    %v4015 = vunpack.c.l.b16 %v3937
    %v4016 = vunpack.c.h.b16 %v3937
    %v4017 = vunpack.c.l.b16 %v3938
    %v4018 = vunpack.c.h.b16 %v3938
    %v4019 = vunpack.c.l.b16 %v3939
    %v4020 = vunpack.c.h.b16 %v3939
    %v4021 = vunpack.c.l.b16 %v3940
    %v4022 = vunpack.c.h.b16 %v3940
    %v4023 = vunpack.c.l.b16 %v3941
    %v4024 = vunpack.c.h.b16 %v3941
    %v4025 = vunpack.c.l.b16 %v3942
    %v4026 = vunpack.c.h.b16 %v3942
    %v4027 = vunpack.c.l.b16 %v3943
    %v4028 = vunpack.c.h.b16 %v3943
    %v4029 = vunpack.c.l.b16 %v3944
    %v4030 = vunpack.c.h.b16 %v3944
    %v4031 = vunpack.c.l.b16 %v3945
    %v4032 = vunpack.c.h.b16 %v3945
    %v4033 = vunpack.c.l.b16 %v3946
    %v4034 = vunpack.c.h.b16 %v3946
    %v4035 = vunpack.c.l.b16 %v3947
    %v4036 = vunpack.c.h.b16 %v3947
    %v4037 = vunpack.c.l.b16 %v3948
    %v4038 = vunpack.c.h.b16 %v3948
    %v4039 = vunpack.c.l.b16 %v3949
    %v4040 = vunpack.c.h.b16 %v3949
    %v4041 = vunpack.c.l.b16 %v3950
    %v4042 = vunpack.c.h.b16 %v3950
    %v4043 = vunpack.c.l.b16 %v3951
    %v4044 = vunpack.c.h.b16 %v3951
    %v4045 = vunpack.c.l.b16 %v3952
    %v4046 = vunpack.c.h.b16 %v3952
    %v4047 = vunpack.c.l.b16 %v3953
    %v4048 = vunpack.c.h.b16 %v3953
    %v4049 = vunpack.c.l.b16 %v3954
    %v4050 = vunpack.c.h.b16 %v3954
    %v4051 = vunpack.c.l.b16 %v3955
    %v4052 = vunpack.c.h.b16 %v3955
    %v4053 = vunpack.c.l.b16 %v3956
    %v4054 = vunpack.c.h.b16 %v3956
    %v4055 = vunpack.c.l.b16 %v3957
    %v4056 = vunpack.c.h.b16 %v3957
    %v4057 = vunpack.c.l.b16 %v3958
    %v4058 = vunpack.c.h.b16 %v3958
    %v4059 = vunpack.c.l.b16 %v3959
    %v4060 = vunpack.c.h.b16 %v3959
    %v4061 = vunpack.c.l.b16 %v3960
    %v4062 = vunpack.c.h.b16 %v3960
    %v4063 = vunpack.c.l.b16 %v3961
    %v4064 = vunpack.c.h.b16 %v3961
    %v4065 = vunpack.c.l.b16 %v3962
    %v4066 = vunpack.c.h.b16 %v3962
    %v4067 = vunpack.c.l.b16 %v3963
    %v4068 = vunpack.c.h.b16 %v3963
    %v4069 = vunpack.c.l.b16 %v3964
    %v4070 = vunpack.c.h.b16 %v3964
    %v4071 = vunpack.c.l.b16 %v3965
    %v4072 = vunpack.c.h.b16 %v3965
    %v4073 = vunpack.c.l.b16 %v3966
    %v4074 = vunpack.c.h.b16 %v3966
    %v4075 = vunpack.c.l.b16 %v3967
    %v4076 = vunpack.c.h.b16 %v3967
    %v4077 = vpack.c.b16 %v4015, %v4013
    %v4078 = vpack.c.b16 %v4016, %v4014
    %v4079 = vpack.c.b16 %v4019, %v4017
    %v4080 = vpack.c.b16 %v4020, %v4018
    %v4081 = vpack.c.b16 %v4023, %v4021
    %v4082 = vpack.c.b16 %v4024, %v4022
    %v4083 = vpack.c.b16 %v4027, %v4025
    %v4084 = vpack.c.b16 %v4028, %v4026
    %v4085 = vpack.c.b16 %v4031, %v4029
    %v4086 = vpack.c.b16 %v4032, %v4030
    %v4087 = vpack.c.b16 %v4035, %v4033
    %v4088 = vpack.c.b16 %v4036, %v4034
    %v4089 = vpack.c.b16 %v4039, %v4037
    %v4090 = vpack.c.b16 %v4040, %v4038
    %v4091 = vpack.c.b16 %v4043, %v4041
    %v4092 = vpack.c.b16 %v4044, %v4042
    %v4093 = vpack.c.b16 %v4047, %v4045
    %v4094 = vpack.c.b16 %v4048, %v4046
    %v4095 = vpack.c.b16 %v4051, %v4049
    %v4096 = vpack.c.b16 %v4052, %v4050
    %v4097 = vpack.c.b16 %v4055, %v4053
    %v4098 = vpack.c.b16 %v4056, %v4054
    %v4099 = vpack.c.b16 %v4059, %v4057
    %v4100 = vpack.c.b16 %v4060, %v4058
    %v4101 = vpack.c.b16 %v4063, %v4061
    %v4102 = vpack.c.b16 %v4064, %v4062
    %v4103 = vpack.c.b16 %v4067, %v4065
    %v4104 = vpack.c.b16 %v4068, %v4066
    %v4105 = vpack.c.b16 %v4071, %v4069
    %v4106 = vpack.c.b16 %v4072, %v4070
    %v4107 = vpack.c.b16 %v4075, %v4073
    %v4108 = vpack.c.b16 %v4076, %v4074
    %4141 = vmatprep.subr.bf16.mxu0 %v4092
    %4142 = vmatpush1.bf16.msra.mxu0 %v4091
    %4143 = vmatprep.subr.bf16.mxu0 %v4090
    %4144 = vmatpush1.bf16.msra.mxu0 %v4089
    %4145 = vmatprep.subr.bf16.mxu0 %v4088
    %4146 = vmatpush1.bf16.msra.mxu0 %v4087
    %4147 = vmatprep.subr.bf16.mxu0 %v4086
    %4148 = vmatpush1.bf16.msra.mxu0 %v4085
    %4149 = vmatprep.subr.bf16.mxu0 %v4084
    %4150 = vmatpush1.bf16.msra.mxu0 %v4083
    %4151 = vmatprep.subr.bf16.mxu0 %v4082
    %4152 = vmatpush1.bf16.msra.mxu0 %v4081
    %4153 = vmatprep.subr.bf16.mxu0 %v4080
    %4154 = vmatpush1.bf16.msra.mxu0 %v4079
    %4155 = vmatprep.subr.bf16.mxu0 %v4078
    %4156 = vmatpush1.bf16.msra.mxu0 %v4077
    %4157 = vmatprep.subr.bf16.mxu0 %v4108
    %4158 = vmatpush2.bf16.msra.mxu0 %v4107
    %4159 = vmatprep.subr.bf16.mxu0 %v4106
    %4160 = vmatpush2.bf16.msra.mxu0 %v4105
    %4161 = vmatprep.subr.bf16.mxu0 %v4104
    %4162 = vmatpush2.bf16.msra.mxu0 %v4103
    %4163 = vmatprep.subr.bf16.mxu0 %v4102
    %4164 = vmatpush2.bf16.msra.mxu0 %v4101
    %4165 = vmatprep.subr.bf16.mxu0 %v4100
    %4166 = vmatpush2.bf16.msra.mxu0 %v4099
    %4167 = vmatprep.subr.bf16.mxu0 %v4098
    %4168 = vmatpush2.bf16.msra.mxu0 %v4097
    %4169 = vmatprep.subr.bf16.mxu0 %v4096
    %4170 = vmatpush2.bf16.msra.mxu0 %v4095
    %4171 = vmatprep.subr.bf16.mxu0 %v4094
    %4172 = vmatpush2.bf16.msra.mxu0 %v4093
    %4173 = vmatprep.mubr.bf16.mxu0 %v3904
    %4174 = vmatmul.mubr.bf16.gmra.mxu0 %v3903
    %v4175 = vpop.f32.mrf.mxu0
    %v4176 = vadd.f32 %v3974, %v4175
    %v4177 = vpop.f32.mrf.mxu0
    %v4178 = vadd.f32 %v3978, %v4177
    %v4179 = vpop.f32.mrf.mxu0
    %v4180 = vadd.f32 %v3974, %v4179
    %v4181 = vpop.f32.mrf.mxu0
    %v4182 = vadd.f32 %v3978, %v4181
    %4183 = vmatprep.mubr.bf16.mxu0 %v3906
    %4184 = vmatmul.mubr.bf16.gmra.mxu0 %v3905
    %v4185 = vpop.f32.mrf.mxu0
    %v4186 = vadd.f32 %v3974, %v4185
    %v4187 = vpop.f32.mrf.mxu0
    %v4188 = vadd.f32 %v3978, %v4187
    %v4189 = vpop.f32.mrf.mxu0
    %v4190 = vadd.f32 %v3974, %v4189
    %v4191 = vpop.f32.mrf.mxu0
    %v4192 = vadd.f32 %v3978, %v4191
    %4193 = vmatprep.mubr.bf16.mxu0 %v3908
    %4194 = vmatmul.mubr.bf16.gmra.mxu0 %v3907
    %v4195 = vpop.f32.mrf.mxu0
    %v4196 = vadd.f32 %v3974, %v4195
    %v4197 = vpop.f32.mrf.mxu0
    %v4198 = vadd.f32 %v3978, %v4197
    %v4199 = vpop.f32.mrf.mxu0
    %v4200 = vadd.f32 %v3974, %v4199
    %v4201 = vpop.f32.mrf.mxu0
    %v4202 = vadd.f32 %v3978, %v4201
    %4203 = vmatprep.mubr.bf16.mxu0 %v3910
    %4204 = vmatmul.mubr.bf16.gmra.mxu0 %v3909
    %v4205 = vpop.f32.mrf.mxu0
    %v4206 = vadd.f32 %v3974, %v4205
    %v4207 = vpop.f32.mrf.mxu0
    %v4208 = vadd.f32 %v3978, %v4207
    %v4209 = vpop.f32.mrf.mxu0
    %v4210 = vadd.f32 %v3974, %v4209
    %v4211 = vpop.f32.mrf.mxu0
    %v4212 = vadd.f32 %v3978, %v4211
    %4213 = vmatprep.mubr.bf16.mxu0 %v3912
    %4214 = vmatmul.mubr.bf16.gmra.mxu0 %v3911
    %v4215 = vpop.f32.mrf.mxu0
    %v4216 = vadd.f32 %v3974, %v4215
    %v4217 = vpop.f32.mrf.mxu0
    %v4218 = vadd.f32 %v3978, %v4217
    %v4219 = vpop.f32.mrf.mxu0
    %v4220 = vadd.f32 %v3974, %v4219
    %v4221 = vpop.f32.mrf.mxu0
    %v4222 = vadd.f32 %v3978, %v4221
    %4223 = vmatprep.mubr.bf16.mxu0 %v3914
    %4224 = vmatmul.mubr.bf16.gmra.mxu0 %v3913
    %v4225 = vpop.f32.mrf.mxu0
    %v4226 = vadd.f32 %v3974, %v4225
    %v4227 = vpop.f32.mrf.mxu0
    %v4228 = vadd.f32 %v3978, %v4227
    %v4229 = vpop.f32.mrf.mxu0
    %v4230 = vadd.f32 %v3974, %v4229
    %v4231 = vpop.f32.mrf.mxu0
    %v4232 = vadd.f32 %v3978, %v4231
    %4233 = vmatprep.mubr.bf16.mxu0 %v3916
    %4234 = vmatmul.mubr.bf16.gmra.mxu0 %v3915
    %v4235 = vpop.f32.mrf.mxu0
    %v4236 = vadd.f32 %v3974, %v4235
    %v4237 = vpop.f32.mrf.mxu0
    %v4238 = vadd.f32 %v3978, %v4237
    %v4239 = vpop.f32.mrf.mxu0
    %v4240 = vadd.f32 %v3974, %v4239
    %v4241 = vpop.f32.mrf.mxu0
    %v4242 = vadd.f32 %v3978, %v4241
    %4243 = vmatprep.mubr.bf16.mxu0 %v3918
    %4244 = vmatmul.mubr.bf16.gmra.mxu0 %v3917
    %v4245 = vpop.f32.mrf.mxu0
    %v4246 = vadd.f32 %v3974, %v4245
    %v4247 = vpop.f32.mrf.mxu0
    %v4248 = vadd.f32 %v3978, %v4247
    %v4249 = vpop.f32.mrf.mxu0
    %v4250 = vadd.f32 %v3974, %v4249
    %v4251 = vpop.f32.mrf.mxu0
    %v4252 = vadd.f32 %v3978, %v4251
    %4253 = vmatprep.mubr.bf16.mxu0 %v3920
    %4254 = vmatmul.mubr.bf16.gmra.mxu0 %v3919
    %v4255 = vpop.f32.mrf.mxu0
    %v4256 = vadd.f32 %v3974, %v4255
    %v4257 = vpop.f32.mrf.mxu0
    %v4258 = vadd.f32 %v3978, %v4257
    %v4259 = vpop.f32.mrf.mxu0
    %v4260 = vadd.f32 %v3974, %v4259
    %v4261 = vpop.f32.mrf.mxu0
    %v4262 = vadd.f32 %v3978, %v4261
    %4263 = vmatprep.mubr.bf16.mxu0 %v3922
    %4264 = vmatmul.mubr.bf16.gmra.mxu0 %v3921
    %v4265 = vpop.f32.mrf.mxu0
    %v4266 = vadd.f32 %v3974, %v4265
    %v4267 = vpop.f32.mrf.mxu0
    %v4268 = vadd.f32 %v3978, %v4267
    %v4269 = vpop.f32.mrf.mxu0
    %v4270 = vadd.f32 %v3974, %v4269
    %v4271 = vpop.f32.mrf.mxu0
    %v4272 = vadd.f32 %v3978, %v4271
    %4273 = vmatprep.mubr.bf16.mxu0 %v3924
    %4274 = vmatmul.mubr.bf16.gmra.mxu0 %v3923
    %v4275 = vpop.f32.mrf.mxu0
    %v4276 = vadd.f32 %v3974, %v4275
    %v4277 = vpop.f32.mrf.mxu0
    %v4278 = vadd.f32 %v3978, %v4277
    %v4279 = vpop.f32.mrf.mxu0
    %v4280 = vadd.f32 %v3974, %v4279
    %v4281 = vpop.f32.mrf.mxu0
    %v4282 = vadd.f32 %v3978, %v4281
    %4283 = vmatprep.mubr.bf16.mxu0 %v3926
    %4284 = vmatmul.mubr.bf16.gmra.mxu0 %v3925
    %v4285 = vpop.f32.mrf.mxu0
    %v4286 = vadd.f32 %v3974, %v4285
    %v4287 = vpop.f32.mrf.mxu0
    %v4288 = vadd.f32 %v3978, %v4287
    %v4289 = vpop.f32.mrf.mxu0
    %v4290 = vadd.f32 %v3974, %v4289
    %v4291 = vpop.f32.mrf.mxu0
    %v4292 = vadd.f32 %v3978, %v4291
    %4293 = vmatprep.mubr.bf16.mxu0 %v3928
    %4294 = vmatmul.mubr.bf16.gmra.mxu0 %v3927
    %v4295 = vpop.f32.mrf.mxu0
    %v4296 = vadd.f32 %v3974, %v4295
    %v4297 = vpop.f32.mrf.mxu0
    %v4298 = vadd.f32 %v3978, %v4297
    %v4299 = vpop.f32.mrf.mxu0
    %v4300 = vadd.f32 %v3974, %v4299
    %v4301 = vpop.f32.mrf.mxu0
    %v4302 = vadd.f32 %v3978, %v4301
    %4303 = vmatprep.mubr.bf16.mxu0 %v3930
    %4304 = vmatmul.mubr.bf16.gmra.mxu0 %v3929
    %v4305 = vpop.f32.mrf.mxu0
    %v4306 = vadd.f32 %v3974, %v4305
    %v4307 = vpop.f32.mrf.mxu0
    %v4308 = vadd.f32 %v3978, %v4307
    %v4309 = vpop.f32.mrf.mxu0
    %v4310 = vadd.f32 %v3974, %v4309
    %v4311 = vpop.f32.mrf.mxu0
    %v4312 = vadd.f32 %v3978, %v4311
    %4313 = vmatprep.mubr.bf16.mxu0 %v3932
    %4314 = vmatmul.mubr.bf16.gmra.mxu0 %v3931
    %v4315 = vpop.f32.mrf.mxu0
    %v4316 = vadd.f32 %v3974, %v4315
    %v4317 = vpop.f32.mrf.mxu0
    %v4318 = vadd.f32 %v3978, %v4317
    %v4319 = vpop.f32.mrf.mxu0
    %v4320 = vadd.f32 %v3974, %v4319
    %v4321 = vpop.f32.mrf.mxu0
    %v4322 = vadd.f32 %v3978, %v4321
    %4323 = vmatprep.mubr.bf16.mxu0 %v3934
    %4324 = vmatmul.mubr.bf16.gmra.mxu0 %v3933
    %v4325 = vpop.f32.mrf.mxu0
    %v4326 = vadd.f32 %v3974, %v4325
    %v4327 = vpop.f32.mrf.mxu0
    %v4328 = vadd.f32 %v3978, %v4327
    %v4329 = vpop.f32.mrf.mxu0
    %v4330 = vadd.f32 %v3974, %v4329
    %v4331 = vpop.f32.mrf.mxu0
    %v4332 = vadd.f32 %v3978, %v4331
    %4333 = vdwg.mxu0
    %v4334 = vmax.f32 %v4176, 0.0
    %v4335 = vmax.f32 %v4178, 0.0
    %v4336 = vmax.f32 %v4180, 0.0
    %v4337 = vmax.f32 %v4182, 0.0
    %v4338 = vmax.f32 %v4186, 0.0
    %v4339 = vmax.f32 %v4188, 0.0
    %v4340 = vmax.f32 %v4190, 0.0
    %v4341 = vmax.f32 %v4192, 0.0
    %v4342 = vmax.f32 %v4196, 0.0
    %v4343 = vmax.f32 %v4198, 0.0
    %v4344 = vmax.f32 %v4200, 0.0
    %v4345 = vmax.f32 %v4202, 0.0
    %v4346 = vmax.f32 %v4206, 0.0
    %v4347 = vmax.f32 %v4208, 0.0
    %v4348 = vmax.f32 %v4210, 0.0
    %v4349 = vmax.f32 %v4212, 0.0
    %v4350 = vmax.f32 %v4216, 0.0
    %v4351 = vmax.f32 %v4218, 0.0
    %v4352 = vmax.f32 %v4220, 0.0
    %v4353 = vmax.f32 %v4222, 0.0
    %v4354 = vmax.f32 %v4226, 0.0
    %v4355 = vmax.f32 %v4228, 0.0
    %v4356 = vmax.f32 %v4230, 0.0
    %v4357 = vmax.f32 %v4232, 0.0
    %v4358 = vmax.f32 %v4236, 0.0
    %v4359 = vmax.f32 %v4238, 0.0
    %v4360 = vmax.f32 %v4240, 0.0
    %v4361 = vmax.f32 %v4242, 0.0
    %v4362 = vmax.f32 %v4246, 0.0
    %v4363 = vmax.f32 %v4248, 0.0
    %v4364 = vmax.f32 %v4250, 0.0
    %v4365 = vmax.f32 %v4252, 0.0
    %v4366 = vmax.f32 %v4256, 0.0
    %v4367 = vmax.f32 %v4258, 0.0
    %v4368 = vmax.f32 %v4260, 0.0
    %v4369 = vmax.f32 %v4262, 0.0
    %v4370 = vmax.f32 %v4266, 0.0
    %v4371 = vmax.f32 %v4268, 0.0
    %v4372 = vmax.f32 %v4270, 0.0
    %v4373 = vmax.f32 %v4272, 0.0
    %v4374 = vmax.f32 %v4276, 0.0
    %v4375 = vmax.f32 %v4278, 0.0
    %v4376 = vmax.f32 %v4280, 0.0
    %v4377 = vmax.f32 %v4282, 0.0
    %v4378 = vmax.f32 %v4286, 0.0
    %v4379 = vmax.f32 %v4288, 0.0
    %v4380 = vmax.f32 %v4290, 0.0
    %v4381 = vmax.f32 %v4292, 0.0
    %v4382 = vmax.f32 %v4296, 0.0
    %v4383 = vmax.f32 %v4298, 0.0
    %v4384 = vmax.f32 %v4300, 0.0
    %v4385 = vmax.f32 %v4302, 0.0
    %v4386 = vmax.f32 %v4306, 0.0
    %v4387 = vmax.f32 %v4308, 0.0
    %v4388 = vmax.f32 %v4310, 0.0
    %v4389 = vmax.f32 %v4312, 0.0
    %v4390 = vmax.f32 %v4316, 0.0
    %v4391 = vmax.f32 %v4318, 0.0
    %v4392 = vmax.f32 %v4320, 0.0
    %v4393 = vmax.f32 %v4322, 0.0
    %v4394 = vmax.f32 %v4326, 0.0
    %v4395 = vmax.f32 %v4328, 0.0
    %v4396 = vmax.f32 %v4330, 0.0
    %v4397 = vmax.f32 %v4332, 0.0
    %v4398 = vpack.c.bf16 %v4336, %v4334
    %v4399 = vpack.c.bf16 %v4337, %v4335
    %v4400 = vpack.c.bf16 %v4340, %v4338
    %v4401 = vpack.c.bf16 %v4341, %v4339
    %v4402 = vpack.c.bf16 %v4344, %v4342
    %v4403 = vpack.c.bf16 %v4345, %v4343
    %v4404 = vpack.c.bf16 %v4348, %v4346
    %v4405 = vpack.c.bf16 %v4349, %v4347
    %v4406 = vpack.c.bf16 %v4352, %v4350
    %v4407 = vpack.c.bf16 %v4353, %v4351
    %v4408 = vpack.c.bf16 %v4356, %v4354
    %v4409 = vpack.c.bf16 %v4357, %v4355
    %v4410 = vpack.c.bf16 %v4360, %v4358
    %v4411 = vpack.c.bf16 %v4361, %v4359
    %v4412 = vpack.c.bf16 %v4364, %v4362
    %v4413 = vpack.c.bf16 %v4365, %v4363
    %v4414 = vpack.c.bf16 %v4368, %v4366
    %v4415 = vpack.c.bf16 %v4369, %v4367
    %v4416 = vpack.c.bf16 %v4372, %v4370
    %v4417 = vpack.c.bf16 %v4373, %v4371
    %v4418 = vpack.c.bf16 %v4376, %v4374
    %v4419 = vpack.c.bf16 %v4377, %v4375
    %v4420 = vpack.c.bf16 %v4380, %v4378
    %v4421 = vpack.c.bf16 %v4381, %v4379
    %v4422 = vpack.c.bf16 %v4384, %v4382
    %v4423 = vpack.c.bf16 %v4385, %v4383
    %v4424 = vpack.c.bf16 %v4388, %v4386
    %v4425 = vpack.c.bf16 %v4389, %v4387
    %v4426 = vpack.c.bf16 %v4392, %v4390
    %v4427 = vpack.c.bf16 %v4393, %v4391
    %v4428 = vpack.c.bf16 %v4396, %v4394
    %v4429 = vpack.c.bf16 %v4397, %v4395
    %s4430 = scalar_lea.vmem [#allocation2], 1536
    %v4431 = vld [vmem:[%s4430] sm:$0xff]
    %v4432 = vld [vmem:[%s4430 + $0x8] sm:$0xff]
    %v4433 = vld [vmem:[%s4430 + $0x10] sm:$0xff]
    %v4434 = vld [vmem:[%s4430 + $0x18] sm:$0xff]
    %v4435 = vld [vmem:[%s4430 + $0x20] sm:$0xff]
    %v4436 = vld [vmem:[%s4430 + $0x28] sm:$0xff]
    %v4437 = vld [vmem:[%s4430 + $0x30] sm:$0xff]
    %v4438 = vld [vmem:[%s4430 + $0x38] sm:$0xff]
    %v4439 = vld [vmem:[%s4430 + $0x40] sm:$0xff]
    %v4440 = vld [vmem:[%s4430 + $0x48] sm:$0xff]
    %v4441 = vld [vmem:[%s4430 + $0x50] sm:$0xff]
    %v4442 = vld [vmem:[%s4430 + $0x58] sm:$0xff]
    %v4443 = vld [vmem:[%s4430 + $0x60] sm:$0xff]
    %v4444 = vld [vmem:[%s4430 + $0x68] sm:$0xff]
    %v4445 = vld [vmem:[%s4430 + $0x70] sm:$0xff]
    %v4446 = vld [vmem:[%s4430 + $0x78] sm:$0xff]
    %v4447 = vld [vmem:[%s4430 + $0x80] sm:$0xff]
    %v4448 = vld [vmem:[%s4430 + $0x88] sm:$0xff]
    %v4449 = vld [vmem:[%s4430 + $0x90] sm:$0xff]
    %v4450 = vld [vmem:[%s4430 + $0x98] sm:$0xff]
    %v4451 = vld [vmem:[%s4430 + $0xa0] sm:$0xff]
    %v4452 = vld [vmem:[%s4430 + $0xa8] sm:$0xff]
    %v4453 = vld [vmem:[%s4430 + $0xb0] sm:$0xff]
    %v4454 = vld [vmem:[%s4430 + $0xb8] sm:$0xff]
    %v4455 = vld [vmem:[%s4430 + $0xc0] sm:$0xff]
    %v4456 = vld [vmem:[%s4430 + $0xc8] sm:$0xff]
    %v4457 = vld [vmem:[%s4430 + $0xd0] sm:$0xff]
    %v4458 = vld [vmem:[%s4430 + $0xd8] sm:$0xff]
    %v4459 = vld [vmem:[%s4430 + $0xe0] sm:$0xff]
    %v4460 = vld [vmem:[%s4430 + $0xe8] sm:$0xff]
    %v4461 = vld [vmem:[%s4430 + $0xf0] sm:$0xff]
    %v4462 = vld [vmem:[%s4430 + $0xf8] sm:$0xff]
    %s4463 = scalar_lea.vmem %s4, 12
    %v4464 = vld [vmem:[%s4463] sm:$0x3]
    %v4466 = vlaneseq
    %v4467 = vshrl.u32 %v4466, 7
    %v4468 = vsub.s32 0, %v4467
    %v4469 = vrot.slane %v4464, %v4468
    %v4470 = vlaneseq
    %v4471 = vshrl.u32 %v4470, 7
    %v4472 = vsub.s32 1, %v4471
    %v4473 = vrot.slane %v4464, %v4472
    %v4508 = vunpack.c.l.b16 %v4431
    %v4509 = vunpack.c.h.b16 %v4431
    %v4510 = vunpack.c.l.b16 %v4432
    %v4511 = vunpack.c.h.b16 %v4432
    %v4512 = vunpack.c.l.b16 %v4433
    %v4513 = vunpack.c.h.b16 %v4433
    %v4514 = vunpack.c.l.b16 %v4434
    %v4515 = vunpack.c.h.b16 %v4434
    %v4516 = vunpack.c.l.b16 %v4435
    %v4517 = vunpack.c.h.b16 %v4435
    %v4518 = vunpack.c.l.b16 %v4436
    %v4519 = vunpack.c.h.b16 %v4436
    %v4520 = vunpack.c.l.b16 %v4437
    %v4521 = vunpack.c.h.b16 %v4437
    %v4522 = vunpack.c.l.b16 %v4438
    %v4523 = vunpack.c.h.b16 %v4438
    %v4524 = vunpack.c.l.b16 %v4439
    %v4525 = vunpack.c.h.b16 %v4439
    %v4526 = vunpack.c.l.b16 %v4440
    %v4527 = vunpack.c.h.b16 %v4440
    %v4528 = vunpack.c.l.b16 %v4441
    %v4529 = vunpack.c.h.b16 %v4441
    %v4530 = vunpack.c.l.b16 %v4442
    %v4531 = vunpack.c.h.b16 %v4442
    %v4532 = vunpack.c.l.b16 %v4443
    %v4533 = vunpack.c.h.b16 %v4443
    %v4534 = vunpack.c.l.b16 %v4444
    %v4535 = vunpack.c.h.b16 %v4444
    %v4536 = vunpack.c.l.b16 %v4445
    %v4537 = vunpack.c.h.b16 %v4445
    %v4538 = vunpack.c.l.b16 %v4446
    %v4539 = vunpack.c.h.b16 %v4446
    %v4540 = vunpack.c.l.b16 %v4447
    %v4541 = vunpack.c.h.b16 %v4447
    %v4542 = vunpack.c.l.b16 %v4448
    %v4543 = vunpack.c.h.b16 %v4448
    %v4544 = vunpack.c.l.b16 %v4449
    %v4545 = vunpack.c.h.b16 %v4449
    %v4546 = vunpack.c.l.b16 %v4450
    %v4547 = vunpack.c.h.b16 %v4450
    %v4548 = vunpack.c.l.b16 %v4451
    %v4549 = vunpack.c.h.b16 %v4451
    %v4550 = vunpack.c.l.b16 %v4452
    %v4551 = vunpack.c.h.b16 %v4452
    %v4552 = vunpack.c.l.b16 %v4453
    %v4553 = vunpack.c.h.b16 %v4453
    %v4554 = vunpack.c.l.b16 %v4454
    %v4555 = vunpack.c.h.b16 %v4454
    %v4556 = vunpack.c.l.b16 %v4455
    %v4557 = vunpack.c.h.b16 %v4455
    %v4558 = vunpack.c.l.b16 %v4456
    %v4559 = vunpack.c.h.b16 %v4456
    %v4560 = vunpack.c.l.b16 %v4457
    %v4561 = vunpack.c.h.b16 %v4457
    %v4562 = vunpack.c.l.b16 %v4458
    %v4563 = vunpack.c.h.b16 %v4458
    %v4564 = vunpack.c.l.b16 %v4459
    %v4565 = vunpack.c.h.b16 %v4459
    %v4566 = vunpack.c.l.b16 %v4460
    %v4567 = vunpack.c.h.b16 %v4460
    %v4568 = vunpack.c.l.b16 %v4461
    %v4569 = vunpack.c.h.b16 %v4461
    %v4570 = vunpack.c.l.b16 %v4462
    %v4571 = vunpack.c.h.b16 %v4462
    %v4572 = vpack.c.b16 %v4510, %v4508
    %v4573 = vpack.c.b16 %v4511, %v4509
    %v4574 = vpack.c.b16 %v4514, %v4512
    %v4575 = vpack.c.b16 %v4515, %v4513
    %v4576 = vpack.c.b16 %v4518, %v4516
    %v4577 = vpack.c.b16 %v4519, %v4517
    %v4578 = vpack.c.b16 %v4522, %v4520
    %v4579 = vpack.c.b16 %v4523, %v4521
    %v4580 = vpack.c.b16 %v4526, %v4524
    %v4581 = vpack.c.b16 %v4527, %v4525
    %v4582 = vpack.c.b16 %v4530, %v4528
    %v4583 = vpack.c.b16 %v4531, %v4529
    %v4584 = vpack.c.b16 %v4534, %v4532
    %v4585 = vpack.c.b16 %v4535, %v4533
    %v4586 = vpack.c.b16 %v4538, %v4536
    %v4587 = vpack.c.b16 %v4539, %v4537
    %v4588 = vpack.c.b16 %v4542, %v4540
    %v4589 = vpack.c.b16 %v4543, %v4541
    %v4590 = vpack.c.b16 %v4546, %v4544
    %v4591 = vpack.c.b16 %v4547, %v4545
    %v4592 = vpack.c.b16 %v4550, %v4548
    %v4593 = vpack.c.b16 %v4551, %v4549
    %v4594 = vpack.c.b16 %v4554, %v4552
    %v4595 = vpack.c.b16 %v4555, %v4553
    %v4596 = vpack.c.b16 %v4558, %v4556
    %v4597 = vpack.c.b16 %v4559, %v4557
    %v4598 = vpack.c.b16 %v4562, %v4560
    %v4599 = vpack.c.b16 %v4563, %v4561
    %v4600 = vpack.c.b16 %v4566, %v4564
    %v4601 = vpack.c.b16 %v4567, %v4565
    %v4602 = vpack.c.b16 %v4570, %v4568
    %v4603 = vpack.c.b16 %v4571, %v4569
    %4636 = vmatprep.subr.bf16.mxu0 %v4587
    %4637 = vmatpush1.bf16.msra.mxu0 %v4586
    %4638 = vmatprep.subr.bf16.mxu0 %v4585
    %4639 = vmatpush1.bf16.msra.mxu0 %v4584
    %4640 = vmatprep.subr.bf16.mxu0 %v4583
    %4641 = vmatpush1.bf16.msra.mxu0 %v4582
    %4642 = vmatprep.subr.bf16.mxu0 %v4581
    %4643 = vmatpush1.bf16.msra.mxu0 %v4580
    %4644 = vmatprep.subr.bf16.mxu0 %v4579
    %4645 = vmatpush1.bf16.msra.mxu0 %v4578
    %4646 = vmatprep.subr.bf16.mxu0 %v4577
    %4647 = vmatpush1.bf16.msra.mxu0 %v4576
    %4648 = vmatprep.subr.bf16.mxu0 %v4575
    %4649 = vmatpush1.bf16.msra.mxu0 %v4574
    %4650 = vmatprep.subr.bf16.mxu0 %v4573
    %4651 = vmatpush1.bf16.msra.mxu0 %v4572
    %4652 = vmatprep.subr.bf16.mxu0 %v4603
    %4653 = vmatpush2.bf16.msra.mxu0 %v4602
    %4654 = vmatprep.subr.bf16.mxu0 %v4601
    %4655 = vmatpush2.bf16.msra.mxu0 %v4600
    %4656 = vmatprep.subr.bf16.mxu0 %v4599
    %4657 = vmatpush2.bf16.msra.mxu0 %v4598
    %4658 = vmatprep.subr.bf16.mxu0 %v4597
    %4659 = vmatpush2.bf16.msra.mxu0 %v4596
    %4660 = vmatprep.subr.bf16.mxu0 %v4595
    %4661 = vmatpush2.bf16.msra.mxu0 %v4594
    %4662 = vmatprep.subr.bf16.mxu0 %v4593
    %4663 = vmatpush2.bf16.msra.mxu0 %v4592
    %4664 = vmatprep.subr.bf16.mxu0 %v4591
    %4665 = vmatpush2.bf16.msra.mxu0 %v4590
    %4666 = vmatprep.subr.bf16.mxu0 %v4589
    %4667 = vmatpush2.bf16.msra.mxu0 %v4588
    %4668 = vmatprep.mubr.bf16.mxu0 %v4399
    %4669 = vmatmul.mubr.bf16.gmra.mxu0 %v4398
    %v4670 = vpop.f32.mrf.mxu0
    %v4671 = vadd.f32 %v4469, %v4670
    %v4672 = vpop.f32.mrf.mxu0
    %v4673 = vadd.f32 %v4473, %v4672
    %v4674 = vpop.f32.mrf.mxu0
    %v4675 = vadd.f32 %v4469, %v4674
    %v4676 = vpop.f32.mrf.mxu0
    %v4677 = vadd.f32 %v4473, %v4676
    %4678 = vmatprep.mubr.bf16.mxu0 %v4401
    %4679 = vmatmul.mubr.bf16.gmra.mxu0 %v4400
    %v4680 = vpop.f32.mrf.mxu0
    %v4681 = vadd.f32 %v4469, %v4680
    %v4682 = vpop.f32.mrf.mxu0
    %v4683 = vadd.f32 %v4473, %v4682
    %v4684 = vpop.f32.mrf.mxu0
    %v4685 = vadd.f32 %v4469, %v4684
    %v4686 = vpop.f32.mrf.mxu0
    %v4687 = vadd.f32 %v4473, %v4686
    %4688 = vmatprep.mubr.bf16.mxu0 %v4403
    %4689 = vmatmul.mubr.bf16.gmra.mxu0 %v4402
    %v4690 = vpop.f32.mrf.mxu0
    %v4691 = vadd.f32 %v4469, %v4690
    %v4692 = vpop.f32.mrf.mxu0
    %v4693 = vadd.f32 %v4473, %v4692
    %v4694 = vpop.f32.mrf.mxu0
    %v4695 = vadd.f32 %v4469, %v4694
    %v4696 = vpop.f32.mrf.mxu0
    %v4697 = vadd.f32 %v4473, %v4696
    %4698 = vmatprep.mubr.bf16.mxu0 %v4405
    %4699 = vmatmul.mubr.bf16.gmra.mxu0 %v4404
    %v4700 = vpop.f32.mrf.mxu0
    %v4701 = vadd.f32 %v4469, %v4700
    %v4702 = vpop.f32.mrf.mxu0
    %v4703 = vadd.f32 %v4473, %v4702
    %v4704 = vpop.f32.mrf.mxu0
    %v4705 = vadd.f32 %v4469, %v4704
    %v4706 = vpop.f32.mrf.mxu0
    %v4707 = vadd.f32 %v4473, %v4706
    %4708 = vmatprep.mubr.bf16.mxu0 %v4407
    %4709 = vmatmul.mubr.bf16.gmra.mxu0 %v4406
    %v4710 = vpop.f32.mrf.mxu0
    %v4711 = vadd.f32 %v4469, %v4710
    %v4712 = vpop.f32.mrf.mxu0
    %v4713 = vadd.f32 %v4473, %v4712
    %v4714 = vpop.f32.mrf.mxu0
    %v4715 = vadd.f32 %v4469, %v4714
    %v4716 = vpop.f32.mrf.mxu0
    %v4717 = vadd.f32 %v4473, %v4716
    %4718 = vmatprep.mubr.bf16.mxu0 %v4409
    %4719 = vmatmul.mubr.bf16.gmra.mxu0 %v4408
    %v4720 = vpop.f32.mrf.mxu0
    %v4721 = vadd.f32 %v4469, %v4720
    %v4722 = vpop.f32.mrf.mxu0
    %v4723 = vadd.f32 %v4473, %v4722
    %v4724 = vpop.f32.mrf.mxu0
    %v4725 = vadd.f32 %v4469, %v4724
    %v4726 = vpop.f32.mrf.mxu0
    %v4727 = vadd.f32 %v4473, %v4726
    %4728 = vmatprep.mubr.bf16.mxu0 %v4411
    %4729 = vmatmul.mubr.bf16.gmra.mxu0 %v4410
    %v4730 = vpop.f32.mrf.mxu0
    %v4731 = vadd.f32 %v4469, %v4730
    %v4732 = vpop.f32.mrf.mxu0
    %v4733 = vadd.f32 %v4473, %v4732
    %v4734 = vpop.f32.mrf.mxu0
    %v4735 = vadd.f32 %v4469, %v4734
    %v4736 = vpop.f32.mrf.mxu0
    %v4737 = vadd.f32 %v4473, %v4736
    %4738 = vmatprep.mubr.bf16.mxu0 %v4413
    %4739 = vmatmul.mubr.bf16.gmra.mxu0 %v4412
    %v4740 = vpop.f32.mrf.mxu0
    %v4741 = vadd.f32 %v4469, %v4740
    %v4742 = vpop.f32.mrf.mxu0
    %v4743 = vadd.f32 %v4473, %v4742
    %v4744 = vpop.f32.mrf.mxu0
    %v4745 = vadd.f32 %v4469, %v4744
    %v4746 = vpop.f32.mrf.mxu0
    %v4747 = vadd.f32 %v4473, %v4746
    %4748 = vmatprep.mubr.bf16.mxu0 %v4415
    %4749 = vmatmul.mubr.bf16.gmra.mxu0 %v4414
    %v4750 = vpop.f32.mrf.mxu0
    %v4751 = vadd.f32 %v4469, %v4750
    %v4752 = vpop.f32.mrf.mxu0
    %v4753 = vadd.f32 %v4473, %v4752
    %v4754 = vpop.f32.mrf.mxu0
    %v4755 = vadd.f32 %v4469, %v4754
    %v4756 = vpop.f32.mrf.mxu0
    %v4757 = vadd.f32 %v4473, %v4756
    %4758 = vmatprep.mubr.bf16.mxu0 %v4417
    %4759 = vmatmul.mubr.bf16.gmra.mxu0 %v4416
    %v4760 = vpop.f32.mrf.mxu0
    %v4761 = vadd.f32 %v4469, %v4760
    %v4762 = vpop.f32.mrf.mxu0
    %v4763 = vadd.f32 %v4473, %v4762
    %v4764 = vpop.f32.mrf.mxu0
    %v4765 = vadd.f32 %v4469, %v4764
    %v4766 = vpop.f32.mrf.mxu0
    %v4767 = vadd.f32 %v4473, %v4766
    %4768 = vmatprep.mubr.bf16.mxu0 %v4419
    %4769 = vmatmul.mubr.bf16.gmra.mxu0 %v4418
    %v4770 = vpop.f32.mrf.mxu0
    %v4771 = vadd.f32 %v4469, %v4770
    %v4772 = vpop.f32.mrf.mxu0
    %v4773 = vadd.f32 %v4473, %v4772
    %v4774 = vpop.f32.mrf.mxu0
    %v4775 = vadd.f32 %v4469, %v4774
    %v4776 = vpop.f32.mrf.mxu0
    %v4777 = vadd.f32 %v4473, %v4776
    %4778 = vmatprep.mubr.bf16.mxu0 %v4421
    %4779 = vmatmul.mubr.bf16.gmra.mxu0 %v4420
    %v4780 = vpop.f32.mrf.mxu0
    %v4781 = vadd.f32 %v4469, %v4780
    %v4782 = vpop.f32.mrf.mxu0
    %v4783 = vadd.f32 %v4473, %v4782
    %v4784 = vpop.f32.mrf.mxu0
    %v4785 = vadd.f32 %v4469, %v4784
    %v4786 = vpop.f32.mrf.mxu0
    %v4787 = vadd.f32 %v4473, %v4786
    %4788 = vmatprep.mubr.bf16.mxu0 %v4423
    %4789 = vmatmul.mubr.bf16.gmra.mxu0 %v4422
    %v4790 = vpop.f32.mrf.mxu0
    %v4791 = vadd.f32 %v4469, %v4790
    %v4792 = vpop.f32.mrf.mxu0
    %v4793 = vadd.f32 %v4473, %v4792
    %v4794 = vpop.f32.mrf.mxu0
    %v4795 = vadd.f32 %v4469, %v4794
    %v4796 = vpop.f32.mrf.mxu0
    %v4797 = vadd.f32 %v4473, %v4796
    %4798 = vmatprep.mubr.bf16.mxu0 %v4425
    %4799 = vmatmul.mubr.bf16.gmra.mxu0 %v4424
    %v4800 = vpop.f32.mrf.mxu0
    %v4801 = vadd.f32 %v4469, %v4800
    %v4802 = vpop.f32.mrf.mxu0
    %v4803 = vadd.f32 %v4473, %v4802
    %v4804 = vpop.f32.mrf.mxu0
    %v4805 = vadd.f32 %v4469, %v4804
    %v4806 = vpop.f32.mrf.mxu0
    %v4807 = vadd.f32 %v4473, %v4806
    %4808 = vmatprep.mubr.bf16.mxu0 %v4427
    %4809 = vmatmul.mubr.bf16.gmra.mxu0 %v4426
    %v4810 = vpop.f32.mrf.mxu0
    %v4811 = vadd.f32 %v4469, %v4810
    %v4812 = vpop.f32.mrf.mxu0
    %v4813 = vadd.f32 %v4473, %v4812
    %v4814 = vpop.f32.mrf.mxu0
    %v4815 = vadd.f32 %v4469, %v4814
    %v4816 = vpop.f32.mrf.mxu0
    %v4817 = vadd.f32 %v4473, %v4816
    %4818 = vmatprep.mubr.bf16.mxu0 %v4429
    %4819 = vmatmul.mubr.bf16.gmra.mxu0 %v4428
    %v4820 = vpop.f32.mrf.mxu0
    %v4821 = vadd.f32 %v4469, %v4820
    %v4822 = vpop.f32.mrf.mxu0
    %v4823 = vadd.f32 %v4473, %v4822
    %v4824 = vpop.f32.mrf.mxu0
    %v4825 = vadd.f32 %v4469, %v4824
    %v4826 = vpop.f32.mrf.mxu0
    %v4827 = vadd.f32 %v4473, %v4826
    %4828 = vdwg.mxu0
    %v4829 = vmax.f32 %v4671, 0.0
    %v4830 = vmax.f32 %v4673, 0.0
    %v4831 = vmax.f32 %v4675, 0.0
    %v4832 = vmax.f32 %v4677, 0.0
    %v4833 = vmax.f32 %v4681, 0.0
    %v4834 = vmax.f32 %v4683, 0.0
    %v4835 = vmax.f32 %v4685, 0.0
    %v4836 = vmax.f32 %v4687, 0.0
    %v4837 = vmax.f32 %v4691, 0.0
    %v4838 = vmax.f32 %v4693, 0.0
    %v4839 = vmax.f32 %v4695, 0.0
    %v4840 = vmax.f32 %v4697, 0.0
    %v4841 = vmax.f32 %v4701, 0.0
    %v4842 = vmax.f32 %v4703, 0.0
    %v4843 = vmax.f32 %v4705, 0.0
    %v4844 = vmax.f32 %v4707, 0.0
    %v4845 = vmax.f32 %v4711, 0.0
    %v4846 = vmax.f32 %v4713, 0.0
    %v4847 = vmax.f32 %v4715, 0.0
    %v4848 = vmax.f32 %v4717, 0.0
    %v4849 = vmax.f32 %v4721, 0.0
    %v4850 = vmax.f32 %v4723, 0.0
    %v4851 = vmax.f32 %v4725, 0.0
    %v4852 = vmax.f32 %v4727, 0.0
    %v4853 = vmax.f32 %v4731, 0.0
    %v4854 = vmax.f32 %v4733, 0.0
    %v4855 = vmax.f32 %v4735, 0.0
    %v4856 = vmax.f32 %v4737, 0.0
    %v4857 = vmax.f32 %v4741, 0.0
    %v4858 = vmax.f32 %v4743, 0.0
    %v4859 = vmax.f32 %v4745, 0.0
    %v4860 = vmax.f32 %v4747, 0.0
    %v4861 = vmax.f32 %v4751, 0.0
    %v4862 = vmax.f32 %v4753, 0.0
    %v4863 = vmax.f32 %v4755, 0.0
    %v4864 = vmax.f32 %v4757, 0.0
    %v4865 = vmax.f32 %v4761, 0.0
    %v4866 = vmax.f32 %v4763, 0.0
    %v4867 = vmax.f32 %v4765, 0.0
    %v4868 = vmax.f32 %v4767, 0.0
    %v4869 = vmax.f32 %v4771, 0.0
    %v4870 = vmax.f32 %v4773, 0.0
    %v4871 = vmax.f32 %v4775, 0.0
    %v4872 = vmax.f32 %v4777, 0.0
    %v4873 = vmax.f32 %v4781, 0.0
    %v4874 = vmax.f32 %v4783, 0.0
    %v4875 = vmax.f32 %v4785, 0.0
    %v4876 = vmax.f32 %v4787, 0.0
    %v4877 = vmax.f32 %v4791, 0.0
    %v4878 = vmax.f32 %v4793, 0.0
    %v4879 = vmax.f32 %v4795, 0.0
    %v4880 = vmax.f32 %v4797, 0.0
    %v4881 = vmax.f32 %v4801, 0.0
    %v4882 = vmax.f32 %v4803, 0.0
    %v4883 = vmax.f32 %v4805, 0.0
    %v4884 = vmax.f32 %v4807, 0.0
    %v4885 = vmax.f32 %v4811, 0.0
    %v4886 = vmax.f32 %v4813, 0.0
    %v4887 = vmax.f32 %v4815, 0.0
    %v4888 = vmax.f32 %v4817, 0.0
    %v4889 = vmax.f32 %v4821, 0.0
    %v4890 = vmax.f32 %v4823, 0.0
    %v4891 = vmax.f32 %v4825, 0.0
    %v4892 = vmax.f32 %v4827, 0.0
    %v4893 = vpack.c.bf16 %v4831, %v4829
    %v4894 = vpack.c.bf16 %v4832, %v4830
    %v4895 = vpack.c.bf16 %v4835, %v4833
    %v4896 = vpack.c.bf16 %v4836, %v4834
    %v4897 = vpack.c.bf16 %v4839, %v4837
    %v4898 = vpack.c.bf16 %v4840, %v4838
    %v4899 = vpack.c.bf16 %v4843, %v4841
    %v4900 = vpack.c.bf16 %v4844, %v4842
    %v4901 = vpack.c.bf16 %v4847, %v4845
    %v4902 = vpack.c.bf16 %v4848, %v4846
    %v4903 = vpack.c.bf16 %v4851, %v4849
    %v4904 = vpack.c.bf16 %v4852, %v4850
    %v4905 = vpack.c.bf16 %v4855, %v4853
    %v4906 = vpack.c.bf16 %v4856, %v4854
    %v4907 = vpack.c.bf16 %v4859, %v4857
    %v4908 = vpack.c.bf16 %v4860, %v4858
    %v4909 = vpack.c.bf16 %v4863, %v4861
    %v4910 = vpack.c.bf16 %v4864, %v4862
    %v4911 = vpack.c.bf16 %v4867, %v4865
    %v4912 = vpack.c.bf16 %v4868, %v4866
    %v4913 = vpack.c.bf16 %v4871, %v4869
    %v4914 = vpack.c.bf16 %v4872, %v4870
    %v4915 = vpack.c.bf16 %v4875, %v4873
    %v4916 = vpack.c.bf16 %v4876, %v4874
    %v4917 = vpack.c.bf16 %v4879, %v4877
    %v4918 = vpack.c.bf16 %v4880, %v4878
    %v4919 = vpack.c.bf16 %v4883, %v4881
    %v4920 = vpack.c.bf16 %v4884, %v4882
    %v4921 = vpack.c.bf16 %v4887, %v4885
    %v4922 = vpack.c.bf16 %v4888, %v4886
    %v4923 = vpack.c.bf16 %v4891, %v4889
    %v4924 = vpack.c.bf16 %v4892, %v4890
    %v4925 = vld [vmem:[%s8] sm:$0xf]
    %v4926 = vld [vmem:[%s8 + $0x4] sm:$0xf]
    %v4927 = vld [vmem:[%s8 + $0x8] sm:$0xf]
    %v4928 = vld [vmem:[%s8 + $0xc] sm:$0xf]
    %v4929 = vld [vmem:[%s8 + $0x10] sm:$0xf]
    %v4930 = vld [vmem:[%s8 + $0x14] sm:$0xf]
    %v4931 = vld [vmem:[%s8 + $0x18] sm:$0xf]
    %v4932 = vld [vmem:[%s8 + $0x1c] sm:$0xf]
    %v4933 = vld [vmem:[%s8 + $0x20] sm:$0xf]
    %v4934 = vld [vmem:[%s8 + $0x24] sm:$0xf]
    %v4935 = vld [vmem:[%s8 + $0x28] sm:$0xf]
    %v4936 = vld [vmem:[%s8 + $0x2c] sm:$0xf]
    %v4937 = vld [vmem:[%s8 + $0x30] sm:$0xf]
    %v4938 = vld [vmem:[%s8 + $0x34] sm:$0xf]
    %v4939 = vld [vmem:[%s8 + $0x38] sm:$0xf]
    %v4940 = vld [vmem:[%s8 + $0x3c] sm:$0xf]
    %v4941 = vld [vmem:[%s8 + $0x40] sm:$0xf]
    %v4942 = vld [vmem:[%s8 + $0x44] sm:$0xf]
    %v4943 = vld [vmem:[%s8 + $0x48] sm:$0xf]
    %v4944 = vld [vmem:[%s8 + $0x4c] sm:$0xf]
    %v4945 = vld [vmem:[%s8 + $0x50] sm:$0xf]
    %v4946 = vld [vmem:[%s8 + $0x54] sm:$0xf]
    %v4947 = vld [vmem:[%s8 + $0x58] sm:$0xf]
    %v4948 = vld [vmem:[%s8 + $0x5c] sm:$0xf]
    %v4949 = vld [vmem:[%s8 + $0x60] sm:$0xf]
    %v4950 = vld [vmem:[%s8 + $0x64] sm:$0xf]
    %v4951 = vld [vmem:[%s8 + $0x68] sm:$0xf]
    %v4952 = vld [vmem:[%s8 + $0x6c] sm:$0xf]
    %v4953 = vld [vmem:[%s8 + $0x70] sm:$0xf]
    %v4954 = vld [vmem:[%s8 + $0x74] sm:$0xf]
    %v4955 = vld [vmem:[%s8 + $0x78] sm:$0xf]
    %v4956 = vld [vmem:[%s8 + $0x7c] sm:$0xf]
    %v4989 = vunpack.c.l.b16 %v4925
    %v4990 = vunpack.c.l.b16 %v4926
    %v4991 = vunpack.c.l.b16 %v4927
    %v4992 = vunpack.c.l.b16 %v4928
    %v4993 = vunpack.c.l.b16 %v4929
    %v4994 = vunpack.c.l.b16 %v4930
    %v4995 = vunpack.c.l.b16 %v4931
    %v4996 = vunpack.c.l.b16 %v4932
    %v4997 = vunpack.c.l.b16 %v4933
    %v4998 = vunpack.c.l.b16 %v4934
    %v4999 = vunpack.c.l.b16 %v4935
    %v5000 = vunpack.c.l.b16 %v4936
    %v5001 = vunpack.c.l.b16 %v4937
    %v5002 = vunpack.c.l.b16 %v4938
    %v5003 = vunpack.c.l.b16 %v4939
    %v5004 = vunpack.c.l.b16 %v4940
    %v5005 = vunpack.c.l.b16 %v4941
    %v5006 = vunpack.c.l.b16 %v4942
    %v5007 = vunpack.c.l.b16 %v4943
    %v5008 = vunpack.c.l.b16 %v4944
    %v5009 = vunpack.c.l.b16 %v4945
    %v5010 = vunpack.c.l.b16 %v4946
    %v5011 = vunpack.c.l.b16 %v4947
    %v5012 = vunpack.c.l.b16 %v4948
    %v5013 = vunpack.c.l.b16 %v4949
    %v5014 = vunpack.c.l.b16 %v4950
    %v5015 = vunpack.c.l.b16 %v4951
    %v5016 = vunpack.c.l.b16 %v4952
    %v5017 = vunpack.c.l.b16 %v4953
    %v5018 = vunpack.c.l.b16 %v4954
    %v5019 = vunpack.c.l.b16 %v4955
    %v5020 = vunpack.c.l.b16 %v4956
    %v5021 = vpack.c.b16 %v4990, %v4989
    %v5022 = vpack.c.b16 %v4992, %v4991
    %v5023 = vpack.c.b16 %v4994, %v4993
    %v5024 = vpack.c.b16 %v4996, %v4995
    %v5025 = vpack.c.b16 %v4998, %v4997
    %v5026 = vpack.c.b16 %v5000, %v4999
    %v5027 = vpack.c.b16 %v5002, %v5001
    %v5028 = vpack.c.b16 %v5004, %v5003
    %v5029 = vpack.c.b16 %v5006, %v5005
    %v5030 = vpack.c.b16 %v5008, %v5007
    %v5031 = vpack.c.b16 %v5010, %v5009
    %v5032 = vpack.c.b16 %v5012, %v5011
    %v5033 = vpack.c.b16 %v5014, %v5013
    %v5034 = vpack.c.b16 %v5016, %v5015
    %v5035 = vpack.c.b16 %v5018, %v5017
    %v5036 = vpack.c.b16 %v5020, %v5019
    %5053 = vmatprep.subr.bf16.mxu0 0
    %5054 = vmatpush1.bf16.msra.mxu0 %v5028
    %5055 = vmatprep.subr.bf16.mxu0 0
    %5056 = vmatpush1.bf16.msra.mxu0 %v5027
    %5057 = vmatprep.subr.bf16.mxu0 0
    %5058 = vmatpush1.bf16.msra.mxu0 %v5026
    %5059 = vmatprep.subr.bf16.mxu0 0
    %5060 = vmatpush1.bf16.msra.mxu0 %v5025
    %5061 = vmatprep.subr.bf16.mxu0 0
    %5062 = vmatpush1.bf16.msra.mxu0 %v5024
    %5063 = vmatprep.subr.bf16.mxu0 0
    %5064 = vmatpush1.bf16.msra.mxu0 %v5023
    %5065 = vmatprep.subr.bf16.mxu0 0
    %5066 = vmatpush1.bf16.msra.mxu0 %v5022
    %5067 = vmatprep.subr.bf16.mxu0 0
    %5068 = vmatpush1.bf16.msra.mxu0 %v5021
    %5069 = vmatprep.subr.bf16.mxu0 0
    %5070 = vmatpush2.bf16.msra.mxu0 %v5036
    %5071 = vmatprep.subr.bf16.mxu0 0
    %5072 = vmatpush2.bf16.msra.mxu0 %v5035
    %5073 = vmatprep.subr.bf16.mxu0 0
    %5074 = vmatpush2.bf16.msra.mxu0 %v5034
    %5075 = vmatprep.subr.bf16.mxu0 0
    %5076 = vmatpush2.bf16.msra.mxu0 %v5033
    %5077 = vmatprep.subr.bf16.mxu0 0
    %5078 = vmatpush2.bf16.msra.mxu0 %v5032
    %5079 = vmatprep.subr.bf16.mxu0 0
    %5080 = vmatpush2.bf16.msra.mxu0 %v5031
    %5081 = vmatprep.subr.bf16.mxu0 0
    %5082 = vmatpush2.bf16.msra.mxu0 %v5030
    %5083 = vmatprep.subr.bf16.mxu0 0
    %5084 = vmatpush2.bf16.msra.mxu0 %v5029
    %5085 = vmatprep.mubr.bf16.mxu0 %v4894
    %5086 = vmatmul.mubr.bf16.gmra.mxu0 %v4893
    %v5087 = vpop.f32.mrf.mxu0
    %v5088 = vadd.f32 0.0, %v5087
    %v5089 = vpop.f32.mrf.mxu0
    %v5090 = vpop.f32.mrf.mxu0
    %v5091 = vadd.f32 0.0, %v5090
    %v5092 = vpop.f32.mrf.mxu0
    %5093 = vmatprep.mubr.bf16.mxu0 %v4896
    %5094 = vmatmul.mubr.bf16.gmra.mxu0 %v4895
    %v5095 = vpop.f32.mrf.mxu0
    %v5096 = vadd.f32 0.0, %v5095
    %v5097 = vpop.f32.mrf.mxu0
    %v5098 = vpop.f32.mrf.mxu0
    %v5099 = vadd.f32 0.0, %v5098
    %v5100 = vpop.f32.mrf.mxu0
    %5101 = vmatprep.mubr.bf16.mxu0 %v4898
    %5102 = vmatmul.mubr.bf16.gmra.mxu0 %v4897
    %v5103 = vpop.f32.mrf.mxu0
    %v5104 = vadd.f32 0.0, %v5103
    %v5105 = vpop.f32.mrf.mxu0
    %v5106 = vpop.f32.mrf.mxu0
    %v5107 = vadd.f32 0.0, %v5106
    %v5108 = vpop.f32.mrf.mxu0
    %5109 = vmatprep.mubr.bf16.mxu0 %v4900
    %5110 = vmatmul.mubr.bf16.gmra.mxu0 %v4899
    %v5111 = vpop.f32.mrf.mxu0
    %v5112 = vadd.f32 0.0, %v5111
    %v5113 = vpop.f32.mrf.mxu0
    %v5114 = vpop.f32.mrf.mxu0
    %v5115 = vadd.f32 0.0, %v5114
    %v5116 = vpop.f32.mrf.mxu0
    %5117 = vmatprep.mubr.bf16.mxu0 %v4902
    %5118 = vmatmul.mubr.bf16.gmra.mxu0 %v4901
    %v5119 = vpop.f32.mrf.mxu0
    %v5120 = vadd.f32 0.0, %v5119
    %v5121 = vpop.f32.mrf.mxu0
    %v5122 = vpop.f32.mrf.mxu0
    %v5123 = vadd.f32 0.0, %v5122
    %v5124 = vpop.f32.mrf.mxu0
    %5125 = vmatprep.mubr.bf16.mxu0 %v4904
    %5126 = vmatmul.mubr.bf16.gmra.mxu0 %v4903
    %v5127 = vpop.f32.mrf.mxu0
    %v5128 = vadd.f32 0.0, %v5127
    %v5129 = vpop.f32.mrf.mxu0
    %v5130 = vpop.f32.mrf.mxu0
    %v5131 = vadd.f32 0.0, %v5130
    %v5132 = vpop.f32.mrf.mxu0
    %5133 = vmatprep.mubr.bf16.mxu0 %v4906
    %5134 = vmatmul.mubr.bf16.gmra.mxu0 %v4905
    %v5135 = vpop.f32.mrf.mxu0
    %v5136 = vadd.f32 0.0, %v5135
    %v5137 = vpop.f32.mrf.mxu0
    %v5138 = vpop.f32.mrf.mxu0
    %v5139 = vadd.f32 0.0, %v5138
    %v5140 = vpop.f32.mrf.mxu0
    %5141 = vmatprep.mubr.bf16.mxu0 %v4908
    %5142 = vmatmul.mubr.bf16.gmra.mxu0 %v4907
    %v5143 = vpop.f32.mrf.mxu0
    %v5144 = vadd.f32 0.0, %v5143
    %v5145 = vpop.f32.mrf.mxu0
    %v5146 = vpop.f32.mrf.mxu0
    %v5147 = vadd.f32 0.0, %v5146
    %v5148 = vpop.f32.mrf.mxu0
    %5149 = vmatprep.mubr.bf16.mxu0 %v4910
    %5150 = vmatmul.mubr.bf16.gmra.mxu0 %v4909
    %v5151 = vpop.f32.mrf.mxu0
    %v5152 = vadd.f32 0.0, %v5151
    %v5153 = vpop.f32.mrf.mxu0
    %v5154 = vpop.f32.mrf.mxu0
    %v5155 = vadd.f32 0.0, %v5154
    %v5156 = vpop.f32.mrf.mxu0
    %5157 = vmatprep.mubr.bf16.mxu0 %v4912
    %5158 = vmatmul.mubr.bf16.gmra.mxu0 %v4911
    %v5159 = vpop.f32.mrf.mxu0
    %v5160 = vadd.f32 0.0, %v5159
    %v5161 = vpop.f32.mrf.mxu0
    %v5162 = vpop.f32.mrf.mxu0
    %v5163 = vadd.f32 0.0, %v5162
    %v5164 = vpop.f32.mrf.mxu0
    %5165 = vmatprep.mubr.bf16.mxu0 %v4914
    %5166 = vmatmul.mubr.bf16.gmra.mxu0 %v4913
    %v5167 = vpop.f32.mrf.mxu0
    %v5168 = vadd.f32 0.0, %v5167
    %v5169 = vpop.f32.mrf.mxu0
    %v5170 = vpop.f32.mrf.mxu0
    %v5171 = vadd.f32 0.0, %v5170
    %v5172 = vpop.f32.mrf.mxu0
    %5173 = vmatprep.mubr.bf16.mxu0 %v4916
    %5174 = vmatmul.mubr.bf16.gmra.mxu0 %v4915
    %v5175 = vpop.f32.mrf.mxu0
    %v5176 = vadd.f32 0.0, %v5175
    %v5177 = vpop.f32.mrf.mxu0
    %v5178 = vpop.f32.mrf.mxu0
    %v5179 = vadd.f32 0.0, %v5178
    %v5180 = vpop.f32.mrf.mxu0
    %5181 = vmatprep.mubr.bf16.mxu0 %v4918
    %5182 = vmatmul.mubr.bf16.gmra.mxu0 %v4917
    %v5183 = vpop.f32.mrf.mxu0
    %v5184 = vadd.f32 0.0, %v5183
    %v5185 = vpop.f32.mrf.mxu0
    %v5186 = vpop.f32.mrf.mxu0
    %v5187 = vadd.f32 0.0, %v5186
    %v5188 = vpop.f32.mrf.mxu0
    %5189 = vmatprep.mubr.bf16.mxu0 %v4920
    %5190 = vmatmul.mubr.bf16.gmra.mxu0 %v4919
    %v5191 = vpop.f32.mrf.mxu0
    %v5192 = vadd.f32 0.0, %v5191
    %v5193 = vpop.f32.mrf.mxu0
    %v5194 = vpop.f32.mrf.mxu0
    %v5195 = vadd.f32 0.0, %v5194
    %v5196 = vpop.f32.mrf.mxu0
    %5197 = vmatprep.mubr.bf16.mxu0 %v4922
    %5198 = vmatmul.mubr.bf16.gmra.mxu0 %v4921
    %v5199 = vpop.f32.mrf.mxu0
    %v5200 = vadd.f32 0.0, %v5199
    %v5201 = vpop.f32.mrf.mxu0
    %v5202 = vpop.f32.mrf.mxu0
    %v5203 = vadd.f32 0.0, %v5202
    %v5204 = vpop.f32.mrf.mxu0
    %5205 = vmatprep.mubr.bf16.mxu0 %v4924
    %5206 = vmatmul.mubr.bf16.gmra.mxu0 %v4923
    %v5207 = vpop.f32.mrf.mxu0
    %v5208 = vadd.f32 0.0, %v5207
    %v5209 = vpop.f32.mrf.mxu0
    %v5210 = vpop.f32.mrf.mxu0
    %v5211 = vadd.f32 0.0, %v5210
    %v5212 = vpop.f32.mrf.mxu0
    %5213 = vdwg.mxu0
    %v5214 = vld [vmem:[%s6] sm:$0xff]
    %v5215 = vld [vmem:[%s6 + $0x8] sm:$0xff]
    %v5216 = vld [vmem:[%s6 + $0x10] sm:$0xff]
    %v5217 = vld [vmem:[%s6 + $0x18] sm:$0xff]
    %v5218 = vld [vmem:[%s6 + $0x20] sm:$0xff]
    %v5219 = vld [vmem:[%s6 + $0x28] sm:$0xff]
    %v5220 = vld [vmem:[%s6 + $0x30] sm:$0xff]
    %v5221 = vld [vmem:[%s6 + $0x38] sm:$0xff]
    %v5222 = vld [vmem:[%s6 + $0x40] sm:$0xff]
    %v5223 = vld [vmem:[%s6 + $0x48] sm:$0xff]
    %v5224 = vld [vmem:[%s6 + $0x50] sm:$0xff]
    %v5225 = vld [vmem:[%s6 + $0x58] sm:$0xff]
    %v5226 = vld [vmem:[%s6 + $0x60] sm:$0xff]
    %v5227 = vld [vmem:[%s6 + $0x68] sm:$0xff]
    %v5228 = vld [vmem:[%s6 + $0x70] sm:$0xff]
    %v5229 = vld [vmem:[%s6 + $0x78] sm:$0xff]
    %v5230 = vld [vmem:[%s6 + $0x80] sm:$0xff]
    %v5231 = vld [vmem:[%s6 + $0x88] sm:$0xff]
    %v5232 = vld [vmem:[%s6 + $0x90] sm:$0xff]
    %v5233 = vld [vmem:[%s6 + $0x98] sm:$0xff]
    %v5234 = vld [vmem:[%s6 + $0xa0] sm:$0xff]
    %v5235 = vld [vmem:[%s6 + $0xa8] sm:$0xff]
    %v5236 = vld [vmem:[%s6 + $0xb0] sm:$0xff]
    %v5237 = vld [vmem:[%s6 + $0xb8] sm:$0xff]
    %v5238 = vld [vmem:[%s6 + $0xc0] sm:$0xff]
    %v5239 = vld [vmem:[%s6 + $0xc8] sm:$0xff]
    %v5240 = vld [vmem:[%s6 + $0xd0] sm:$0xff]
    %v5241 = vld [vmem:[%s6 + $0xd8] sm:$0xff]
    %v5242 = vld [vmem:[%s6 + $0xe0] sm:$0xff]
    %v5243 = vld [vmem:[%s6 + $0xe8] sm:$0xff]
    %v5244 = vld [vmem:[%s6 + $0xf0] sm:$0xff]
    %v5245 = vld [vmem:[%s6 + $0xf8] sm:$0xff]
    %v5246 = vld [vmem:[%s7] sm:$0x3]
    %v5248 = vlaneseq
    %v5249 = vshrl.u32 %v5248, 7
    %v5250 = vsub.s32 0, %v5249
    %v5251 = vrot.slane %v5246, %v5250
    %v5252 = vlaneseq
    %v5253 = vshrl.u32 %v5252, 7
    %v5254 = vsub.s32 1, %v5253
    %v5255 = vrot.slane %v5246, %v5254
    %v5290 = vunpack.c.l.b16 %v5214
    %v5291 = vunpack.c.h.b16 %v5214
    %v5292 = vunpack.c.l.b16 %v5215
    %v5293 = vunpack.c.h.b16 %v5215
    %v5294 = vunpack.c.l.b16 %v5216
    %v5295 = vunpack.c.h.b16 %v5216
    %v5296 = vunpack.c.l.b16 %v5217
    %v5297 = vunpack.c.h.b16 %v5217
    %v5298 = vunpack.c.l.b16 %v5218
    %v5299 = vunpack.c.h.b16 %v5218
    %v5300 = vunpack.c.l.b16 %v5219
    %v5301 = vunpack.c.h.b16 %v5219
    %v5302 = vunpack.c.l.b16 %v5220
    %v5303 = vunpack.c.h.b16 %v5220
    %v5304 = vunpack.c.l.b16 %v5221
    %v5305 = vunpack.c.h.b16 %v5221
    %v5306 = vunpack.c.l.b16 %v5222
    %v5307 = vunpack.c.h.b16 %v5222
    %v5308 = vunpack.c.l.b16 %v5223
    %v5309 = vunpack.c.h.b16 %v5223
    %v5310 = vunpack.c.l.b16 %v5224
    %v5311 = vunpack.c.h.b16 %v5224
    %v5312 = vunpack.c.l.b16 %v5225
    %v5313 = vunpack.c.h.b16 %v5225
    %v5314 = vunpack.c.l.b16 %v5226
    %v5315 = vunpack.c.h.b16 %v5226
    %v5316 = vunpack.c.l.b16 %v5227
    %v5317 = vunpack.c.h.b16 %v5227
    %v5318 = vunpack.c.l.b16 %v5228
    %v5319 = vunpack.c.h.b16 %v5228
    %v5320 = vunpack.c.l.b16 %v5229
    %v5321 = vunpack.c.h.b16 %v5229
    %v5322 = vunpack.c.l.b16 %v5230
    %v5323 = vunpack.c.h.b16 %v5230
    %v5324 = vunpack.c.l.b16 %v5231
    %v5325 = vunpack.c.h.b16 %v5231
    %v5326 = vunpack.c.l.b16 %v5232
    %v5327 = vunpack.c.h.b16 %v5232
    %v5328 = vunpack.c.l.b16 %v5233
    %v5329 = vunpack.c.h.b16 %v5233
    %v5330 = vunpack.c.l.b16 %v5234
    %v5331 = vunpack.c.h.b16 %v5234
    %v5332 = vunpack.c.l.b16 %v5235
    %v5333 = vunpack.c.h.b16 %v5235
    %v5334 = vunpack.c.l.b16 %v5236
    %v5335 = vunpack.c.h.b16 %v5236
    %v5336 = vunpack.c.l.b16 %v5237
    %v5337 = vunpack.c.h.b16 %v5237
    %v5338 = vunpack.c.l.b16 %v5238
    %v5339 = vunpack.c.h.b16 %v5238
    %v5340 = vunpack.c.l.b16 %v5239
    %v5341 = vunpack.c.h.b16 %v5239
    %v5342 = vunpack.c.l.b16 %v5240
    %v5343 = vunpack.c.h.b16 %v5240
    %v5344 = vunpack.c.l.b16 %v5241
    %v5345 = vunpack.c.h.b16 %v5241
    %v5346 = vunpack.c.l.b16 %v5242
    %v5347 = vunpack.c.h.b16 %v5242
    %v5348 = vunpack.c.l.b16 %v5243
    %v5349 = vunpack.c.h.b16 %v5243
    %v5350 = vunpack.c.l.b16 %v5244
    %v5351 = vunpack.c.h.b16 %v5244
    %v5352 = vunpack.c.l.b16 %v5245
    %v5353 = vunpack.c.h.b16 %v5245
    %v5354 = vpack.c.b16 %v5292, %v5290
    %v5355 = vpack.c.b16 %v5293, %v5291
    %v5356 = vpack.c.b16 %v5296, %v5294
    %v5357 = vpack.c.b16 %v5297, %v5295
    %v5358 = vpack.c.b16 %v5300, %v5298
    %v5359 = vpack.c.b16 %v5301, %v5299
    %v5360 = vpack.c.b16 %v5304, %v5302
    %v5361 = vpack.c.b16 %v5305, %v5303
    %v5362 = vpack.c.b16 %v5308, %v5306
    %v5363 = vpack.c.b16 %v5309, %v5307
    %v5364 = vpack.c.b16 %v5312, %v5310
    %v5365 = vpack.c.b16 %v5313, %v5311
    %v5366 = vpack.c.b16 %v5316, %v5314
    %v5367 = vpack.c.b16 %v5317, %v5315
    %v5368 = vpack.c.b16 %v5320, %v5318
    %v5369 = vpack.c.b16 %v5321, %v5319
    %v5370 = vpack.c.b16 %v5324, %v5322
    %v5371 = vpack.c.b16 %v5325, %v5323
    %v5372 = vpack.c.b16 %v5328, %v5326
    %v5373 = vpack.c.b16 %v5329, %v5327
    %v5374 = vpack.c.b16 %v5332, %v5330
    %v5375 = vpack.c.b16 %v5333, %v5331
    %v5376 = vpack.c.b16 %v5336, %v5334
    %v5377 = vpack.c.b16 %v5337, %v5335
    %v5378 = vpack.c.b16 %v5340, %v5338
    %v5379 = vpack.c.b16 %v5341, %v5339
    %v5380 = vpack.c.b16 %v5344, %v5342
    %v5381 = vpack.c.b16 %v5345, %v5343
    %v5382 = vpack.c.b16 %v5348, %v5346
    %v5383 = vpack.c.b16 %v5349, %v5347
    %v5384 = vpack.c.b16 %v5352, %v5350
    %v5385 = vpack.c.b16 %v5353, %v5351
    %5418 = vmatprep.subr.bf16.mxu0 %v5369
    %5419 = vmatpush1.bf16.msra.mxu0 %v5368
    %5420 = vmatprep.subr.bf16.mxu0 %v5367
    %5421 = vmatpush1.bf16.msra.mxu0 %v5366
    %5422 = vmatprep.subr.bf16.mxu0 %v5365
    %5423 = vmatpush1.bf16.msra.mxu0 %v5364
    %5424 = vmatprep.subr.bf16.mxu0 %v5363
    %5425 = vmatpush1.bf16.msra.mxu0 %v5362
    %5426 = vmatprep.subr.bf16.mxu0 %v5361
    %5427 = vmatpush1.bf16.msra.mxu0 %v5360
    %5428 = vmatprep.subr.bf16.mxu0 %v5359
    %5429 = vmatpush1.bf16.msra.mxu0 %v5358
    %5430 = vmatprep.subr.bf16.mxu0 %v5357
    %5431 = vmatpush1.bf16.msra.mxu0 %v5356
    %5432 = vmatprep.subr.bf16.mxu0 %v5355
    %5433 = vmatpush1.bf16.msra.mxu0 %v5354
    %5434 = vmatprep.subr.bf16.mxu0 %v5385
    %5435 = vmatpush2.bf16.msra.mxu0 %v5384
    %5436 = vmatprep.subr.bf16.mxu0 %v5383
    %5437 = vmatpush2.bf16.msra.mxu0 %v5382
    %5438 = vmatprep.subr.bf16.mxu0 %v5381
    %5439 = vmatpush2.bf16.msra.mxu0 %v5380
    %5440 = vmatprep.subr.bf16.mxu0 %v5379
    %5441 = vmatpush2.bf16.msra.mxu0 %v5378
    %5442 = vmatprep.subr.bf16.mxu0 %v5377
    %5443 = vmatpush2.bf16.msra.mxu0 %v5376
    %5444 = vmatprep.subr.bf16.mxu0 %v5375
    %5445 = vmatpush2.bf16.msra.mxu0 %v5374
    %5446 = vmatprep.subr.bf16.mxu0 %v5373
    %5447 = vmatpush2.bf16.msra.mxu0 %v5372
    %5448 = vmatprep.subr.bf16.mxu0 %v5371
    %5449 = vmatpush2.bf16.msra.mxu0 %v5370
    %5450 = vmatprep.mubr.bf16.mxu0 %v4894
    %5451 = vmatmul.mubr.bf16.gmra.mxu0 %v4893
    %v5452 = vpop.f32.mrf.mxu0
    %v5453 = vadd.f32 %v5251, %v5452
    %v5454 = vpop.f32.mrf.mxu0
    %v5455 = vadd.f32 %v5255, %v5454
    %v5456 = vpop.f32.mrf.mxu0
    %v5457 = vadd.f32 %v5251, %v5456
    %v5458 = vpop.f32.mrf.mxu0
    %v5459 = vadd.f32 %v5255, %v5458
    %5460 = vmatprep.mubr.bf16.mxu0 %v4896
    %5461 = vmatmul.mubr.bf16.gmra.mxu0 %v4895
    %v5462 = vpop.f32.mrf.mxu0
    %v5463 = vadd.f32 %v5251, %v5462
    %v5464 = vpop.f32.mrf.mxu0
    %v5465 = vadd.f32 %v5255, %v5464
    %v5466 = vpop.f32.mrf.mxu0
    %v5467 = vadd.f32 %v5251, %v5466
    %v5468 = vpop.f32.mrf.mxu0
    %v5469 = vadd.f32 %v5255, %v5468
    %5470 = vmatprep.mubr.bf16.mxu0 %v4898
    %5471 = vmatmul.mubr.bf16.gmra.mxu0 %v4897
    %v5472 = vpop.f32.mrf.mxu0
    %v5473 = vadd.f32 %v5251, %v5472
    %v5474 = vpop.f32.mrf.mxu0
    %v5475 = vadd.f32 %v5255, %v5474
    %v5476 = vpop.f32.mrf.mxu0
    %v5477 = vadd.f32 %v5251, %v5476
    %v5478 = vpop.f32.mrf.mxu0
    %v5479 = vadd.f32 %v5255, %v5478
    %5480 = vmatprep.mubr.bf16.mxu0 %v4900
    %5481 = vmatmul.mubr.bf16.gmra.mxu0 %v4899
    %v5482 = vpop.f32.mrf.mxu0
    %v5483 = vadd.f32 %v5251, %v5482
    %v5484 = vpop.f32.mrf.mxu0
    %v5485 = vadd.f32 %v5255, %v5484
    %v5486 = vpop.f32.mrf.mxu0
    %v5487 = vadd.f32 %v5251, %v5486
    %v5488 = vpop.f32.mrf.mxu0
    %v5489 = vadd.f32 %v5255, %v5488
    %5490 = vmatprep.mubr.bf16.mxu0 %v4902
    %5491 = vmatmul.mubr.bf16.gmra.mxu0 %v4901
    %v5492 = vpop.f32.mrf.mxu0
    %v5493 = vadd.f32 %v5251, %v5492
    %v5494 = vpop.f32.mrf.mxu0
    %v5495 = vadd.f32 %v5255, %v5494
    %v5496 = vpop.f32.mrf.mxu0
    %v5497 = vadd.f32 %v5251, %v5496
    %v5498 = vpop.f32.mrf.mxu0
    %v5499 = vadd.f32 %v5255, %v5498
    %5500 = vmatprep.mubr.bf16.mxu0 %v4904
    %5501 = vmatmul.mubr.bf16.gmra.mxu0 %v4903
    %v5502 = vpop.f32.mrf.mxu0
    %v5503 = vadd.f32 %v5251, %v5502
    %v5504 = vpop.f32.mrf.mxu0
    %v5505 = vadd.f32 %v5255, %v5504
    %v5506 = vpop.f32.mrf.mxu0
    %v5507 = vadd.f32 %v5251, %v5506
    %v5508 = vpop.f32.mrf.mxu0
    %v5509 = vadd.f32 %v5255, %v5508
    %5510 = vmatprep.mubr.bf16.mxu0 %v4906
    %5511 = vmatmul.mubr.bf16.gmra.mxu0 %v4905
    %v5512 = vpop.f32.mrf.mxu0
    %v5513 = vadd.f32 %v5251, %v5512
    %v5514 = vpop.f32.mrf.mxu0
    %v5515 = vadd.f32 %v5255, %v5514
    %v5516 = vpop.f32.mrf.mxu0
    %v5517 = vadd.f32 %v5251, %v5516
    %v5518 = vpop.f32.mrf.mxu0
    %v5519 = vadd.f32 %v5255, %v5518
    %5520 = vmatprep.mubr.bf16.mxu0 %v4908
    %5521 = vmatmul.mubr.bf16.gmra.mxu0 %v4907
    %v5522 = vpop.f32.mrf.mxu0
    %v5523 = vadd.f32 %v5251, %v5522
    %v5524 = vpop.f32.mrf.mxu0
    %v5525 = vadd.f32 %v5255, %v5524
    %v5526 = vpop.f32.mrf.mxu0
    %v5527 = vadd.f32 %v5251, %v5526
    %v5528 = vpop.f32.mrf.mxu0
    %v5529 = vadd.f32 %v5255, %v5528
    %5530 = vmatprep.mubr.bf16.mxu0 %v4910
    %5531 = vmatmul.mubr.bf16.gmra.mxu0 %v4909
    %v5532 = vpop.f32.mrf.mxu0
    %v5533 = vadd.f32 %v5251, %v5532
    %v5534 = vpop.f32.mrf.mxu0
    %v5535 = vadd.f32 %v5255, %v5534
    %v5536 = vpop.f32.mrf.mxu0
    %v5537 = vadd.f32 %v5251, %v5536
    %v5538 = vpop.f32.mrf.mxu0
    %v5539 = vadd.f32 %v5255, %v5538
    %5540 = vmatprep.mubr.bf16.mxu0 %v4912
    %5541 = vmatmul.mubr.bf16.gmra.mxu0 %v4911
    %v5542 = vpop.f32.mrf.mxu0
    %v5543 = vadd.f32 %v5251, %v5542
    %v5544 = vpop.f32.mrf.mxu0
    %v5545 = vadd.f32 %v5255, %v5544
    %v5546 = vpop.f32.mrf.mxu0
    %v5547 = vadd.f32 %v5251, %v5546
    %v5548 = vpop.f32.mrf.mxu0
    %v5549 = vadd.f32 %v5255, %v5548
    %5550 = vmatprep.mubr.bf16.mxu0 %v4914
    %5551 = vmatmul.mubr.bf16.gmra.mxu0 %v4913
    %v5552 = vpop.f32.mrf.mxu0
    %v5553 = vadd.f32 %v5251, %v5552
    %v5554 = vpop.f32.mrf.mxu0
    %v5555 = vadd.f32 %v5255, %v5554
    %v5556 = vpop.f32.mrf.mxu0
    %v5557 = vadd.f32 %v5251, %v5556
    %v5558 = vpop.f32.mrf.mxu0
    %v5559 = vadd.f32 %v5255, %v5558
    %5560 = vmatprep.mubr.bf16.mxu0 %v4916
    %5561 = vmatmul.mubr.bf16.gmra.mxu0 %v4915
    %v5562 = vpop.f32.mrf.mxu0
    %v5563 = vadd.f32 %v5251, %v5562
    %v5564 = vpop.f32.mrf.mxu0
    %v5565 = vadd.f32 %v5255, %v5564
    %v5566 = vpop.f32.mrf.mxu0
    %v5567 = vadd.f32 %v5251, %v5566
    %v5568 = vpop.f32.mrf.mxu0
    %v5569 = vadd.f32 %v5255, %v5568
    %5570 = vmatprep.mubr.bf16.mxu0 %v4918
    %5571 = vmatmul.mubr.bf16.gmra.mxu0 %v4917
    %v5572 = vpop.f32.mrf.mxu0
    %v5573 = vadd.f32 %v5251, %v5572
    %v5574 = vpop.f32.mrf.mxu0
    %v5575 = vadd.f32 %v5255, %v5574
    %v5576 = vpop.f32.mrf.mxu0
    %v5577 = vadd.f32 %v5251, %v5576
    %v5578 = vpop.f32.mrf.mxu0
    %v5579 = vadd.f32 %v5255, %v5578
    %5580 = vmatprep.mubr.bf16.mxu0 %v4920
    %5581 = vmatmul.mubr.bf16.gmra.mxu0 %v4919
    %v5582 = vpop.f32.mrf.mxu0
    %v5583 = vadd.f32 %v5251, %v5582
    %v5584 = vpop.f32.mrf.mxu0
    %v5585 = vadd.f32 %v5255, %v5584
    %v5586 = vpop.f32.mrf.mxu0
    %v5587 = vadd.f32 %v5251, %v5586
    %v5588 = vpop.f32.mrf.mxu0
    %v5589 = vadd.f32 %v5255, %v5588
    %5590 = vmatprep.mubr.bf16.mxu0 %v4922
    %5591 = vmatmul.mubr.bf16.gmra.mxu0 %v4921
    %v5592 = vpop.f32.mrf.mxu0
    %v5593 = vadd.f32 %v5251, %v5592
    %v5594 = vpop.f32.mrf.mxu0
    %v5595 = vadd.f32 %v5255, %v5594
    %v5596 = vpop.f32.mrf.mxu0
    %v5597 = vadd.f32 %v5251, %v5596
    %v5598 = vpop.f32.mrf.mxu0
    %v5599 = vadd.f32 %v5255, %v5598
    %5600 = vmatprep.mubr.bf16.mxu0 %v4924
    %5601 = vmatmul.mubr.bf16.gmra.mxu0 %v4923
    %v5602 = vpop.f32.mrf.mxu0
    %v5603 = vadd.f32 %v5251, %v5602
    %v5604 = vpop.f32.mrf.mxu0
    %v5605 = vadd.f32 %v5255, %v5604
    %v5606 = vpop.f32.mrf.mxu0
    %v5607 = vadd.f32 %v5251, %v5606
    %v5608 = vpop.f32.mrf.mxu0
    %v5609 = vadd.f32 %v5255, %v5608
    %5610 = vdwg.mxu0
    %v5611 = vpack.c.bf16 %v5457, %v5453
    %v5612 = vpack.c.bf16 %v5459, %v5455
    %v5613 = vpack.c.bf16 %v5467, %v5463
    %v5614 = vpack.c.bf16 %v5469, %v5465
    %v5615 = vpack.c.bf16 %v5477, %v5473
    %v5616 = vpack.c.bf16 %v5479, %v5475
    %v5617 = vpack.c.bf16 %v5487, %v5483
    %v5618 = vpack.c.bf16 %v5489, %v5485
    %v5619 = vpack.c.bf16 %v5497, %v5493
    %v5620 = vpack.c.bf16 %v5499, %v5495
    %v5621 = vpack.c.bf16 %v5507, %v5503
    %v5622 = vpack.c.bf16 %v5509, %v5505
    %v5623 = vpack.c.bf16 %v5517, %v5513
    %v5624 = vpack.c.bf16 %v5519, %v5515
    %v5625 = vpack.c.bf16 %v5527, %v5523
    %v5626 = vpack.c.bf16 %v5529, %v5525
    %v5627 = vpack.c.bf16 %v5537, %v5533
    %v5628 = vpack.c.bf16 %v5539, %v5535
    %v5629 = vpack.c.bf16 %v5547, %v5543
    %v5630 = vpack.c.bf16 %v5549, %v5545
    %v5631 = vpack.c.bf16 %v5557, %v5553
    %v5632 = vpack.c.bf16 %v5559, %v5555
    %v5633 = vpack.c.bf16 %v5567, %v5563
    %v5634 = vpack.c.bf16 %v5569, %v5565
    %v5635 = vpack.c.bf16 %v5577, %v5573
    %v5636 = vpack.c.bf16 %v5579, %v5575
    %v5637 = vpack.c.bf16 %v5587, %v5583
    %v5638 = vpack.c.bf16 %v5589, %v5585
    %v5639 = vpack.c.bf16 %v5597, %v5593
    %v5640 = vpack.c.bf16 %v5599, %v5595
    %v5641 = vpack.c.bf16 %v5607, %v5603
    %v5642 = vpack.c.bf16 %v5609, %v5605
    %v5643 = vld [vmem:[%s9] sm:$0xf]
    %v5644 = vld [vmem:[%s9 + $0x4] sm:$0xf]
    %v5645 = vld [vmem:[%s9 + $0x8] sm:$0xf]
    %v5646 = vld [vmem:[%s9 + $0xc] sm:$0xf]
    %v5647 = vld [vmem:[%s9 + $0x10] sm:$0xf]
    %v5648 = vld [vmem:[%s9 + $0x14] sm:$0xf]
    %v5649 = vld [vmem:[%s9 + $0x18] sm:$0xf]
    %v5650 = vld [vmem:[%s9 + $0x1c] sm:$0xf]
    %v5651 = vld [vmem:[%s9 + $0x20] sm:$0xf]
    %v5652 = vld [vmem:[%s9 + $0x24] sm:$0xf]
    %v5653 = vld [vmem:[%s9 + $0x28] sm:$0xf]
    %v5654 = vld [vmem:[%s9 + $0x2c] sm:$0xf]
    %v5655 = vld [vmem:[%s9 + $0x30] sm:$0xf]
    %v5656 = vld [vmem:[%s9 + $0x34] sm:$0xf]
    %v5657 = vld [vmem:[%s9 + $0x38] sm:$0xf]
    %v5658 = vld [vmem:[%s9 + $0x3c] sm:$0xf]
    %v5659 = vld [vmem:[%s9 + $0x40] sm:$0xf]
    %v5660 = vld [vmem:[%s9 + $0x44] sm:$0xf]
    %v5661 = vld [vmem:[%s9 + $0x48] sm:$0xf]
    %v5662 = vld [vmem:[%s9 + $0x4c] sm:$0xf]
    %v5663 = vld [vmem:[%s9 + $0x50] sm:$0xf]
    %v5664 = vld [vmem:[%s9 + $0x54] sm:$0xf]
    %v5665 = vld [vmem:[%s9 + $0x58] sm:$0xf]
    %v5666 = vld [vmem:[%s9 + $0x5c] sm:$0xf]
    %v5667 = vld [vmem:[%s9 + $0x60] sm:$0xf]
    %v5668 = vld [vmem:[%s9 + $0x64] sm:$0xf]
    %v5669 = vld [vmem:[%s9 + $0x68] sm:$0xf]
    %v5670 = vld [vmem:[%s9 + $0x6c] sm:$0xf]
    %v5671 = vld [vmem:[%s9 + $0x70] sm:$0xf]
    %v5672 = vld [vmem:[%s9 + $0x74] sm:$0xf]
    %v5673 = vld [vmem:[%s9 + $0x78] sm:$0xf]
    %v5674 = vld [vmem:[%s9 + $0x7c] sm:$0xf]
    %v5675 = vld [vmem:[%s10] sm:$0x1]
    %5676 = vset.pattern.permute.xlu0 3
    %5677 = vperm.xlu0 %5676, %v62
    %v5678 = vpop.permute.xlu0 %5677
    %5680 = vset.pattern.permute.xlu0 3
    %5681 = vperm.xlu0 %5680, %v63
    %v5682 = vpop.permute.xlu0 %5681
    %5684 = vset.pattern.permute.xlu0 3
    %5685 = vperm.xlu0 %5684, %v64
    %v5686 = vpop.permute.xlu0 %5685
    %5688 = vset.pattern.permute.xlu0 3
    %5689 = vperm.xlu0 %5688, %v65
    %v5690 = vpop.permute.xlu0 %5689
    %5692 = vset.pattern.permute.xlu0 3
    %5693 = vperm.xlu0 %5692, %v66
    %v5694 = vpop.permute.xlu0 %5693
    %5696 = vset.pattern.permute.xlu0 3
    %5697 = vperm.xlu0 %5696, %v67
    %v5698 = vpop.permute.xlu0 %5697
    %5700 = vset.pattern.permute.xlu0 3
    %5701 = vperm.xlu0 %5700, %v68
    %v5702 = vpop.permute.xlu0 %5701
    %5704 = vset.pattern.permute.xlu0 3
    %5705 = vperm.xlu0 %5704, %v69
    %v5706 = vpop.permute.xlu0 %5705
    %5708 = vset.pattern.permute.xlu0 3
    %5709 = vperm.xlu0 %5708, %v70
    %v5710 = vpop.permute.xlu0 %5709
    %5712 = vset.pattern.permute.xlu0 3
    %5713 = vperm.xlu0 %5712, %v71
    %v5714 = vpop.permute.xlu0 %5713
    %5716 = vset.pattern.permute.xlu0 3
    %5717 = vperm.xlu0 %5716, %v72
    %v5718 = vpop.permute.xlu0 %5717
    %5720 = vset.pattern.permute.xlu0 3
    %5721 = vperm.xlu0 %5720, %v73
    %v5722 = vpop.permute.xlu0 %5721
    %5724 = vset.pattern.permute.xlu0 3
    %5725 = vperm.xlu0 %5724, %v74
    %v5726 = vpop.permute.xlu0 %5725
    %5728 = vset.pattern.permute.xlu0 3
    %5729 = vperm.xlu0 %5728, %v75
    %v5730 = vpop.permute.xlu0 %5729
    %5732 = vset.pattern.permute.xlu0 3
    %5733 = vperm.xlu0 %5732, %v76
    %v5734 = vpop.permute.xlu0 %5733
    %5736 = vset.pattern.permute.xlu0 3
    %5737 = vperm.xlu0 %5736, %v77
    %v5738 = vpop.permute.xlu0 %5737
    %5740 = vset.pattern.permute.xlu0 3
    %5741 = vperm.xlu0 %5740, %v78
    %v5742 = vpop.permute.xlu0 %5741
    %5744 = vset.pattern.permute.xlu0 3
    %5745 = vperm.xlu0 %5744, %v79
    %v5746 = vpop.permute.xlu0 %5745
    %5748 = vset.pattern.permute.xlu0 3
    %5749 = vperm.xlu0 %5748, %v80
    %v5750 = vpop.permute.xlu0 %5749
    %5752 = vset.pattern.permute.xlu0 3
    %5753 = vperm.xlu0 %5752, %v81
    %v5754 = vpop.permute.xlu0 %5753
    %5756 = vset.pattern.permute.xlu0 3
    %5757 = vperm.xlu0 %5756, %v82
    %v5758 = vpop.permute.xlu0 %5757
    %5760 = vset.pattern.permute.xlu0 3
    %5761 = vperm.xlu0 %5760, %v83
    %v5762 = vpop.permute.xlu0 %5761
    %5764 = vset.pattern.permute.xlu0 3
    %5765 = vperm.xlu0 %5764, %v84
    %v5766 = vpop.permute.xlu0 %5765
    %5768 = vset.pattern.permute.xlu0 3
    %5769 = vperm.xlu0 %5768, %v85
    %v5770 = vpop.permute.xlu0 %5769
    %5772 = vset.pattern.permute.xlu0 3
    %5773 = vperm.xlu0 %5772, %v86
    %v5774 = vpop.permute.xlu0 %5773
    %5776 = vset.pattern.permute.xlu0 3
    %5777 = vperm.xlu0 %5776, %v87
    %v5778 = vpop.permute.xlu0 %5777
    %5780 = vset.pattern.permute.xlu0 3
    %5781 = vperm.xlu0 %5780, %v88
    %v5782 = vpop.permute.xlu0 %5781
    %5784 = vset.pattern.permute.xlu0 3
    %5785 = vperm.xlu0 %5784, %v89
    %v5786 = vpop.permute.xlu0 %5785
    %5788 = vset.pattern.permute.xlu0 3
    %5789 = vperm.xlu0 %5788, %v90
    %v5790 = vpop.permute.xlu0 %5789
    %5792 = vset.pattern.permute.xlu0 3
    %5793 = vperm.xlu0 %5792, %v91
    %v5794 = vpop.permute.xlu0 %5793
    %5796 = vset.pattern.permute.xlu0 3
    %5797 = vperm.xlu0 %5796, %v92
    %v5798 = vpop.permute.xlu0 %5797
    %5800 = vset.pattern.permute.xlu0 3
    %5801 = vperm.xlu0 %5800, %v93
    %v5802 = vpop.permute.xlu0 %5801
    %v5804 = vlaneseq
    %v5805 = vshrl.u32 %v5804, 7
    %v5806 = vsub.s32 0, %v5805
    %v5807 = vrot.slane %v5675, %v5806
    %v5808 = vmul.f32 %v5678, %v5807
    %v5809 = vmul.f32 %v5682, %v5807
    %v5810 = vmul.f32 %v5686, %v5807
    %v5811 = vmul.f32 %v5690, %v5807
    %v5812 = vmul.f32 %v5694, %v5807
    %v5813 = vmul.f32 %v5698, %v5807
    %v5814 = vmul.f32 %v5702, %v5807
    %v5815 = vmul.f32 %v5706, %v5807
    %v5816 = vmul.f32 %v5710, %v5807
    %v5817 = vmul.f32 %v5714, %v5807
    %v5818 = vmul.f32 %v5718, %v5807
    %v5819 = vmul.f32 %v5722, %v5807
    %v5820 = vmul.f32 %v5726, %v5807
    %v5821 = vmul.f32 %v5730, %v5807
    %v5822 = vmul.f32 %v5734, %v5807
    %v5823 = vmul.f32 %v5738, %v5807
    %v5824 = vmul.f32 %v5742, %v5807
    %v5825 = vmul.f32 %v5746, %v5807
    %v5826 = vmul.f32 %v5750, %v5807
    %v5827 = vmul.f32 %v5754, %v5807
    %v5828 = vmul.f32 %v5758, %v5807
    %v5829 = vmul.f32 %v5762, %v5807
    %v5830 = vmul.f32 %v5766, %v5807
    %v5831 = vmul.f32 %v5770, %v5807
    %v5832 = vmul.f32 %v5774, %v5807
    %v5833 = vmul.f32 %v5778, %v5807
    %v5834 = vmul.f32 %v5782, %v5807
    %v5835 = vmul.f32 %v5786, %v5807
    %v5836 = vmul.f32 %v5790, %v5807
    %v5837 = vmul.f32 %v5794, %v5807
    %v5838 = vmul.f32 %v5798, %v5807
    %v5839 = vmul.f32 %v5802, %v5807
    %v5840 = vld [vmem:[%s10 + $0x1] sm:$0x1]
    %5841 = vset.pattern.permute.xlu0 4
    %5842 = vperm.xlu0 %5841, %v62
    %v5843 = vpop.permute.xlu0 %5842
    %5845 = vset.pattern.permute.xlu0 4
    %5846 = vperm.xlu0 %5845, %v63
    %v5847 = vpop.permute.xlu0 %5846
    %5849 = vset.pattern.permute.xlu0 4
    %5850 = vperm.xlu0 %5849, %v64
    %v5851 = vpop.permute.xlu0 %5850
    %5853 = vset.pattern.permute.xlu0 4
    %5854 = vperm.xlu0 %5853, %v65
    %v5855 = vpop.permute.xlu0 %5854
    %5857 = vset.pattern.permute.xlu0 4
    %5858 = vperm.xlu0 %5857, %v66
    %v5859 = vpop.permute.xlu0 %5858
    %5861 = vset.pattern.permute.xlu0 4
    %5862 = vperm.xlu0 %5861, %v67
    %v5863 = vpop.permute.xlu0 %5862
    %5865 = vset.pattern.permute.xlu0 4
    %5866 = vperm.xlu0 %5865, %v68
    %v5867 = vpop.permute.xlu0 %5866
    %5869 = vset.pattern.permute.xlu0 4
    %5870 = vperm.xlu0 %5869, %v69
    %v5871 = vpop.permute.xlu0 %5870
    %5873 = vset.pattern.permute.xlu0 4
    %5874 = vperm.xlu0 %5873, %v70
    %v5875 = vpop.permute.xlu0 %5874
    %5877 = vset.pattern.permute.xlu0 4
    %5878 = vperm.xlu0 %5877, %v71
    %v5879 = vpop.permute.xlu0 %5878
    %5881 = vset.pattern.permute.xlu0 4
    %5882 = vperm.xlu0 %5881, %v72
    %v5883 = vpop.permute.xlu0 %5882
    %5885 = vset.pattern.permute.xlu0 4
    %5886 = vperm.xlu0 %5885, %v73
    %v5887 = vpop.permute.xlu0 %5886
    %5889 = vset.pattern.permute.xlu0 4
    %5890 = vperm.xlu0 %5889, %v74
    %v5891 = vpop.permute.xlu0 %5890
    %5893 = vset.pattern.permute.xlu0 4
    %5894 = vperm.xlu0 %5893, %v75
    %v5895 = vpop.permute.xlu0 %5894
    %5897 = vset.pattern.permute.xlu0 4
    %5898 = vperm.xlu0 %5897, %v76
    %v5899 = vpop.permute.xlu0 %5898
    %5901 = vset.pattern.permute.xlu0 4
    %5902 = vperm.xlu0 %5901, %v77
    %v5903 = vpop.permute.xlu0 %5902
    %5905 = vset.pattern.permute.xlu0 4
    %5906 = vperm.xlu0 %5905, %v78
    %v5907 = vpop.permute.xlu0 %5906
    %5909 = vset.pattern.permute.xlu0 4
    %5910 = vperm.xlu0 %5909, %v79
    %v5911 = vpop.permute.xlu0 %5910
    %5913 = vset.pattern.permute.xlu0 4
    %5914 = vperm.xlu0 %5913, %v80
    %v5915 = vpop.permute.xlu0 %5914
    %5917 = vset.pattern.permute.xlu0 4
    %5918 = vperm.xlu0 %5917, %v81
    %v5919 = vpop.permute.xlu0 %5918
    %5921 = vset.pattern.permute.xlu0 4
    %5922 = vperm.xlu0 %5921, %v82
    %v5923 = vpop.permute.xlu0 %5922
    %5925 = vset.pattern.permute.xlu0 4
    %5926 = vperm.xlu0 %5925, %v83
    %v5927 = vpop.permute.xlu0 %5926
    %5929 = vset.pattern.permute.xlu0 4
    %5930 = vperm.xlu0 %5929, %v84
    %v5931 = vpop.permute.xlu0 %5930
    %5933 = vset.pattern.permute.xlu0 4
    %5934 = vperm.xlu0 %5933, %v85
    %v5935 = vpop.permute.xlu0 %5934
    %5937 = vset.pattern.permute.xlu0 4
    %5938 = vperm.xlu0 %5937, %v86
    %v5939 = vpop.permute.xlu0 %5938
    %5941 = vset.pattern.permute.xlu0 4
    %5942 = vperm.xlu0 %5941, %v87
    %v5943 = vpop.permute.xlu0 %5942
    %5945 = vset.pattern.permute.xlu0 4
    %5946 = vperm.xlu0 %5945, %v88
    %v5947 = vpop.permute.xlu0 %5946
    %5949 = vset.pattern.permute.xlu0 4
    %5950 = vperm.xlu0 %5949, %v89
    %v5951 = vpop.permute.xlu0 %5950
    %5953 = vset.pattern.permute.xlu0 4
    %5954 = vperm.xlu0 %5953, %v90
    %v5955 = vpop.permute.xlu0 %5954
    %5957 = vset.pattern.permute.xlu0 4
    %5958 = vperm.xlu0 %5957, %v91
    %v5959 = vpop.permute.xlu0 %5958
    %5961 = vset.pattern.permute.xlu0 4
    %5962 = vperm.xlu0 %5961, %v92
    %v5963 = vpop.permute.xlu0 %5962
    %5965 = vset.pattern.permute.xlu0 4
    %5966 = vperm.xlu0 %5965, %v93
    %v5967 = vpop.permute.xlu0 %5966
    %v5969 = vlaneseq
    %v5970 = vshrl.u32 %v5969, 7
    %v5971 = vsub.s32 0, %v5970
    %v5972 = vrot.slane %v5840, %v5971
    %v5973 = vmul.f32 %v5843, %v5972
    %v5974 = vmul.f32 %v5847, %v5972
    %v5975 = vmul.f32 %v5851, %v5972
    %v5976 = vmul.f32 %v5855, %v5972
    %v5977 = vmul.f32 %v5859, %v5972
    %v5978 = vmul.f32 %v5863, %v5972
    %v5979 = vmul.f32 %v5867, %v5972
    %v5980 = vmul.f32 %v5871, %v5972
    %v5981 = vmul.f32 %v5875, %v5972
    %v5982 = vmul.f32 %v5879, %v5972
    %v5983 = vmul.f32 %v5883, %v5972
    %v5984 = vmul.f32 %v5887, %v5972
    %v5985 = vmul.f32 %v5891, %v5972
    %v5986 = vmul.f32 %v5895, %v5972
    %v5987 = vmul.f32 %v5899, %v5972
    %v5988 = vmul.f32 %v5903, %v5972
    %v5989 = vmul.f32 %v5907, %v5972
    %v5990 = vmul.f32 %v5911, %v5972
    %v5991 = vmul.f32 %v5915, %v5972
    %v5992 = vmul.f32 %v5919, %v5972
    %v5993 = vmul.f32 %v5923, %v5972
    %v5994 = vmul.f32 %v5927, %v5972
    %v5995 = vmul.f32 %v5931, %v5972
    %v5996 = vmul.f32 %v5935, %v5972
    %v5997 = vmul.f32 %v5939, %v5972
    %v5998 = vmul.f32 %v5943, %v5972
    %v5999 = vmul.f32 %v5947, %v5972
    %v6000 = vmul.f32 %v5951, %v5972
    %v6001 = vmul.f32 %v5955, %v5972
    %v6002 = vmul.f32 %v5959, %v5972
    %v6003 = vmul.f32 %v5963, %v5972
    %v6004 = vmul.f32 %v5967, %v5972
    %v6005 = vadd.f32 %v5808, %v5973
    %v6006 = vadd.f32 %v5809, %v5974
    %v6007 = vadd.f32 %v5810, %v5975
    %v6008 = vadd.f32 %v5811, %v5976
    %v6009 = vadd.f32 %v5812, %v5977
    %v6010 = vadd.f32 %v5813, %v5978
    %v6011 = vadd.f32 %v5814, %v5979
    %v6012 = vadd.f32 %v5815, %v5980
    %v6013 = vadd.f32 %v5816, %v5981
    %v6014 = vadd.f32 %v5817, %v5982
    %v6015 = vadd.f32 %v5818, %v5983
    %v6016 = vadd.f32 %v5819, %v5984
    %v6017 = vadd.f32 %v5820, %v5985
    %v6018 = vadd.f32 %v5821, %v5986
    %v6019 = vadd.f32 %v5822, %v5987
    %v6020 = vadd.f32 %v5823, %v5988
    %v6021 = vadd.f32 %v5824, %v5989
    %v6022 = vadd.f32 %v5825, %v5990
    %v6023 = vadd.f32 %v5826, %v5991
    %v6024 = vadd.f32 %v5827, %v5992
    %v6025 = vadd.f32 %v5828, %v5993
    %v6026 = vadd.f32 %v5829, %v5994
    %v6027 = vadd.f32 %v5830, %v5995
    %v6028 = vadd.f32 %v5831, %v5996
    %v6029 = vadd.f32 %v5832, %v5997
    %v6030 = vadd.f32 %v5833, %v5998
    %v6031 = vadd.f32 %v5834, %v5999
    %v6032 = vadd.f32 %v5835, %v6000
    %v6033 = vadd.f32 %v5836, %v6001
    %v6034 = vadd.f32 %v5837, %v6002
    %v6035 = vadd.f32 %v5838, %v6003
    %v6036 = vadd.f32 %v5839, %v6004
    %v6037 = vld [vmem:[%s10 + $0x2] sm:$0x1]
    %6038 = vset.pattern.permute.xlu0 5
    %6039 = vperm.xlu0 %6038, %v62
    %v6040 = vpop.permute.xlu0 %6039
    %6042 = vset.pattern.permute.xlu0 5
    %6043 = vperm.xlu0 %6042, %v63
    %v6044 = vpop.permute.xlu0 %6043
    %6046 = vset.pattern.permute.xlu0 5
    %6047 = vperm.xlu0 %6046, %v64
    %v6048 = vpop.permute.xlu0 %6047
    %6050 = vset.pattern.permute.xlu0 5
    %6051 = vperm.xlu0 %6050, %v65
    %v6052 = vpop.permute.xlu0 %6051
    %6054 = vset.pattern.permute.xlu0 5
    %6055 = vperm.xlu0 %6054, %v66
    %v6056 = vpop.permute.xlu0 %6055
    %6058 = vset.pattern.permute.xlu0 5
    %6059 = vperm.xlu0 %6058, %v67
    %v6060 = vpop.permute.xlu0 %6059
    %6062 = vset.pattern.permute.xlu0 5
    %6063 = vperm.xlu0 %6062, %v68
    %v6064 = vpop.permute.xlu0 %6063
    %6066 = vset.pattern.permute.xlu0 5
    %6067 = vperm.xlu0 %6066, %v69
    %v6068 = vpop.permute.xlu0 %6067
    %6070 = vset.pattern.permute.xlu0 5
    %6071 = vperm.xlu0 %6070, %v70
    %v6072 = vpop.permute.xlu0 %6071
    %6074 = vset.pattern.permute.xlu0 5
    %6075 = vperm.xlu0 %6074, %v71
    %v6076 = vpop.permute.xlu0 %6075
    %6078 = vset.pattern.permute.xlu0 5
    %6079 = vperm.xlu0 %6078, %v72
    %v6080 = vpop.permute.xlu0 %6079
    %6082 = vset.pattern.permute.xlu0 5
    %6083 = vperm.xlu0 %6082, %v73
    %v6084 = vpop.permute.xlu0 %6083
    %6086 = vset.pattern.permute.xlu0 5
    %6087 = vperm.xlu0 %6086, %v74
    %v6088 = vpop.permute.xlu0 %6087
    %6090 = vset.pattern.permute.xlu0 5
    %6091 = vperm.xlu0 %6090, %v75
    %v6092 = vpop.permute.xlu0 %6091
    %6094 = vset.pattern.permute.xlu0 5
    %6095 = vperm.xlu0 %6094, %v76
    %v6096 = vpop.permute.xlu0 %6095
    %6098 = vset.pattern.permute.xlu0 5
    %6099 = vperm.xlu0 %6098, %v77
    %v6100 = vpop.permute.xlu0 %6099
    %6102 = vset.pattern.permute.xlu0 5
    %6103 = vperm.xlu0 %6102, %v78
    %v6104 = vpop.permute.xlu0 %6103
    %6106 = vset.pattern.permute.xlu0 5
    %6107 = vperm.xlu0 %6106, %v79
    %v6108 = vpop.permute.xlu0 %6107
    %6110 = vset.pattern.permute.xlu0 5
    %6111 = vperm.xlu0 %6110, %v80
    %v6112 = vpop.permute.xlu0 %6111
    %6114 = vset.pattern.permute.xlu0 5
    %6115 = vperm.xlu0 %6114, %v81
    %v6116 = vpop.permute.xlu0 %6115
    %6118 = vset.pattern.permute.xlu0 5
    %6119 = vperm.xlu0 %6118, %v82
    %v6120 = vpop.permute.xlu0 %6119
    %6122 = vset.pattern.permute.xlu0 5
    %6123 = vperm.xlu0 %6122, %v83
    %v6124 = vpop.permute.xlu0 %6123
    %6126 = vset.pattern.permute.xlu0 5
    %6127 = vperm.xlu0 %6126, %v84
    %v6128 = vpop.permute.xlu0 %6127
    %6130 = vset.pattern.permute.xlu0 5
    %6131 = vperm.xlu0 %6130, %v85
    %v6132 = vpop.permute.xlu0 %6131
    %6134 = vset.pattern.permute.xlu0 5
    %6135 = vperm.xlu0 %6134, %v86
    %v6136 = vpop.permute.xlu0 %6135
    %6138 = vset.pattern.permute.xlu0 5
    %6139 = vperm.xlu0 %6138, %v87
    %v6140 = vpop.permute.xlu0 %6139
    %6142 = vset.pattern.permute.xlu0 5
    %6143 = vperm.xlu0 %6142, %v88
    %v6144 = vpop.permute.xlu0 %6143
    %6146 = vset.pattern.permute.xlu0 5
    %6147 = vperm.xlu0 %6146, %v89
    %v6148 = vpop.permute.xlu0 %6147
    %6150 = vset.pattern.permute.xlu0 5
    %6151 = vperm.xlu0 %6150, %v90
    %v6152 = vpop.permute.xlu0 %6151
    %6154 = vset.pattern.permute.xlu0 5
    %6155 = vperm.xlu0 %6154, %v91
    %v6156 = vpop.permute.xlu0 %6155
    %6158 = vset.pattern.permute.xlu0 5
    %6159 = vperm.xlu0 %6158, %v92
    %v6160 = vpop.permute.xlu0 %6159
    %6162 = vset.pattern.permute.xlu0 5
    %6163 = vperm.xlu0 %6162, %v93
    %v6164 = vpop.permute.xlu0 %6163
    %v6166 = vlaneseq
    %v6167 = vshrl.u32 %v6166, 7
    %v6168 = vsub.s32 0, %v6167
    %v6169 = vrot.slane %v6037, %v6168
    %v6170 = vmul.f32 %v6040, %v6169
    %v6171 = vmul.f32 %v6044, %v6169
    %v6172 = vmul.f32 %v6048, %v6169
    %v6173 = vmul.f32 %v6052, %v6169
    %v6174 = vmul.f32 %v6056, %v6169
    %v6175 = vmul.f32 %v6060, %v6169
    %v6176 = vmul.f32 %v6064, %v6169
    %v6177 = vmul.f32 %v6068, %v6169
    %v6178 = vmul.f32 %v6072, %v6169
    %v6179 = vmul.f32 %v6076, %v6169
    %v6180 = vmul.f32 %v6080, %v6169
    %v6181 = vmul.f32 %v6084, %v6169
    %v6182 = vmul.f32 %v6088, %v6169
    %v6183 = vmul.f32 %v6092, %v6169
    %v6184 = vmul.f32 %v6096, %v6169
    %v6185 = vmul.f32 %v6100, %v6169
    %v6186 = vmul.f32 %v6104, %v6169
    %v6187 = vmul.f32 %v6108, %v6169
    %v6188 = vmul.f32 %v6112, %v6169
    %v6189 = vmul.f32 %v6116, %v6169
    %v6190 = vmul.f32 %v6120, %v6169
    %v6191 = vmul.f32 %v6124, %v6169
    %v6192 = vmul.f32 %v6128, %v6169
    %v6193 = vmul.f32 %v6132, %v6169
    %v6194 = vmul.f32 %v6136, %v6169
    %v6195 = vmul.f32 %v6140, %v6169
    %v6196 = vmul.f32 %v6144, %v6169
    %v6197 = vmul.f32 %v6148, %v6169
    %v6198 = vmul.f32 %v6152, %v6169
    %v6199 = vmul.f32 %v6156, %v6169
    %v6200 = vmul.f32 %v6160, %v6169
    %v6201 = vmul.f32 %v6164, %v6169
    %v6202 = vadd.f32 %v6005, %v6170
    %v6203 = vadd.f32 %v6006, %v6171
    %v6204 = vadd.f32 %v6007, %v6172
    %v6205 = vadd.f32 %v6008, %v6173
    %v6206 = vadd.f32 %v6009, %v6174
    %v6207 = vadd.f32 %v6010, %v6175
    %v6208 = vadd.f32 %v6011, %v6176
    %v6209 = vadd.f32 %v6012, %v6177
    %v6210 = vadd.f32 %v6013, %v6178
    %v6211 = vadd.f32 %v6014, %v6179
    %v6212 = vadd.f32 %v6015, %v6180
    %v6213 = vadd.f32 %v6016, %v6181
    %v6214 = vadd.f32 %v6017, %v6182
    %v6215 = vadd.f32 %v6018, %v6183
    %v6216 = vadd.f32 %v6019, %v6184
    %v6217 = vadd.f32 %v6020, %v6185
    %v6218 = vadd.f32 %v6021, %v6186
    %v6219 = vadd.f32 %v6022, %v6187
    %v6220 = vadd.f32 %v6023, %v6188
    %v6221 = vadd.f32 %v6024, %v6189
    %v6222 = vadd.f32 %v6025, %v6190
    %v6223 = vadd.f32 %v6026, %v6191
    %v6224 = vadd.f32 %v6027, %v6192
    %v6225 = vadd.f32 %v6028, %v6193
    %v6226 = vadd.f32 %v6029, %v6194
    %v6227 = vadd.f32 %v6030, %v6195
    %v6228 = vadd.f32 %v6031, %v6196
    %v6229 = vadd.f32 %v6032, %v6197
    %v6230 = vadd.f32 %v6033, %v6198
    %v6231 = vadd.f32 %v6034, %v6199
    %v6232 = vadd.f32 %v6035, %v6200
    %v6233 = vadd.f32 %v6036, %v6201
    %v6266 = vunpack.c.l.b16 %v5643
    %v6267 = vunpack.c.l.b16 %v5644
    %v6268 = vunpack.c.l.b16 %v5645
    %v6269 = vunpack.c.l.b16 %v5646
    %v6270 = vunpack.c.l.b16 %v5647
    %v6271 = vunpack.c.l.b16 %v5648
    %v6272 = vunpack.c.l.b16 %v5649
    %v6273 = vunpack.c.l.b16 %v5650
    %v6274 = vunpack.c.l.b16 %v5651
    %v6275 = vunpack.c.l.b16 %v5652
    %v6276 = vunpack.c.l.b16 %v5653
    %v6277 = vunpack.c.l.b16 %v5654
    %v6278 = vunpack.c.l.b16 %v5655
    %v6279 = vunpack.c.l.b16 %v5656
    %v6280 = vunpack.c.l.b16 %v5657
    %v6281 = vunpack.c.l.b16 %v5658
    %v6282 = vunpack.c.l.b16 %v5659
    %v6283 = vunpack.c.l.b16 %v5660
    %v6284 = vunpack.c.l.b16 %v5661
    %v6285 = vunpack.c.l.b16 %v5662
    %v6286 = vunpack.c.l.b16 %v5663
    %v6287 = vunpack.c.l.b16 %v5664
    %v6288 = vunpack.c.l.b16 %v5665
    %v6289 = vunpack.c.l.b16 %v5666
    %v6290 = vunpack.c.l.b16 %v5667
    %v6291 = vunpack.c.l.b16 %v5668
    %v6292 = vunpack.c.l.b16 %v5669
    %v6293 = vunpack.c.l.b16 %v5670
    %v6294 = vunpack.c.l.b16 %v5671
    %v6295 = vunpack.c.l.b16 %v5672
    %v6296 = vunpack.c.l.b16 %v5673
    %v6297 = vunpack.c.l.b16 %v5674
    %v6298 = vpack.c.b16 %v6267, %v6266
    %v6299 = vpack.c.b16 %v6269, %v6268
    %v6300 = vpack.c.b16 %v6271, %v6270
    %v6301 = vpack.c.b16 %v6273, %v6272
    %v6302 = vpack.c.b16 %v6275, %v6274
    %v6303 = vpack.c.b16 %v6277, %v6276
    %v6304 = vpack.c.b16 %v6279, %v6278
    %v6305 = vpack.c.b16 %v6281, %v6280
    %v6306 = vpack.c.b16 %v6283, %v6282
    %v6307 = vpack.c.b16 %v6285, %v6284
    %v6308 = vpack.c.b16 %v6287, %v6286
    %v6309 = vpack.c.b16 %v6289, %v6288
    %v6310 = vpack.c.b16 %v6291, %v6290
    %v6311 = vpack.c.b16 %v6293, %v6292
    %v6312 = vpack.c.b16 %v6295, %v6294
    %v6313 = vpack.c.b16 %v6297, %v6296
    %6330 = vmatprep.subr.bf16.mxu0 0
    %6331 = vmatpush1.bf16.msra.mxu0 %v6305
    %6332 = vmatprep.subr.bf16.mxu0 0
    %6333 = vmatpush1.bf16.msra.mxu0 %v6304
    %6334 = vmatprep.subr.bf16.mxu0 0
    %6335 = vmatpush1.bf16.msra.mxu0 %v6303
    %6336 = vmatprep.subr.bf16.mxu0 0
    %6337 = vmatpush1.bf16.msra.mxu0 %v6302
    %6338 = vmatprep.subr.bf16.mxu0 0
    %6339 = vmatpush1.bf16.msra.mxu0 %v6301
    %6340 = vmatprep.subr.bf16.mxu0 0
    %6341 = vmatpush1.bf16.msra.mxu0 %v6300
    %6342 = vmatprep.subr.bf16.mxu0 0
    %6343 = vmatpush1.bf16.msra.mxu0 %v6299
    %6344 = vmatprep.subr.bf16.mxu0 0
    %6345 = vmatpush1.bf16.msra.mxu0 %v6298
    %6346 = vmatprep.subr.bf16.mxu0 0
    %6347 = vmatpush2.bf16.msra.mxu0 %v6313
    %6348 = vmatprep.subr.bf16.mxu0 0
    %6349 = vmatpush2.bf16.msra.mxu0 %v6312
    %6350 = vmatprep.subr.bf16.mxu0 0
    %6351 = vmatpush2.bf16.msra.mxu0 %v6311
    %6352 = vmatprep.subr.bf16.mxu0 0
    %6353 = vmatpush2.bf16.msra.mxu0 %v6310
    %6354 = vmatprep.subr.bf16.mxu0 0
    %6355 = vmatpush2.bf16.msra.mxu0 %v6309
    %6356 = vmatprep.subr.bf16.mxu0 0
    %6357 = vmatpush2.bf16.msra.mxu0 %v6308
    %6358 = vmatprep.subr.bf16.mxu0 0
    %6359 = vmatpush2.bf16.msra.mxu0 %v6307
    %6360 = vmatprep.subr.bf16.mxu0 0
    %6361 = vmatpush2.bf16.msra.mxu0 %v6306
    %6362 = vmatprep.mubr.bf16.mxu0 %v5612
    %6363 = vmatmul.mubr.bf16.gmra.mxu0 %v5611
    %v6364 = vpop.f32.mrf.mxu0
    %v6365 = vadd.f32 %v6202, %v6364
    %v6366 = vpop.f32.mrf.mxu0
    %v6367 = vpop.f32.mrf.mxu0
    %v6368 = vadd.f32 %v6203, %v6367
    %v6369 = vpop.f32.mrf.mxu0
    %6370 = vmatprep.mubr.bf16.mxu0 %v5614
    %6371 = vmatmul.mubr.bf16.gmra.mxu0 %v5613
    %v6372 = vpop.f32.mrf.mxu0
    %v6373 = vadd.f32 %v6204, %v6372
    %v6374 = vpop.f32.mrf.mxu0
    %v6375 = vpop.f32.mrf.mxu0
    %v6376 = vadd.f32 %v6205, %v6375
    %v6377 = vpop.f32.mrf.mxu0
    %6378 = vmatprep.mubr.bf16.mxu0 %v5616
    %6379 = vmatmul.mubr.bf16.gmra.mxu0 %v5615
    %v6380 = vpop.f32.mrf.mxu0
    %v6381 = vadd.f32 %v6206, %v6380
    %v6382 = vpop.f32.mrf.mxu0
    %v6383 = vpop.f32.mrf.mxu0
    %v6384 = vadd.f32 %v6207, %v6383
    %v6385 = vpop.f32.mrf.mxu0
    %6386 = vmatprep.mubr.bf16.mxu0 %v5618
    %6387 = vmatmul.mubr.bf16.gmra.mxu0 %v5617
    %v6388 = vpop.f32.mrf.mxu0
    %v6389 = vadd.f32 %v6208, %v6388
    %v6390 = vpop.f32.mrf.mxu0
    %v6391 = vpop.f32.mrf.mxu0
    %v6392 = vadd.f32 %v6209, %v6391
    %v6393 = vpop.f32.mrf.mxu0
    %6394 = vmatprep.mubr.bf16.mxu0 %v5620
    %6395 = vmatmul.mubr.bf16.gmra.mxu0 %v5619
    %v6396 = vpop.f32.mrf.mxu0
    %v6397 = vadd.f32 %v6210, %v6396
    %v6398 = vpop.f32.mrf.mxu0
    %v6399 = vpop.f32.mrf.mxu0
    %v6400 = vadd.f32 %v6211, %v6399
    %v6401 = vpop.f32.mrf.mxu0
    %6402 = vmatprep.mubr.bf16.mxu0 %v5622
    %6403 = vmatmul.mubr.bf16.gmra.mxu0 %v5621
    %v6404 = vpop.f32.mrf.mxu0
    %v6405 = vadd.f32 %v6212, %v6404
    %v6406 = vpop.f32.mrf.mxu0
    %v6407 = vpop.f32.mrf.mxu0
    %v6408 = vadd.f32 %v6213, %v6407
    %v6409 = vpop.f32.mrf.mxu0
    %6410 = vmatprep.mubr.bf16.mxu0 %v5624
    %6411 = vmatmul.mubr.bf16.gmra.mxu0 %v5623
    %v6412 = vpop.f32.mrf.mxu0
    %v6413 = vadd.f32 %v6214, %v6412
    %v6414 = vpop.f32.mrf.mxu0
    %v6415 = vpop.f32.mrf.mxu0
    %v6416 = vadd.f32 %v6215, %v6415
    %v6417 = vpop.f32.mrf.mxu0
    %6418 = vmatprep.mubr.bf16.mxu0 %v5626
    %6419 = vmatmul.mubr.bf16.gmra.mxu0 %v5625
    %v6420 = vpop.f32.mrf.mxu0
    %v6421 = vadd.f32 %v6216, %v6420
    %v6422 = vpop.f32.mrf.mxu0
    %v6423 = vpop.f32.mrf.mxu0
    %v6424 = vadd.f32 %v6217, %v6423
    %v6425 = vpop.f32.mrf.mxu0
    %6426 = vmatprep.mubr.bf16.mxu0 %v5628
    %6427 = vmatmul.mubr.bf16.gmra.mxu0 %v5627
    %v6428 = vpop.f32.mrf.mxu0
    %v6429 = vadd.f32 %v6218, %v6428
    %v6430 = vpop.f32.mrf.mxu0
    %v6431 = vpop.f32.mrf.mxu0
    %v6432 = vadd.f32 %v6219, %v6431
    %v6433 = vpop.f32.mrf.mxu0
    %6434 = vmatprep.mubr.bf16.mxu0 %v5630
    %6435 = vmatmul.mubr.bf16.gmra.mxu0 %v5629
    %v6436 = vpop.f32.mrf.mxu0
    %v6437 = vadd.f32 %v6220, %v6436
    %v6438 = vpop.f32.mrf.mxu0
    %v6439 = vpop.f32.mrf.mxu0
    %v6440 = vadd.f32 %v6221, %v6439
    %v6441 = vpop.f32.mrf.mxu0
    %6442 = vmatprep.mubr.bf16.mxu0 %v5632
    %6443 = vmatmul.mubr.bf16.gmra.mxu0 %v5631
    %v6444 = vpop.f32.mrf.mxu0
    %v6445 = vadd.f32 %v6222, %v6444
    %v6446 = vpop.f32.mrf.mxu0
    %v6447 = vpop.f32.mrf.mxu0
    %v6448 = vadd.f32 %v6223, %v6447
    %v6449 = vpop.f32.mrf.mxu0
    %6450 = vmatprep.mubr.bf16.mxu0 %v5634
    %6451 = vmatmul.mubr.bf16.gmra.mxu0 %v5633
    %v6452 = vpop.f32.mrf.mxu0
    %v6453 = vadd.f32 %v6224, %v6452
    %v6454 = vpop.f32.mrf.mxu0
    %v6455 = vpop.f32.mrf.mxu0
    %v6456 = vadd.f32 %v6225, %v6455
    %v6457 = vpop.f32.mrf.mxu0
    %6458 = vmatprep.mubr.bf16.mxu0 %v5636
    %6459 = vmatmul.mubr.bf16.gmra.mxu0 %v5635
    %v6460 = vpop.f32.mrf.mxu0
    %v6461 = vadd.f32 %v6226, %v6460
    %v6462 = vpop.f32.mrf.mxu0
    %v6463 = vpop.f32.mrf.mxu0
    %v6464 = vadd.f32 %v6227, %v6463
    %v6465 = vpop.f32.mrf.mxu0
    %6466 = vmatprep.mubr.bf16.mxu0 %v5638
    %6467 = vmatmul.mubr.bf16.gmra.mxu0 %v5637
    %v6468 = vpop.f32.mrf.mxu0
    %v6469 = vadd.f32 %v6228, %v6468
    %v6470 = vpop.f32.mrf.mxu0
    %v6471 = vpop.f32.mrf.mxu0
    %v6472 = vadd.f32 %v6229, %v6471
    %v6473 = vpop.f32.mrf.mxu0
    %6474 = vmatprep.mubr.bf16.mxu0 %v5640
    %6475 = vmatmul.mubr.bf16.gmra.mxu0 %v5639
    %v6476 = vpop.f32.mrf.mxu0
    %v6477 = vadd.f32 %v6230, %v6476
    %v6478 = vpop.f32.mrf.mxu0
    %v6479 = vpop.f32.mrf.mxu0
    %v6480 = vadd.f32 %v6231, %v6479
    %v6481 = vpop.f32.mrf.mxu0
    %6482 = vmatprep.mubr.bf16.mxu0 %v5642
    %6483 = vmatmul.mubr.bf16.gmra.mxu0 %v5641
    %v6484 = vpop.f32.mrf.mxu0
    %v6485 = vadd.f32 %v6232, %v6484
    %v6486 = vpop.f32.mrf.mxu0
    %v6487 = vpop.f32.mrf.mxu0
    %v6488 = vadd.f32 %v6233, %v6487
    %v6489 = vpop.f32.mrf.mxu0
    %6490 = vdwg.mxu0
    %v6491 = vld [vmem:[%s11] sm:$0x1]
    %v6493 = vlaneseq
    %v6494 = vshrl.u32 %v6493, 7
    %v6495 = vsub.s32 0, %v6494
    %v6496 = vrot.slane %v6491, %v6495
    %v6498 = vadd.f32 %v6365, %v6496
    %v6499 = vadd.f32 %v6368, %v6496
    %v6500 = vadd.f32 %v6373, %v6496
    %v6501 = vadd.f32 %v6376, %v6496
    %v6502 = vadd.f32 %v6381, %v6496
    %v6503 = vadd.f32 %v6384, %v6496
    %v6504 = vadd.f32 %v6389, %v6496
    %v6505 = vadd.f32 %v6392, %v6496
    %v6506 = vadd.f32 %v6397, %v6496
    %v6507 = vadd.f32 %v6400, %v6496
    %v6508 = vadd.f32 %v6405, %v6496
    %v6509 = vadd.f32 %v6408, %v6496
    %v6510 = vadd.f32 %v6413, %v6496
    %v6511 = vadd.f32 %v6416, %v6496
    %v6512 = vadd.f32 %v6421, %v6496
    %v6513 = vadd.f32 %v6424, %v6496
    %v6514 = vadd.f32 %v6429, %v6496
    %v6515 = vadd.f32 %v6432, %v6496
    %v6516 = vadd.f32 %v6437, %v6496
    %v6517 = vadd.f32 %v6440, %v6496
    %v6518 = vadd.f32 %v6445, %v6496
    %v6519 = vadd.f32 %v6448, %v6496
    %v6520 = vadd.f32 %v6453, %v6496
    %v6521 = vadd.f32 %v6456, %v6496
    %v6522 = vadd.f32 %v6461, %v6496
    %v6523 = vadd.f32 %v6464, %v6496
    %v6524 = vadd.f32 %v6469, %v6496
    %v6525 = vadd.f32 %v6472, %v6496
    %v6526 = vadd.f32 %v6477, %v6496
    %v6527 = vadd.f32 %v6480, %v6496
    %v6528 = vadd.f32 %v6485, %v6496
    %v6529 = vadd.f32 %v6488, %v6496
    %v6530 = vmax.f32 %v6498, 0.0
    %v6531 = vmax.f32 %v6499, 0.0
    %v6532 = vmax.f32 %v6500, 0.0
    %v6533 = vmax.f32 %v6501, 0.0
    %v6534 = vmax.f32 %v6502, 0.0
    %v6535 = vmax.f32 %v6503, 0.0
    %v6536 = vmax.f32 %v6504, 0.0
    %v6537 = vmax.f32 %v6505, 0.0
    %v6538 = vmax.f32 %v6506, 0.0
    %v6539 = vmax.f32 %v6507, 0.0
    %v6540 = vmax.f32 %v6508, 0.0
    %v6541 = vmax.f32 %v6509, 0.0
    %v6542 = vmax.f32 %v6510, 0.0
    %v6543 = vmax.f32 %v6511, 0.0
    %v6544 = vmax.f32 %v6512, 0.0
    %v6545 = vmax.f32 %v6513, 0.0
    %v6546 = vmax.f32 %v6514, 0.0
    %v6547 = vmax.f32 %v6515, 0.0
    %v6548 = vmax.f32 %v6516, 0.0
    %v6549 = vmax.f32 %v6517, 0.0
    %v6550 = vmax.f32 %v6518, 0.0
    %v6551 = vmax.f32 %v6519, 0.0
    %v6552 = vmax.f32 %v6520, 0.0
    %v6553 = vmax.f32 %v6521, 0.0
    %v6554 = vmax.f32 %v6522, 0.0
    %v6555 = vmax.f32 %v6523, 0.0
    %v6556 = vmax.f32 %v6524, 0.0
    %v6557 = vmax.f32 %v6525, 0.0
    %v6558 = vmax.f32 %v6526, 0.0
    %v6559 = vmax.f32 %v6527, 0.0
    %v6560 = vmax.f32 %v6528, 0.0
    %v6561 = vmax.f32 %v6529, 0.0
    %v6562 = vpack.c.bf16 %v6531, %v6530
    %v6563 = vpack.c.bf16 %v6533, %v6532
    %v6564 = vpack.c.bf16 %v6535, %v6534
    %v6565 = vpack.c.bf16 %v6537, %v6536
    %v6566 = vpack.c.bf16 %v6539, %v6538
    %v6567 = vpack.c.bf16 %v6541, %v6540
    %v6568 = vpack.c.bf16 %v6543, %v6542
    %v6569 = vpack.c.bf16 %v6545, %v6544
    %v6570 = vpack.c.bf16 %v6547, %v6546
    %v6571 = vpack.c.bf16 %v6549, %v6548
    %v6572 = vpack.c.bf16 %v6551, %v6550
    %v6573 = vpack.c.bf16 %v6553, %v6552
    %v6574 = vpack.c.bf16 %v6555, %v6554
    %v6575 = vpack.c.bf16 %v6557, %v6556
    %v6576 = vpack.c.bf16 %v6559, %v6558
    %v6577 = vpack.c.bf16 %v6561, %v6560
    %v6578 = vld [vmem:[%s12] sm:$0xf]
    %v6579 = vld [vmem:[%s12 + $0x4] sm:$0xf]
    %v6580 = vld [vmem:[%s12 + $0x8] sm:$0xf]
    %v6581 = vld [vmem:[%s12 + $0xc] sm:$0xf]
    %v6582 = vld [vmem:[%s12 + $0x10] sm:$0xf]
    %v6583 = vld [vmem:[%s12 + $0x14] sm:$0xf]
    %v6584 = vld [vmem:[%s12 + $0x18] sm:$0xf]
    %v6585 = vld [vmem:[%s12 + $0x1c] sm:$0xf]
    %v6586 = vld [vmem:[%s12 + $0x20] sm:$0xf]
    %v6587 = vld [vmem:[%s12 + $0x24] sm:$0xf]
    %v6588 = vld [vmem:[%s12 + $0x28] sm:$0xf]
    %v6589 = vld [vmem:[%s12 + $0x2c] sm:$0xf]
    %v6590 = vld [vmem:[%s12 + $0x30] sm:$0xf]
    %v6591 = vld [vmem:[%s12 + $0x34] sm:$0xf]
    %v6592 = vld [vmem:[%s12 + $0x38] sm:$0xf]
    %v6593 = vld [vmem:[%s12 + $0x3c] sm:$0xf]
    %v6610 = vunpack.c.l.b16 %v6578
    %v6611 = vunpack.c.l.b16 %v6579
    %v6612 = vunpack.c.l.b16 %v6580
    %v6613 = vunpack.c.l.b16 %v6581
    %v6614 = vunpack.c.l.b16 %v6582
    %v6615 = vunpack.c.l.b16 %v6583
    %v6616 = vunpack.c.l.b16 %v6584
    %v6617 = vunpack.c.l.b16 %v6585
    %v6618 = vunpack.c.l.b16 %v6586
    %v6619 = vunpack.c.l.b16 %v6587
    %v6620 = vunpack.c.l.b16 %v6588
    %v6621 = vunpack.c.l.b16 %v6589
    %v6622 = vunpack.c.l.b16 %v6590
    %v6623 = vunpack.c.l.b16 %v6591
    %v6624 = vunpack.c.l.b16 %v6592
    %v6625 = vunpack.c.l.b16 %v6593
    %v6626 = vpack.c.b16 %v6611, %v6610
    %v6627 = vpack.c.b16 %v6613, %v6612
    %v6628 = vpack.c.b16 %v6615, %v6614
    %v6629 = vpack.c.b16 %v6617, %v6616
    %v6630 = vpack.c.b16 %v6619, %v6618
    %v6631 = vpack.c.b16 %v6621, %v6620
    %v6632 = vpack.c.b16 %v6623, %v6622
    %v6633 = vpack.c.b16 %v6625, %v6624
    %6642 = vmatprep.subr.bf16.mxu0 0
    %6643 = vmatpush1.bf16.msra.mxu0 %v6633
    %6644 = vmatprep.subr.bf16.mxu0 0
    %6645 = vmatpush1.bf16.msra.mxu0 %v6632
    %6646 = vmatprep.subr.bf16.mxu0 0
    %6647 = vmatpush1.bf16.msra.mxu0 %v6631
    %6648 = vmatprep.subr.bf16.mxu0 0
    %6649 = vmatpush1.bf16.msra.mxu0 %v6630
    %6650 = vmatprep.subr.bf16.mxu0 0
    %6651 = vmatpush1.bf16.msra.mxu0 %v6629
    %6652 = vmatprep.subr.bf16.mxu0 0
    %6653 = vmatpush1.bf16.msra.mxu0 %v6628
    %6654 = vmatprep.subr.bf16.mxu0 0
    %6655 = vmatpush1.bf16.msra.mxu0 %v6627
    %6656 = vmatprep.subr.bf16.mxu0 0
    %6657 = vmatpush1.bf16.msra.mxu0 %v6626
    %6658 = vmatprep.subr.bf16.mxu0 0
    %6659 = vmatpush2.bf16.msra.mxu0 0
    %6660 = vmatprep.subr.bf16.mxu0 0
    %6661 = vmatpush2.bf16.msra.mxu0 0
    %6662 = vmatprep.subr.bf16.mxu0 0
    %6663 = vmatpush2.bf16.msra.mxu0 0
    %6664 = vmatprep.subr.bf16.mxu0 0
    %6665 = vmatpush2.bf16.msra.mxu0 0
    %6666 = vmatprep.subr.bf16.mxu0 0
    %6667 = vmatpush2.bf16.msra.mxu0 0
    %6668 = vmatprep.subr.bf16.mxu0 0
    %6669 = vmatpush2.bf16.msra.mxu0 0
    %6670 = vmatprep.subr.bf16.mxu0 0
    %6671 = vmatpush2.bf16.msra.mxu0 0
    %6672 = vmatprep.subr.bf16.mxu0 0
    %6673 = vmatpush2.bf16.msra.mxu0 0
    %6674 = vmatprep.mubr.bf16.mxu0 0
    %6675 = vmatmul.mubr.bf16.gmra.mxu0 %v6562
    %v6676 = vpop.f32.mrf.mxu0
    %v6677 = vadd.f32 %v5088, %v6676
    %v6678 = vpop.f32.mrf.mxu0
    %v6679 = vpop.f32.mrf.mxu0
    %v6680 = vadd.f32 %v5091, %v6679
    %v6681 = vpop.f32.mrf.mxu0
    %6682 = vmatprep.mubr.bf16.mxu0 0
    %6683 = vmatmul.mubr.bf16.gmra.mxu0 %v6563
    %v6684 = vpop.f32.mrf.mxu0
    %v6685 = vadd.f32 %v5096, %v6684
    %v6686 = vpop.f32.mrf.mxu0
    %v6687 = vpop.f32.mrf.mxu0
    %v6688 = vadd.f32 %v5099, %v6687
    %v6689 = vpop.f32.mrf.mxu0
    %6690 = vmatprep.mubr.bf16.mxu0 0
    %6691 = vmatmul.mubr.bf16.gmra.mxu0 %v6564
    %v6692 = vpop.f32.mrf.mxu0
    %v6693 = vadd.f32 %v5104, %v6692
    %v6694 = vpop.f32.mrf.mxu0
    %v6695 = vpop.f32.mrf.mxu0
    %v6696 = vadd.f32 %v5107, %v6695
    %v6697 = vpop.f32.mrf.mxu0
    %6698 = vmatprep.mubr.bf16.mxu0 0
    %6699 = vmatmul.mubr.bf16.gmra.mxu0 %v6565
    %v6700 = vpop.f32.mrf.mxu0
    %v6701 = vadd.f32 %v5112, %v6700
    %v6702 = vpop.f32.mrf.mxu0
    %v6703 = vpop.f32.mrf.mxu0
    %v6704 = vadd.f32 %v5115, %v6703
    %v6705 = vpop.f32.mrf.mxu0
    %6706 = vmatprep.mubr.bf16.mxu0 0
    %6707 = vmatmul.mubr.bf16.gmra.mxu0 %v6566
    %v6708 = vpop.f32.mrf.mxu0
    %v6709 = vadd.f32 %v5120, %v6708
    %v6710 = vpop.f32.mrf.mxu0
    %v6711 = vpop.f32.mrf.mxu0
    %v6712 = vadd.f32 %v5123, %v6711
    %v6713 = vpop.f32.mrf.mxu0
    %6714 = vmatprep.mubr.bf16.mxu0 0
    %6715 = vmatmul.mubr.bf16.gmra.mxu0 %v6567
    %v6716 = vpop.f32.mrf.mxu0
    %v6717 = vadd.f32 %v5128, %v6716
    %v6718 = vpop.f32.mrf.mxu0
    %v6719 = vpop.f32.mrf.mxu0
    %v6720 = vadd.f32 %v5131, %v6719
    %v6721 = vpop.f32.mrf.mxu0
    %6722 = vmatprep.mubr.bf16.mxu0 0
    %6723 = vmatmul.mubr.bf16.gmra.mxu0 %v6568
    %v6724 = vpop.f32.mrf.mxu0
    %v6725 = vadd.f32 %v5136, %v6724
    %v6726 = vpop.f32.mrf.mxu0
    %v6727 = vpop.f32.mrf.mxu0
    %v6728 = vadd.f32 %v5139, %v6727
    %v6729 = vpop.f32.mrf.mxu0
    %6730 = vmatprep.mubr.bf16.mxu0 0
    %6731 = vmatmul.mubr.bf16.gmra.mxu0 %v6569
    %v6732 = vpop.f32.mrf.mxu0
    %v6733 = vadd.f32 %v5144, %v6732
    %v6734 = vpop.f32.mrf.mxu0
    %v6735 = vpop.f32.mrf.mxu0
    %v6736 = vadd.f32 %v5147, %v6735
    %v6737 = vpop.f32.mrf.mxu0
    %6738 = vmatprep.mubr.bf16.mxu0 0
    %6739 = vmatmul.mubr.bf16.gmra.mxu0 %v6570
    %v6740 = vpop.f32.mrf.mxu0
    %v6741 = vadd.f32 %v5152, %v6740
    %v6742 = vpop.f32.mrf.mxu0
    %v6743 = vpop.f32.mrf.mxu0
    %v6744 = vadd.f32 %v5155, %v6743
    %v6745 = vpop.f32.mrf.mxu0
    %6746 = vmatprep.mubr.bf16.mxu0 0
    %6747 = vmatmul.mubr.bf16.gmra.mxu0 %v6571
    %v6748 = vpop.f32.mrf.mxu0
    %v6749 = vadd.f32 %v5160, %v6748
    %v6750 = vpop.f32.mrf.mxu0
    %v6751 = vpop.f32.mrf.mxu0
    %v6752 = vadd.f32 %v5163, %v6751
    %v6753 = vpop.f32.mrf.mxu0
    %6754 = vmatprep.mubr.bf16.mxu0 0
    %6755 = vmatmul.mubr.bf16.gmra.mxu0 %v6572
    %v6756 = vpop.f32.mrf.mxu0
    %v6757 = vadd.f32 %v5168, %v6756
    %v6758 = vpop.f32.mrf.mxu0
    %v6759 = vpop.f32.mrf.mxu0
    %v6760 = vadd.f32 %v5171, %v6759
    %v6761 = vpop.f32.mrf.mxu0
    %6762 = vmatprep.mubr.bf16.mxu0 0
    %6763 = vmatmul.mubr.bf16.gmra.mxu0 %v6573
    %v6764 = vpop.f32.mrf.mxu0
    %v6765 = vadd.f32 %v5176, %v6764
    %v6766 = vpop.f32.mrf.mxu0
    %v6767 = vpop.f32.mrf.mxu0
    %v6768 = vadd.f32 %v5179, %v6767
    %v6769 = vpop.f32.mrf.mxu0
    %6770 = vmatprep.mubr.bf16.mxu0 0
    %6771 = vmatmul.mubr.bf16.gmra.mxu0 %v6574
    %v6772 = vpop.f32.mrf.mxu0
    %v6773 = vadd.f32 %v5184, %v6772
    %v6774 = vpop.f32.mrf.mxu0
    %v6775 = vpop.f32.mrf.mxu0
    %v6776 = vadd.f32 %v5187, %v6775
    %v6777 = vpop.f32.mrf.mxu0
    %6778 = vmatprep.mubr.bf16.mxu0 0
    %6779 = vmatmul.mubr.bf16.gmra.mxu0 %v6575
    %v6780 = vpop.f32.mrf.mxu0
    %v6781 = vadd.f32 %v5192, %v6780
    %v6782 = vpop.f32.mrf.mxu0
    %v6783 = vpop.f32.mrf.mxu0
    %v6784 = vadd.f32 %v5195, %v6783
    %v6785 = vpop.f32.mrf.mxu0
    %6786 = vmatprep.mubr.bf16.mxu0 0
    %6787 = vmatmul.mubr.bf16.gmra.mxu0 %v6576
    %v6788 = vpop.f32.mrf.mxu0
    %v6789 = vadd.f32 %v5200, %v6788
    %v6790 = vpop.f32.mrf.mxu0
    %v6791 = vpop.f32.mrf.mxu0
    %v6792 = vadd.f32 %v5203, %v6791
    %v6793 = vpop.f32.mrf.mxu0
    %6794 = vmatprep.mubr.bf16.mxu0 0
    %6795 = vmatmul.mubr.bf16.gmra.mxu0 %v6577
    %v6796 = vpop.f32.mrf.mxu0
    %v6797 = vadd.f32 %v5208, %v6796
    %v6798 = vpop.f32.mrf.mxu0
    %v6799 = vpop.f32.mrf.mxu0
    %v6800 = vadd.f32 %v5211, %v6799
    %v6801 = vpop.f32.mrf.mxu0
    %6802 = vdwg.mxu0
    %v6803 = vld [vmem:[%s13] sm:$0x1]
    %v6805 = vlaneseq
    %v6806 = vshrl.u32 %v6805, 7
    %v6807 = vsub.s32 0, %v6806
    %v6808 = vrot.slane %v6803, %v6807
    %v6810 = vadd.f32 %v6677, %v6808
    %v6811 = vadd.f32 %v6680, %v6808
    %v6812 = vadd.f32 %v6685, %v6808
    %v6813 = vadd.f32 %v6688, %v6808
    %v6814 = vadd.f32 %v6693, %v6808
    %v6815 = vadd.f32 %v6696, %v6808
    %v6816 = vadd.f32 %v6701, %v6808
    %v6817 = vadd.f32 %v6704, %v6808
    %v6818 = vadd.f32 %v6709, %v6808
    %v6819 = vadd.f32 %v6712, %v6808
    %v6820 = vadd.f32 %v6717, %v6808
    %v6821 = vadd.f32 %v6720, %v6808
    %v6822 = vadd.f32 %v6725, %v6808
    %v6823 = vadd.f32 %v6728, %v6808
    %v6824 = vadd.f32 %v6733, %v6808
    %v6825 = vadd.f32 %v6736, %v6808
    %v6826 = vadd.f32 %v6741, %v6808
    %v6827 = vadd.f32 %v6744, %v6808
    %v6828 = vadd.f32 %v6749, %v6808
    %v6829 = vadd.f32 %v6752, %v6808
    %v6830 = vadd.f32 %v6757, %v6808
    %v6831 = vadd.f32 %v6760, %v6808
    %v6832 = vadd.f32 %v6765, %v6808
    %v6833 = vadd.f32 %v6768, %v6808
    %v6834 = vadd.f32 %v6773, %v6808
    %v6835 = vadd.f32 %v6776, %v6808
    %v6836 = vadd.f32 %v6781, %v6808
    %v6837 = vadd.f32 %v6784, %v6808
    %v6838 = vadd.f32 %v6789, %v6808
    %v6839 = vadd.f32 %v6792, %v6808
    %v6840 = vadd.f32 %v6797, %v6808
    %v6841 = vadd.f32 %v6800, %v6808
    %6842 = vst [vmem:[%s14] sm:$0xff] %v6810
    %6843 = vst [vmem:[%s14 + $0x8] sm:$0xff] %v6811
    %6844 = vst [vmem:[%s14 + $0x10] sm:$0xff] %v6812
    %6845 = vst [vmem:[%s14 + $0x18] sm:$0xff] %v6813
    %6846 = vst [vmem:[%s14 + $0x20] sm:$0xff] %v6814
    %6847 = vst [vmem:[%s14 + $0x28] sm:$0xff] %v6815
    %6848 = vst [vmem:[%s14 + $0x30] sm:$0xff] %v6816
    %6849 = vst [vmem:[%s14 + $0x38] sm:$0xff] %v6817
    %6850 = vst [vmem:[%s14 + $0x40] sm:$0xff] %v6818
    %6851 = vst [vmem:[%s14 + $0x48] sm:$0xff] %v6819
    %6852 = vst [vmem:[%s14 + $0x50] sm:$0xff] %v6820
    %6853 = vst [vmem:[%s14 + $0x58] sm:$0xff] %v6821
    %6854 = vst [vmem:[%s14 + $0x60] sm:$0xff] %v6822
    %6855 = vst [vmem:[%s14 + $0x68] sm:$0xff] %v6823
    %6856 = vst [vmem:[%s14 + $0x70] sm:$0xff] %v6824
    %6857 = vst [vmem:[%s14 + $0x78] sm:$0xff] %v6825
    %6858 = vst [vmem:[%s14 + $0x80] sm:$0xff] %v6826
    %6859 = vst [vmem:[%s14 + $0x88] sm:$0xff] %v6827
    %6860 = vst [vmem:[%s14 + $0x90] sm:$0xff] %v6828
    %6861 = vst [vmem:[%s14 + $0x98] sm:$0xff] %v6829
    %6862 = vst [vmem:[%s14 + $0xa0] sm:$0xff] %v6830
    %6863 = vst [vmem:[%s14 + $0xa8] sm:$0xff] %v6831
    %6864 = vst [vmem:[%s14 + $0xb0] sm:$0xff] %v6832
    %6865 = vst [vmem:[%s14 + $0xb8] sm:$0xff] %v6833
    %6866 = vst [vmem:[%s14 + $0xc0] sm:$0xff] %v6834
    %6867 = vst [vmem:[%s14 + $0xc8] sm:$0xff] %v6835
    %6868 = vst [vmem:[%s14 + $0xd0] sm:$0xff] %v6836
    %6869 = vst [vmem:[%s14 + $0xd8] sm:$0xff] %v6837
    %6870 = vst [vmem:[%s14 + $0xe0] sm:$0xff] %v6838
    %6871 = vst [vmem:[%s14 + $0xe8] sm:$0xff] %v6839
    %6872 = vst [vmem:[%s14 + $0xf0] sm:$0xff] %v6840
    %6873 = vst [vmem:[%s14 + $0xf8] sm:$0xff] %v6841
    // Predicated region
    $region62: #{nerf_forward_pallas.1} parent=1 // pred_check
      _
    $region63: #{nerf_forward_pallas.1} parent=1 // pred_check_branch
      %6875 = sbr.rel (0) target = $region65
    $region64: #{nerf_forward_pallas.1} parent=1 // pred_region
      _
    $region65: #{nerf_forward_pallas.1} parent=1 // pred_fallthru
      _
    // Predicated region
    $region66: #{nerf_forward_pallas.1} parent=1 // pred_check
      _
    $region67: #{nerf_forward_pallas.1} parent=1 // pred_check_branch
      %6877 = sbr.rel (0) target = $region69
    $region68: #{nerf_forward_pallas.1} parent=1 // pred_region
      _
    $region69: #{nerf_forward_pallas.1} parent=1 // pred_fallthru
      _
    %6878 = vsyncpa [#allocation3], 1

</llo_original>
